<compile_context>
chip_gen: v7x
topology: tpu7x:2x2x1
jax: 0.10.0
libtpu: 0.0.40
codegen_flags: <defaults>
</compile_context>

<pallas_src>
import numpy as np
import jax
import jax.numpy as jnp
from jax import lax
from jax.experimental import pallas as pl
from jax.experimental.pallas import tpu as pltpu

LANES = 128


def _round_up(x, m):
    return ((x + m - 1) // m) * m


def _pick_row_tiles(mp, max_tm=1024):
    """>=2 even tiles when possible (v7x megacore), block rows capped."""
    nt = max(2, pl.cdiv(mp, max_tm))
    nt += nt % 2
    tm = _round_up(pl.cdiv(mp, nt), 8)
    return tm, nt


def _pick_batch_tiles(n):
    """Batch tile: multiple of 16 rows (bf16 sublane packing), capped at 64."""
    if n <= 64:
        return _round_up(n, 16), 1
    tn = 64
    return tn, pl.cdiv(n, tn)


def _sigmoid(x):
    # One EUP transcendental per element; the mul/add ride the idle VALU slot.
    return 0.5 * jnp.tanh(0.5 * x) + 0.5


# ----------------------------------------------------------------------------
# Kernel 1: conv1 (im2col matmul) + bias + sigmoid + 2x2 average pool.
#   p_ref : (4, TM, Kp) bf16  leading axis = pool-window position,
#                             rows of each slab = (n, hp, wp) output positions
#   w_ref : (Kp, 128)   bf16  conv weight, zero-padded to 128 output lanes
#   b_ref : (1, 128)    f32
#   o_ref : (TM, 128)   bf16  pooled sigmoid activations (lane-dense store)
# ----------------------------------------------------------------------------
def conv_sig_pool_kernel(p_ref, w_ref, b_ref, o_ref):
    w = w_ref[...]
    b = b_ref[...]
    acc = None
    for t in range(4):                      # 4 pool-window positions
        y = jnp.dot(p_ref[t], w, preferred_element_type=jnp.float32)
        s = _sigmoid(y + b)
        acc = s if acc is None else acc + s
    o_ref[...] = (0.25 * acc).astype(o_ref.dtype)


# ----------------------------------------------------------------------------
# Kernel 2: conv2 + sigmoid + pool + FC1 + sigmoid + FC2 + sigmoid + FC3.
#   p_ref  : (4*S, TN, Kp) bf16  rows ordered (pool position t, spatial s, n)
#   wc_ref : (Kp, 128) bf16,  bc_ref : (1, 128) f32      conv2 weight / bias
#   w1_ref : (S, 128, 128) bf16, b1_ref : (1, 128) f32   FC1 per spatial pos
#   w2_ref/w3_ref : (128, 128) bf16, b2_ref/b3_ref : (1, 128) f32
#   o_ref  : (TN, 128) f32   logits (first 10 lanes real)
# ----------------------------------------------------------------------------
def conv2_mlp_kernel(p_ref, wc_ref, bc_ref, w1_ref, b1_ref,
                     w2_ref, b2_ref, w3_ref, b3_ref, o_ref):
    ts, tn, kp = p_ref.shape
    ns = ts // 4                             # pooled spatial positions (25)

    # conv2 for every (pool position, spatial position, batch row) in one
    # stacked MXU matmul; leading-dim merge is tile-aligned (tn % 16 == 0).
    p = p_ref[...].reshape(ts * tn, kp)
    y = jnp.dot(p, wc_ref[...], preferred_element_type=jnp.float32)
    s = _sigmoid(y + bc_ref[...])            # (4*ns*tn, 128) f32

    # 2x2 average pool = mean over the 4 pool-position row groups.
    m = ns * tn
    pooled = (0.25 * (s[0:m] + s[m:2 * m] + s[2 * m:3 * m] + s[3 * m:4 * m]))
    pooled = pooled.astype(jnp.bfloat16)     # (ns*tn, 128), rows = (s, n)

    # Fused FC1: contract over (spatial position, channel lane).  Lanes >= 16
    # hold sigmoid(0)=0.5 padding garbage but their FC1 weight rows are zero.
    h = jnp.zeros((tn, LANES), jnp.float32)
    for si in range(ns):
        h = h + jnp.dot(pooled[si * tn:(si + 1) * tn], w1_ref[si],
                        preferred_element_type=jnp.float32)
    h = _sigmoid(h + b1_ref[...])
    h = _sigmoid(jnp.dot(h.astype(jnp.bfloat16), w2_ref[...],
                         preferred_element_type=jnp.float32) + b2_ref[...])
    o_ref[...] = jnp.dot(h.astype(jnp.bfloat16), w3_ref[...],
                         preferred_element_type=jnp.float32) + b3_ref[...]


# ----------------------------------------------------------------------------
# Wrappers (XLA glue: im2col, zero padding, one-time weight repacking)
# ----------------------------------------------------------------------------
def conv1_sigmoid_pool(x, w, b):
    """x: (N,1,28,28) f32 NCHW -> (N,14,14,6) bf16 NHWC."""
    N, cin, H, _ = x.shape
    cout, _, k, _ = w.shape
    K = cin * k * k                      # 25
    Kp = _round_up(K, 8)                 # 32: Mosaic pads lanes in-vreg
    Ho = H + 2 * 2 - k + 1               # padding=2 -> 28
    Hp = Ho // 2                         # 14
    Mp = N * Hp * Hp

    x_nhwc = x.transpose(0, 2, 3, 1)
    patches = lax.conv_general_dilated_patches(
        x_nhwc, (k, k), (1, 1), ((2, 2), (2, 2)),
        dimension_numbers=("NHWC", "HWIO", "NHWC"))   # (N, 28, 28, 25)
    patches = patches.astype(jnp.bfloat16)

    # Group rows by pool-window position: (4, Mp, K); rows = (n, hp, wp).
    P = patches.reshape(N, Hp, 2, Hp, 2, K).transpose(2, 4, 0, 1, 3, 5)
    P = P.reshape(4, Mp, K)

    tm, nt = _pick_row_tiles(Mp)
    Mpad = nt * tm
    P = jnp.pad(P, ((0, 0), (0, Mpad - Mp), (0, Kp - K)))

    wm = jnp.zeros((Kp, LANES), jnp.float32).at[:K, :cout].set(
        w.reshape(cout, K).T).astype(jnp.bfloat16)
    bm = jnp.zeros((1, LANES), jnp.float32).at[0, :cout].set(b)

    out = pl.pallas_call(
        conv_sig_pool_kernel,
        out_shape=jax.ShapeDtypeStruct((Mpad, LANES), jnp.bfloat16),
        grid=(nt,),
        in_specs=[pl.BlockSpec((4, tm, Kp), lambda i: (0, i, 0)),
                  pl.BlockSpec((Kp, LANES), lambda i: (0, 0)),
                  pl.BlockSpec((1, LANES), lambda i: (0, 0))],
        out_specs=pl.BlockSpec((tm, LANES), lambda i: (i, 0)),
        compiler_params=pltpu.CompilerParams(
            dimension_semantics=("parallel",)),
    )(P, wm, bm)

    return out[:Mp, :cout].reshape(N, Hp, Hp, cout)   # NHWC bf16


def conv2_mlp_head(h, c2w, c2b, f1w, f1b, f2w, f2b, f3w, f3b):
    """h: (N,14,14,6) bf16 NHWC -> (N,10) f32 logits."""
    N = h.shape[0]
    cout, cin, k, _ = c2w.shape           # 16, 6, 5
    K = cin * k * k                       # 150
    Kp = _round_up(K, LANES)              # 256
    Ho = h.shape[1] - k + 1               # 10
    Hp = Ho // 2                          # 5
    S = Hp * Hp                           # 25
    H1, H2, O = f1w.shape[1], f2w.shape[1], f3w.shape[1]

    patches = lax.conv_general_dilated_patches(
        h, (k, k), (1, 1), ((0, 0), (0, 0)),
        dimension_numbers=("NHWC", "HWIO", "NHWC"))   # (N, 10, 10, 150) bf16

    # (pool position t, pooled spatial s, batch n, K)
    P = patches.reshape(N, Hp, 2, Hp, 2, K).transpose(2, 4, 1, 3, 0, 5)
    P = P.reshape(4 * S, N, K)

    tn, nb = _pick_batch_tiles(N)
    Npad = tn * nb
    P = jnp.pad(P, ((0, 0), (0, Npad - N), (0, Kp - K)))

    wc = jnp.zeros((Kp, LANES), jnp.float32).at[:K, :cout].set(
        c2w.reshape(cout, K).T).astype(jnp.bfloat16)
    bc = jnp.zeros((1, LANES), jnp.float32).at[0, :cout].set(c2b)

    # FC1 weights regrouped per pooled spatial position.  PyTorch flatten
    # order of (N,16,5,5) is (c, hp, wp); kernel contracts (s=(hp,wp), c).
    w1s = f1w.reshape(cout, Hp, Hp, H1).transpose(1, 2, 0, 3).reshape(S, cout, H1)
    w1 = jnp.zeros((S, LANES, LANES), jnp.float32).at[:, :cout, :H1].set(
        w1s).astype(jnp.bfloat16)
    b1 = jnp.zeros((1, LANES), jnp.float32).at[0, :H1].set(f1b)
    w2 = jnp.zeros((LANES, LANES), jnp.float32).at[:H1, :H2].set(f2w).astype(jnp.bfloat16)
    b2 = jnp.zeros((1, LANES), jnp.float32).at[0, :H2].set(f2b)
    w3 = jnp.zeros((LANES, LANES), jnp.float32).at[:H2, :O].set(f3w).astype(jnp.bfloat16)
    b3 = jnp.zeros((1, LANES), jnp.float32).at[0, :O].set(f3b)

    out = pl.pallas_call(
        conv2_mlp_kernel,
        out_shape=jax.ShapeDtypeStruct((Npad, LANES), jnp.float32),
        grid=(nb,),
        in_specs=[pl.BlockSpec((4 * S, tn, Kp), lambda i: (0, i, 0)),
                  pl.BlockSpec((Kp, LANES), lambda i: (0, 0)),
                  pl.BlockSpec((1, LANES), lambda i: (0, 0)),
                  pl.BlockSpec((S, LANES, LANES), lambda i: (0, 0, 0)),
                  pl.BlockSpec((1, LANES), lambda i: (0, 0)),
                  pl.BlockSpec((LANES, LANES), lambda i: (0, 0)),
                  pl.BlockSpec((1, LANES), lambda i: (0, 0)),
                  pl.BlockSpec((LANES, LANES), lambda i: (0, 0)),
                  pl.BlockSpec((1, LANES), lambda i: (0, 0))],
        out_specs=pl.BlockSpec((tn, LANES), lambda i: (i, 0)),
        compiler_params=pltpu.CompilerParams(
            dimension_semantics=("parallel",)),
    )(P, wc, bc, w1, b1, w2, b2, w3, b3)
    return out[:N, :O]


def lenet5_forward(x, params):
    c1w, c1b, c2w, c2b, f1w, f1b, f2w, f2b, f3w, f3b = params
    h = conv1_sigmoid_pool(x, c1w, c1b)                       # (N,14,14,6) bf16
    return conv2_mlp_head(h, c2w, c2b, f1w, f1b, f2w, f2b, f3w, f3b)  # (N,10)


# ----------------------------------------------------------------------------
# Deterministic parameter init (shapes from the PyTorch module __init__)
# ----------------------------------------------------------------------------
def init_params(key):
    ks = jax.random.split(key, 10)

    def u(k, shape, fan_in):
        bound = 1.0 / np.sqrt(fan_in)
        return jax.random.uniform(k, shape, jnp.float32, -bound, bound)

    c1w = u(ks[0], (6, 1, 5, 5), 25);    c1b = u(ks[1], (6,), 25)
    c2w = u(ks[2], (16, 6, 5, 5), 150);  c2b = u(ks[3], (16,), 150)
    f1w = u(ks[4], (400, 120), 400);     f1b = u(ks[5], (120,), 400)
    f2w = u(ks[6], (120, 84), 120);      f2b = u(ks[7], (84,), 120)
    f3w = u(ks[8], (84, 10), 84);        f3b = u(ks[9], (10,), 84)
    return (c1w, c1b, c2w, c2b, f1w, f1b, f2w, f2b, f3w, f3b)


# ----------------------------------------------------------------------------
# Pure-JAX f32 reference (same math via lax.conv) for a correctness check
# ----------------------------------------------------------------------------
def ref_forward(x, params):
    c1w, c1b, c2w, c2b, f1w, f1b, f2w, f2b, f3w, f3b = params

    def conv(x, w, b, pad):
        y = lax.conv_general_dilated(
            x, w, (1, 1), ((pad, pad), (pad, pad)),
            dimension_numbers=("NCHW", "OIHW", "NCHW"))
        return y + b[None, :, None, None]

    def pool(y):
        N, C, H, W = y.shape
        return y.reshape(N, C, H // 2, 2, W // 2, 2).mean(axis=(3, 5))

    h = pool(jax.nn.sigmoid(conv(x, c1w, c1b, 2)))
    h = pool(jax.nn.sigmoid(conv(h, c2w, c2b, 0)))
    flat = h.reshape(h.shape[0], -1)
    h = jax.nn.sigmoid(flat @ f1w + f1b)
    h = jax.nn.sigmoid(h @ f2w + f2b)
    return h @ f3w + f3b


if __name__ == "__main__":
    key = jax.random.PRNGKey(0)
    kx, kp = jax.random.split(key)
    # LeNet5's Linear(16*5*5, 120) fixes the input spatial size to 28x28.
    x = jax.random.normal(kx, (2, 1, 28, 28), dtype=jnp.float32)
    params = init_params(kp)

    out = jax.block_until_ready(jax.jit(lenet5_forward)(x, params))

    ref = ref_forward(x, params)
    assert out.shape == (2, 10)
    # bf16 matmul operands / bf16 inter-layer activations -> relaxed tolerance.
    np.testing.assert_allclose(np.asarray(out), np.asarray(ref),
                               rtol=3e-2, atol=3e-2)
    print("KERNEL_OK")
</pallas_src>

<mosaic_0001>
module attributes {stable_mosaic.version = 11 : i64} {
  func.func @conv_sig_pool_kernel(%arg0: i32, %arg1: memref<4x200x32xbf16, #tpu.memory_space<vmem>>, %arg2: memref<32x128xbf16, #tpu.memory_space<vmem>>, %arg3: memref<1x128xf32, #tpu.memory_space<vmem>>, %arg4: memref<200x128xbf16, #tpu.memory_space<vmem>>) attributes {dimension_semantics = [#tpu.dimension_semantics<parallel>], iteration_bounds = array<i64: 2>, scalar_prefetch = 0 : i64, scratch_operands = 0 : i64, tpu.core_type = #tpu.core_type<tc>, window_params = [{transform_indices = @transform_0, window_bounds = array<i64: 4, 200, 32>}, {pipeline_mode = #tpu.pipeline_mode<synchronous>, transform_indices = @transform_1, window_bounds = array<i64: 32, 128>}, {pipeline_mode = #tpu.pipeline_mode<synchronous>, transform_indices = @transform_2, window_bounds = array<i64: 1, 128>}, {transform_indices = @transform_3, window_bounds = array<i64: 200, 128>}]} {
    %c0 = arith.constant 0 : index
    %c0_0 = arith.constant 0 : index
    %0 = vector.load %arg2[%c0, %c0_0] : memref<32x128xbf16, #tpu.memory_space<vmem>>, vector<32x128xbf16>
    %c0_1 = arith.constant 0 : index
    %c0_2 = arith.constant 0 : index
    %1 = vector.load %arg3[%c0_1, %c0_2] : memref<1x128xf32, #tpu.memory_space<vmem>>, vector<1x128xf32>
    %c0_3 = arith.constant 0 : index
    %c0_4 = arith.constant 0 : index
    %c0_5 = arith.constant 0 : index
    %2 = vector.load %arg1[%c0_3, %c0_4, %c0_5] : memref<4x200x32xbf16, #tpu.memory_space<vmem>>, vector<1x200x32xbf16>
    %3 = vector.shape_cast %2 : vector<1x200x32xbf16> to vector<200x32xbf16>
    %cst = arith.constant dense<0.000000e+00> : vector<200x128xf32>
    %4 = tpu.matmul %3, %0, %cst {dimension_numbers = #tpu.dot_dimension_numbers<[1], [0], [0], [1], [0, 0, 1, 1], [], []>} : vector<200x32xbf16>, vector<32x128xbf16>, vector<200x128xf32> -> vector<200x128xf32>
    %5 = vector.broadcast %1 : vector<1x128xf32> to vector<200x128xf32>
    %6 = arith.addf %4, %5 : vector<200x128xf32>
    %cst_6 = arith.constant 5.000000e-01 : f32
    %7 = vector.broadcast %cst_6 : f32 to vector<200x128xf32>
    %8 = arith.mulf %7, %6 : vector<200x128xf32>
    %9 = math.tanh %8 : vector<200x128xf32>
    %cst_7 = arith.constant 5.000000e-01 : f32
    %10 = vector.broadcast %cst_7 : f32 to vector<200x128xf32>
    %11 = arith.mulf %10, %9 : vector<200x128xf32>
    %cst_8 = arith.constant 5.000000e-01 : f32
    %12 = vector.broadcast %cst_8 : f32 to vector<200x128xf32>
    %13 = arith.addf %11, %12 : vector<200x128xf32>
    %c1 = arith.constant 1 : index
    %c0_9 = arith.constant 0 : index
    %c0_10 = arith.constant 0 : index
    %14 = vector.load %arg1[%c1, %c0_9, %c0_10] : memref<4x200x32xbf16, #tpu.memory_space<vmem>>, vector<1x200x32xbf16>
    %15 = vector.shape_cast %14 : vector<1x200x32xbf16> to vector<200x32xbf16>
    %cst_11 = arith.constant dense<0.000000e+00> : vector<200x128xf32>
    %16 = tpu.matmul %15, %0, %cst_11 {dimension_numbers = #tpu.dot_dimension_numbers<[1], [0], [0], [1], [0, 0, 1, 1], [], []>} : vector<200x32xbf16>, vector<32x128xbf16>, vector<200x128xf32> -> vector<200x128xf32>
    %17 = vector.broadcast %1 : vector<1x128xf32> to vector<200x128xf32>
    %18 = arith.addf %16, %17 : vector<200x128xf32>
    %cst_12 = arith.constant 5.000000e-01 : f32
    %19 = vector.broadcast %cst_12 : f32 to vector<200x128xf32>
    %20 = arith.mulf %19, %18 : vector<200x128xf32>
    %21 = math.tanh %20 : vector<200x128xf32>
    %cst_13 = arith.constant 5.000000e-01 : f32
    %22 = vector.broadcast %cst_13 : f32 to vector<200x128xf32>
    %23 = arith.mulf %22, %21 : vector<200x128xf32>
    %cst_14 = arith.constant 5.000000e-01 : f32
    %24 = vector.broadcast %cst_14 : f32 to vector<200x128xf32>
    %25 = arith.addf %23, %24 : vector<200x128xf32>
    %26 = arith.addf %13, %25 : vector<200x128xf32>
    %c2 = arith.constant 2 : index
    %c0_15 = arith.constant 0 : index
    %c0_16 = arith.constant 0 : index
    %27 = vector.load %arg1[%c2, %c0_15, %c0_16] : memref<4x200x32xbf16, #tpu.memory_space<vmem>>, vector<1x200x32xbf16>
    %28 = vector.shape_cast %27 : vector<1x200x32xbf16> to vector<200x32xbf16>
    %cst_17 = arith.constant dense<0.000000e+00> : vector<200x128xf32>
    %29 = tpu.matmul %28, %0, %cst_17 {dimension_numbers = #tpu.dot_dimension_numbers<[1], [0], [0], [1], [0, 0, 1, 1], [], []>} : vector<200x32xbf16>, vector<32x128xbf16>, vector<200x128xf32> -> vector<200x128xf32>
    %30 = vector.broadcast %1 : vector<1x128xf32> to vector<200x128xf32>
    %31 = arith.addf %29, %30 : vector<200x128xf32>
    %cst_18 = arith.constant 5.000000e-01 : f32
    %32 = vector.broadcast %cst_18 : f32 to vector<200x128xf32>
    %33 = arith.mulf %32, %31 : vector<200x128xf32>
    %34 = math.tanh %33 : vector<200x128xf32>
    %cst_19 = arith.constant 5.000000e-01 : f32
    %35 = vector.broadcast %cst_19 : f32 to vector<200x128xf32>
    %36 = arith.mulf %35, %34 : vector<200x128xf32>
    %cst_20 = arith.constant 5.000000e-01 : f32
    %37 = vector.broadcast %cst_20 : f32 to vector<200x128xf32>
    %38 = arith.addf %36, %37 : vector<200x128xf32>
    %39 = arith.addf %26, %38 : vector<200x128xf32>
    %c3 = arith.constant 3 : index
    %c0_21 = arith.constant 0 : index
    %c0_22 = arith.constant 0 : index
    %40 = vector.load %arg1[%c3, %c0_21, %c0_22] : memref<4x200x32xbf16, #tpu.memory_space<vmem>>, vector<1x200x32xbf16>
    %41 = vector.shape_cast %40 : vector<1x200x32xbf16> to vector<200x32xbf16>
    %cst_23 = arith.constant dense<0.000000e+00> : vector<200x128xf32>
    %42 = tpu.matmul %41, %0, %cst_23 {dimension_numbers = #tpu.dot_dimension_numbers<[1], [0], [0], [1], [0, 0, 1, 1], [], []>} : vector<200x32xbf16>, vector<32x128xbf16>, vector<200x128xf32> -> vector<200x128xf32>
    %43 = vector.broadcast %1 : vector<1x128xf32> to vector<200x128xf32>
    %44 = arith.addf %42, %43 : vector<200x128xf32>
    %cst_24 = arith.constant 5.000000e-01 : f32
    %45 = vector.broadcast %cst_24 : f32 to vector<200x128xf32>
    %46 = arith.mulf %45, %44 : vector<200x128xf32>
    %47 = math.tanh %46 : vector<200x128xf32>
    %cst_25 = arith.constant 5.000000e-01 : f32
    %48 = vector.broadcast %cst_25 : f32 to vector<200x128xf32>
    %49 = arith.mulf %48, %47 : vector<200x128xf32>
    %cst_26 = arith.constant 5.000000e-01 : f32
    %50 = vector.broadcast %cst_26 : f32 to vector<200x128xf32>
    %51 = arith.addf %49, %50 : vector<200x128xf32>
    %52 = arith.addf %39, %51 : vector<200x128xf32>
    %cst_27 = arith.constant 2.500000e-01 : f32
    %53 = vector.broadcast %cst_27 : f32 to vector<200x128xf32>
    %54 = arith.mulf %53, %52 : vector<200x128xf32>
    %55 = arith.truncf %54 : vector<200x128xf32> to vector<200x128xbf16>
    %c0_28 = arith.constant 0 : index
    %c0_29 = arith.constant 0 : index
    %56 = vector.load %arg4[%c0_28, %c0_29] : memref<200x128xbf16, #tpu.memory_space<vmem>>, vector<200x128xbf16>
    tpu.vector_store %arg4[%c0_28, %c0_29], %55 {strides = array<i32>} : memref<200x128xbf16, #tpu.memory_space<vmem>>, vector<200x128xbf16>,
    return
  }
  func.func @transform_0(%arg0: i32) -> (i32, i32, i32) {
    %c0_i32 = arith.constant 0 : i32
    %c0_i32_0 = arith.constant 0 : i32
    %c0_i32_1 = arith.constant 0 : i32
    return %c0_i32, %arg0, %c0_i32_0 : i32, i32, i32
  }
  func.func @transform_1(%arg0: i32) -> (i32, i32) {
    %c0_i32 = arith.constant 0 : i32
    %c0_i32_0 = arith.constant 0 : i32
    %c0_i32_1 = arith.constant 0 : i32
    return %c0_i32, %c0_i32_0 : i32, i32
  }
  func.func @transform_2(%arg0: i32) -> (i32, i32) {
    %c0_i32 = arith.constant 0 : i32
    %c0_i32_0 = arith.constant 0 : i32
    %c0_i32_1 = arith.constant 0 : i32
    return %c0_i32, %c0_i32_0 : i32, i32
  }
  func.func @transform_3(%arg0: i32) -> (i32, i32) {
    %c0_i32 = arith.constant 0 : i32
    %c0_i32_0 = arith.constant 0 : i32
    return %arg0, %c0_i32 : i32, i32
  }
}

module attributes {stable_mosaic.version = 11 : i64} {
  func.func @conv2_mlp_kernel(%arg0: i32, %arg1: memref<100x16x256xbf16, #tpu.memory_space<vmem>>, %arg2: memref<256x128xbf16, #tpu.memory_space<vmem>>, %arg3: memref<1x128xf32, #tpu.memory_space<vmem>>, %arg4: memref<25x128x128xbf16, #tpu.memory_space<vmem>>, %arg5: memref<1x128xf32, #tpu.memory_space<vmem>>, %arg6: memref<128x128xbf16, #tpu.memory_space<vmem>>, %arg7: memref<1x128xf32, #tpu.memory_space<vmem>>, %arg8: memref<128x128xbf16, #tpu.memory_space<vmem>>, %arg9: memref<1x128xf32, #tpu.memory_space<vmem>>, %arg10: memref<16x128xf32, #tpu.memory_space<vmem>>) attributes {dimension_semantics = [#tpu.dimension_semantics<parallel>], iteration_bounds = array<i64: 1>, scalar_prefetch = 0 : i64, scratch_operands = 0 : i64, tpu.core_type = #tpu.core_type<tc>, window_params = [{transform_indices = @transform_0, window_bounds = array<i64: 100, 16, 256>}, {pipeline_mode = #tpu.pipeline_mode<synchronous>, transform_indices = @transform_1, window_bounds = array<i64: 256, 128>}, {pipeline_mode = #tpu.pipeline_mode<synchronous>, transform_indices = @transform_2, window_bounds = array<i64: 1, 128>}, {pipeline_mode = #tpu.pipeline_mode<synchronous>, transform_indices = @transform_3, window_bounds = array<i64: 25, 128, 128>}, {pipeline_mode = #tpu.pipeline_mode<synchronous>, transform_indices = @transform_4, window_bounds = array<i64: 1, 128>}, {pipeline_mode = #tpu.pipeline_mode<synchronous>, transform_indices = @transform_5, window_bounds = array<i64: 128, 128>}, {pipeline_mode = #tpu.pipeline_mode<synchronous>, transform_indices = @transform_6, window_bounds = array<i64: 1, 128>}, {pipeline_mode = #tpu.pipeline_mode<synchronous>, transform_indices = @transform_7, window_bounds = array<i64: 128, 128>}, {pipeline_mode = #tpu.pipeline_mode<synchronous>, transform_indices = @transform_8, window_bounds = array<i64: 1, 128>}, {transform_indices = @transform_9, window_bounds = array<i64: 16, 128>}]} {
    %c0 = arith.constant 0 : index
    %c0_0 = arith.constant 0 : index
    %c0_1 = arith.constant 0 : index
    %0 = vector.load %arg1[%c0, %c0_0, %c0_1] : memref<100x16x256xbf16, #tpu.memory_space<vmem>>, vector<100x16x256xbf16>
    %1 = vector.shape_cast %0 : vector<100x16x256xbf16> to vector<1600x256xbf16>
    %c0_2 = arith.constant 0 : index
    %c0_3 = arith.constant 0 : index
    %2 = vector.load %arg2[%c0_2, %c0_3] : memref<256x128xbf16, #tpu.memory_space<vmem>>, vector<256x128xbf16>
    %cst = arith.constant dense<0.000000e+00> : vector<1600x128xf32>
    %3 = tpu.matmul %1, %2, %cst {dimension_numbers = #tpu.dot_dimension_numbers<[1], [0], [0], [1], [0, 0, 1, 1], [], []>} : vector<1600x256xbf16>, vector<256x128xbf16>, vector<1600x128xf32> -> vector<1600x128xf32>
    %c0_4 = arith.constant 0 : index
    %c0_5 = arith.constant 0 : index
    %4 = vector.load %arg3[%c0_4, %c0_5] : memref<1x128xf32, #tpu.memory_space<vmem>>, vector<1x128xf32>
    %5 = vector.broadcast %4 : vector<1x128xf32> to vector<1600x128xf32>
    %6 = arith.addf %3, %5 : vector<1600x128xf32>
    %cst_6 = arith.constant 5.000000e-01 : f32
    %7 = vector.broadcast %cst_6 : f32 to vector<1600x128xf32>
    %8 = arith.mulf %7, %6 : vector<1600x128xf32>
    %9 = math.tanh %8 : vector<1600x128xf32>
    %cst_7 = arith.constant 5.000000e-01 : f32
    %10 = vector.broadcast %cst_7 : f32 to vector<1600x128xf32>
    %11 = arith.mulf %10, %9 : vector<1600x128xf32>
    %cst_8 = arith.constant 5.000000e-01 : f32
    %12 = vector.broadcast %cst_8 : f32 to vector<1600x128xf32>
    %13 = arith.addf %11, %12 : vector<1600x128xf32>
    %14 = vector.extract_strided_slice %13 {offsets = [0, 0], sizes = [400, 128], strides = [1, 1]} : vector<1600x128xf32> to vector<400x128xf32>
    %15 = vector.extract_strided_slice %13 {offsets = [400, 0], sizes = [400, 128], strides = [1, 1]} : vector<1600x128xf32> to vector<400x128xf32>
    %16 = arith.addf %14, %15 : vector<400x128xf32>
    %17 = vector.extract_strided_slice %13 {offsets = [800, 0], sizes = [400, 128], strides = [1, 1]} : vector<1600x128xf32> to vector<400x128xf32>
    %18 = arith.addf %16, %17 : vector<400x128xf32>
    %19 = vector.extract_strided_slice %13 {offsets = [1200, 0], sizes = [400, 128], strides = [1, 1]} : vector<1600x128xf32> to vector<400x128xf32>
    %20 = arith.addf %18, %19 : vector<400x128xf32>
    %cst_9 = arith.constant 2.500000e-01 : f32
    %21 = vector.broadcast %cst_9 : f32 to vector<400x128xf32>
    %22 = arith.mulf %21, %20 : vector<400x128xf32>
    %23 = arith.truncf %22 : vector<400x128xf32> to vector<400x128xbf16>
    %cst_10 = arith.constant 0.000000e+00 : f32
    %24 = vector.broadcast %cst_10 : f32 to vector<16x128xf32>
    %25 = vector.extract_strided_slice %23 {offsets = [0, 0], sizes = [16, 128], strides = [1, 1]} : vector<400x128xbf16> to vector<16x128xbf16>
    %c0_11 = arith.constant 0 : index
    %c0_12 = arith.constant 0 : index
    %c0_13 = arith.constant 0 : index
    %26 = vector.load %arg4[%c0_11, %c0_12, %c0_13] : memref<25x128x128xbf16, #tpu.memory_space<vmem>>, vector<1x128x128xbf16>
    %27 = vector.shape_cast %26 : vector<1x128x128xbf16> to vector<128x128xbf16>
    %cst_14 = arith.constant dense<0.000000e+00> : vector<16x128xf32>
    %28 = tpu.matmul %25, %27, %cst_14 {dimension_numbers = #tpu.dot_dimension_numbers<[1], [0], [0], [1], [0, 0, 1, 1], [], []>} : vector<16x128xbf16>, vector<128x128xbf16>, vector<16x128xf32> -> vector<16x128xf32>
    %29 = arith.addf %24, %28 : vector<16x128xf32>
    %30 = vector.extract_strided_slice %23 {offsets = [16, 0], sizes = [16, 128], strides = [1, 1]} : vector<400x128xbf16> to vector<16x128xbf16>
    %c1 = arith.constant 1 : index
    %c0_15 = arith.constant 0 : index
    %c0_16 = arith.constant 0 : index
    %31 = vector.load %arg4[%c1, %c0_15, %c0_16] : memref<25x128x128xbf16, #tpu.memory_space<vmem>>, vector<1x128x128xbf16>
    %32 = vector.shape_cast %31 : vector<1x128x128xbf16> to vector<128x128xbf16>
    %cst_17 = arith.constant dense<0.000000e+00> : vector<16x128xf32>
    %33 = tpu.matmul %30, %32, %cst_17 {dimension_numbers = #tpu.dot_dimension_numbers<[1], [0], [0], [1], [0, 0, 1, 1], [], []>} : vector<16x128xbf16>, vector<128x128xbf16>, vector<16x128xf32> -> vector<16x128xf32>
    %34 = arith.addf %29, %33 : vector<16x128xf32>
    %35 = vector.extract_strided_slice %23 {offsets = [32, 0], sizes = [16, 128], strides = [1, 1]} : vector<400x128xbf16> to vector<16x128xbf16>
    %c2 = arith.constant 2 : index
    %c0_18 = arith.constant 0 : index
    %c0_19 = arith.constant 0 : index
    %36 = vector.load %arg4[%c2, %c0_18, %c0_19] : memref<25x128x128xbf16, #tpu.memory_space<vmem>>, vector<1x128x128xbf16>
    %37 = vector.shape_cast %36 : vector<1x128x128xbf16> to vector<128x128xbf16>
    %cst_20 = arith.constant dense<0.000000e+00> : vector<16x128xf32>
    %38 = tpu.matmul %35, %37, %cst_20 {dimension_numbers = #tpu.dot_dimension_numbers<[1], [0], [0], [1], [0, 0, 1, 1], [], []>} : vector<16x128xbf16>, vector<128x128xbf16>, vector<16x128xf32> -> vector<16x128xf32>
    %39 = arith.addf %34, %38 : vector<16x128xf32>
    %40 = vector.extract_strided_slice %23 {offsets = [48, 0], sizes = [16, 128], strides = [1, 1]} : vector<400x128xbf16> to vector<16x128xbf16>
    %c3 = arith.constant 3 : index
    %c0_21 = arith.constant 0 : index
    %c0_22 = arith.constant 0 : index
    %41 = vector.load %arg4[%c3, %c0_21, %c0_22] : memref<25x128x128xbf16, #tpu.memory_space<vmem>>, vector<1x128x128xbf16>
    %42 = vector.shape_cast %41 : vector<1x128x128xbf16> to vector<128x128xbf16>
    %cst_23 = arith.constant dense<0.000000e+00> : vector<16x128xf32>
    %43 = tpu.matmul %40, %42, %cst_23 {dimension_numbers = #tpu.dot_dimension_numbers<[1], [0], [0], [1], [0, 0, 1, 1], [], []>} : vector<16x128xbf16>, vector<128x128xbf16>, vector<16x128xf32> -> vector<16x128xf32>
    %44 = arith.addf %39, %43 : vector<16x128xf32>
    %45 = vector.extract_strided_slice %23 {offsets = [64, 0], sizes = [16, 128], strides = [1, 1]} : vector<400x128xbf16> to vector<16x128xbf16>
    %c4 = arith.constant 4 : index
    %c0_24 = arith.constant 0 : index
    %c0_25 = arith.constant 0 : index
    %46 = vector.load %arg4[%c4, %c0_24, %c0_25] : memref<25x128x128xbf16, #tpu.memory_space<vmem>>, vector<1x128x128xbf16>
    %47 = vector.shape_cast %46 : vector<1x128x128xbf16> to vector<128x128xbf16>
    %cst_26 = arith.constant dense<0.000000e+00> : vector<16x128xf32>
    %48 = tpu.matmul %45, %47, %cst_26 {dimension_numbers = #tpu.dot_dimension_numbers<[1], [0], [0], [1], [0, 0, 1, 1], [], []>} : vector<16x128xbf16>, vector<128x128xbf16>, vector<16x128xf32> -> vector<16x128xf32>
    %49 = arith.addf %44, %48 : vector<16x128xf32>
    %50 = vector.extract_strided_slice %23 {offsets = [80, 0], sizes = [16, 128], strides = [1, 1]} : vector<400x128xbf16> to vector<16x128xbf16>
    %c5 = arith.constant 5 : index
    %c0_27 = arith.constant 0 : index
    %c0_28 = arith.constant 0 : index
    %51 = vector.load %arg4[%c5, %c0_27, %c0_28] : memref<25x128x128xbf16, #tpu.memory_space<vmem>>, vector<1x128x128xbf16>
    %52 = vector.shape_cast %51 : vector<1x128x128xbf16> to vector<128x128xbf16>
    %cst_29 = arith.constant dense<0.000000e+00> : vector<16x128xf32>
    %53 = tpu.matmul %50, %52, %cst_29 {dimension_numbers = #tpu.dot_dimension_numbers<[1], [0], [0], [1], [0, 0, 1, 1], [], []>} : vector<16x128xbf16>, vector<128x128xbf16>, vector<16x128xf32> -> vector<16x128xf32>
    %54 = arith.addf %49, %53 : vector<16x128xf32>
    %55 = vector.extract_strided_slice %23 {offsets = [96, 0], sizes = [16, 128], strides = [1, 1]} : vector<400x128xbf16> to vector<16x128xbf16>
    %c6 = arith.constant 6 : index
    %c0_30 = arith.constant 0 : index
    %c0_31 = arith.constant 0 : index
    %56 = vector.load %arg4[%c6, %c0_30, %c0_31] : memref<25x128x128xbf16, #tpu.memory_space<vmem>>, vector<1x128x128xbf16>
    %57 = vector.shape_cast %56 : vector<1x128x128xbf16> to vector<128x128xbf16>
    %cst_32 = arith.constant dense<0.000000e+00> : vector<16x128xf32>
    %58 = tpu.matmul %55, %57, %cst_32 {dimension_numbers = #tpu.dot_dimension_numbers<[1], [0], [0], [1], [0, 0, 1, 1], [], []>} : vector<16x128xbf16>, vector<128x128xbf16>, vector<16x128xf32> -> vector<16x128xf32>
    %59 = arith.addf %54, %58 : vector<16x128xf32>
    %60 = vector.extract_strided_slice %23 {offsets = [112, 0], sizes = [16, 128], strides = [1, 1]} : vector<400x128xbf16> to vector<16x128xbf16>
    %c7 = arith.constant 7 : index
    %c0_33 = arith.constant 0 : index
    %c0_34 = arith.constant 0 : index
    %61 = vector.load %arg4[%c7, %c0_33, %c0_34] : memref<25x128x128xbf16, #tpu.memory_space<vmem>>, vector<1x128x128xbf16>
    %62 = vector.shape_cast %61 : vector<1x128x128xbf16> to vector<128x128xbf16>
    %cst_35 = arith.constant dense<0.000000e+00> : vector<16x128xf32>
    %63 = tpu.matmul %60, %62, %cst_35 {dimension_numbers = #tpu.dot_dimension_numbers<[1], [0], [0], [1], [0, 0, 1, 1], [], []>} : vector<16x128xbf16>, vector<128x128xbf16>, vector<16x128xf32> -> vector<16x128xf32>
    %64 = arith.addf %59, %63 : vector<16x128xf32>
    %65 = vector.extract_strided_slice %23 {offsets = [128, 0], sizes = [16, 128], strides = [1, 1]} : vector<400x128xbf16> to vector<16x128xbf16>
    %c8 = arith.constant 8 : index
    %c0_36 = arith.constant 0 : index
    %c0_37 = arith.constant 0 : index
    %66 = vector.load %arg4[%c8, %c0_36, %c0_37] : memref<25x128x128xbf16, #tpu.memory_space<vmem>>, vector<1x128x128xbf16>
    %67 = vector.shape_cast %66 : vector<1x128x128xbf16> to vector<128x128xbf16>
    %cst_38 = arith.constant dense<0.000000e+00> : vector<16x128xf32>
    %68 = tpu.matmul %65, %67, %cst_38 {dimension_numbers = #tpu.dot_dimension_numbers<[1], [0], [0], [1], [0, 0, 1, 1], [], []>} : vector<16x128xbf16>, vector<128x128xbf16>, vector<16x128xf32> -> vector<16x128xf32>
    %69 = arith.addf %64, %68 : vector<16x128xf32>
    %70 = vector.extract_strided_slice %23 {offsets = [144, 0], sizes = [16, 128], strides = [1, 1]} : vector<400x128xbf16> to vector<16x128xbf16>
    %c9 = arith.constant 9 : index
    %c0_39 = arith.constant 0 : index
    %c0_40 = arith.constant 0 : index
    %71 = vector.load %arg4[%c9, %c0_39, %c0_40] : memref<25x128x128xbf16, #tpu.memory_space<vmem>>, vector<1x128x128xbf16>
    %72 = vector.shape_cast %71 : vector<1x128x128xbf16> to vector<128x128xbf16>
    %cst_41 = arith.constant dense<0.000000e+00> : vector<16x128xf32>
    %73 = tpu.matmul %70, %72, %cst_41 {dimension_numbers = #tpu.dot_dimension_numbers<[1], [0], [0], [1], [0, 0, 1, 1], [], []>} : vector<16x128xbf16>, vector<128x128xbf16>, vector<16x128xf32> -> vector<16x128xf32>
    %74 = arith.addf %69, %73 : vector<16x128xf32>
    %75 = vector.extract_strided_slice %23 {offsets = [160, 0], sizes = [16, 128], strides = [1, 1]} : vector<400x128xbf16> to vector<16x128xbf16>
    %c10 = arith.constant 10 : index
    %c0_42 = arith.constant 0 : index
    %c0_43 = arith.constant 0 : index
    %76 = vector.load %arg4[%c10, %c0_42, %c0_43] : memref<25x128x128xbf16, #tpu.memory_space<vmem>>, vector<1x128x128xbf16>
    %77 = vector.shape_cast %76 : vector<1x128x128xbf16> to vector<128x128xbf16>
    %cst_44 = arith.constant dense<0.000000e+00> : vector<16x128xf32>
    %78 = tpu.matmul %75, %77, %cst_44 {dimension_numbers = #tpu.dot_dimension_numbers<[1], [0], [0], [1], [0, 0, 1, 1], [], []>} : vector<16x128xbf16>, vector<128x128xbf16>, vector<16x128xf32> -> vector<16x128xf32>
    %79 = arith.addf %74, %78 : vector<16x128xf32>
    %80 = vector.extract_strided_slice %23 {offsets = [176, 0], sizes = [16, 128], strides = [1, 1]} : vector<400x128xbf16> to vector<16x128xbf16>
    %c11 = arith.constant 11 : index
    %c0_45 = arith.constant 0 : index
    %c0_46 = arith.constant 0 : index
    %81 = vector.load %arg4[%c11, %c0_45, %c0_46] : memref<25x128x128xbf16, #tpu.memory_space<vmem>>, vector<1x128x128xbf16>
    %82 = vector.shape_cast %81 : vector<1x128x128xbf16> to vector<128x128xbf16>
    %cst_47 = arith.constant dense<0.000000e+00> : vector<16x128xf32>
    %83 = tpu.matmul %80, %82, %cst_47 {dimension_numbers = #tpu.dot_dimension_numbers<[1], [0], [0], [1], [0, 0, 1, 1], [], []>} : vector<16x128xbf16>, vector<128x128xbf16>, vector<16x128xf32> -> vector<16x128xf32>
    %84 = arith.addf %79, %83 : vector<16x128xf32>
    %85 = vector.extract_strided_slice %23 {offsets = [192, 0], sizes = [16, 128], strides = [1, 1]} : vector<400x128xbf16> to vector<16x128xbf16>
    %c12 = arith.constant 12 : index
    %c0_48 = arith.constant 0 : index
    %c0_49 = arith.constant 0 : index
    %86 = vector.load %arg4[%c12, %c0_48, %c0_49] : memref<25x128x128xbf16, #tpu.memory_space<vmem>>, vector<1x128x128xbf16>
    %87 = vector.shape_cast %86 : vector<1x128x128xbf16> to vector<128x128xbf16>
    %cst_50 = arith.constant dense<0.000000e+00> : vector<16x128xf32>
    %88 = tpu.matmul %85, %87, %cst_50 {dimension_numbers = #tpu.dot_dimension_numbers<[1], [0], [0], [1], [0, 0, 1, 1], [], []>} : vector<16x128xbf16>, vector<128x128xbf16>, vector<16x128xf32> -> vector<16x128xf32>
    %89 = arith.addf %84, %88 : vector<16x128xf32>
    %90 = vector.extract_strided_slice %23 {offsets = [208, 0], sizes = [16, 128], strides = [1, 1]} : vector<400x128xbf16> to vector<16x128xbf16>
    %c13 = arith.constant 13 : index
    %c0_51 = arith.constant 0 : index
    %c0_52 = arith.constant 0 : index
    %91 = vector.load %arg4[%c13, %c0_51, %c0_52] : memref<25x128x128xbf16, #tpu.memory_space<vmem>>, vector<1x128x128xbf16>
    %92 = vector.shape_cast %91 : vector<1x128x128xbf16> to vector<128x128xbf16>
    %cst_53 = arith.constant dense<0.000000e+00> : vector<16x128xf32>
    %93 = tpu.matmul %90, %92, %cst_53 {dimension_numbers = #tpu.dot_dimension_numbers<[1], [0], [0], [1], [0, 0, 1, 1], [], []>} : vector<16x128xbf16>, vector<128x128xbf16>, vector<16x128xf32> -> vector<16x128xf32>
    %94 = arith.addf %89, %93 : vector<16x128xf32>
    %95 = vector.extract_strided_slice %23 {offsets = [224, 0], sizes = [16, 128], strides = [1, 1]} : vector<400x128xbf16> to vector<16x128xbf16>
    %c14 = arith.constant 14 : index
    %c0_54 = arith.constant 0 : index
    %c0_55 = arith.constant 0 : index
    %96 = vector.load %arg4[%c14, %c0_54, %c0_55] : memref<25x128x128xbf16, #tpu.memory_space<vmem>>, vector<1x128x128xbf16>
    %97 = vector.shape_cast %96 : vector<1x128x128xbf16> to vector<128x128xbf16>
    %cst_56 = arith.constant dense<0.000000e+00> : vector<16x128xf32>
    %98 = tpu.matmul %95, %97, %cst_56 {dimension_numbers = #tpu.dot_dimension_numbers<[1], [0], [0], [1], [0, 0, 1, 1], [], []>} : vector<16x128xbf16>, vector<128x128xbf16>, vector<16x128xf32> -> vector<16x128xf32>
    %99 = arith.addf %94, %98 : vector<16x128xf32>
    %100 = vector.extract_strided_slice %23 {offsets = [240, 0], sizes = [16, 128], strides = [1, 1]} : vector<400x128xbf16> to vector<16x128xbf16>
    %c15 = arith.constant 15 : index
    %c0_57 = arith.constant 0 : index
    %c0_58 = arith.constant 0 : index
    %101 = vector.load %arg4[%c15, %c0_57, %c0_58] : memref<25x128x128xbf16, #tpu.memory_space<vmem>>, vector<1x128x128xbf16>
    %102 = vector.shape_cast %101 : vector<1x128x128xbf16> to vector<128x128xbf16>
    %cst_59 = arith.constant dense<0.000000e+00> : vector<16x128xf32>
    %103 = tpu.matmul %100, %102, %cst_59 {dimension_numbers = #tpu.dot_dimension_numbers<[1], [0], [0], [1], [0, 0, 1, 1], [], []>} : vector<16x128xbf16>, vector<128x128xbf16>, vector<16x128xf32> -> vector<16x128xf32>
    %104 = arith.addf %99, %103 : vector<16x128xf32>
    %105 = vector.extract_strided_slice %23 {offsets = [256, 0], sizes = [16, 128], strides = [1, 1]} : vector<400x128xbf16> to vector<16x128xbf16>
    %c16 = arith.constant 16 : index
    %c0_60 = arith.constant 0 : index
    %c0_61 = arith.constant 0 : index
    %106 = vector.load %arg4[%c16, %c0_60, %c0_61] : memref<25x128x128xbf16, #tpu.memory_space<vmem>>, vector<1x128x128xbf16>
    %107 = vector.shape_cast %106 : vector<1x128x128xbf16> to vector<128x128xbf16>
    %cst_62 = arith.constant dense<0.000000e+00> : vector<16x128xf32>
    %108 = tpu.matmul %105, %107, %cst_62 {dimension_numbers = #tpu.dot_dimension_numbers<[1], [0], [0], [1], [0, 0, 1, 1], [], []>} : vector<16x128xbf16>, vector<128x128xbf16>, vector<16x128xf32> -> vector<16x128xf32>
    %109 = arith.addf %104, %108 : vector<16x128xf32>
    %110 = vector.extract_strided_slice %23 {offsets = [272, 0], sizes = [16, 128], strides = [1, 1]} : vector<400x128xbf16> to vector<16x128xbf16>
    %c17 = arith.constant 17 : index
    %c0_63 = arith.constant 0 : index
    %c0_64 = arith.constant 0 : index
    %111 = vector.load %arg4[%c17, %c0_63, %c0_64] : memref<25x128x128xbf16, #tpu.memory_space<vmem>>, vector<1x128x128xbf16>
    %112 = vector.shape_cast %111 : vector<1x128x128xbf16> to vector<128x128xbf16>
    %cst_65 = arith.constant dense<0.000000e+00> : vector<16x128xf32>
    %113 = tpu.matmul %110, %112, %cst_65 {dimension_numbers = #tpu.dot_dimension_numbers<[1], [0], [0], [1], [0, 0, 1, 1], [], []>} : vector<16x128xbf16>, vector<128x128xbf16>, vector<16x128xf32> -> vector<16x128xf32>
    %114 = arith.addf %109, %113 : vector<16x128xf32>
    %115 = vector.extract_strided_slice %23 {offsets = [288, 0], sizes = [16, 128], strides = [1, 1]} : vector<400x128xbf16> to vector<16x128xbf16>
    %c18 = arith.constant 18 : index
    %c0_66 = arith.constant 0 : index
    %c0_67 = arith.constant 0 : index
    %116 = vector.load %arg4[%c18, %c0_66, %c0_67] : memref<25x128x128xbf16, #tpu.memory_space<vmem>>, vector<1x128x128xbf16>
    %117 = vector.shape_cast %116 : vector<1x128x128xbf16> to vector<128x128xbf16>
    %cst_68 = arith.constant dense<0.000000e+00> : vector<16x128xf32>
    %118 = tpu.matmul %115, %117, %cst_68 {dimension_numbers = #tpu.dot_dimension_numbers<[1], [0], [0], [1], [0, 0, 1, 1], [], []>} : vector<16x128xbf16>, vector<128x128xbf16>, vector<16x128xf32> -> vector<16x128xf32>
    %119 = arith.addf %114, %118 : vector<16x128xf32>
    %120 = vector.extract_strided_slice %23 {offsets = [304, 0], sizes = [16, 128], strides = [1, 1]} : vector<400x128xbf16> to vector<16x128xbf16>
    %c19 = arith.constant 19 : index
    %c0_69 = arith.constant 0 : index
    %c0_70 = arith.constant 0 : index
    %121 = vector.load %arg4[%c19, %c0_69, %c0_70] : memref<25x128x128xbf16, #tpu.memory_space<vmem>>, vector<1x128x128xbf16>
    %122 = vector.shape_cast %121 : vector<1x128x128xbf16> to vector<128x128xbf16>
    %cst_71 = arith.constant dense<0.000000e+00> : vector<16x128xf32>
    %123 = tpu.matmul %120, %122, %cst_71 {dimension_numbers = #tpu.dot_dimension_numbers<[1], [0], [0], [1], [0, 0, 1, 1], [], []>} : vector<16x128xbf16>, vector<128x128xbf16>, vector<16x128xf32> -> vector<16x128xf32>
    %124 = arith.addf %119, %123 : vector<16x128xf32>
    %125 = vector.extract_strided_slice %23 {offsets = [320, 0], sizes = [16, 128], strides = [1, 1]} : vector<400x128xbf16> to vector<16x128xbf16>
    %c20 = arith.constant 20 : index
    %c0_72 = arith.constant 0 : index
    %c0_73 = arith.constant 0 : index
    %126 = vector.load %arg4[%c20, %c0_72, %c0_73] : memref<25x128x128xbf16, #tpu.memory_space<vmem>>, vector<1x128x128xbf16>
    %127 = vector.shape_cast %126 : vector<1x128x128xbf16> to vector<128x128xbf16>
    %cst_74 = arith.constant dense<0.000000e+00> : vector<16x128xf32>
    %128 = tpu.matmul %125, %127, %cst_74 {dimension_numbers = #tpu.dot_dimension_numbers<[1], [0], [0], [1], [0, 0, 1, 1], [], []>} : vector<16x128xbf16>, vector<128x128xbf16>, vector<16x128xf32> -> vector<16x128xf32>
    %129 = arith.addf %124, %128 : vector<16x128xf32>
    %130 = vector.extract_strided_slice %23 {offsets = [336, 0], sizes = [16, 128], strides = [1, 1]} : vector<400x128xbf16> to vector<16x128xbf16>
    %c21 = arith.constant 21 : index
    %c0_75 = arith.constant 0 : index
    %c0_76 = arith.constant 0 : index
    %131 = vector.load %arg4[%c21, %c0_75, %c0_76] : memref<25x128x128xbf16, #tpu.memory_space<vmem>>, vector<1x128x128xbf16>
    %132 = vector.shape_cast %131 : vector<1x128x128xbf16> to vector<128x128xbf16>
    %cst_77 = arith.constant dense<0.000000e+00> : vector<16x128xf32>
    %133 = tpu.matmul %130, %132, %cst_77 {dimension_numbers = #tpu.dot_dimension_numbers<[1], [0], [0], [1], [0, 0, 1, 1], [], []>} : vector<16x128xbf16>, vector<128x128xbf16>, vector<16x128xf32> -> vector<16x128xf32>
    %134 = arith.addf %129, %133 : vector<16x128xf32>
    %135 = vector.extract_strided_slice %23 {offsets = [352, 0], sizes = [16, 128], strides = [1, 1]} : vector<400x128xbf16> to vector<16x128xbf16>
    %c22 = arith.constant 22 : index
    %c0_78 = arith.constant 0 : index
    %c0_79 = arith.constant 0 : index
    %136 = vector.load %arg4[%c22, %c0_78, %c0_79] : memref<25x128x128xbf16, #tpu.memory_space<vmem>>, vector<1x128x128xbf16>
    %137 = vector.shape_cast %136 : vector<1x128x128xbf16> to vector<128x128xbf16>
    %cst_80 = arith.constant dense<0.000000e+00> : vector<16x128xf32>
    %138 = tpu.matmul %135, %137, %cst_80 {dimension_numbers = #tpu.dot_dimension_numbers<[1], [0], [0], [1], [0, 0, 1, 1], [], []>} : vector<16x128xbf16>, vector<128x128xbf16>, vector<16x128xf32> -> vector<16x128xf32>
    %139 = arith.addf %134, %138 : vector<16x128xf32>
    %140 = vector.extract_strided_slice %23 {offsets = [368, 0], sizes = [16, 128], strides = [1, 1]} : vector<400x128xbf16> to vector<16x128xbf16>
    %c23 = arith.constant 23 : index
    %c0_81 = arith.constant 0 : index
    %c0_82 = arith.constant 0 : index
    %141 = vector.load %arg4[%c23, %c0_81, %c0_82] : memref<25x128x128xbf16, #tpu.memory_space<vmem>>, vector<1x128x128xbf16>
    %142 = vector.shape_cast %141 : vector<1x128x128xbf16> to vector<128x128xbf16>
    %cst_83 = arith.constant dense<0.000000e+00> : vector<16x128xf32>
    %143 = tpu.matmul %140, %142, %cst_83 {dimension_numbers = #tpu.dot_dimension_numbers<[1], [0], [0], [1], [0, 0, 1, 1], [], []>} : vector<16x128xbf16>, vector<128x128xbf16>, vector<16x128xf32> -> vector<16x128xf32>
    %144 = arith.addf %139, %143 : vector<16x128xf32>
    %145 = vector.extract_strided_slice %23 {offsets = [384, 0], sizes = [16, 128], strides = [1, 1]} : vector<400x128xbf16> to vector<16x128xbf16>
    %c24 = arith.constant 24 : index
    %c0_84 = arith.constant 0 : index
    %c0_85 = arith.constant 0 : index
    %146 = vector.load %arg4[%c24, %c0_84, %c0_85] : memref<25x128x128xbf16, #tpu.memory_space<vmem>>, vector<1x128x128xbf16>
    %147 = vector.shape_cast %146 : vector<1x128x128xbf16> to vector<128x128xbf16>
    %cst_86 = arith.constant dense<0.000000e+00> : vector<16x128xf32>
    %148 = tpu.matmul %145, %147, %cst_86 {dimension_numbers = #tpu.dot_dimension_numbers<[1], [0], [0], [1], [0, 0, 1, 1], [], []>} : vector<16x128xbf16>, vector<128x128xbf16>, vector<16x128xf32> -> vector<16x128xf32>
    %149 = arith.addf %144, %148 : vector<16x128xf32>
    %c0_87 = arith.constant 0 : index
    %c0_88 = arith.constant 0 : index
    %150 = vector.load %arg5[%c0_87, %c0_88] : memref<1x128xf32, #tpu.memory_space<vmem>>, vector<1x128xf32>
    %151 = vector.broadcast %150 : vector<1x128xf32> to vector<16x128xf32>
    %152 = arith.addf %149, %151 : vector<16x128xf32>
    %cst_89 = arith.constant 5.000000e-01 : f32
    %153 = vector.broadcast %cst_89 : f32 to vector<16x128xf32>
    %154 = arith.mulf %153, %152 : vector<16x128xf32>
    %155 = math.tanh %154 : vector<16x128xf32>
    %cst_90 = arith.constant 5.000000e-01 : f32
    %156 = vector.broadcast %cst_90 : f32 to vector<16x128xf32>
    %157 = arith.mulf %156, %155 : vector<16x128xf32>
    %cst_91 = arith.constant 5.000000e-01 : f32
    %158 = vector.broadcast %cst_91 : f32 to vector<16x128xf32>
    %159 = arith.addf %157, %158 : vector<16x128xf32>
    %160 = arith.truncf %159 : vector<16x128xf32> to vector<16x128xbf16>
    %c0_92 = arith.constant 0 : index
    %c0_93 = arith.constant 0 : index
    %161 = vector.load %arg6[%c0_92, %c0_93] : memref<128x128xbf16, #tpu.memory_space<vmem>>, vector<128x128xbf16>
    %cst_94 = arith.constant dense<0.000000e+00> : vector<16x128xf32>
    %162 = tpu.matmul %160, %161, %cst_94 {dimension_numbers = #tpu.dot_dimension_numbers<[1], [0], [0], [1], [0, 0, 1, 1], [], []>} : vector<16x128xbf16>, vector<128x128xbf16>, vector<16x128xf32> -> vector<16x128xf32>
    %c0_95 = arith.constant 0 : index
    %c0_96 = arith.constant 0 : index
    %163 = vector.load %arg7[%c0_95, %c0_96] : memref<1x128xf32, #tpu.memory_space<vmem>>, vector<1x128xf32>
    %164 = vector.broadcast %163 : vector<1x128xf32> to vector<16x128xf32>
    %165 = arith.addf %162, %164 : vector<16x128xf32>
    %cst_97 = arith.constant 5.000000e-01 : f32
    %166 = vector.broadcast %cst_97 : f32 to vector<16x128xf32>
    %167 = arith.mulf %166, %165 : vector<16x128xf32>
    %168 = math.tanh %167 : vector<16x128xf32>
    %cst_98 = arith.constant 5.000000e-01 : f32
    %169 = vector.broadcast %cst_98 : f32 to vector<16x128xf32>
    %170 = arith.mulf %169, %168 : vector<16x128xf32>
    %cst_99 = arith.constant 5.000000e-01 : f32
    %171 = vector.broadcast %cst_99 : f32 to vector<16x128xf32>
    %172 = arith.addf %170, %171 : vector<16x128xf32>
    %173 = arith.truncf %172 : vector<16x128xf32> to vector<16x128xbf16>
    %c0_100 = arith.constant 0 : index
    %c0_101 = arith.constant 0 : index
    %174 = vector.load %arg8[%c0_100, %c0_101] : memref<128x128xbf16, #tpu.memory_space<vmem>>, vector<128x128xbf16>
    %cst_102 = arith.constant dense<0.000000e+00> : vector<16x128xf32>
    %175 = tpu.matmul %173, %174, %cst_102 {dimension_numbers = #tpu.dot_dimension_numbers<[1], [0], [0], [1], [0, 0, 1, 1], [], []>} : vector<16x128xbf16>, vector<128x128xbf16>, vector<16x128xf32> -> vector<16x128xf32>
    %c0_103 = arith.constant 0 : index
    %c0_104 = arith.constant 0 : index
    %176 = vector.load %arg9[%c0_103, %c0_104] : memref<1x128xf32, #tpu.memory_space<vmem>>, vector<1x128xf32>
    %177 = vector.broadcast %176 : vector<1x128xf32> to vector<16x128xf32>
    %178 = arith.addf %175, %177 : vector<16x128xf32>
    %c0_105 = arith.constant 0 : index
    %c0_106 = arith.constant 0 : index
    %179 = vector.load %arg10[%c0_105, %c0_106] : memref<16x128xf32, #tpu.memory_space<vmem>>, vector<16x128xf32>
    tpu.vector_store %arg10[%c0_105, %c0_106], %178 {strides = array<i32>} : memref<16x128xf32, #tpu.memory_space<vmem>>, vector<16x128xf32>,
    return
  }
  func.func @transform_0(%arg0: i32) -> (i32, i32, i32) {
    %c0_i32 = arith.constant 0 : i32
    %c0_i32_0 = arith.constant 0 : i32
    %c0_i32_1 = arith.constant 0 : i32
    return %c0_i32, %arg0, %c0_i32_0 : i32, i32, i32
  }
  func.func @transform_1(%arg0: i32) -> (i32, i32) {
    %c0_i32 = arith.constant 0 : i32
    %c0_i32_0 = arith.constant 0 : i32
    %c0_i32_1 = arith.constant 0 : i32
    return %c0_i32, %c0_i32_0 : i32, i32
  }
  func.func @transform_2(%arg0: i32) -> (i32, i32) {
    %c0_i32 = arith.constant 0 : i32
    %c0_i32_0 = arith.constant 0 : i32
    %c0_i32_1 = arith.constant 0 : i32
    return %c0_i32, %c0_i32_0 : i32, i32
  }
  func.func @transform_3(%arg0: i32) -> (i32, i32, i32) {
    %c0_i32 = arith.constant 0 : i32
    %c0_i32_0 = arith.constant 0 : i32
    %c0_i32_1 = arith.constant 0 : i32
    %c0_i32_2 = arith.constant 0 : i32
    return %c0_i32, %c0_i32_0, %c0_i32_1 : i32, i32, i32
  }
  func.func @transform_4(%arg0: i32) -> (i32, i32) {
    %c0_i32 = arith.constant 0 : i32
    %c0_i32_0 = arith.constant 0 : i32
    %c0_i32_1 = arith.constant 0 : i32
    return %c0_i32, %c0_i32_0 : i32, i32
  }
  func.func @transform_5(%arg0: i32) -> (i32, i32) {
    %c0_i32 = arith.constant 0 : i32
    %c0_i32_0 = arith.constant 0 : i32
    %c0_i32_1 = arith.constant 0 : i32
    return %c0_i32, %c0_i32_0 : i32, i32
  }
  func.func @transform_6(%arg0: i32) -> (i32, i32) {
    %c0_i32 = arith.constant 0 : i32
    %c0_i32_0 = arith.constant 0 : i32
    %c0_i32_1 = arith.constant 0 : i32
    return %c0_i32, %c0_i32_0 : i32, i32
  }
  func.func @transform_7(%arg0: i32) -> (i32, i32) {
    %c0_i32 = arith.constant 0 : i32
    %c0_i32_0 = arith.constant 0 : i32
    %c0_i32_1 = arith.constant 0 : i32
    return %c0_i32, %c0_i32_0 : i32, i32
  }
  func.func @transform_8(%arg0: i32) -> (i32, i32) {
    %c0_i32 = arith.constant 0 : i32
    %c0_i32_0 = arith.constant 0 : i32
    %c0_i32_1 = arith.constant 0 : i32
    return %c0_i32, %c0_i32_0 : i32, i32
  }
  func.func @transform_9(%arg0: i32) -> (i32, i32) {
    %c0_i32 = arith.constant 0 : i32
    %c0_i32_0 = arith.constant 0 : i32
    return %arg0, %c0_i32 : i32, i32
  }
}

</mosaic_0001>

<llo_original>
// kernel: lenet5_forward.2
$region0: #{lenet5_forward.2}
  #allocation0 [shape = 'u32[]', space=smem, size = 0x4, offset = 0x4, fixed_abs, tag = 'smem constant byte address 0x4 - core index']
  #allocation1 [shape = 'u32[144,128]{1,0:T(1,128)}', space=vmem, size = 0x12000, scoped, tag = 'internal scratch']
  %s0 = inlined_call_operand.vmem [shape: bf16[4,400,32], index: 0, kind: input, shape index: {}]
  %s1 = inlined_call_operand.vmem [shape: bf16[32,128], index: 1, kind: input, shape index: {}]
  %s2 = inlined_call_operand.vmem [shape: f32[1,128], index: 2, kind: input, shape index: {}]
  %s3 = inlined_call_operand.vmem [shape: bf16[400,128], index: 3, kind: output, shape index: {}]
  %s4 = sld [smem:[#allocation0]]
  $region86: #{lenet5_forward.2} parent=0
    _
  %s6 = ssub.s32 1, %s4
  %s7 = scalar_select 0, %s6, %s4
  $region1: #{lenet5_forward.2} parent=0
    #allocation2 [shape = 'u8[409600]{0}', space=vmem, size = 0x64000, scoped, tag = 'input window, operand 0']
    loop: start=0, step=1, limit=4
    $region2: #{lenet5_forward.2} parent=1 // loop_pre_header
      _
    $region3: #{lenet5_forward.2} parent=1 // loop_header
      %s9 = sphi 0, %s13
      %p10 = scmp.ge.s32.totalorder %s9, 4
      %s19 = sphi 0, %s21
      %s22 = sphi 0, %s19
      %s23 = sphi 0, %s22
      %s39 = sphi 0, %s23
      %s43 = sphi 0, %s43
      %s45 = sphi 0, %s43
      %s46 = sphi 0, %s45
      %s60 = sphi 0, %s46
      %s64 = sphi 0, %s64
      %s66 = sphi 0, %s64
      %s67 = sphi 0, %s66
      %s81 = sphi 0, %s67
      %s87 = sphi 0, %s89
      %s90 = sphi 0, %s87
      %s91 = sphi 0, %s90
      %s107 = sphi 0, %s91
    $region4: #{lenet5_forward.2} parent=1 // loop_header_branch
      %12 = sbr.rel (%p10) target = $region8
    $region5: #{lenet5_forward.2} parent=1 // loop_body
      %s14 = ssub.s32 %s9, 1
      %s15 = ssub.s32 %s9, 2
      %s16 = sadd.s32 %s9, 1
      %s17 = ssub.s32 %s9, %s16
      %p18 = scmp.eq.s32.totalorder %s17, 0
      %s20 = sadd.s32 %s19, 1
      %s21 = scalar_select %p18, %s19, %s20
      %p24 = pneg %p18
      %p25 = scmp.eq.s32.totalorder %s9, 1
      %p26 = por %p24, %p25
      %p27 = scmp.ne.s32.totalorder %s19, %s22
      %p28 = scmp.eq.s32.totalorder %s9, 0
      %p29 = por %p27, %p28
      %p30 = scmp.ne.s32.totalorder %s19, %s22
      %p31 = scmp.eq.s32.totalorder %s14, 1
      %p32 = por %p30, %p31
      %p33 = scmp.ne.s32.totalorder %s22, %s23
      %p34 = scmp.eq.s32.totalorder %s14, 0
      %p35 = por %p33, %p34
      %p36 = scmp.ne.s32.totalorder %s22, %s23
      %p37 = scmp.eq.s32.totalorder %s15, 1
      %p38 = por %p36, %p37
      %p40 = scmp.ne.s32.totalorder %s23, %s39
      %p41 = scmp.eq.s32.totalorder %s15, 0
      %p42 = por %p40, %p41
      %s44 = sadd.s32 %s43, 1
      %p47 = scmp.eq.s32.totalorder %s9, 1
      %p48 = scmp.ne.s32.totalorder %s43, %s45
      %p49 = scmp.eq.s32.totalorder %s9, 0
      %p50 = por %p48, %p49
      %p51 = scmp.ne.s32.totalorder %s43, %s45
      %p52 = scmp.eq.s32.totalorder %s14, 1
      %p53 = por %p51, %p52
      %p54 = scmp.ne.s32.totalorder %s45, %s46
      %p55 = scmp.eq.s32.totalorder %s14, 0
      %p56 = por %p54, %p55
      %p57 = scmp.ne.s32.totalorder %s45, %s46
      %p58 = scmp.eq.s32.totalorder %s15, 1
      %p59 = por %p57, %p58
      %p61 = scmp.ne.s32.totalorder %s46, %s60
      %p62 = scmp.eq.s32.totalorder %s15, 0
      %p63 = por %p61, %p62
      %s65 = sadd.s32 %s64, 1
      %p68 = scmp.eq.s32.totalorder %s9, 1
      %p69 = scmp.ne.s32.totalorder %s64, %s66
      %p70 = scmp.eq.s32.totalorder %s9, 0
      %p71 = por %p69, %p70
      %p72 = scmp.ne.s32.totalorder %s64, %s66
      %p73 = scmp.eq.s32.totalorder %s14, 1
      %p74 = por %p72, %p73
      %p75 = scmp.ne.s32.totalorder %s66, %s67
      %p76 = scmp.eq.s32.totalorder %s14, 0
      %p77 = por %p75, %p76
      %p78 = scmp.ne.s32.totalorder %s66, %s67
      %p79 = scmp.eq.s32.totalorder %s15, 1
      %p80 = por %p78, %p79
      %p82 = scmp.ne.s32.totalorder %s67, %s81
      %p83 = scmp.eq.s32.totalorder %s15, 0
      %p84 = por %p82, %p83
      %s85 = ssub.s32 %s9, %s16
      %p86 = scmp.eq.s32.totalorder %s85, 0
      %s88 = sadd.s32 %s87, 1
      %s89 = scalar_select %p86, %s87, %s88
      %p92 = pneg %p86
      %p93 = scmp.eq.s32.totalorder %s9, 1
      %p94 = por %p92, %p93
      %p95 = scmp.ne.s32.totalorder %s87, %s90
      %p96 = scmp.eq.s32.totalorder %s9, 0
      %p97 = por %p95, %p96
      %p98 = scmp.ne.s32.totalorder %s87, %s90
      %p99 = scmp.eq.s32.totalorder %s14, 1
      %p100 = por %p98, %p99
      %p101 = scmp.ne.s32.totalorder %s90, %s91
      %p102 = scmp.eq.s32.totalorder %s14, 0
      %p103 = por %p101, %p102
      %p104 = scmp.ne.s32.totalorder %s90, %s91
      %p105 = scmp.eq.s32.totalorder %s15, 1
      %p106 = por %p104, %p105
      %p108 = scmp.ne.s32.totalorder %s91, %s107
      %p109 = scmp.eq.s32.totalorder %s15, 0
      %p110 = por %p108, %p109
      %p111 = scmp.le.s32.totalorder 1, %s9
      %p112 = scmp.lt.s32.totalorder %s9, 3
      %p113 = pnand %p111, %p112
      %p114 = pneg %p113
      // Predicated region
      $region9: #{lenet5_forward.2} parent=5 // pred_check
        _
      $region10: #{lenet5_forward.2} parent=5 // pred_check_branch
        %116 = sbr.rel (%p113) target = $region12
      $region11: #{lenet5_forward.2} parent=5 // pred_region
        %s117 = ssub.s32 %s9, 1
        // Predicated region
        $region13: #{lenet5_forward.2} parent=11 // pred_check
          %p118 = pneg %p56
        $region14: #{lenet5_forward.2} parent=11 // pred_check_branch
          %120 = sbr.rel (%p118) target = $region16
        $region15: #{lenet5_forward.2} parent=11 // pred_region
          _
        $region16: #{lenet5_forward.2} parent=11 // pred_fallthru
          _
        // Predicated region
        $region17: #{lenet5_forward.2} parent=11 // pred_check
          %p121 = pneg %p77
        $region18: #{lenet5_forward.2} parent=11 // pred_check_branch
          %123 = sbr.rel (%p121) target = $region20
        $region19: #{lenet5_forward.2} parent=11 // pred_region
          _
        $region20: #{lenet5_forward.2} parent=11 // pred_fallthru
          _
      $region12: #{lenet5_forward.2} parent=5 // pred_fallthru
        _
      %p124 = scmp.lt.s32.totalorder %s9, 2
      // Predicated region
      $region21: #{lenet5_forward.2} parent=5 // pred_check
        %p125 = pneg %p124
      $region22: #{lenet5_forward.2} parent=5 // pred_check_branch
        %127 = sbr.rel (%p125) target = $region24
      $region23: #{lenet5_forward.2} parent=5 // pred_region
        // Predicated region
        $region25: #{lenet5_forward.2} parent=23 // pred_check
          %p128 = pneg %p29
        $region26: #{lenet5_forward.2} parent=23 // pred_check_branch
          %130 = sbr.rel (%p128) target = $region28
        $region27: #{lenet5_forward.2} parent=23 // pred_region
          %s131 = sand.u32 %s19, 1
          %s132 = sand.u32 %s19, 1
          %s133 = smul.addr %s132, 400
          %s134 = scalar_lea.vmem [#allocation2], %s133
          %s135 = smul.u32 25, %s9
          %s136 = smul.addr %s135, 4
          %s137 = scalar_lea.vmem %s0, %s136
          // Predicated region
          $region29: #{lenet5_forward.2} parent=27 // pred_check
            _
          $region30: #{lenet5_forward.2} parent=27 // pred_check_branch
            %139 = sbr.rel (0) target = $region32
          $region31: #{lenet5_forward.2} parent=27 // pred_region
            // Predicated region
            $region33: #{lenet5_forward.2} parent=31 // pred_check
              _
            $region34: #{lenet5_forward.2} parent=31 // pred_check_branch
              %141 = sbr.rel target = $region36
            $region35: #{lenet5_forward.2} parent=31 // pred_region
              // Predicated region
              $region48: #{lenet5_forward.2} parent=35 // pred_check
                _
              $region49: #{lenet5_forward.2} parent=35 // pred_check_branch
                %354 = sbr.rel (0) target = $region51
              $region50: #{lenet5_forward.2} parent=35 // pred_region
                loop: start=0, step=1, limit=1
                $region52: #{lenet5_forward.2} parent=50 // loop_pre_header
                  _
                $region53: #{lenet5_forward.2} parent=50 // loop_header
                  %s356 = sphi 0, %s360
                  %p357 = scmp.ge.s32.totalorder %s356, 1
                  %s361 = sphi %s137, %s137
                  %s362 = sphi %s134, %s134
                $region54: #{lenet5_forward.2} parent=50 // loop_header_branch
                  %359 = sbr.rel (%p357) target = $region58
                $region55: #{lenet5_forward.2} parent=50 // loop_body
                  _
                $region56: #{lenet5_forward.2} parent=50 // loop_footer
                  %s360 = sadd.s32 1, %s356
                $region57: #{lenet5_forward.2} parent=50 // loop_footer_branch
                  %355 = sbr.rel target = $region53
                $region58: #{lenet5_forward.2} parent=50 // loop_exit
                  _
                loop: start=0, step=1, limit=1
                $region59: #{lenet5_forward.2} parent=50 // loop_pre_header
                  _
                $region60: #{lenet5_forward.2} parent=50 // loop_header
                  %s365 = sphi 0, %s369
                  %p366 = scmp.ge.s32.totalorder %s365, 1
                  %s370 = sphi %s137, %s137
                  %s371 = sphi %s134, %s134
                $region61: #{lenet5_forward.2} parent=50 // loop_header_branch
                  %368 = sbr.rel (%p366) target = $region65
                $region62: #{lenet5_forward.2} parent=50 // loop_body
                  %v372 = vld [vmem:[%s370] sm:$0xf]
                  %373 = vst [vmem:[%s371] sm:$0xf] %v372
                  %v374 = vld [vmem:[%s370 + $0x4] sm:$0xf]
                  %375 = vst [vmem:[%s371 + $0x4] sm:$0xf] %v374
                  %v376 = vld [vmem:[%s370 + $0x8] sm:$0xf]
                  %377 = vst [vmem:[%s371 + $0x8] sm:$0xf] %v376
                  %v378 = vld [vmem:[%s370 + $0xc] sm:$0xf]
                  %379 = vst [vmem:[%s371 + $0xc] sm:$0xf] %v378
                  %v380 = vld [vmem:[%s370 + $0x10] sm:$0xf]
                  %381 = vst [vmem:[%s371 + $0x10] sm:$0xf] %v380
                  %v382 = vld [vmem:[%s370 + $0x14] sm:$0xf]
                  %383 = vst [vmem:[%s371 + $0x14] sm:$0xf] %v382
                  %v384 = vld [vmem:[%s370 + $0x18] sm:$0xf]
                  %385 = vst [vmem:[%s371 + $0x18] sm:$0xf] %v384
                  %v386 = vld [vmem:[%s370 + $0x1c] sm:$0xf]
                  %387 = vst [vmem:[%s371 + $0x1c] sm:$0xf] %v386
                  %v388 = vld [vmem:[%s370 + $0x20] sm:$0xf]
                  %389 = vst [vmem:[%s371 + $0x20] sm:$0xf] %v388
                  %v390 = vld [vmem:[%s370 + $0x24] sm:$0xf]
                  %391 = vst [vmem:[%s371 + $0x24] sm:$0xf] %v390
                  %v392 = vld [vmem:[%s370 + $0x28] sm:$0xf]
                  %393 = vst [vmem:[%s371 + $0x28] sm:$0xf] %v392
                  %v394 = vld [vmem:[%s370 + $0x2c] sm:$0xf]
                  %395 = vst [vmem:[%s371 + $0x2c] sm:$0xf] %v394
                  %v396 = vld [vmem:[%s370 + $0x30] sm:$0xf]
                  %397 = vst [vmem:[%s371 + $0x30] sm:$0xf] %v396
                  %v398 = vld [vmem:[%s370 + $0x34] sm:$0xf]
                  %399 = vst [vmem:[%s371 + $0x34] sm:$0xf] %v398
                  %v400 = vld [vmem:[%s370 + $0x38] sm:$0xf]
                  %401 = vst [vmem:[%s371 + $0x38] sm:$0xf] %v400
                  %v402 = vld [vmem:[%s370 + $0x3c] sm:$0xf]
                  %403 = vst [vmem:[%s371 + $0x3c] sm:$0xf] %v402
                  %v404 = vld [vmem:[%s370 + $0x40] sm:$0xf]
                  %405 = vst [vmem:[%s371 + $0x40] sm:$0xf] %v404
                  %v406 = vld [vmem:[%s370 + $0x44] sm:$0xf]
                  %407 = vst [vmem:[%s371 + $0x44] sm:$0xf] %v406
                  %v408 = vld [vmem:[%s370 + $0x48] sm:$0xf]
                  %409 = vst [vmem:[%s371 + $0x48] sm:$0xf] %v408
                  %v410 = vld [vmem:[%s370 + $0x4c] sm:$0xf]
                  %411 = vst [vmem:[%s371 + $0x4c] sm:$0xf] %v410
                  %v412 = vld [vmem:[%s370 + $0x50] sm:$0xf]
                  %413 = vst [vmem:[%s371 + $0x50] sm:$0xf] %v412
                  %v414 = vld [vmem:[%s370 + $0x54] sm:$0xf]
                  %415 = vst [vmem:[%s371 + $0x54] sm:$0xf] %v414
                  %v416 = vld [vmem:[%s370 + $0x58] sm:$0xf]
                  %417 = vst [vmem:[%s371 + $0x58] sm:$0xf] %v416
                  %v418 = vld [vmem:[%s370 + $0x5c] sm:$0xf]
                  %419 = vst [vmem:[%s371 + $0x5c] sm:$0xf] %v418
                  %v420 = vld [vmem:[%s370 + $0x60] sm:$0xf]
                  %421 = vst [vmem:[%s371 + $0x60] sm:$0xf] %v420
                  %v422 = vld [vmem:[%s370 + $0xc8] sm:$0xf]
                  %423 = vst [vmem:[%s371 + $0x64] sm:$0xf] %v422
                  %v424 = vld [vmem:[%s370 + $0xcc] sm:$0xf]
                  %425 = vst [vmem:[%s371 + $0x68] sm:$0xf] %v424
                  %v426 = vld [vmem:[%s370 + $0xd0] sm:$0xf]
                  %427 = vst [vmem:[%s371 + $0x6c] sm:$0xf] %v426
                  %v428 = vld [vmem:[%s370 + $0xd4] sm:$0xf]
                  %429 = vst [vmem:[%s371 + $0x70] sm:$0xf] %v428
                  %v430 = vld [vmem:[%s370 + $0xd8] sm:$0xf]
                  %431 = vst [vmem:[%s371 + $0x74] sm:$0xf] %v430
                  %v432 = vld [vmem:[%s370 + $0xdc] sm:$0xf]
                  %433 = vst [vmem:[%s371 + $0x78] sm:$0xf] %v432
                  %v434 = vld [vmem:[%s370 + $0xe0] sm:$0xf]
                  %435 = vst [vmem:[%s371 + $0x7c] sm:$0xf] %v434
                  %v436 = vld [vmem:[%s370 + $0xe4] sm:$0xf]
                  %437 = vst [vmem:[%s371 + $0x80] sm:$0xf] %v436
                  %v438 = vld [vmem:[%s370 + $0xe8] sm:$0xf]
                  %439 = vst [vmem:[%s371 + $0x84] sm:$0xf] %v438
                  %v440 = vld [vmem:[%s370 + $0xec] sm:$0xf]
                  %441 = vst [vmem:[%s371 + $0x88] sm:$0xf] %v440
                  %v442 = vld [vmem:[%s370 + $0xf0] sm:$0xf]
                  %443 = vst [vmem:[%s371 + $0x8c] sm:$0xf] %v442
                  %v444 = vld [vmem:[%s370 + $0xf4] sm:$0xf]
                  %445 = vst [vmem:[%s371 + $0x90] sm:$0xf] %v444
                  %v446 = vld [vmem:[%s370 + $0xf8] sm:$0xf]
                  %447 = vst [vmem:[%s371 + $0x94] sm:$0xf] %v446
                  %v448 = vld [vmem:[%s370 + $0xfc] sm:$0xf]
                  %449 = vst [vmem:[%s371 + $0x98] sm:$0xf] %v448
                  %v450 = vld [vmem:[%s370 + $0x100] sm:$0xf]
                  %451 = vst [vmem:[%s371 + $0x9c] sm:$0xf] %v450
                  %v452 = vld [vmem:[%s370 + $0x104] sm:$0xf]
                  %453 = vst [vmem:[%s371 + $0xa0] sm:$0xf] %v452
                  %v454 = vld [vmem:[%s370 + $0x108] sm:$0xf]
                  %455 = vst [vmem:[%s371 + $0xa4] sm:$0xf] %v454
                  %v456 = vld [vmem:[%s370 + $0x10c] sm:$0xf]
                  %457 = vst [vmem:[%s371 + $0xa8] sm:$0xf] %v456
                  %v458 = vld [vmem:[%s370 + $0x110] sm:$0xf]
                  %459 = vst [vmem:[%s371 + $0xac] sm:$0xf] %v458
                  %v460 = vld [vmem:[%s370 + $0x114] sm:$0xf]
                  %461 = vst [vmem:[%s371 + $0xb0] sm:$0xf] %v460
                  %v462 = vld [vmem:[%s370 + $0x118] sm:$0xf]
                  %463 = vst [vmem:[%s371 + $0xb4] sm:$0xf] %v462
                  %v464 = vld [vmem:[%s370 + $0x11c] sm:$0xf]
                  %465 = vst [vmem:[%s371 + $0xb8] sm:$0xf] %v464
                  %v466 = vld [vmem:[%s370 + $0x120] sm:$0xf]
                  %467 = vst [vmem:[%s371 + $0xbc] sm:$0xf] %v466
                  %v468 = vld [vmem:[%s370 + $0x124] sm:$0xf]
                  %469 = vst [vmem:[%s371 + $0xc0] sm:$0xf] %v468
                  %v470 = vld [vmem:[%s370 + $0x128] sm:$0xf]
                  %471 = vst [vmem:[%s371 + $0xc4] sm:$0xf] %v470
                  %v472 = vld [vmem:[%s370 + $0x190] sm:$0xf]
                  %473 = vst [vmem:[%s371 + $0xc8] sm:$0xf] %v472
                  %v474 = vld [vmem:[%s370 + $0x194] sm:$0xf]
                  %475 = vst [vmem:[%s371 + $0xcc] sm:$0xf] %v474
                  %v476 = vld [vmem:[%s370 + $0x198] sm:$0xf]
                  %477 = vst [vmem:[%s371 + $0xd0] sm:$0xf] %v476
                  %v478 = vld [vmem:[%s370 + $0x19c] sm:$0xf]
                  %479 = vst [vmem:[%s371 + $0xd4] sm:$0xf] %v478
                  %v480 = vld [vmem:[%s370 + $0x1a0] sm:$0xf]
                  %481 = vst [vmem:[%s371 + $0xd8] sm:$0xf] %v480
                  %v482 = vld [vmem:[%s370 + $0x1a4] sm:$0xf]
                  %483 = vst [vmem:[%s371 + $0xdc] sm:$0xf] %v482
                  %v484 = vld [vmem:[%s370 + $0x1a8] sm:$0xf]
                  %485 = vst [vmem:[%s371 + $0xe0] sm:$0xf] %v484
                  %v486 = vld [vmem:[%s370 + $0x1ac] sm:$0xf]
                  %487 = vst [vmem:[%s371 + $0xe4] sm:$0xf] %v486
                  %v488 = vld [vmem:[%s370 + $0x1b0] sm:$0xf]
                  %489 = vst [vmem:[%s371 + $0xe8] sm:$0xf] %v488
                  %v490 = vld [vmem:[%s370 + $0x1b4] sm:$0xf]
                  %491 = vst [vmem:[%s371 + $0xec] sm:$0xf] %v490
                  %v492 = vld [vmem:[%s370 + $0x1b8] sm:$0xf]
                  %493 = vst [vmem:[%s371 + $0xf0] sm:$0xf] %v492
                  %v494 = vld [vmem:[%s370 + $0x1bc] sm:$0xf]
                  %495 = vst [vmem:[%s371 + $0xf4] sm:$0xf] %v494
                  %v496 = vld [vmem:[%s370 + $0x1c0] sm:$0xf]
                  %497 = vst [vmem:[%s371 + $0xf8] sm:$0xf] %v496
                  %v498 = vld [vmem:[%s370 + $0x1c4] sm:$0xf]
                  %499 = vst [vmem:[%s371 + $0xfc] sm:$0xf] %v498
                  %v500 = vld [vmem:[%s370 + $0x1c8] sm:$0xf]
                  %501 = vst [vmem:[%s371 + $0x100] sm:$0xf] %v500
                  %v502 = vld [vmem:[%s370 + $0x1cc] sm:$0xf]
                  %503 = vst [vmem:[%s371 + $0x104] sm:$0xf] %v502
                  %v504 = vld [vmem:[%s370 + $0x1d0] sm:$0xf]
                  %505 = vst [vmem:[%s371 + $0x108] sm:$0xf] %v504
                  %v506 = vld [vmem:[%s370 + $0x1d4] sm:$0xf]
                  %507 = vst [vmem:[%s371 + $0x10c] sm:$0xf] %v506
                  %v508 = vld [vmem:[%s370 + $0x1d8] sm:$0xf]
                  %509 = vst [vmem:[%s371 + $0x110] sm:$0xf] %v508
                  %v510 = vld [vmem:[%s370 + $0x1dc] sm:$0xf]
                  %511 = vst [vmem:[%s371 + $0x114] sm:$0xf] %v510
                  %v512 = vld [vmem:[%s370 + $0x1e0] sm:$0xf]
                  %513 = vst [vmem:[%s371 + $0x118] sm:$0xf] %v512
                  %v514 = vld [vmem:[%s370 + $0x1e4] sm:$0xf]
                  %515 = vst [vmem:[%s371 + $0x11c] sm:$0xf] %v514
                  %v516 = vld [vmem:[%s370 + $0x1e8] sm:$0xf]
                  %517 = vst [vmem:[%s371 + $0x120] sm:$0xf] %v516
                  %v518 = vld [vmem:[%s370 + $0x1ec] sm:$0xf]
                  %519 = vst [vmem:[%s371 + $0x124] sm:$0xf] %v518
                  %v520 = vld [vmem:[%s370 + $0x1f0] sm:$0xf]
                  %521 = vst [vmem:[%s371 + $0x128] sm:$0xf] %v520
                  %v522 = vld [vmem:[%s370 + $0x258] sm:$0xf]
                  %523 = vst [vmem:[%s371 + $0x12c] sm:$0xf] %v522
                  %v524 = vld [vmem:[%s370 + $0x25c] sm:$0xf]
                  %525 = vst [vmem:[%s371 + $0x130] sm:$0xf] %v524
                  %v526 = vld [vmem:[%s370 + $0x260] sm:$0xf]
                  %527 = vst [vmem:[%s371 + $0x134] sm:$0xf] %v526
                  %v528 = vld [vmem:[%s370 + $0x264] sm:$0xf]
                  %529 = vst [vmem:[%s371 + $0x138] sm:$0xf] %v528
                  %v530 = vld [vmem:[%s370 + $0x268] sm:$0xf]
                  %531 = vst [vmem:[%s371 + $0x13c] sm:$0xf] %v530
                  %v532 = vld [vmem:[%s370 + $0x26c] sm:$0xf]
                  %533 = vst [vmem:[%s371 + $0x140] sm:$0xf] %v532
                  %v534 = vld [vmem:[%s370 + $0x270] sm:$0xf]
                  %535 = vst [vmem:[%s371 + $0x144] sm:$0xf] %v534
                  %v536 = vld [vmem:[%s370 + $0x274] sm:$0xf]
                  %537 = vst [vmem:[%s371 + $0x148] sm:$0xf] %v536
                  %v538 = vld [vmem:[%s370 + $0x278] sm:$0xf]
                  %539 = vst [vmem:[%s371 + $0x14c] sm:$0xf] %v538
                  %v540 = vld [vmem:[%s370 + $0x27c] sm:$0xf]
                  %541 = vst [vmem:[%s371 + $0x150] sm:$0xf] %v540
                  %v542 = vld [vmem:[%s370 + $0x280] sm:$0xf]
                  %543 = vst [vmem:[%s371 + $0x154] sm:$0xf] %v542
                  %v544 = vld [vmem:[%s370 + $0x284] sm:$0xf]
                  %545 = vst [vmem:[%s371 + $0x158] sm:$0xf] %v544
                  %v546 = vld [vmem:[%s370 + $0x288] sm:$0xf]
                  %547 = vst [vmem:[%s371 + $0x15c] sm:$0xf] %v546
                  %v548 = vld [vmem:[%s370 + $0x28c] sm:$0xf]
                  %549 = vst [vmem:[%s371 + $0x160] sm:$0xf] %v548
                  %v550 = vld [vmem:[%s370 + $0x290] sm:$0xf]
                  %551 = vst [vmem:[%s371 + $0x164] sm:$0xf] %v550
                  %v552 = vld [vmem:[%s370 + $0x294] sm:$0xf]
                  %553 = vst [vmem:[%s371 + $0x168] sm:$0xf] %v552
                  %v554 = vld [vmem:[%s370 + $0x298] sm:$0xf]
                  %555 = vst [vmem:[%s371 + $0x16c] sm:$0xf] %v554
                  %v556 = vld [vmem:[%s370 + $0x29c] sm:$0xf]
                  %557 = vst [vmem:[%s371 + $0x170] sm:$0xf] %v556
                  %v558 = vld [vmem:[%s370 + $0x2a0] sm:$0xf]
                  %559 = vst [vmem:[%s371 + $0x174] sm:$0xf] %v558
                  %v560 = vld [vmem:[%s370 + $0x2a4] sm:$0xf]
                  %561 = vst [vmem:[%s371 + $0x178] sm:$0xf] %v560
                  %v562 = vld [vmem:[%s370 + $0x2a8] sm:$0xf]
                  %563 = vst [vmem:[%s371 + $0x17c] sm:$0xf] %v562
                  %v564 = vld [vmem:[%s370 + $0x2ac] sm:$0xf]
                  %565 = vst [vmem:[%s371 + $0x180] sm:$0xf] %v564
                  %v566 = vld [vmem:[%s370 + $0x2b0] sm:$0xf]
                  %567 = vst [vmem:[%s371 + $0x184] sm:$0xf] %v566
                  %v568 = vld [vmem:[%s370 + $0x2b4] sm:$0xf]
                  %569 = vst [vmem:[%s371 + $0x188] sm:$0xf] %v568
                  %v570 = vld [vmem:[%s370 + $0x2b8] sm:$0xf]
                  %571 = vst [vmem:[%s371 + $0x18c] sm:$0xf] %v570
                $region63: #{lenet5_forward.2} parent=50 // loop_footer
                  %s369 = sadd.s32 1, %s365
                $region64: #{lenet5_forward.2} parent=50 // loop_footer_branch
                  %364 = sbr.rel target = $region60
                $region65: #{lenet5_forward.2} parent=50 // loop_exit
                  _
              $region51: #{lenet5_forward.2} parent=35 // pred_fallthru
                _
            $region36: #{lenet5_forward.2} parent=31 // pred_fallthru
              _
            // Predicated region
            $region37: #{lenet5_forward.2} parent=31 // pred_check
              _
            $region38: #{lenet5_forward.2} parent=31 // pred_check_branch
              %143 = sbr.rel (0) target = $region40
            $region39: #{lenet5_forward.2} parent=31 // pred_region
              loop: start=0, step=1, limit=1
              $region41: #{lenet5_forward.2} parent=39 // loop_pre_header
                _
              $region42: #{lenet5_forward.2} parent=39 // loop_header
                %s146 = sphi 0, %s150
                %p147 = scmp.ge.s32.totalorder %s146, 1
                %s151 = sphi %s137, %s137
                %s152 = sphi %s134, %s134
              $region43: #{lenet5_forward.2} parent=39 // loop_header_branch
                %149 = sbr.rel (%p147) target = $region47
              $region44: #{lenet5_forward.2} parent=39 // loop_body
                %v153 = vld [vmem:[%s151] sm:$0xf]
                %154 = vst [vmem:[%s152] sm:$0xf] %v153
                %v155 = vld [vmem:[%s151 + $0x4] sm:$0xf]
                %156 = vst [vmem:[%s152 + $0x4] sm:$0xf] %v155
                %v157 = vld [vmem:[%s151 + $0x8] sm:$0xf]
                %158 = vst [vmem:[%s152 + $0x8] sm:$0xf] %v157
                %v159 = vld [vmem:[%s151 + $0xc] sm:$0xf]
                %160 = vst [vmem:[%s152 + $0xc] sm:$0xf] %v159
                %v161 = vld [vmem:[%s151 + $0x10] sm:$0xf]
                %162 = vst [vmem:[%s152 + $0x10] sm:$0xf] %v161
                %v163 = vld [vmem:[%s151 + $0x14] sm:$0xf]
                %164 = vst [vmem:[%s152 + $0x14] sm:$0xf] %v163
                %v165 = vld [vmem:[%s151 + $0x18] sm:$0xf]
                %166 = vst [vmem:[%s152 + $0x18] sm:$0xf] %v165
                %v167 = vld [vmem:[%s151 + $0x1c] sm:$0xf]
                %168 = vst [vmem:[%s152 + $0x1c] sm:$0xf] %v167
                %v169 = vld [vmem:[%s151 + $0x20] sm:$0xf]
                %170 = vst [vmem:[%s152 + $0x20] sm:$0xf] %v169
                %v171 = vld [vmem:[%s151 + $0x24] sm:$0xf]
                %172 = vst [vmem:[%s152 + $0x24] sm:$0xf] %v171
                %v173 = vld [vmem:[%s151 + $0x28] sm:$0xf]
                %174 = vst [vmem:[%s152 + $0x28] sm:$0xf] %v173
                %v175 = vld [vmem:[%s151 + $0x2c] sm:$0xf]
                %176 = vst [vmem:[%s152 + $0x2c] sm:$0xf] %v175
                %v177 = vld [vmem:[%s151 + $0x30] sm:$0xf]
                %178 = vst [vmem:[%s152 + $0x30] sm:$0xf] %v177
                %v179 = vld [vmem:[%s151 + $0x34] sm:$0xf]
                %180 = vst [vmem:[%s152 + $0x34] sm:$0xf] %v179
                %v181 = vld [vmem:[%s151 + $0x38] sm:$0xf]
                %182 = vst [vmem:[%s152 + $0x38] sm:$0xf] %v181
                %v183 = vld [vmem:[%s151 + $0x3c] sm:$0xf]
                %184 = vst [vmem:[%s152 + $0x3c] sm:$0xf] %v183
                %v185 = vld [vmem:[%s151 + $0x40] sm:$0xf]
                %186 = vst [vmem:[%s152 + $0x40] sm:$0xf] %v185
                %v187 = vld [vmem:[%s151 + $0x44] sm:$0xf]
                %188 = vst [vmem:[%s152 + $0x44] sm:$0xf] %v187
                %v189 = vld [vmem:[%s151 + $0x48] sm:$0xf]
                %190 = vst [vmem:[%s152 + $0x48] sm:$0xf] %v189
                %v191 = vld [vmem:[%s151 + $0x4c] sm:$0xf]
                %192 = vst [vmem:[%s152 + $0x4c] sm:$0xf] %v191
                %v193 = vld [vmem:[%s151 + $0x50] sm:$0xf]
                %194 = vst [vmem:[%s152 + $0x50] sm:$0xf] %v193
                %v195 = vld [vmem:[%s151 + $0x54] sm:$0xf]
                %196 = vst [vmem:[%s152 + $0x54] sm:$0xf] %v195
                %v197 = vld [vmem:[%s151 + $0x58] sm:$0xf]
                %198 = vst [vmem:[%s152 + $0x58] sm:$0xf] %v197
                %v199 = vld [vmem:[%s151 + $0x5c] sm:$0xf]
                %200 = vst [vmem:[%s152 + $0x5c] sm:$0xf] %v199
                %v201 = vld [vmem:[%s151 + $0x60] sm:$0xf]
                %202 = vst [vmem:[%s152 + $0x60] sm:$0xf] %v201
                %v203 = vld [vmem:[%s151 + $0xc8] sm:$0xf]
                %204 = vst [vmem:[%s152 + $0x64] sm:$0xf] %v203
                %v205 = vld [vmem:[%s151 + $0xcc] sm:$0xf]
                %206 = vst [vmem:[%s152 + $0x68] sm:$0xf] %v205
                %v207 = vld [vmem:[%s151 + $0xd0] sm:$0xf]
                %208 = vst [vmem:[%s152 + $0x6c] sm:$0xf] %v207
                %v209 = vld [vmem:[%s151 + $0xd4] sm:$0xf]
                %210 = vst [vmem:[%s152 + $0x70] sm:$0xf] %v209
                %v211 = vld [vmem:[%s151 + $0xd8] sm:$0xf]
                %212 = vst [vmem:[%s152 + $0x74] sm:$0xf] %v211
                %v213 = vld [vmem:[%s151 + $0xdc] sm:$0xf]
                %214 = vst [vmem:[%s152 + $0x78] sm:$0xf] %v213
                %v215 = vld [vmem:[%s151 + $0xe0] sm:$0xf]
                %216 = vst [vmem:[%s152 + $0x7c] sm:$0xf] %v215
                %v217 = vld [vmem:[%s151 + $0xe4] sm:$0xf]
                %218 = vst [vmem:[%s152 + $0x80] sm:$0xf] %v217
                %v219 = vld [vmem:[%s151 + $0xe8] sm:$0xf]
                %220 = vst [vmem:[%s152 + $0x84] sm:$0xf] %v219
                %v221 = vld [vmem:[%s151 + $0xec] sm:$0xf]
                %222 = vst [vmem:[%s152 + $0x88] sm:$0xf] %v221
                %v223 = vld [vmem:[%s151 + $0xf0] sm:$0xf]
                %224 = vst [vmem:[%s152 + $0x8c] sm:$0xf] %v223
                %v225 = vld [vmem:[%s151 + $0xf4] sm:$0xf]
                %226 = vst [vmem:[%s152 + $0x90] sm:$0xf] %v225
                %v227 = vld [vmem:[%s151 + $0xf8] sm:$0xf]
                %228 = vst [vmem:[%s152 + $0x94] sm:$0xf] %v227
                %v229 = vld [vmem:[%s151 + $0xfc] sm:$0xf]
                %230 = vst [vmem:[%s152 + $0x98] sm:$0xf] %v229
                %v231 = vld [vmem:[%s151 + $0x100] sm:$0xf]
                %232 = vst [vmem:[%s152 + $0x9c] sm:$0xf] %v231
                %v233 = vld [vmem:[%s151 + $0x104] sm:$0xf]
                %234 = vst [vmem:[%s152 + $0xa0] sm:$0xf] %v233
                %v235 = vld [vmem:[%s151 + $0x108] sm:$0xf]
                %236 = vst [vmem:[%s152 + $0xa4] sm:$0xf] %v235
                %v237 = vld [vmem:[%s151 + $0x10c] sm:$0xf]
                %238 = vst [vmem:[%s152 + $0xa8] sm:$0xf] %v237
                %v239 = vld [vmem:[%s151 + $0x110] sm:$0xf]
                %240 = vst [vmem:[%s152 + $0xac] sm:$0xf] %v239
                %v241 = vld [vmem:[%s151 + $0x114] sm:$0xf]
                %242 = vst [vmem:[%s152 + $0xb0] sm:$0xf] %v241
                %v243 = vld [vmem:[%s151 + $0x118] sm:$0xf]
                %244 = vst [vmem:[%s152 + $0xb4] sm:$0xf] %v243
                %v245 = vld [vmem:[%s151 + $0x11c] sm:$0xf]
                %246 = vst [vmem:[%s152 + $0xb8] sm:$0xf] %v245
                %v247 = vld [vmem:[%s151 + $0x120] sm:$0xf]
                %248 = vst [vmem:[%s152 + $0xbc] sm:$0xf] %v247
                %v249 = vld [vmem:[%s151 + $0x124] sm:$0xf]
                %250 = vst [vmem:[%s152 + $0xc0] sm:$0xf] %v249
                %v251 = vld [vmem:[%s151 + $0x128] sm:$0xf]
                %252 = vst [vmem:[%s152 + $0xc4] sm:$0xf] %v251
                %v253 = vld [vmem:[%s151 + $0x190] sm:$0xf]
                %254 = vst [vmem:[%s152 + $0xc8] sm:$0xf] %v253
                %v255 = vld [vmem:[%s151 + $0x194] sm:$0xf]
                %256 = vst [vmem:[%s152 + $0xcc] sm:$0xf] %v255
                %v257 = vld [vmem:[%s151 + $0x198] sm:$0xf]
                %258 = vst [vmem:[%s152 + $0xd0] sm:$0xf] %v257
                %v259 = vld [vmem:[%s151 + $0x19c] sm:$0xf]
                %260 = vst [vmem:[%s152 + $0xd4] sm:$0xf] %v259
                %v261 = vld [vmem:[%s151 + $0x1a0] sm:$0xf]
                %262 = vst [vmem:[%s152 + $0xd8] sm:$0xf] %v261
                %v263 = vld [vmem:[%s151 + $0x1a4] sm:$0xf]
                %264 = vst [vmem:[%s152 + $0xdc] sm:$0xf] %v263
                %v265 = vld [vmem:[%s151 + $0x1a8] sm:$0xf]
                %266 = vst [vmem:[%s152 + $0xe0] sm:$0xf] %v265
                %v267 = vld [vmem:[%s151 + $0x1ac] sm:$0xf]
                %268 = vst [vmem:[%s152 + $0xe4] sm:$0xf] %v267
                %v269 = vld [vmem:[%s151 + $0x1b0] sm:$0xf]
                %270 = vst [vmem:[%s152 + $0xe8] sm:$0xf] %v269
                %v271 = vld [vmem:[%s151 + $0x1b4] sm:$0xf]
                %272 = vst [vmem:[%s152 + $0xec] sm:$0xf] %v271
                %v273 = vld [vmem:[%s151 + $0x1b8] sm:$0xf]
                %274 = vst [vmem:[%s152 + $0xf0] sm:$0xf] %v273
                %v275 = vld [vmem:[%s151 + $0x1bc] sm:$0xf]
                %276 = vst [vmem:[%s152 + $0xf4] sm:$0xf] %v275
                %v277 = vld [vmem:[%s151 + $0x1c0] sm:$0xf]
                %278 = vst [vmem:[%s152 + $0xf8] sm:$0xf] %v277
                %v279 = vld [vmem:[%s151 + $0x1c4] sm:$0xf]
                %280 = vst [vmem:[%s152 + $0xfc] sm:$0xf] %v279
                %v281 = vld [vmem:[%s151 + $0x1c8] sm:$0xf]
                %282 = vst [vmem:[%s152 + $0x100] sm:$0xf] %v281
                %v283 = vld [vmem:[%s151 + $0x1cc] sm:$0xf]
                %284 = vst [vmem:[%s152 + $0x104] sm:$0xf] %v283
                %v285 = vld [vmem:[%s151 + $0x1d0] sm:$0xf]
                %286 = vst [vmem:[%s152 + $0x108] sm:$0xf] %v285
                %v287 = vld [vmem:[%s151 + $0x1d4] sm:$0xf]
                %288 = vst [vmem:[%s152 + $0x10c] sm:$0xf] %v287
                %v289 = vld [vmem:[%s151 + $0x1d8] sm:$0xf]
                %290 = vst [vmem:[%s152 + $0x110] sm:$0xf] %v289
                %v291 = vld [vmem:[%s151 + $0x1dc] sm:$0xf]
                %292 = vst [vmem:[%s152 + $0x114] sm:$0xf] %v291
                %v293 = vld [vmem:[%s151 + $0x1e0] sm:$0xf]
                %294 = vst [vmem:[%s152 + $0x118] sm:$0xf] %v293
                %v295 = vld [vmem:[%s151 + $0x1e4] sm:$0xf]
                %296 = vst [vmem:[%s152 + $0x11c] sm:$0xf] %v295
                %v297 = vld [vmem:[%s151 + $0x1e8] sm:$0xf]
                %298 = vst [vmem:[%s152 + $0x120] sm:$0xf] %v297
                %v299 = vld [vmem:[%s151 + $0x1ec] sm:$0xf]
                %300 = vst [vmem:[%s152 + $0x124] sm:$0xf] %v299
                %v301 = vld [vmem:[%s151 + $0x1f0] sm:$0xf]
                %302 = vst [vmem:[%s152 + $0x128] sm:$0xf] %v301
                %v303 = vld [vmem:[%s151 + $0x258] sm:$0xf]
                %304 = vst [vmem:[%s152 + $0x12c] sm:$0xf] %v303
                %v305 = vld [vmem:[%s151 + $0x25c] sm:$0xf]
                %306 = vst [vmem:[%s152 + $0x130] sm:$0xf] %v305
                %v307 = vld [vmem:[%s151 + $0x260] sm:$0xf]
                %308 = vst [vmem:[%s152 + $0x134] sm:$0xf] %v307
                %v309 = vld [vmem:[%s151 + $0x264] sm:$0xf]
                %310 = vst [vmem:[%s152 + $0x138] sm:$0xf] %v309
                %v311 = vld [vmem:[%s151 + $0x268] sm:$0xf]
                %312 = vst [vmem:[%s152 + $0x13c] sm:$0xf] %v311
                %v313 = vld [vmem:[%s151 + $0x26c] sm:$0xf]
                %314 = vst [vmem:[%s152 + $0x140] sm:$0xf] %v313
                %v315 = vld [vmem:[%s151 + $0x270] sm:$0xf]
                %316 = vst [vmem:[%s152 + $0x144] sm:$0xf] %v315
                %v317 = vld [vmem:[%s151 + $0x274] sm:$0xf]
                %318 = vst [vmem:[%s152 + $0x148] sm:$0xf] %v317
                %v319 = vld [vmem:[%s151 + $0x278] sm:$0xf]
                %320 = vst [vmem:[%s152 + $0x14c] sm:$0xf] %v319
                %v321 = vld [vmem:[%s151 + $0x27c] sm:$0xf]
                %322 = vst [vmem:[%s152 + $0x150] sm:$0xf] %v321
                %v323 = vld [vmem:[%s151 + $0x280] sm:$0xf]
                %324 = vst [vmem:[%s152 + $0x154] sm:$0xf] %v323
                %v325 = vld [vmem:[%s151 + $0x284] sm:$0xf]
                %326 = vst [vmem:[%s152 + $0x158] sm:$0xf] %v325
                %v327 = vld [vmem:[%s151 + $0x288] sm:$0xf]
                %328 = vst [vmem:[%s152 + $0x15c] sm:$0xf] %v327
                %v329 = vld [vmem:[%s151 + $0x28c] sm:$0xf]
                %330 = vst [vmem:[%s152 + $0x160] sm:$0xf] %v329
                %v331 = vld [vmem:[%s151 + $0x290] sm:$0xf]
                %332 = vst [vmem:[%s152 + $0x164] sm:$0xf] %v331
                %v333 = vld [vmem:[%s151 + $0x294] sm:$0xf]
                %334 = vst [vmem:[%s152 + $0x168] sm:$0xf] %v333
                %v335 = vld [vmem:[%s151 + $0x298] sm:$0xf]
                %336 = vst [vmem:[%s152 + $0x16c] sm:$0xf] %v335
                %v337 = vld [vmem:[%s151 + $0x29c] sm:$0xf]
                %338 = vst [vmem:[%s152 + $0x170] sm:$0xf] %v337
                %v339 = vld [vmem:[%s151 + $0x2a0] sm:$0xf]
                %340 = vst [vmem:[%s152 + $0x174] sm:$0xf] %v339
                %v341 = vld [vmem:[%s151 + $0x2a4] sm:$0xf]
                %342 = vst [vmem:[%s152 + $0x178] sm:$0xf] %v341
                %v343 = vld [vmem:[%s151 + $0x2a8] sm:$0xf]
                %344 = vst [vmem:[%s152 + $0x17c] sm:$0xf] %v343
                %v345 = vld [vmem:[%s151 + $0x2ac] sm:$0xf]
                %346 = vst [vmem:[%s152 + $0x180] sm:$0xf] %v345
                %v347 = vld [vmem:[%s151 + $0x2b0] sm:$0xf]
                %348 = vst [vmem:[%s152 + $0x184] sm:$0xf] %v347
                %v349 = vld [vmem:[%s151 + $0x2b4] sm:$0xf]
                %350 = vst [vmem:[%s152 + $0x188] sm:$0xf] %v349
                %v351 = vld [vmem:[%s151 + $0x2b8] sm:$0xf]
                %352 = vst [vmem:[%s152 + $0x18c] sm:$0xf] %v351
              $region45: #{lenet5_forward.2} parent=39 // loop_footer
                %s150 = sadd.s32 1, %s146
              $region46: #{lenet5_forward.2} parent=39 // loop_footer_branch
                %145 = sbr.rel target = $region42
              $region47: #{lenet5_forward.2} parent=39 // loop_exit
                _
            $region40: #{lenet5_forward.2} parent=31 // pred_fallthru
              _
          $region32: #{lenet5_forward.2} parent=27 // pred_fallthru
            _
          %572 = vnop
        $region28: #{lenet5_forward.2} parent=23 // pred_fallthru
          _
      $region24: #{lenet5_forward.2} parent=5 // pred_fallthru
        _
      %p573 = scmp.le.s32.totalorder 1, %s9
      %p574 = scmp.lt.s32.totalorder %s9, 3
      %p575 = pnand %p573, %p574
      %p576 = pneg %p575
      // Predicated region
      $region66: #{lenet5_forward.2} parent=5 // pred_check
        _
      $region67: #{lenet5_forward.2} parent=5 // pred_check_branch
        %578 = sbr.rel (%p575) target = $region69
      $region68: #{lenet5_forward.2} parent=5 // pred_region
        %s579 = ssub.s32 %s9, 1
        %s580 = sand.u32 %s22, 1
        %s581 = sand.u32 %s22, 1
        %s582 = smul.addr %s581, 400
        %s583 = scalar_lea.vmem [#allocation2], %s582
        // Predicated region
        $region70: #{lenet5_forward.2} parent=68 // pred_check
          %p584 = pneg %p35
        $region71: #{lenet5_forward.2} parent=68 // pred_check_branch
          %586 = sbr.rel (%p584) target = $region73
        $region72: #{lenet5_forward.2} parent=68 // pred_region
          _
        $region73: #{lenet5_forward.2} parent=68 // pred_fallthru
          _
        %s587 = sand.u32 %s22, 1
        %s588 = sand.u32 %s22, 1
        %s589 = smul.addr %s588, 400
        %s590 = scalar_lea.vmem [#allocation2], %s589
        %p591 = pneg %p35
        %p592 = pneg %p32
        %p593 = pneg %p56
        %p594 = pneg %p53
        %p595 = pneg %p77
        %p596 = pneg %p74
        %p597 = pneg %p103
        %p598 = pneg %p100
        %s599 = smul.u32 25, %s14
        %p600 = scmp.lt.s32.totalorder %s599, 49
        %s601 = scalar_select %p600, %s599, 49
        %s602 = smul.addr %s601, 4
        %s603 = scalar_lea.vmem %s3, %s602
        %s604 = smul.u32 25, %s14
        %s605 = smul.u32 25, %s14
        %p606 = scmp.lt.s32.totalorder %s605, 49
        %s607 = scalar_select %p606, %s605, 49
        %s608 = smul.addr %s607, 4
        %s609 = scalar_lea.vmem %s3, %s608
        %s610 = smul.u32 25, %s14
        %v612 = vld [vmem:[%s1] sm:$0xf]
        %v613 = vld [vmem:[%s1 + $0x4] sm:$0xf]
        %v614 = vld [vmem:[%s1 + $0x8] sm:$0xf]
        %v615 = vld [vmem:[%s1 + $0xc] sm:$0xf]
        %v616 = vld [vmem:[%s2] sm:$0x1]
        %v617 = vld [vmem:[%s583] sm:$0xf]
        %v618 = vld [vmem:[%s583 + $0x4] sm:$0xf]
        %v619 = vld [vmem:[%s583 + $0x8] sm:$0xf]
        %v620 = vld [vmem:[%s583 + $0xc] sm:$0xf]
        %v621 = vld [vmem:[%s583 + $0x10] sm:$0xf]
        %v622 = vld [vmem:[%s583 + $0x14] sm:$0xf]
        %v623 = vld [vmem:[%s583 + $0x18] sm:$0xf]
        %v624 = vld [vmem:[%s583 + $0x1c] sm:$0xf]
        %v625 = vld [vmem:[%s583 + $0x20] sm:$0xf]
        %v626 = vld [vmem:[%s583 + $0x24] sm:$0xf]
        %v627 = vld [vmem:[%s583 + $0x28] sm:$0xf]
        %v628 = vld [vmem:[%s583 + $0x2c] sm:$0xf]
        %v629 = vld [vmem:[%s583 + $0x30] sm:$0xf]
        %v630 = vld [vmem:[%s583 + $0x34] sm:$0xf]
        %v631 = vld [vmem:[%s583 + $0x38] sm:$0xf]
        %v632 = vld [vmem:[%s583 + $0x3c] sm:$0xf]
        %v633 = vld [vmem:[%s583 + $0x40] sm:$0xf]
        %v634 = vld [vmem:[%s583 + $0x44] sm:$0xf]
        %v635 = vld [vmem:[%s583 + $0x48] sm:$0xf]
        %v636 = vld [vmem:[%s583 + $0x4c] sm:$0xf]
        %v637 = vld [vmem:[%s583 + $0x50] sm:$0xf]
        %v638 = vld [vmem:[%s583 + $0x54] sm:$0xf]
        %v639 = vld [vmem:[%s583 + $0x58] sm:$0xf]
        %v640 = vld [vmem:[%s583 + $0x5c] sm:$0xf]
        %v641 = vld [vmem:[%s583 + $0x60] sm:$0xf]
        %v643 = vlaneseq
        %v644 = vshrl.u32 %v643, 7
        %v645 = vsub.s32 0, %v644
        %v646 = vrot.slane %v616, %v645
        %v673 = vunpack.c.l.b16 %v617
        %v674 = vunpack.c.l.b16 %v618
        %v675 = vunpack.c.l.b16 %v619
        %v676 = vunpack.c.l.b16 %v620
        %v677 = vunpack.c.l.b16 %v621
        %v678 = vunpack.c.l.b16 %v622
        %v679 = vunpack.c.l.b16 %v623
        %v680 = vunpack.c.l.b16 %v624
        %v681 = vunpack.c.l.b16 %v625
        %v682 = vunpack.c.l.b16 %v626
        %v683 = vunpack.c.l.b16 %v627
        %v684 = vunpack.c.l.b16 %v628
        %v685 = vunpack.c.l.b16 %v629
        %v686 = vunpack.c.l.b16 %v630
        %v687 = vunpack.c.l.b16 %v631
        %v688 = vunpack.c.l.b16 %v632
        %v689 = vunpack.c.l.b16 %v633
        %v690 = vunpack.c.l.b16 %v634
        %v691 = vunpack.c.l.b16 %v635
        %v692 = vunpack.c.l.b16 %v636
        %v693 = vunpack.c.l.b16 %v637
        %v694 = vunpack.c.l.b16 %v638
        %v695 = vunpack.c.l.b16 %v639
        %v696 = vunpack.c.l.b16 %v640
        %v697 = vunpack.c.l.b16 %v641
        %v698 = vpack.c.b16 %v674, %v673
        %v699 = vpack.c.b16 %v676, %v675
        %v700 = vpack.c.b16 %v678, %v677
        %v701 = vpack.c.b16 %v680, %v679
        %v702 = vpack.c.b16 %v682, %v681
        %v703 = vpack.c.b16 %v684, %v683
        %v704 = vpack.c.b16 %v686, %v685
        %v705 = vpack.c.b16 %v688, %v687
        %v706 = vpack.c.b16 %v690, %v689
        %v707 = vpack.c.b16 %v692, %v691
        %v708 = vpack.c.b16 %v694, %v693
        %v709 = vpack.c.b16 %v696, %v695
        %v710 = vpack.c.b16 %v697, %v697
        %v715 = vunpack.c.l.b16 %v612
        %v716 = vunpack.c.l.b16 %v613
        %v717 = vunpack.c.l.b16 %v614
        %v718 = vunpack.c.l.b16 %v615
        %v719 = vpack.c.b16 %v716, %v715
        %v720 = vpack.c.b16 %v718, %v717
        %vm723 = vcmask 261120
        %v725 = vsel %vm723, %v698, 0
        %v728 = vsel %vm723, %v699, 0
        %v731 = vsel %vm723, %v700, 0
        %v734 = vsel %vm723, %v701, 0
        %v737 = vsel %vm723, %v702, 0
        %v740 = vsel %vm723, %v703, 0
        %v743 = vsel %vm723, %v704, 0
        %v746 = vsel %vm723, %v705, 0
        %v749 = vsel %vm723, %v706, 0
        %v752 = vsel %vm723, %v707, 0
        %v755 = vsel %vm723, %v708, 0
        %v758 = vsel %vm723, %v709, 0
        %v761 = vsel %vm723, %v710, 0
        %763 = vmatprep.subr.bf16.mxu0 0
        %764 = vmatpush1.bf16.msra.mxu0 %v719
        %765 = vmatprep.subr.bf16.mxu0 0
        %766 = vmatpush1.bf16.msra.mxu0 %v720
        %767 = vmatprep.subr.bf16.mxu0 0
        %768 = vmatpush1.bf16.msra.mxu0 0
        %769 = vmatprep.subr.bf16.mxu0 0
        %770 = vmatpush1.bf16.msra.mxu0 0
        %771 = vmatprep.subr.bf16.mxu0 0
        %772 = vmatpush1.bf16.msra.mxu0 0
        %773 = vmatprep.subr.bf16.mxu0 0
        %774 = vmatpush1.bf16.msra.mxu0 0
        %775 = vmatprep.subr.bf16.mxu0 0
        %776 = vmatpush1.bf16.msra.mxu0 0
        %777 = vmatprep.subr.bf16.mxu0 0
        %778 = vmatpush1.bf16.msra.mxu0 0
        %779 = vmatprep.subr.bf16.mxu0 0
        %780 = vmatpush1.bf16.msra.mxu0 0
        %781 = vmatprep.subr.bf16.mxu0 0
        %782 = vmatpush1.bf16.msra.mxu0 0
        %783 = vmatprep.subr.bf16.mxu0 0
        %784 = vmatpush1.bf16.msra.mxu0 0
        %785 = vmatprep.subr.bf16.mxu0 0
        %786 = vmatpush1.bf16.msra.mxu0 0
        %787 = vmatprep.subr.bf16.mxu0 0
        %788 = vmatpush1.bf16.msra.mxu0 0
        %789 = vmatprep.subr.bf16.mxu0 0
        %790 = vmatpush1.bf16.msra.mxu0 0
        %791 = vmatprep.subr.bf16.mxu0 0
        %792 = vmatpush1.bf16.msra.mxu0 0
        %793 = vmatprep.subr.bf16.mxu0 0
        %794 = vmatpush1.bf16.msra.mxu0 0
        %795 = vmatprep.mubr.bf16.mxu0 0
        %796 = vmatmul.mubr.bf16.gmra.mrb[0].mxu0 %v725
        %v797 = vpop.f32.mrb[0].mxu0
        %v798 = vadd.f32 %v646, %v797
        %v799 = vpop.f32.mrb[0].mxu0
        %v800 = vpop.f32.mrb[0].mxu0
        %v801 = vadd.f32 %v646, %v800
        %v802 = vpop.f32.mrb[0].mxu0
        %803 = vmatprep.mubr.bf16.mxu0 0
        %804 = vmatmul.mubr.bf16.gmra.mrb[0].mxu0 %v728
        %v805 = vpop.f32.mrb[0].mxu0
        %v806 = vadd.f32 %v646, %v805
        %v807 = vpop.f32.mrb[0].mxu0
        %v808 = vpop.f32.mrb[0].mxu0
        %v809 = vadd.f32 %v646, %v808
        %v810 = vpop.f32.mrb[0].mxu0
        %811 = vmatprep.mubr.bf16.mxu0 0
        %812 = vmatmul.mubr.bf16.gmra.mrb[0].mxu0 %v731
        %v813 = vpop.f32.mrb[0].mxu0
        %v814 = vadd.f32 %v646, %v813
        %v815 = vpop.f32.mrb[0].mxu0
        %v816 = vpop.f32.mrb[0].mxu0
        %v817 = vadd.f32 %v646, %v816
        %v818 = vpop.f32.mrb[0].mxu0
        %819 = vmatprep.mubr.bf16.mxu0 0
        %820 = vmatmul.mubr.bf16.gmra.mrb[0].mxu0 %v734
        %v821 = vpop.f32.mrb[0].mxu0
        %v822 = vadd.f32 %v646, %v821
        %v823 = vpop.f32.mrb[0].mxu0
        %v824 = vpop.f32.mrb[0].mxu0
        %v825 = vadd.f32 %v646, %v824
        %v826 = vpop.f32.mrb[0].mxu0
        %827 = vmatprep.mubr.bf16.mxu0 0
        %828 = vmatmul.mubr.bf16.gmra.mrb[0].mxu0 %v737
        %v829 = vpop.f32.mrb[0].mxu0
        %v830 = vadd.f32 %v646, %v829
        %v831 = vpop.f32.mrb[0].mxu0
        %v832 = vpop.f32.mrb[0].mxu0
        %v833 = vadd.f32 %v646, %v832
        %v834 = vpop.f32.mrb[0].mxu0
        %835 = vmatprep.mubr.bf16.mxu0 0
        %836 = vmatmul.mubr.bf16.gmra.mrb[0].mxu0 %v740
        %v837 = vpop.f32.mrb[0].mxu0
        %v838 = vadd.f32 %v646, %v837
        %v839 = vpop.f32.mrb[0].mxu0
        %v840 = vpop.f32.mrb[0].mxu0
        %v841 = vadd.f32 %v646, %v840
        %v842 = vpop.f32.mrb[0].mxu0
        %843 = vmatprep.mubr.bf16.mxu0 0
        %844 = vmatmul.mubr.bf16.gmra.mrb[0].mxu0 %v743
        %v845 = vpop.f32.mrb[0].mxu0
        %v846 = vadd.f32 %v646, %v845
        %v847 = vpop.f32.mrb[0].mxu0
        %v848 = vpop.f32.mrb[0].mxu0
        %v849 = vadd.f32 %v646, %v848
        %v850 = vpop.f32.mrb[0].mxu0
        %851 = vmatprep.mubr.bf16.mxu0 0
        %852 = vmatmul.mubr.bf16.gmra.mrb[0].mxu0 %v746
        %v853 = vpop.f32.mrb[0].mxu0
        %v854 = vadd.f32 %v646, %v853
        %v855 = vpop.f32.mrb[0].mxu0
        %v856 = vpop.f32.mrb[0].mxu0
        %v857 = vadd.f32 %v646, %v856
        %v858 = vpop.f32.mrb[0].mxu0
        %859 = vmatprep.mubr.bf16.mxu0 0
        %860 = vmatmul.mubr.bf16.gmra.mrb[0].mxu0 %v749
        %v861 = vpop.f32.mrb[0].mxu0
        %v862 = vadd.f32 %v646, %v861
        %v863 = vpop.f32.mrb[0].mxu0
        %v864 = vpop.f32.mrb[0].mxu0
        %v865 = vadd.f32 %v646, %v864
        %v866 = vpop.f32.mrb[0].mxu0
        %867 = vmatprep.mubr.bf16.mxu0 0
        %868 = vmatmul.mubr.bf16.gmra.mrb[0].mxu0 %v752
        %v869 = vpop.f32.mrb[0].mxu0
        %v870 = vadd.f32 %v646, %v869
        %v871 = vpop.f32.mrb[0].mxu0
        %v872 = vpop.f32.mrb[0].mxu0
        %v873 = vadd.f32 %v646, %v872
        %v874 = vpop.f32.mrb[0].mxu0
        %875 = vmatprep.mubr.bf16.mxu0 0
        %876 = vmatmul.mubr.bf16.gmra.mrb[0].mxu0 %v755
        %v877 = vpop.f32.mrb[0].mxu0
        %v878 = vadd.f32 %v646, %v877
        %v879 = vpop.f32.mrb[0].mxu0
        %v880 = vpop.f32.mrb[0].mxu0
        %v881 = vadd.f32 %v646, %v880
        %v882 = vpop.f32.mrb[0].mxu0
        %883 = vmatprep.mubr.bf16.mxu0 0
        %884 = vmatmul.mubr.bf16.gmra.mrb[0].mxu0 %v758
        %v885 = vpop.f32.mrb[0].mxu0
        %v886 = vadd.f32 %v646, %v885
        %v887 = vpop.f32.mrb[0].mxu0
        %v888 = vpop.f32.mrb[0].mxu0
        %v889 = vadd.f32 %v646, %v888
        %v890 = vpop.f32.mrb[0].mxu0
        %891 = vmatprep.mubr.bf16.mxu0 0
        %892 = vmatmul.mubr.bf16.gmra.mrb[0].mxu0 %v761
        %v893 = vpop.f32.mrb[0].mxu0
        %v894 = vadd.f32 %v646, %v893
        %v895 = vpop.f32.mrb[0].mxu0
        %v896 = vpop.f32.mrb[0].mxu0
        %v897 = vpop.f32.mrb[0].mxu0
        %898 = vdwg.mxu0
        %v899 = vmul.f32 %v798, 0.5
        %v900 = vmul.f32 %v801, 0.5
        %v901 = vmul.f32 %v806, 0.5
        %v902 = vmul.f32 %v809, 0.5
        %v903 = vmul.f32 %v814, 0.5
        %v904 = vmul.f32 %v817, 0.5
        %v905 = vmul.f32 %v822, 0.5
        %v906 = vmul.f32 %v825, 0.5
        %v907 = vmul.f32 %v830, 0.5
        %v908 = vmul.f32 %v833, 0.5
        %v909 = vmul.f32 %v838, 0.5
        %v910 = vmul.f32 %v841, 0.5
        %v911 = vmul.f32 %v846, 0.5
        %v912 = vmul.f32 %v849, 0.5
        %v913 = vmul.f32 %v854, 0.5
        %v914 = vmul.f32 %v857, 0.5
        %v915 = vmul.f32 %v862, 0.5
        %v916 = vmul.f32 %v865, 0.5
        %v917 = vmul.f32 %v870, 0.5
        %v918 = vmul.f32 %v873, 0.5
        %v919 = vmul.f32 %v878, 0.5
        %v920 = vmul.f32 %v881, 0.5
        %v921 = vmul.f32 %v886, 0.5
        %v922 = vmul.f32 %v889, 0.5
        %v923 = vmul.f32 %v894, 0.5
        %v924 = vtanh.pop %v899
        %v925 = vtanh.pop %v900
        %v926 = vtanh.pop %v901
        %v927 = vtanh.pop %v902
        %v928 = vtanh.pop %v903
        %v929 = vtanh.pop %v904
        %v930 = vtanh.pop %v905
        %v931 = vtanh.pop %v906
        %v932 = vtanh.pop %v907
        %v933 = vtanh.pop %v908
        %v934 = vtanh.pop %v909
        %v935 = vtanh.pop %v910
        %v936 = vtanh.pop %v911
        %v937 = vtanh.pop %v912
        %v938 = vtanh.pop %v913
        %v939 = vtanh.pop %v914
        %v940 = vtanh.pop %v915
        %v941 = vtanh.pop %v916
        %v942 = vtanh.pop %v917
        %v943 = vtanh.pop %v918
        %v944 = vtanh.pop %v919
        %v945 = vtanh.pop %v920
        %v946 = vtanh.pop %v921
        %v947 = vtanh.pop %v922
        %v948 = vtanh.pop %v923
        %v949 = vmul.f32 %v924, 0.5
        %v950 = vmul.f32 %v925, 0.5
        %v951 = vmul.f32 %v926, 0.5
        %v952 = vmul.f32 %v927, 0.5
        %v953 = vmul.f32 %v928, 0.5
        %v954 = vmul.f32 %v929, 0.5
        %v955 = vmul.f32 %v930, 0.5
        %v956 = vmul.f32 %v931, 0.5
        %v957 = vmul.f32 %v932, 0.5
        %v958 = vmul.f32 %v933, 0.5
        %v959 = vmul.f32 %v934, 0.5
        %v960 = vmul.f32 %v935, 0.5
        %v961 = vmul.f32 %v936, 0.5
        %v962 = vmul.f32 %v937, 0.5
        %v963 = vmul.f32 %v938, 0.5
        %v964 = vmul.f32 %v939, 0.5
        %v965 = vmul.f32 %v940, 0.5
        %v966 = vmul.f32 %v941, 0.5
        %v967 = vmul.f32 %v942, 0.5
        %v968 = vmul.f32 %v943, 0.5
        %v969 = vmul.f32 %v944, 0.5
        %v970 = vmul.f32 %v945, 0.5
        %v971 = vmul.f32 %v946, 0.5
        %v972 = vmul.f32 %v947, 0.5
        %v973 = vmul.f32 %v948, 0.5
        %v974 = vadd.f32 %v949, 0.5
        %v975 = vadd.f32 %v950, 0.5
        %v976 = vadd.f32 %v951, 0.5
        %v977 = vadd.f32 %v952, 0.5
        %v978 = vadd.f32 %v953, 0.5
        %v979 = vadd.f32 %v954, 0.5
        %v980 = vadd.f32 %v955, 0.5
        %v981 = vadd.f32 %v956, 0.5
        %v982 = vadd.f32 %v957, 0.5
        %v983 = vadd.f32 %v958, 0.5
        %v984 = vadd.f32 %v959, 0.5
        %v985 = vadd.f32 %v960, 0.5
        %v986 = vadd.f32 %v961, 0.5
        %v987 = vadd.f32 %v962, 0.5
        %v988 = vadd.f32 %v963, 0.5
        %v989 = vadd.f32 %v964, 0.5
        %v990 = vadd.f32 %v965, 0.5
        %v991 = vadd.f32 %v966, 0.5
        %v992 = vadd.f32 %v967, 0.5
        %v993 = vadd.f32 %v968, 0.5
        %v994 = vadd.f32 %v969, 0.5
        %v995 = vadd.f32 %v970, 0.5
        %v996 = vadd.f32 %v971, 0.5
        %v997 = vadd.f32 %v972, 0.5
        %v998 = vadd.f32 %v973, 0.5
        %s999 = scalar_lea.vmem %s583, 100 [#allocation2]
        %v1000 = vld [vmem:[%s999] sm:$0xf]
        %v1001 = vld [vmem:[%s999 + $0x4] sm:$0xf]
        %v1002 = vld [vmem:[%s999 + $0x8] sm:$0xf]
        %v1003 = vld [vmem:[%s999 + $0xc] sm:$0xf]
        %v1004 = vld [vmem:[%s999 + $0x10] sm:$0xf]
        %v1005 = vld [vmem:[%s999 + $0x14] sm:$0xf]
        %v1006 = vld [vmem:[%s999 + $0x18] sm:$0xf]
        %v1007 = vld [vmem:[%s999 + $0x1c] sm:$0xf]
        %v1008 = vld [vmem:[%s999 + $0x20] sm:$0xf]
        %v1009 = vld [vmem:[%s999 + $0x24] sm:$0xf]
        %v1010 = vld [vmem:[%s999 + $0x28] sm:$0xf]
        %v1011 = vld [vmem:[%s999 + $0x2c] sm:$0xf]
        %v1012 = vld [vmem:[%s999 + $0x30] sm:$0xf]
        %v1013 = vld [vmem:[%s999 + $0x34] sm:$0xf]
        %v1014 = vld [vmem:[%s999 + $0x38] sm:$0xf]
        %v1015 = vld [vmem:[%s999 + $0x3c] sm:$0xf]
        %v1016 = vld [vmem:[%s999 + $0x40] sm:$0xf]
        %v1017 = vld [vmem:[%s999 + $0x44] sm:$0xf]
        %v1018 = vld [vmem:[%s999 + $0x48] sm:$0xf]
        %v1019 = vld [vmem:[%s999 + $0x4c] sm:$0xf]
        %v1020 = vld [vmem:[%s999 + $0x50] sm:$0xf]
        %v1021 = vld [vmem:[%s999 + $0x54] sm:$0xf]
        %v1022 = vld [vmem:[%s999 + $0x58] sm:$0xf]
        %v1023 = vld [vmem:[%s999 + $0x5c] sm:$0xf]
        %v1024 = vld [vmem:[%s999 + $0x60] sm:$0xf]
        %v1050 = vunpack.c.l.b16 %v1000
        %v1051 = vunpack.c.l.b16 %v1001
        %v1052 = vunpack.c.l.b16 %v1002
        %v1053 = vunpack.c.l.b16 %v1003
        %v1054 = vunpack.c.l.b16 %v1004
        %v1055 = vunpack.c.l.b16 %v1005
        %v1056 = vunpack.c.l.b16 %v1006
        %v1057 = vunpack.c.l.b16 %v1007
        %v1058 = vunpack.c.l.b16 %v1008
        %v1059 = vunpack.c.l.b16 %v1009
        %v1060 = vunpack.c.l.b16 %v1010
        %v1061 = vunpack.c.l.b16 %v1011
        %v1062 = vunpack.c.l.b16 %v1012
        %v1063 = vunpack.c.l.b16 %v1013
        %v1064 = vunpack.c.l.b16 %v1014
        %v1065 = vunpack.c.l.b16 %v1015
        %v1066 = vunpack.c.l.b16 %v1016
        %v1067 = vunpack.c.l.b16 %v1017
        %v1068 = vunpack.c.l.b16 %v1018
        %v1069 = vunpack.c.l.b16 %v1019
        %v1070 = vunpack.c.l.b16 %v1020
        %v1071 = vunpack.c.l.b16 %v1021
        %v1072 = vunpack.c.l.b16 %v1022
        %v1073 = vunpack.c.l.b16 %v1023
        %v1074 = vunpack.c.l.b16 %v1024
        %v1075 = vpack.c.b16 %v1051, %v1050
        %v1076 = vpack.c.b16 %v1053, %v1052
        %v1077 = vpack.c.b16 %v1055, %v1054
        %v1078 = vpack.c.b16 %v1057, %v1056
        %v1079 = vpack.c.b16 %v1059, %v1058
        %v1080 = vpack.c.b16 %v1061, %v1060
        %v1081 = vpack.c.b16 %v1063, %v1062
        %v1082 = vpack.c.b16 %v1065, %v1064
        %v1083 = vpack.c.b16 %v1067, %v1066
        %v1084 = vpack.c.b16 %v1069, %v1068
        %v1085 = vpack.c.b16 %v1071, %v1070
        %v1086 = vpack.c.b16 %v1073, %v1072
        %v1087 = vpack.c.b16 %v1074, %v1074
        %v1089 = vsel %vm723, %v1075, 0
        %v1092 = vsel %vm723, %v1076, 0
        %v1095 = vsel %vm723, %v1077, 0
        %v1098 = vsel %vm723, %v1078, 0
        %v1101 = vsel %vm723, %v1079, 0
        %v1104 = vsel %vm723, %v1080, 0
        %v1107 = vsel %vm723, %v1081, 0
        %v1110 = vsel %vm723, %v1082, 0
        %v1113 = vsel %vm723, %v1083, 0
        %v1116 = vsel %vm723, %v1084, 0
        %v1119 = vsel %vm723, %v1085, 0
        %v1122 = vsel %vm723, %v1086, 0
        %v1125 = vsel %vm723, %v1087, 0
        %1127 = vmatprep.subr.bf16.mxu0 0
        %1128 = vmatpush1.bf16.msra.mxu0 %v719
        %1129 = vmatprep.subr.bf16.mxu0 0
        %1130 = vmatpush1.bf16.msra.mxu0 %v720
        %1131 = vmatprep.subr.bf16.mxu0 0
        %1132 = vmatpush1.bf16.msra.mxu0 0
        %1133 = vmatprep.subr.bf16.mxu0 0
        %1134 = vmatpush1.bf16.msra.mxu0 0
        %1135 = vmatprep.subr.bf16.mxu0 0
        %1136 = vmatpush1.bf16.msra.mxu0 0
        %1137 = vmatprep.subr.bf16.mxu0 0
        %1138 = vmatpush1.bf16.msra.mxu0 0
        %1139 = vmatprep.subr.bf16.mxu0 0
        %1140 = vmatpush1.bf16.msra.mxu0 0
        %1141 = vmatprep.subr.bf16.mxu0 0
        %1142 = vmatpush1.bf16.msra.mxu0 0
        %1143 = vmatprep.subr.bf16.mxu0 0
        %1144 = vmatpush1.bf16.msra.mxu0 0
        %1145 = vmatprep.subr.bf16.mxu0 0
        %1146 = vmatpush1.bf16.msra.mxu0 0
        %1147 = vmatprep.subr.bf16.mxu0 0
        %1148 = vmatpush1.bf16.msra.mxu0 0
        %1149 = vmatprep.subr.bf16.mxu0 0
        %1150 = vmatpush1.bf16.msra.mxu0 0
        %1151 = vmatprep.subr.bf16.mxu0 0
        %1152 = vmatpush1.bf16.msra.mxu0 0
        %1153 = vmatprep.subr.bf16.mxu0 0
        %1154 = vmatpush1.bf16.msra.mxu0 0
        %1155 = vmatprep.subr.bf16.mxu0 0
        %1156 = vmatpush1.bf16.msra.mxu0 0
        %1157 = vmatprep.subr.bf16.mxu0 0
        %1158 = vmatpush1.bf16.msra.mxu0 0
        %1159 = vmatprep.mubr.bf16.mxu0 0
        %1160 = vmatmul.mubr.bf16.gmra.mrb[0].mxu0 %v1089
        %v1161 = vpop.f32.mrb[0].mxu0
        %v1162 = vadd.f32 %v646, %v1161
        %v1163 = vpop.f32.mrb[0].mxu0
        %v1164 = vpop.f32.mrb[0].mxu0
        %v1165 = vadd.f32 %v646, %v1164
        %v1166 = vpop.f32.mrb[0].mxu0
        %1167 = vmatprep.mubr.bf16.mxu0 0
        %1168 = vmatmul.mubr.bf16.gmra.mrb[0].mxu0 %v1092
        %v1169 = vpop.f32.mrb[0].mxu0
        %v1170 = vadd.f32 %v646, %v1169
        %v1171 = vpop.f32.mrb[0].mxu0
        %v1172 = vpop.f32.mrb[0].mxu0
        %v1173 = vadd.f32 %v646, %v1172
        %v1174 = vpop.f32.mrb[0].mxu0
        %1175 = vmatprep.mubr.bf16.mxu0 0
        %1176 = vmatmul.mubr.bf16.gmra.mrb[0].mxu0 %v1095
        %v1177 = vpop.f32.mrb[0].mxu0
        %v1178 = vadd.f32 %v646, %v1177
        %v1179 = vpop.f32.mrb[0].mxu0
        %v1180 = vpop.f32.mrb[0].mxu0
        %v1181 = vadd.f32 %v646, %v1180
        %v1182 = vpop.f32.mrb[0].mxu0
        %1183 = vmatprep.mubr.bf16.mxu0 0
        %1184 = vmatmul.mubr.bf16.gmra.mrb[0].mxu0 %v1098
        %v1185 = vpop.f32.mrb[0].mxu0
        %v1186 = vadd.f32 %v646, %v1185
        %v1187 = vpop.f32.mrb[0].mxu0
        %v1188 = vpop.f32.mrb[0].mxu0
        %v1189 = vadd.f32 %v646, %v1188
        %v1190 = vpop.f32.mrb[0].mxu0
        %1191 = vmatprep.mubr.bf16.mxu0 0
        %1192 = vmatmul.mubr.bf16.gmra.mrb[0].mxu0 %v1101
        %v1193 = vpop.f32.mrb[0].mxu0
        %v1194 = vadd.f32 %v646, %v1193
        %v1195 = vpop.f32.mrb[0].mxu0
        %v1196 = vpop.f32.mrb[0].mxu0
        %v1197 = vadd.f32 %v646, %v1196
        %v1198 = vpop.f32.mrb[0].mxu0
        %1199 = vmatprep.mubr.bf16.mxu0 0
        %1200 = vmatmul.mubr.bf16.gmra.mrb[0].mxu0 %v1104
        %v1201 = vpop.f32.mrb[0].mxu0
        %v1202 = vadd.f32 %v646, %v1201
        %v1203 = vpop.f32.mrb[0].mxu0
        %v1204 = vpop.f32.mrb[0].mxu0
        %v1205 = vadd.f32 %v646, %v1204
        %v1206 = vpop.f32.mrb[0].mxu0
        %1207 = vmatprep.mubr.bf16.mxu0 0
        %1208 = vmatmul.mubr.bf16.gmra.mrb[0].mxu0 %v1107
        %v1209 = vpop.f32.mrb[0].mxu0
        %v1210 = vadd.f32 %v646, %v1209
        %v1211 = vpop.f32.mrb[0].mxu0
        %v1212 = vpop.f32.mrb[0].mxu0
        %v1213 = vadd.f32 %v646, %v1212
        %v1214 = vpop.f32.mrb[0].mxu0
        %1215 = vmatprep.mubr.bf16.mxu0 0
        %1216 = vmatmul.mubr.bf16.gmra.mrb[0].mxu0 %v1110
        %v1217 = vpop.f32.mrb[0].mxu0
        %v1218 = vadd.f32 %v646, %v1217
        %v1219 = vpop.f32.mrb[0].mxu0
        %v1220 = vpop.f32.mrb[0].mxu0
        %v1221 = vadd.f32 %v646, %v1220
        %v1222 = vpop.f32.mrb[0].mxu0
        %1223 = vmatprep.mubr.bf16.mxu0 0
        %1224 = vmatmul.mubr.bf16.gmra.mrb[0].mxu0 %v1113
        %v1225 = vpop.f32.mrb[0].mxu0
        %v1226 = vadd.f32 %v646, %v1225
        %v1227 = vpop.f32.mrb[0].mxu0
        %v1228 = vpop.f32.mrb[0].mxu0
        %v1229 = vadd.f32 %v646, %v1228
        %v1230 = vpop.f32.mrb[0].mxu0
        %1231 = vmatprep.mubr.bf16.mxu0 0
        %1232 = vmatmul.mubr.bf16.gmra.mrb[0].mxu0 %v1116
        %v1233 = vpop.f32.mrb[0].mxu0
        %v1234 = vadd.f32 %v646, %v1233
        %v1235 = vpop.f32.mrb[0].mxu0
        %v1236 = vpop.f32.mrb[0].mxu0
        %v1237 = vadd.f32 %v646, %v1236
        %v1238 = vpop.f32.mrb[0].mxu0
        %1239 = vmatprep.mubr.bf16.mxu0 0
        %1240 = vmatmul.mubr.bf16.gmra.mrb[0].mxu0 %v1119
        %v1241 = vpop.f32.mrb[0].mxu0
        %v1242 = vadd.f32 %v646, %v1241
        %v1243 = vpop.f32.mrb[0].mxu0
        %v1244 = vpop.f32.mrb[0].mxu0
        %v1245 = vadd.f32 %v646, %v1244
        %v1246 = vpop.f32.mrb[0].mxu0
        %1247 = vmatprep.mubr.bf16.mxu0 0
        %1248 = vmatmul.mubr.bf16.gmra.mrb[0].mxu0 %v1122
        %v1249 = vpop.f32.mrb[0].mxu0
        %v1250 = vadd.f32 %v646, %v1249
        %v1251 = vpop.f32.mrb[0].mxu0
        %v1252 = vpop.f32.mrb[0].mxu0
        %v1253 = vadd.f32 %v646, %v1252
        %v1254 = vpop.f32.mrb[0].mxu0
        %1255 = vmatprep.mubr.bf16.mxu0 0
        %1256 = vmatmul.mubr.bf16.gmra.mrb[0].mxu0 %v1125
        %v1257 = vpop.f32.mrb[0].mxu0
        %v1258 = vadd.f32 %v646, %v1257
        %v1259 = vpop.f32.mrb[0].mxu0
        %v1260 = vpop.f32.mrb[0].mxu0
        %v1261 = vpop.f32.mrb[0].mxu0
        %1262 = vdwg.mxu0
        %v1263 = vmul.f32 %v1162, 0.5
        %v1264 = vmul.f32 %v1165, 0.5
        %v1265 = vmul.f32 %v1170, 0.5
        %v1266 = vmul.f32 %v1173, 0.5
        %v1267 = vmul.f32 %v1178, 0.5
        %v1268 = vmul.f32 %v1181, 0.5
        %v1269 = vmul.f32 %v1186, 0.5
        %v1270 = vmul.f32 %v1189, 0.5
        %v1271 = vmul.f32 %v1194, 0.5
        %v1272 = vmul.f32 %v1197, 0.5
        %v1273 = vmul.f32 %v1202, 0.5
        %v1274 = vmul.f32 %v1205, 0.5
        %v1275 = vmul.f32 %v1210, 0.5
        %v1276 = vmul.f32 %v1213, 0.5
        %v1277 = vmul.f32 %v1218, 0.5
        %v1278 = vmul.f32 %v1221, 0.5
        %v1279 = vmul.f32 %v1226, 0.5
        %v1280 = vmul.f32 %v1229, 0.5
        %v1281 = vmul.f32 %v1234, 0.5
        %v1282 = vmul.f32 %v1237, 0.5
        %v1283 = vmul.f32 %v1242, 0.5
        %v1284 = vmul.f32 %v1245, 0.5
        %v1285 = vmul.f32 %v1250, 0.5
        %v1286 = vmul.f32 %v1253, 0.5
        %v1287 = vmul.f32 %v1258, 0.5
        %v1288 = vtanh.pop %v1263
        %v1289 = vtanh.pop %v1264
        %v1290 = vtanh.pop %v1265
        %v1291 = vtanh.pop %v1266
        %v1292 = vtanh.pop %v1267
        %v1293 = vtanh.pop %v1268
        %v1294 = vtanh.pop %v1269
        %v1295 = vtanh.pop %v1270
        %v1296 = vtanh.pop %v1271
        %v1297 = vtanh.pop %v1272
        %v1298 = vtanh.pop %v1273
        %v1299 = vtanh.pop %v1274
        %v1300 = vtanh.pop %v1275
        %v1301 = vtanh.pop %v1276
        %v1302 = vtanh.pop %v1277
        %v1303 = vtanh.pop %v1278
        %v1304 = vtanh.pop %v1279
        %v1305 = vtanh.pop %v1280
        %v1306 = vtanh.pop %v1281
        %v1307 = vtanh.pop %v1282
        %v1308 = vtanh.pop %v1283
        %v1309 = vtanh.pop %v1284
        %v1310 = vtanh.pop %v1285
        %v1311 = vtanh.pop %v1286
        %v1312 = vtanh.pop %v1287
        %v1313 = vmul.f32 %v1288, 0.5
        %v1314 = vmul.f32 %v1289, 0.5
        %v1315 = vmul.f32 %v1290, 0.5
        %v1316 = vmul.f32 %v1291, 0.5
        %v1317 = vmul.f32 %v1292, 0.5
        %v1318 = vmul.f32 %v1293, 0.5
        %v1319 = vmul.f32 %v1294, 0.5
        %v1320 = vmul.f32 %v1295, 0.5
        %v1321 = vmul.f32 %v1296, 0.5
        %v1322 = vmul.f32 %v1297, 0.5
        %v1323 = vmul.f32 %v1298, 0.5
        %v1324 = vmul.f32 %v1299, 0.5
        %v1325 = vmul.f32 %v1300, 0.5
        %v1326 = vmul.f32 %v1301, 0.5
        %v1327 = vmul.f32 %v1302, 0.5
        %v1328 = vmul.f32 %v1303, 0.5
        %v1329 = vmul.f32 %v1304, 0.5
        %v1330 = vmul.f32 %v1305, 0.5
        %v1331 = vmul.f32 %v1306, 0.5
        %v1332 = vmul.f32 %v1307, 0.5
        %v1333 = vmul.f32 %v1308, 0.5
        %v1334 = vmul.f32 %v1309, 0.5
        %v1335 = vmul.f32 %v1310, 0.5
        %v1336 = vmul.f32 %v1311, 0.5
        %v1337 = vmul.f32 %v1312, 0.5
        %v1338 = vadd.f32 %v1313, 0.5
        %v1339 = vadd.f32 %v1314, 0.5
        %v1340 = vadd.f32 %v1315, 0.5
        %v1341 = vadd.f32 %v1316, 0.5
        %v1342 = vadd.f32 %v1317, 0.5
        %v1343 = vadd.f32 %v1318, 0.5
        %v1344 = vadd.f32 %v1319, 0.5
        %v1345 = vadd.f32 %v1320, 0.5
        %v1346 = vadd.f32 %v1321, 0.5
        %v1347 = vadd.f32 %v1322, 0.5
        %v1348 = vadd.f32 %v1323, 0.5
        %v1349 = vadd.f32 %v1324, 0.5
        %v1350 = vadd.f32 %v1325, 0.5
        %v1351 = vadd.f32 %v1326, 0.5
        %v1352 = vadd.f32 %v1327, 0.5
        %v1353 = vadd.f32 %v1328, 0.5
        %v1354 = vadd.f32 %v1329, 0.5
        %v1355 = vadd.f32 %v1330, 0.5
        %v1356 = vadd.f32 %v1331, 0.5
        %v1357 = vadd.f32 %v1332, 0.5
        %v1358 = vadd.f32 %v1333, 0.5
        %v1359 = vadd.f32 %v1334, 0.5
        %v1360 = vadd.f32 %v1335, 0.5
        %v1361 = vadd.f32 %v1336, 0.5
        %v1362 = vadd.f32 %v1337, 0.5
        %v1363 = vadd.f32 %v974, %v1338
        %v1364 = vadd.f32 %v975, %v1339
        %v1365 = vadd.f32 %v976, %v1340
        %v1366 = vadd.f32 %v977, %v1341
        %v1367 = vadd.f32 %v978, %v1342
        %v1368 = vadd.f32 %v979, %v1343
        %v1369 = vadd.f32 %v980, %v1344
        %v1370 = vadd.f32 %v981, %v1345
        %v1371 = vadd.f32 %v982, %v1346
        %v1372 = vadd.f32 %v983, %v1347
        %v1373 = vadd.f32 %v984, %v1348
        %v1374 = vadd.f32 %v985, %v1349
        %v1375 = vadd.f32 %v986, %v1350
        %v1376 = vadd.f32 %v987, %v1351
        %v1377 = vadd.f32 %v988, %v1352
        %v1378 = vadd.f32 %v989, %v1353
        %v1379 = vadd.f32 %v990, %v1354
        %v1380 = vadd.f32 %v991, %v1355
        %v1381 = vadd.f32 %v992, %v1356
        %v1382 = vadd.f32 %v993, %v1357
        %v1383 = vadd.f32 %v994, %v1358
        %v1384 = vadd.f32 %v995, %v1359
        %v1385 = vadd.f32 %v996, %v1360
        %v1386 = vadd.f32 %v997, %v1361
        %v1387 = vadd.f32 %v998, %v1362
        %s1388 = scalar_lea.vmem %s583, 200 [#allocation2]
        %v1389 = vld [vmem:[%s1388] sm:$0xf]
        %v1390 = vld [vmem:[%s1388 + $0x4] sm:$0xf]
        %v1391 = vld [vmem:[%s1388 + $0x8] sm:$0xf]
        %v1392 = vld [vmem:[%s1388 + $0xc] sm:$0xf]
        %v1393 = vld [vmem:[%s1388 + $0x10] sm:$0xf]
        %v1394 = vld [vmem:[%s1388 + $0x14] sm:$0xf]
        %v1395 = vld [vmem:[%s1388 + $0x18] sm:$0xf]
        %v1396 = vld [vmem:[%s1388 + $0x1c] sm:$0xf]
        %v1397 = vld [vmem:[%s1388 + $0x20] sm:$0xf]
        %v1398 = vld [vmem:[%s1388 + $0x24] sm:$0xf]
        %v1399 = vld [vmem:[%s1388 + $0x28] sm:$0xf]
        %v1400 = vld [vmem:[%s1388 + $0x2c] sm:$0xf]
        %v1401 = vld [vmem:[%s1388 + $0x30] sm:$0xf]
        %v1402 = vld [vmem:[%s1388 + $0x34] sm:$0xf]
        %v1403 = vld [vmem:[%s1388 + $0x38] sm:$0xf]
        %v1404 = vld [vmem:[%s1388 + $0x3c] sm:$0xf]
        %v1405 = vld [vmem:[%s1388 + $0x40] sm:$0xf]
        %v1406 = vld [vmem:[%s1388 + $0x44] sm:$0xf]
        %v1407 = vld [vmem:[%s1388 + $0x48] sm:$0xf]
        %v1408 = vld [vmem:[%s1388 + $0x4c] sm:$0xf]
        %v1409 = vld [vmem:[%s1388 + $0x50] sm:$0xf]
        %v1410 = vld [vmem:[%s1388 + $0x54] sm:$0xf]
        %v1411 = vld [vmem:[%s1388 + $0x58] sm:$0xf]
        %v1412 = vld [vmem:[%s1388 + $0x5c] sm:$0xf]
        %v1413 = vld [vmem:[%s1388 + $0x60] sm:$0xf]
        %v1439 = vunpack.c.l.b16 %v1389
        %v1440 = vunpack.c.l.b16 %v1390
        %v1441 = vunpack.c.l.b16 %v1391
        %v1442 = vunpack.c.l.b16 %v1392
        %v1443 = vunpack.c.l.b16 %v1393
        %v1444 = vunpack.c.l.b16 %v1394
        %v1445 = vunpack.c.l.b16 %v1395
        %v1446 = vunpack.c.l.b16 %v1396
        %v1447 = vunpack.c.l.b16 %v1397
        %v1448 = vunpack.c.l.b16 %v1398
        %v1449 = vunpack.c.l.b16 %v1399
        %v1450 = vunpack.c.l.b16 %v1400
        %v1451 = vunpack.c.l.b16 %v1401
        %v1452 = vunpack.c.l.b16 %v1402
        %v1453 = vunpack.c.l.b16 %v1403
        %v1454 = vunpack.c.l.b16 %v1404
        %v1455 = vunpack.c.l.b16 %v1405
        %v1456 = vunpack.c.l.b16 %v1406
        %v1457 = vunpack.c.l.b16 %v1407
        %v1458 = vunpack.c.l.b16 %v1408
        %v1459 = vunpack.c.l.b16 %v1409
        %v1460 = vunpack.c.l.b16 %v1410
        %v1461 = vunpack.c.l.b16 %v1411
        %v1462 = vunpack.c.l.b16 %v1412
        %v1463 = vunpack.c.l.b16 %v1413
        %v1464 = vpack.c.b16 %v1440, %v1439
        %v1465 = vpack.c.b16 %v1442, %v1441
        %v1466 = vpack.c.b16 %v1444, %v1443
        %v1467 = vpack.c.b16 %v1446, %v1445
        %v1468 = vpack.c.b16 %v1448, %v1447
        %v1469 = vpack.c.b16 %v1450, %v1449
        %v1470 = vpack.c.b16 %v1452, %v1451
        %v1471 = vpack.c.b16 %v1454, %v1453
        %v1472 = vpack.c.b16 %v1456, %v1455
        %v1473 = vpack.c.b16 %v1458, %v1457
        %v1474 = vpack.c.b16 %v1460, %v1459
        %v1475 = vpack.c.b16 %v1462, %v1461
        %v1476 = vpack.c.b16 %v1463, %v1463
        %v1478 = vsel %vm723, %v1464, 0
        %v1481 = vsel %vm723, %v1465, 0
        %v1484 = vsel %vm723, %v1466, 0
        %v1487 = vsel %vm723, %v1467, 0
        %v1490 = vsel %vm723, %v1468, 0
        %v1493 = vsel %vm723, %v1469, 0
        %v1496 = vsel %vm723, %v1470, 0
        %v1499 = vsel %vm723, %v1471, 0
        %v1502 = vsel %vm723, %v1472, 0
        %v1505 = vsel %vm723, %v1473, 0
        %v1508 = vsel %vm723, %v1474, 0
        %v1511 = vsel %vm723, %v1475, 0
        %v1514 = vsel %vm723, %v1476, 0
        %1516 = vmatprep.subr.bf16.mxu0 0
        %1517 = vmatpush1.bf16.msra.mxu0 %v719
        %1518 = vmatprep.subr.bf16.mxu0 0
        %1519 = vmatpush1.bf16.msra.mxu0 %v720
        %1520 = vmatprep.subr.bf16.mxu0 0
        %1521 = vmatpush1.bf16.msra.mxu0 0
        %1522 = vmatprep.subr.bf16.mxu0 0
        %1523 = vmatpush1.bf16.msra.mxu0 0
        %1524 = vmatprep.subr.bf16.mxu0 0
        %1525 = vmatpush1.bf16.msra.mxu0 0
        %1526 = vmatprep.subr.bf16.mxu0 0
        %1527 = vmatpush1.bf16.msra.mxu0 0
        %1528 = vmatprep.subr.bf16.mxu0 0
        %1529 = vmatpush1.bf16.msra.mxu0 0
        %1530 = vmatprep.subr.bf16.mxu0 0
        %1531 = vmatpush1.bf16.msra.mxu0 0
        %1532 = vmatprep.subr.bf16.mxu0 0
        %1533 = vmatpush1.bf16.msra.mxu0 0
        %1534 = vmatprep.subr.bf16.mxu0 0
        %1535 = vmatpush1.bf16.msra.mxu0 0
        %1536 = vmatprep.subr.bf16.mxu0 0
        %1537 = vmatpush1.bf16.msra.mxu0 0
        %1538 = vmatprep.subr.bf16.mxu0 0
        %1539 = vmatpush1.bf16.msra.mxu0 0
        %1540 = vmatprep.subr.bf16.mxu0 0
        %1541 = vmatpush1.bf16.msra.mxu0 0
        %1542 = vmatprep.subr.bf16.mxu0 0
        %1543 = vmatpush1.bf16.msra.mxu0 0
        %1544 = vmatprep.subr.bf16.mxu0 0
        %1545 = vmatpush1.bf16.msra.mxu0 0
        %1546 = vmatprep.subr.bf16.mxu0 0
        %1547 = vmatpush1.bf16.msra.mxu0 0
        %1548 = vmatprep.mubr.bf16.mxu0 0
        %1549 = vmatmul.mubr.bf16.gmra.mrb[0].mxu0 %v1478
        %v1550 = vpop.f32.mrb[0].mxu0
        %v1551 = vadd.f32 %v646, %v1550
        %v1552 = vpop.f32.mrb[0].mxu0
        %v1553 = vpop.f32.mrb[0].mxu0
        %v1554 = vadd.f32 %v646, %v1553
        %v1555 = vpop.f32.mrb[0].mxu0
        %1556 = vmatprep.mubr.bf16.mxu0 0
        %1557 = vmatmul.mubr.bf16.gmra.mrb[0].mxu0 %v1481
        %v1558 = vpop.f32.mrb[0].mxu0
        %v1559 = vadd.f32 %v646, %v1558
        %v1560 = vpop.f32.mrb[0].mxu0
        %v1561 = vpop.f32.mrb[0].mxu0
        %v1562 = vadd.f32 %v646, %v1561
        %v1563 = vpop.f32.mrb[0].mxu0
        %1564 = vmatprep.mubr.bf16.mxu0 0
        %1565 = vmatmul.mubr.bf16.gmra.mrb[0].mxu0 %v1484
        %v1566 = vpop.f32.mrb[0].mxu0
        %v1567 = vadd.f32 %v646, %v1566
        %v1568 = vpop.f32.mrb[0].mxu0
        %v1569 = vpop.f32.mrb[0].mxu0
        %v1570 = vadd.f32 %v646, %v1569
        %v1571 = vpop.f32.mrb[0].mxu0
        %1572 = vmatprep.mubr.bf16.mxu0 0
        %1573 = vmatmul.mubr.bf16.gmra.mrb[0].mxu0 %v1487
        %v1574 = vpop.f32.mrb[0].mxu0
        %v1575 = vadd.f32 %v646, %v1574
        %v1576 = vpop.f32.mrb[0].mxu0
        %v1577 = vpop.f32.mrb[0].mxu0
        %v1578 = vadd.f32 %v646, %v1577
        %v1579 = vpop.f32.mrb[0].mxu0
        %1580 = vmatprep.mubr.bf16.mxu0 0
        %1581 = vmatmul.mubr.bf16.gmra.mrb[0].mxu0 %v1490
        %v1582 = vpop.f32.mrb[0].mxu0
        %v1583 = vadd.f32 %v646, %v1582
        %v1584 = vpop.f32.mrb[0].mxu0
        %v1585 = vpop.f32.mrb[0].mxu0
        %v1586 = vadd.f32 %v646, %v1585
        %v1587 = vpop.f32.mrb[0].mxu0
        %1588 = vmatprep.mubr.bf16.mxu0 0
        %1589 = vmatmul.mubr.bf16.gmra.mrb[0].mxu0 %v1493
        %v1590 = vpop.f32.mrb[0].mxu0
        %v1591 = vadd.f32 %v646, %v1590
        %v1592 = vpop.f32.mrb[0].mxu0
        %v1593 = vpop.f32.mrb[0].mxu0
        %v1594 = vadd.f32 %v646, %v1593
        %v1595 = vpop.f32.mrb[0].mxu0
        %1596 = vmatprep.mubr.bf16.mxu0 0
        %1597 = vmatmul.mubr.bf16.gmra.mrb[0].mxu0 %v1496
        %v1598 = vpop.f32.mrb[0].mxu0
        %v1599 = vadd.f32 %v646, %v1598
        %v1600 = vpop.f32.mrb[0].mxu0
        %v1601 = vpop.f32.mrb[0].mxu0
        %v1602 = vadd.f32 %v646, %v1601
        %v1603 = vpop.f32.mrb[0].mxu0
        %1604 = vmatprep.mubr.bf16.mxu0 0
        %1605 = vmatmul.mubr.bf16.gmra.mrb[0].mxu0 %v1499
        %v1606 = vpop.f32.mrb[0].mxu0
        %v1607 = vadd.f32 %v646, %v1606
        %v1608 = vpop.f32.mrb[0].mxu0
        %v1609 = vpop.f32.mrb[0].mxu0
        %v1610 = vadd.f32 %v646, %v1609
        %v1611 = vpop.f32.mrb[0].mxu0
        %1612 = vmatprep.mubr.bf16.mxu0 0
        %1613 = vmatmul.mubr.bf16.gmra.mrb[0].mxu0 %v1502
        %v1614 = vpop.f32.mrb[0].mxu0
        %v1615 = vadd.f32 %v646, %v1614
        %v1616 = vpop.f32.mrb[0].mxu0
        %v1617 = vpop.f32.mrb[0].mxu0
        %v1618 = vadd.f32 %v646, %v1617
        %v1619 = vpop.f32.mrb[0].mxu0
        %1620 = vmatprep.mubr.bf16.mxu0 0
        %1621 = vmatmul.mubr.bf16.gmra.mrb[0].mxu0 %v1505
        %v1622 = vpop.f32.mrb[0].mxu0
        %v1623 = vadd.f32 %v646, %v1622
        %v1624 = vpop.f32.mrb[0].mxu0
        %v1625 = vpop.f32.mrb[0].mxu0
        %v1626 = vadd.f32 %v646, %v1625
        %v1627 = vpop.f32.mrb[0].mxu0
        %1628 = vmatprep.mubr.bf16.mxu0 0
        %1629 = vmatmul.mubr.bf16.gmra.mrb[0].mxu0 %v1508
        %v1630 = vpop.f32.mrb[0].mxu0
        %v1631 = vadd.f32 %v646, %v1630
        %v1632 = vpop.f32.mrb[0].mxu0
        %v1633 = vpop.f32.mrb[0].mxu0
        %v1634 = vadd.f32 %v646, %v1633
        %v1635 = vpop.f32.mrb[0].mxu0
        %1636 = vmatprep.mubr.bf16.mxu0 0
        %1637 = vmatmul.mubr.bf16.gmra.mrb[0].mxu0 %v1511
        %v1638 = vpop.f32.mrb[0].mxu0
        %v1639 = vadd.f32 %v646, %v1638
        %v1640 = vpop.f32.mrb[0].mxu0
        %v1641 = vpop.f32.mrb[0].mxu0
        %v1642 = vadd.f32 %v646, %v1641
        %v1643 = vpop.f32.mrb[0].mxu0
        %1644 = vmatprep.mubr.bf16.mxu0 0
        %1645 = vmatmul.mubr.bf16.gmra.mrb[0].mxu0 %v1514
        %v1646 = vpop.f32.mrb[0].mxu0
        %v1647 = vadd.f32 %v646, %v1646
        %v1648 = vpop.f32.mrb[0].mxu0
        %v1649 = vpop.f32.mrb[0].mxu0
        %v1650 = vpop.f32.mrb[0].mxu0
        %1651 = vdwg.mxu0
        %v1652 = vmul.f32 %v1551, 0.5
        %v1653 = vmul.f32 %v1554, 0.5
        %v1654 = vmul.f32 %v1559, 0.5
        %v1655 = vmul.f32 %v1562, 0.5
        %v1656 = vmul.f32 %v1567, 0.5
        %v1657 = vmul.f32 %v1570, 0.5
        %v1658 = vmul.f32 %v1575, 0.5
        %v1659 = vmul.f32 %v1578, 0.5
        %v1660 = vmul.f32 %v1583, 0.5
        %v1661 = vmul.f32 %v1586, 0.5
        %v1662 = vmul.f32 %v1591, 0.5
        %v1663 = vmul.f32 %v1594, 0.5
        %v1664 = vmul.f32 %v1599, 0.5
        %v1665 = vmul.f32 %v1602, 0.5
        %v1666 = vmul.f32 %v1607, 0.5
        %v1667 = vmul.f32 %v1610, 0.5
        %v1668 = vmul.f32 %v1615, 0.5
        %v1669 = vmul.f32 %v1618, 0.5
        %v1670 = vmul.f32 %v1623, 0.5
        %v1671 = vmul.f32 %v1626, 0.5
        %v1672 = vmul.f32 %v1631, 0.5
        %v1673 = vmul.f32 %v1634, 0.5
        %v1674 = vmul.f32 %v1639, 0.5
        %v1675 = vmul.f32 %v1642, 0.5
        %v1676 = vmul.f32 %v1647, 0.5
        %v1677 = vtanh.pop %v1652
        %v1678 = vtanh.pop %v1653
        %v1679 = vtanh.pop %v1654
        %v1680 = vtanh.pop %v1655
        %v1681 = vtanh.pop %v1656
        %v1682 = vtanh.pop %v1657
        %v1683 = vtanh.pop %v1658
        %v1684 = vtanh.pop %v1659
        %v1685 = vtanh.pop %v1660
        %v1686 = vtanh.pop %v1661
        %v1687 = vtanh.pop %v1662
        %v1688 = vtanh.pop %v1663
        %v1689 = vtanh.pop %v1664
        %v1690 = vtanh.pop %v1665
        %v1691 = vtanh.pop %v1666
        %v1692 = vtanh.pop %v1667
        %v1693 = vtanh.pop %v1668
        %v1694 = vtanh.pop %v1669
        %v1695 = vtanh.pop %v1670
        %v1696 = vtanh.pop %v1671
        %v1697 = vtanh.pop %v1672
        %v1698 = vtanh.pop %v1673
        %v1699 = vtanh.pop %v1674
        %v1700 = vtanh.pop %v1675
        %v1701 = vtanh.pop %v1676
        %v1702 = vmul.f32 %v1677, 0.5
        %v1703 = vmul.f32 %v1678, 0.5
        %v1704 = vmul.f32 %v1679, 0.5
        %v1705 = vmul.f32 %v1680, 0.5
        %v1706 = vmul.f32 %v1681, 0.5
        %v1707 = vmul.f32 %v1682, 0.5
        %v1708 = vmul.f32 %v1683, 0.5
        %v1709 = vmul.f32 %v1684, 0.5
        %v1710 = vmul.f32 %v1685, 0.5
        %v1711 = vmul.f32 %v1686, 0.5
        %v1712 = vmul.f32 %v1687, 0.5
        %v1713 = vmul.f32 %v1688, 0.5
        %v1714 = vmul.f32 %v1689, 0.5
        %v1715 = vmul.f32 %v1690, 0.5
        %v1716 = vmul.f32 %v1691, 0.5
        %v1717 = vmul.f32 %v1692, 0.5
        %v1718 = vmul.f32 %v1693, 0.5
        %v1719 = vmul.f32 %v1694, 0.5
        %v1720 = vmul.f32 %v1695, 0.5
        %v1721 = vmul.f32 %v1696, 0.5
        %v1722 = vmul.f32 %v1697, 0.5
        %v1723 = vmul.f32 %v1698, 0.5
        %v1724 = vmul.f32 %v1699, 0.5
        %v1725 = vmul.f32 %v1700, 0.5
        %v1726 = vmul.f32 %v1701, 0.5
        %v1727 = vadd.f32 %v1702, 0.5
        %v1728 = vadd.f32 %v1703, 0.5
        %v1729 = vadd.f32 %v1704, 0.5
        %v1730 = vadd.f32 %v1705, 0.5
        %v1731 = vadd.f32 %v1706, 0.5
        %v1732 = vadd.f32 %v1707, 0.5
        %v1733 = vadd.f32 %v1708, 0.5
        %v1734 = vadd.f32 %v1709, 0.5
        %v1735 = vadd.f32 %v1710, 0.5
        %v1736 = vadd.f32 %v1711, 0.5
        %v1737 = vadd.f32 %v1712, 0.5
        %v1738 = vadd.f32 %v1713, 0.5
        %v1739 = vadd.f32 %v1714, 0.5
        %v1740 = vadd.f32 %v1715, 0.5
        %v1741 = vadd.f32 %v1716, 0.5
        %v1742 = vadd.f32 %v1717, 0.5
        %v1743 = vadd.f32 %v1718, 0.5
        %v1744 = vadd.f32 %v1719, 0.5
        %v1745 = vadd.f32 %v1720, 0.5
        %v1746 = vadd.f32 %v1721, 0.5
        %v1747 = vadd.f32 %v1722, 0.5
        %v1748 = vadd.f32 %v1723, 0.5
        %v1749 = vadd.f32 %v1724, 0.5
        %v1750 = vadd.f32 %v1725, 0.5
        %v1751 = vadd.f32 %v1726, 0.5
        %v1752 = vadd.f32 %v1363, %v1727
        %v1753 = vadd.f32 %v1364, %v1728
        %v1754 = vadd.f32 %v1365, %v1729
        %v1755 = vadd.f32 %v1366, %v1730
        %v1756 = vadd.f32 %v1367, %v1731
        %v1757 = vadd.f32 %v1368, %v1732
        %v1758 = vadd.f32 %v1369, %v1733
        %v1759 = vadd.f32 %v1370, %v1734
        %v1760 = vadd.f32 %v1371, %v1735
        %v1761 = vadd.f32 %v1372, %v1736
        %v1762 = vadd.f32 %v1373, %v1737
        %v1763 = vadd.f32 %v1374, %v1738
        %v1764 = vadd.f32 %v1375, %v1739
        %v1765 = vadd.f32 %v1376, %v1740
        %v1766 = vadd.f32 %v1377, %v1741
        %v1767 = vadd.f32 %v1378, %v1742
        %v1768 = vadd.f32 %v1379, %v1743
        %v1769 = vadd.f32 %v1380, %v1744
        %v1770 = vadd.f32 %v1381, %v1745
        %v1771 = vadd.f32 %v1382, %v1746
        %v1772 = vadd.f32 %v1383, %v1747
        %v1773 = vadd.f32 %v1384, %v1748
        %v1774 = vadd.f32 %v1385, %v1749
        %v1775 = vadd.f32 %v1386, %v1750
        %v1776 = vadd.f32 %v1387, %v1751
        %s1777 = scalar_lea.vmem %s583, 300 [#allocation2]
        %v1778 = vld [vmem:[%s1777] sm:$0xf]
        %v1779 = vld [vmem:[%s1777 + $0x4] sm:$0xf]
        %v1780 = vld [vmem:[%s1777 + $0x8] sm:$0xf]
        %v1781 = vld [vmem:[%s1777 + $0xc] sm:$0xf]
        %v1782 = vld [vmem:[%s1777 + $0x10] sm:$0xf]
        %v1783 = vld [vmem:[%s1777 + $0x14] sm:$0xf]
        %v1784 = vld [vmem:[%s1777 + $0x18] sm:$0xf]
        %v1785 = vld [vmem:[%s1777 + $0x1c] sm:$0xf]
        %v1786 = vld [vmem:[%s1777 + $0x20] sm:$0xf]
        %v1787 = vld [vmem:[%s1777 + $0x24] sm:$0xf]
        %v1788 = vld [vmem:[%s1777 + $0x28] sm:$0xf]
        %v1789 = vld [vmem:[%s1777 + $0x2c] sm:$0xf]
        %v1790 = vld [vmem:[%s1777 + $0x30] sm:$0xf]
        %v1791 = vld [vmem:[%s1777 + $0x34] sm:$0xf]
        %v1792 = vld [vmem:[%s1777 + $0x38] sm:$0xf]
        %v1793 = vld [vmem:[%s1777 + $0x3c] sm:$0xf]
        %v1794 = vld [vmem:[%s1777 + $0x40] sm:$0xf]
        %v1795 = vld [vmem:[%s1777 + $0x44] sm:$0xf]
        %v1796 = vld [vmem:[%s1777 + $0x48] sm:$0xf]
        %v1797 = vld [vmem:[%s1777 + $0x4c] sm:$0xf]
        %v1798 = vld [vmem:[%s1777 + $0x50] sm:$0xf]
        %v1799 = vld [vmem:[%s1777 + $0x54] sm:$0xf]
        %v1800 = vld [vmem:[%s1777 + $0x58] sm:$0xf]
        %v1801 = vld [vmem:[%s1777 + $0x5c] sm:$0xf]
        %v1802 = vld [vmem:[%s1777 + $0x60] sm:$0xf]
        %v1828 = vunpack.c.l.b16 %v1778
        %v1829 = vunpack.c.l.b16 %v1779
        %v1830 = vunpack.c.l.b16 %v1780
        %v1831 = vunpack.c.l.b16 %v1781
        %v1832 = vunpack.c.l.b16 %v1782
        %v1833 = vunpack.c.l.b16 %v1783
        %v1834 = vunpack.c.l.b16 %v1784
        %v1835 = vunpack.c.l.b16 %v1785
        %v1836 = vunpack.c.l.b16 %v1786
        %v1837 = vunpack.c.l.b16 %v1787
        %v1838 = vunpack.c.l.b16 %v1788
        %v1839 = vunpack.c.l.b16 %v1789
        %v1840 = vunpack.c.l.b16 %v1790
        %v1841 = vunpack.c.l.b16 %v1791
        %v1842 = vunpack.c.l.b16 %v1792
        %v1843 = vunpack.c.l.b16 %v1793
        %v1844 = vunpack.c.l.b16 %v1794
        %v1845 = vunpack.c.l.b16 %v1795
        %v1846 = vunpack.c.l.b16 %v1796
        %v1847 = vunpack.c.l.b16 %v1797
        %v1848 = vunpack.c.l.b16 %v1798
        %v1849 = vunpack.c.l.b16 %v1799
        %v1850 = vunpack.c.l.b16 %v1800
        %v1851 = vunpack.c.l.b16 %v1801
        %v1852 = vunpack.c.l.b16 %v1802
        %v1853 = vpack.c.b16 %v1829, %v1828
        %v1854 = vpack.c.b16 %v1831, %v1830
        %v1855 = vpack.c.b16 %v1833, %v1832
        %v1856 = vpack.c.b16 %v1835, %v1834
        %v1857 = vpack.c.b16 %v1837, %v1836
        %v1858 = vpack.c.b16 %v1839, %v1838
        %v1859 = vpack.c.b16 %v1841, %v1840
        %v1860 = vpack.c.b16 %v1843, %v1842
        %v1861 = vpack.c.b16 %v1845, %v1844
        %v1862 = vpack.c.b16 %v1847, %v1846
        %v1863 = vpack.c.b16 %v1849, %v1848
        %v1864 = vpack.c.b16 %v1851, %v1850
        %v1865 = vpack.c.b16 %v1852, %v1852
        %v1867 = vsel %vm723, %v1853, 0
        %v1870 = vsel %vm723, %v1854, 0
        %v1873 = vsel %vm723, %v1855, 0
        %v1876 = vsel %vm723, %v1856, 0
        %v1879 = vsel %vm723, %v1857, 0
        %v1882 = vsel %vm723, %v1858, 0
        %v1885 = vsel %vm723, %v1859, 0
        %v1888 = vsel %vm723, %v1860, 0
        %v1891 = vsel %vm723, %v1861, 0
        %v1894 = vsel %vm723, %v1862, 0
        %v1897 = vsel %vm723, %v1863, 0
        %v1900 = vsel %vm723, %v1864, 0
        %v1903 = vsel %vm723, %v1865, 0
        %1905 = vmatprep.subr.bf16.mxu0 0
        %1906 = vmatpush1.bf16.msra.mxu0 %v719
        %1907 = vmatprep.subr.bf16.mxu0 0
        %1908 = vmatpush1.bf16.msra.mxu0 %v720
        %1909 = vmatprep.subr.bf16.mxu0 0
        %1910 = vmatpush1.bf16.msra.mxu0 0
        %1911 = vmatprep.subr.bf16.mxu0 0
        %1912 = vmatpush1.bf16.msra.mxu0 0
        %1913 = vmatprep.subr.bf16.mxu0 0
        %1914 = vmatpush1.bf16.msra.mxu0 0
        %1915 = vmatprep.subr.bf16.mxu0 0
        %1916 = vmatpush1.bf16.msra.mxu0 0
        %1917 = vmatprep.subr.bf16.mxu0 0
        %1918 = vmatpush1.bf16.msra.mxu0 0
        %1919 = vmatprep.subr.bf16.mxu0 0
        %1920 = vmatpush1.bf16.msra.mxu0 0
        %1921 = vmatprep.subr.bf16.mxu0 0
        %1922 = vmatpush1.bf16.msra.mxu0 0
        %1923 = vmatprep.subr.bf16.mxu0 0
        %1924 = vmatpush1.bf16.msra.mxu0 0
        %1925 = vmatprep.subr.bf16.mxu0 0
        %1926 = vmatpush1.bf16.msra.mxu0 0
        %1927 = vmatprep.subr.bf16.mxu0 0
        %1928 = vmatpush1.bf16.msra.mxu0 0
        %1929 = vmatprep.subr.bf16.mxu0 0
        %1930 = vmatpush1.bf16.msra.mxu0 0
        %1931 = vmatprep.subr.bf16.mxu0 0
        %1932 = vmatpush1.bf16.msra.mxu0 0
        %1933 = vmatprep.subr.bf16.mxu0 0
        %1934 = vmatpush1.bf16.msra.mxu0 0
        %1935 = vmatprep.subr.bf16.mxu0 0
        %1936 = vmatpush1.bf16.msra.mxu0 0
        %1937 = vmatprep.mubr.bf16.mxu0 0
        %1938 = vmatmul.mubr.bf16.gmra.mrb[0].mxu0 %v1867
        %v1939 = vpop.f32.mrb[0].mxu0
        %v1940 = vadd.f32 %v646, %v1939
        %v1941 = vpop.f32.mrb[0].mxu0
        %v1942 = vpop.f32.mrb[0].mxu0
        %v1943 = vadd.f32 %v646, %v1942
        %v1944 = vpop.f32.mrb[0].mxu0
        %1945 = vmatprep.mubr.bf16.mxu0 0
        %1946 = vmatmul.mubr.bf16.gmra.mrb[0].mxu0 %v1870
        %v1947 = vpop.f32.mrb[0].mxu0
        %v1948 = vadd.f32 %v646, %v1947
        %v1949 = vpop.f32.mrb[0].mxu0
        %v1950 = vpop.f32.mrb[0].mxu0
        %v1951 = vadd.f32 %v646, %v1950
        %v1952 = vpop.f32.mrb[0].mxu0
        %1953 = vmatprep.mubr.bf16.mxu0 0
        %1954 = vmatmul.mubr.bf16.gmra.mrb[0].mxu0 %v1873
        %v1955 = vpop.f32.mrb[0].mxu0
        %v1956 = vadd.f32 %v646, %v1955
        %v1957 = vpop.f32.mrb[0].mxu0
        %v1958 = vpop.f32.mrb[0].mxu0
        %v1959 = vadd.f32 %v646, %v1958
        %v1960 = vpop.f32.mrb[0].mxu0
        %1961 = vmatprep.mubr.bf16.mxu0 0
        %1962 = vmatmul.mubr.bf16.gmra.mrb[0].mxu0 %v1876
        %v1963 = vpop.f32.mrb[0].mxu0
        %v1964 = vadd.f32 %v646, %v1963
        %v1965 = vpop.f32.mrb[0].mxu0
        %v1966 = vpop.f32.mrb[0].mxu0
        %v1967 = vadd.f32 %v646, %v1966
        %v1968 = vpop.f32.mrb[0].mxu0
        %1969 = vmatprep.mubr.bf16.mxu0 0
        %1970 = vmatmul.mubr.bf16.gmra.mrb[0].mxu0 %v1879
        %v1971 = vpop.f32.mrb[0].mxu0
        %v1972 = vadd.f32 %v646, %v1971
        %v1973 = vpop.f32.mrb[0].mxu0
        %v1974 = vpop.f32.mrb[0].mxu0
        %v1975 = vadd.f32 %v646, %v1974
        %v1976 = vpop.f32.mrb[0].mxu0
        %1977 = vmatprep.mubr.bf16.mxu0 0
        %1978 = vmatmul.mubr.bf16.gmra.mrb[0].mxu0 %v1882
        %v1979 = vpop.f32.mrb[0].mxu0
        %v1980 = vadd.f32 %v646, %v1979
        %v1981 = vpop.f32.mrb[0].mxu0
        %v1982 = vpop.f32.mrb[0].mxu0
        %v1983 = vadd.f32 %v646, %v1982
        %v1984 = vpop.f32.mrb[0].mxu0
        %1985 = vmatprep.mubr.bf16.mxu0 0
        %1986 = vmatmul.mubr.bf16.gmra.mrb[0].mxu0 %v1885
        %v1987 = vpop.f32.mrb[0].mxu0
        %v1988 = vadd.f32 %v646, %v1987
        %v1989 = vpop.f32.mrb[0].mxu0
        %v1990 = vpop.f32.mrb[0].mxu0
        %v1991 = vadd.f32 %v646, %v1990
        %v1992 = vpop.f32.mrb[0].mxu0
        %1993 = vmatprep.mubr.bf16.mxu0 0
        %1994 = vmatmul.mubr.bf16.gmra.mrb[0].mxu0 %v1888
        %v1995 = vpop.f32.mrb[0].mxu0
        %v1996 = vadd.f32 %v646, %v1995
        %v1997 = vpop.f32.mrb[0].mxu0
        %v1998 = vpop.f32.mrb[0].mxu0
        %v1999 = vadd.f32 %v646, %v1998
        %v2000 = vpop.f32.mrb[0].mxu0
        %2001 = vmatprep.mubr.bf16.mxu0 0
        %2002 = vmatmul.mubr.bf16.gmra.mrb[0].mxu0 %v1891
        %v2003 = vpop.f32.mrb[0].mxu0
        %v2004 = vadd.f32 %v646, %v2003
        %v2005 = vpop.f32.mrb[0].mxu0
        %v2006 = vpop.f32.mrb[0].mxu0
        %v2007 = vadd.f32 %v646, %v2006
        %v2008 = vpop.f32.mrb[0].mxu0
        %2009 = vmatprep.mubr.bf16.mxu0 0
        %2010 = vmatmul.mubr.bf16.gmra.mrb[0].mxu0 %v1894
        %v2011 = vpop.f32.mrb[0].mxu0
        %v2012 = vadd.f32 %v646, %v2011
        %v2013 = vpop.f32.mrb[0].mxu0
        %v2014 = vpop.f32.mrb[0].mxu0
        %v2015 = vadd.f32 %v646, %v2014
        %v2016 = vpop.f32.mrb[0].mxu0
        %2017 = vmatprep.mubr.bf16.mxu0 0
        %2018 = vmatmul.mubr.bf16.gmra.mrb[0].mxu0 %v1897
        %v2019 = vpop.f32.mrb[0].mxu0
        %v2020 = vadd.f32 %v646, %v2019
        %v2021 = vpop.f32.mrb[0].mxu0
        %v2022 = vpop.f32.mrb[0].mxu0
        %v2023 = vadd.f32 %v646, %v2022
        %v2024 = vpop.f32.mrb[0].mxu0
        %2025 = vmatprep.mubr.bf16.mxu0 0
        %2026 = vmatmul.mubr.bf16.gmra.mrb[0].mxu0 %v1900
        %v2027 = vpop.f32.mrb[0].mxu0
        %v2028 = vadd.f32 %v646, %v2027
        %v2029 = vpop.f32.mrb[0].mxu0
        %v2030 = vpop.f32.mrb[0].mxu0
        %v2031 = vadd.f32 %v646, %v2030
        %v2032 = vpop.f32.mrb[0].mxu0
        %2033 = vmatprep.mubr.bf16.mxu0 0
        %2034 = vmatmul.mubr.bf16.gmra.mrb[0].mxu0 %v1903
        %v2035 = vpop.f32.mrb[0].mxu0
        %v2036 = vadd.f32 %v646, %v2035
        %v2037 = vpop.f32.mrb[0].mxu0
        %v2038 = vpop.f32.mrb[0].mxu0
        %v2039 = vpop.f32.mrb[0].mxu0
        %2040 = vdwg.mxu0
        %v2041 = vmul.f32 %v1940, 0.5
        %v2042 = vmul.f32 %v1943, 0.5
        %v2043 = vmul.f32 %v1948, 0.5
        %v2044 = vmul.f32 %v1951, 0.5
        %v2045 = vmul.f32 %v1956, 0.5
        %v2046 = vmul.f32 %v1959, 0.5
        %v2047 = vmul.f32 %v1964, 0.5
        %v2048 = vmul.f32 %v1967, 0.5
        %v2049 = vmul.f32 %v1972, 0.5
        %v2050 = vmul.f32 %v1975, 0.5
        %v2051 = vmul.f32 %v1980, 0.5
        %v2052 = vmul.f32 %v1983, 0.5
        %v2053 = vmul.f32 %v1988, 0.5
        %v2054 = vmul.f32 %v1991, 0.5
        %v2055 = vmul.f32 %v1996, 0.5
        %v2056 = vmul.f32 %v1999, 0.5
        %v2057 = vmul.f32 %v2004, 0.5
        %v2058 = vmul.f32 %v2007, 0.5
        %v2059 = vmul.f32 %v2012, 0.5
        %v2060 = vmul.f32 %v2015, 0.5
        %v2061 = vmul.f32 %v2020, 0.5
        %v2062 = vmul.f32 %v2023, 0.5
        %v2063 = vmul.f32 %v2028, 0.5
        %v2064 = vmul.f32 %v2031, 0.5
        %v2065 = vmul.f32 %v2036, 0.5
        %v2066 = vtanh.pop %v2041
        %v2067 = vtanh.pop %v2042
        %v2068 = vtanh.pop %v2043
        %v2069 = vtanh.pop %v2044
        %v2070 = vtanh.pop %v2045
        %v2071 = vtanh.pop %v2046
        %v2072 = vtanh.pop %v2047
        %v2073 = vtanh.pop %v2048
        %v2074 = vtanh.pop %v2049
        %v2075 = vtanh.pop %v2050
        %v2076 = vtanh.pop %v2051
        %v2077 = vtanh.pop %v2052
        %v2078 = vtanh.pop %v2053
        %v2079 = vtanh.pop %v2054
        %v2080 = vtanh.pop %v2055
        %v2081 = vtanh.pop %v2056
        %v2082 = vtanh.pop %v2057
        %v2083 = vtanh.pop %v2058
        %v2084 = vtanh.pop %v2059
        %v2085 = vtanh.pop %v2060
        %v2086 = vtanh.pop %v2061
        %v2087 = vtanh.pop %v2062
        %v2088 = vtanh.pop %v2063
        %v2089 = vtanh.pop %v2064
        %v2090 = vtanh.pop %v2065
        %v2091 = vmul.f32 %v2066, 0.5
        %v2092 = vmul.f32 %v2067, 0.5
        %v2093 = vmul.f32 %v2068, 0.5
        %v2094 = vmul.f32 %v2069, 0.5
        %v2095 = vmul.f32 %v2070, 0.5
        %v2096 = vmul.f32 %v2071, 0.5
        %v2097 = vmul.f32 %v2072, 0.5
        %v2098 = vmul.f32 %v2073, 0.5
        %v2099 = vmul.f32 %v2074, 0.5
        %v2100 = vmul.f32 %v2075, 0.5
        %v2101 = vmul.f32 %v2076, 0.5
        %v2102 = vmul.f32 %v2077, 0.5
        %v2103 = vmul.f32 %v2078, 0.5
        %v2104 = vmul.f32 %v2079, 0.5
        %v2105 = vmul.f32 %v2080, 0.5
        %v2106 = vmul.f32 %v2081, 0.5
        %v2107 = vmul.f32 %v2082, 0.5
        %v2108 = vmul.f32 %v2083, 0.5
        %v2109 = vmul.f32 %v2084, 0.5
        %v2110 = vmul.f32 %v2085, 0.5
        %v2111 = vmul.f32 %v2086, 0.5
        %v2112 = vmul.f32 %v2087, 0.5
        %v2113 = vmul.f32 %v2088, 0.5
        %v2114 = vmul.f32 %v2089, 0.5
        %v2115 = vmul.f32 %v2090, 0.5
        %v2116 = vadd.f32 %v2091, 0.5
        %v2117 = vadd.f32 %v2092, 0.5
        %v2118 = vadd.f32 %v2093, 0.5
        %v2119 = vadd.f32 %v2094, 0.5
        %v2120 = vadd.f32 %v2095, 0.5
        %v2121 = vadd.f32 %v2096, 0.5
        %v2122 = vadd.f32 %v2097, 0.5
        %v2123 = vadd.f32 %v2098, 0.5
        %v2124 = vadd.f32 %v2099, 0.5
        %v2125 = vadd.f32 %v2100, 0.5
        %v2126 = vadd.f32 %v2101, 0.5
        %v2127 = vadd.f32 %v2102, 0.5
        %v2128 = vadd.f32 %v2103, 0.5
        %v2129 = vadd.f32 %v2104, 0.5
        %v2130 = vadd.f32 %v2105, 0.5
        %v2131 = vadd.f32 %v2106, 0.5
        %v2132 = vadd.f32 %v2107, 0.5
        %v2133 = vadd.f32 %v2108, 0.5
        %v2134 = vadd.f32 %v2109, 0.5
        %v2135 = vadd.f32 %v2110, 0.5
        %v2136 = vadd.f32 %v2111, 0.5
        %v2137 = vadd.f32 %v2112, 0.5
        %v2138 = vadd.f32 %v2113, 0.5
        %v2139 = vadd.f32 %v2114, 0.5
        %v2140 = vadd.f32 %v2115, 0.5
        %v2141 = vadd.f32 %v1752, %v2116
        %v2142 = vadd.f32 %v1753, %v2117
        %v2143 = vadd.f32 %v1754, %v2118
        %v2144 = vadd.f32 %v1755, %v2119
        %v2145 = vadd.f32 %v1756, %v2120
        %v2146 = vadd.f32 %v1757, %v2121
        %v2147 = vadd.f32 %v1758, %v2122
        %v2148 = vadd.f32 %v1759, %v2123
        %v2149 = vadd.f32 %v1760, %v2124
        %v2150 = vadd.f32 %v1761, %v2125
        %v2151 = vadd.f32 %v1762, %v2126
        %v2152 = vadd.f32 %v1763, %v2127
        %v2153 = vadd.f32 %v1764, %v2128
        %v2154 = vadd.f32 %v1765, %v2129
        %v2155 = vadd.f32 %v1766, %v2130
        %v2156 = vadd.f32 %v1767, %v2131
        %v2157 = vadd.f32 %v1768, %v2132
        %v2158 = vadd.f32 %v1769, %v2133
        %v2159 = vadd.f32 %v1770, %v2134
        %v2160 = vadd.f32 %v1771, %v2135
        %v2161 = vadd.f32 %v1772, %v2136
        %v2162 = vadd.f32 %v1773, %v2137
        %v2163 = vadd.f32 %v1774, %v2138
        %v2164 = vadd.f32 %v1775, %v2139
        %v2165 = vadd.f32 %v1776, %v2140
        %v2166 = vmul.f32 %v2141, 0.25
        %v2167 = vmul.f32 %v2142, 0.25
        %v2168 = vmul.f32 %v2143, 0.25
        %v2169 = vmul.f32 %v2144, 0.25
        %v2170 = vmul.f32 %v2145, 0.25
        %v2171 = vmul.f32 %v2146, 0.25
        %v2172 = vmul.f32 %v2147, 0.25
        %v2173 = vmul.f32 %v2148, 0.25
        %v2174 = vmul.f32 %v2149, 0.25
        %v2175 = vmul.f32 %v2150, 0.25
        %v2176 = vmul.f32 %v2151, 0.25
        %v2177 = vmul.f32 %v2152, 0.25
        %v2178 = vmul.f32 %v2153, 0.25
        %v2179 = vmul.f32 %v2154, 0.25
        %v2180 = vmul.f32 %v2155, 0.25
        %v2181 = vmul.f32 %v2156, 0.25
        %v2182 = vmul.f32 %v2157, 0.25
        %v2183 = vmul.f32 %v2158, 0.25
        %v2184 = vmul.f32 %v2159, 0.25
        %v2185 = vmul.f32 %v2160, 0.25
        %v2186 = vmul.f32 %v2161, 0.25
        %v2187 = vmul.f32 %v2162, 0.25
        %v2188 = vmul.f32 %v2163, 0.25
        %v2189 = vmul.f32 %v2164, 0.25
        %v2190 = vmul.f32 %v2165, 0.25
        %v2191 = vpack.c.bf16 %v2167, %v2166
        %v2192 = vpack.c.bf16 %v2169, %v2168
        %v2193 = vpack.c.bf16 %v2171, %v2170
        %v2194 = vpack.c.bf16 %v2173, %v2172
        %v2195 = vpack.c.bf16 %v2175, %v2174
        %v2196 = vpack.c.bf16 %v2177, %v2176
        %v2197 = vpack.c.bf16 %v2179, %v2178
        %v2198 = vpack.c.bf16 %v2181, %v2180
        %v2199 = vpack.c.bf16 %v2183, %v2182
        %v2200 = vpack.c.bf16 %v2185, %v2184
        %v2201 = vpack.c.bf16 %v2187, %v2186
        %v2202 = vpack.c.bf16 %v2189, %v2188
        %v2203 = vpack.c.bf16 %v2190, %v2190
        %v2217 = vunpack.c.l.b16 %v2191
        %v2218 = vunpack.c.h.b16 %v2191
        %v2219 = vunpack.c.l.b16 %v2192
        %v2220 = vunpack.c.h.b16 %v2192
        %v2221 = vunpack.c.l.b16 %v2193
        %v2222 = vunpack.c.h.b16 %v2193
        %v2223 = vunpack.c.l.b16 %v2194
        %v2224 = vunpack.c.h.b16 %v2194
        %v2225 = vunpack.c.l.b16 %v2195
        %v2226 = vunpack.c.h.b16 %v2195
        %v2227 = vunpack.c.l.b16 %v2196
        %v2228 = vunpack.c.h.b16 %v2196
        %v2229 = vunpack.c.l.b16 %v2197
        %v2230 = vunpack.c.h.b16 %v2197
        %v2231 = vunpack.c.l.b16 %v2198
        %v2232 = vunpack.c.h.b16 %v2198
        %v2233 = vunpack.c.l.b16 %v2199
        %v2234 = vunpack.c.h.b16 %v2199
        %v2235 = vunpack.c.l.b16 %v2200
        %v2236 = vunpack.c.h.b16 %v2200
        %v2237 = vunpack.c.l.b16 %v2201
        %v2238 = vunpack.c.h.b16 %v2201
        %v2239 = vunpack.c.l.b16 %v2202
        %v2240 = vunpack.c.h.b16 %v2202
        %v2241 = vunpack.c.l.b16 %v2203
        %v2242 = vpack.c.b16 %v2217, %v2217
        %v2243 = vpack.c.b16 %v2218, %v2218
        %v2244 = vpack.c.b16 %v2219, %v2219
        %v2245 = vpack.c.b16 %v2220, %v2220
        %v2246 = vpack.c.b16 %v2221, %v2221
        %v2247 = vpack.c.b16 %v2222, %v2222
        %v2248 = vpack.c.b16 %v2223, %v2223
        %v2249 = vpack.c.b16 %v2224, %v2224
        %v2250 = vpack.c.b16 %v2225, %v2225
        %v2251 = vpack.c.b16 %v2226, %v2226
        %v2252 = vpack.c.b16 %v2227, %v2227
        %v2253 = vpack.c.b16 %v2228, %v2228
        %v2254 = vpack.c.b16 %v2229, %v2229
        %v2255 = vpack.c.b16 %v2230, %v2230
        %v2256 = vpack.c.b16 %v2231, %v2231
        %v2257 = vpack.c.b16 %v2232, %v2232
        %v2258 = vpack.c.b16 %v2233, %v2233
        %v2259 = vpack.c.b16 %v2234, %v2234
        %v2260 = vpack.c.b16 %v2235, %v2235
        %v2261 = vpack.c.b16 %v2236, %v2236
        %v2262 = vpack.c.b16 %v2237, %v2237
        %v2263 = vpack.c.b16 %v2238, %v2238
        %v2264 = vpack.c.b16 %v2239, %v2239
        %v2265 = vpack.c.b16 %v2240, %v2240
        %v2266 = vpack.c.b16 %v2241, %v2241
        %2292 = vst [vmem:[%s609] sm:$0xf] %v2242
        %2293 = vst [vmem:[%s609 + $0x4] sm:$0xf] %v2243
        %2294 = vst [vmem:[%s609 + $0x8] sm:$0xf] %v2244
        %2295 = vst [vmem:[%s609 + $0xc] sm:$0xf] %v2245
        %2296 = vst [vmem:[%s609 + $0x10] sm:$0xf] %v2246
        %2297 = vst [vmem:[%s609 + $0x14] sm:$0xf] %v2247
        %2298 = vst [vmem:[%s609 + $0x18] sm:$0xf] %v2248
        %2299 = vst [vmem:[%s609 + $0x1c] sm:$0xf] %v2249
        %2300 = vst [vmem:[%s609 + $0x20] sm:$0xf] %v2250
        %2301 = vst [vmem:[%s609 + $0x24] sm:$0xf] %v2251
        %2302 = vst [vmem:[%s609 + $0x28] sm:$0xf] %v2252
        %2303 = vst [vmem:[%s609 + $0x2c] sm:$0xf] %v2253
        %2304 = vst [vmem:[%s609 + $0x30] sm:$0xf] %v2254
        %2305 = vst [vmem:[%s609 + $0x34] sm:$0xf] %v2255
        %2306 = vst [vmem:[%s609 + $0x38] sm:$0xf] %v2256
        %2307 = vst [vmem:[%s609 + $0x3c] sm:$0xf] %v2257
        %2308 = vst [vmem:[%s609 + $0x40] sm:$0xf] %v2258
        %2309 = vst [vmem:[%s609 + $0x44] sm:$0xf] %v2259
        %2310 = vst [vmem:[%s609 + $0x48] sm:$0xf] %v2260
        %2311 = vst [vmem:[%s609 + $0x4c] sm:$0xf] %v2261
        %2312 = vst [vmem:[%s609 + $0x50] sm:$0xf] %v2262
        %2313 = vst [vmem:[%s609 + $0x54] sm:$0xf] %v2263
        %2314 = vst [vmem:[%s609 + $0x58] sm:$0xf] %v2264
        %2315 = vst [vmem:[%s609 + $0x5c] sm:$0xf] %v2265
        %2316 = vst [vmem:[%s609 + $0x60] sm:$0xf] %v2266
        %s2317 = smul.u32 25, %s14
        %p2318 = scmp.lt.s32.totalorder %s2317, 49
        %s2319 = scalar_select %p2318, %s2317, 49
        %s2320 = smul.addr %s2319, 4
        %s2321 = scalar_lea.vmem %s3, %s2320
        // Predicated region
        $region74: #{lenet5_forward.2} parent=68 // pred_check
          %p2322 = pneg %p100
        $region75: #{lenet5_forward.2} parent=68 // pred_check_branch
          %2324 = sbr.rel (%p2322) target = $region77
        $region76: #{lenet5_forward.2} parent=68 // pred_region
          %s2325 = smul.u32 25, %s14
        $region77: #{lenet5_forward.2} parent=68 // pred_fallthru
          _
      $region69: #{lenet5_forward.2} parent=5 // pred_fallthru
        _
      %p2326 = scmp.le.s32.totalorder 2, %s9
      // Predicated region
      $region78: #{lenet5_forward.2} parent=5 // pred_check
        %p2327 = pneg %p2326
      $region79: #{lenet5_forward.2} parent=5 // pred_check_branch
        %2329 = sbr.rel (%p2327) target = $region81
      $region80: #{lenet5_forward.2} parent=5 // pred_region
        %s2330 = ssub.s32 %s9, 2
        // Predicated region
        $region82: #{lenet5_forward.2} parent=80 // pred_check
          %p2331 = pneg %p106
        $region83: #{lenet5_forward.2} parent=80 // pred_check_branch
          %2333 = sbr.rel (%p2331) target = $region85
        $region84: #{lenet5_forward.2} parent=80 // pred_region
          %s2334 = smul.u32 25, %s15
          %p2335 = scmp.lt.s32.totalorder %s2334, 49
          %s2336 = scalar_select %p2335, %s2334, 49
          %s2337 = smul.addr %s2336, 4
          %s2338 = scalar_lea.vmem %s3, %s2337
        $region85: #{lenet5_forward.2} parent=80 // pred_fallthru
          _
      $region81: #{lenet5_forward.2} parent=5 // pred_fallthru
        _
    $region6: #{lenet5_forward.2} parent=1 // loop_footer
      %s13 = sadd.s32 1, %s9
    $region7: #{lenet5_forward.2} parent=1 // loop_footer_branch
      %8 = sbr.rel target = $region3
    $region8: #{lenet5_forward.2} parent=1 // loop_exit
      _

// kernel: lenet5_forward.3
$region0: #{lenet5_forward.3}
  #allocation0 [shape = 'u32[]', space=smem, size = 0x4, offset = 0x4, fixed_abs, tag = 'smem constant byte address 0x4 - core index']
  #allocation1 [shape = 'u32[144,128]{1,0:T(1,128)}', space=vmem, size = 0x12000, scoped, tag = 'internal scratch']
  %s0 = inlined_call_operand.vmem [shape: bf16[100,16,256], index: 0, kind: input, shape index: {}]
  %s1 = inlined_call_operand.vmem [shape: bf16[256,128], index: 1, kind: input, shape index: {}]
  %s2 = inlined_call_operand.vmem [shape: f32[1,128], index: 2, kind: input, shape index: {}]
  %s3 = inlined_call_operand.vmem [shape: bf16[25,128,128], index: 3, kind: input, shape index: {}]
  %s4 = inlined_call_operand.vmem [shape: f32[1,128], index: 4, kind: input, shape index: {}]
  %s5 = inlined_call_operand.vmem [shape: bf16[128,128], index: 5, kind: input, shape index: {}]
  %s6 = inlined_call_operand.vmem [shape: f32[1,128], index: 6, kind: input, shape index: {}]
  %s7 = inlined_call_operand.vmem [shape: bf16[128,128], index: 7, kind: input, shape index: {}]
  %s8 = inlined_call_operand.vmem [shape: f32[1,128], index: 8, kind: input, shape index: {}]
  %s9 = inlined_call_operand.vmem [shape: f32[16,128], index: 9, kind: output, shape index: {}]
  %s10 = sld [smem:[#allocation0]]
  $region46: #{lenet5_forward.3} parent=0
    _
  %s12 = ssub.s32 1, %s10
  %s13 = scalar_select 0, %s12, %s10
  // Predicated region
  $region2: #{lenet5_forward.3} parent=0 // pred_check
    _
  $region3: #{lenet5_forward.3} parent=0 // pred_check_branch
    %15 = sbr.rel (0) target = $region5
  $region4: #{lenet5_forward.3} parent=0 // pred_region
    _
  $region5: #{lenet5_forward.3} parent=0 // pred_fallthru
    _
  // Predicated region
  $region6: #{lenet5_forward.3} parent=0 // pred_check
    _
  $region7: #{lenet5_forward.3} parent=0 // pred_check_branch
    %17 = sbr.rel (0) target = $region9
  $region8: #{lenet5_forward.3} parent=0 // pred_region
    _
  $region9: #{lenet5_forward.3} parent=0 // pred_fallthru
    _
  // Predicated region
  $region10: #{lenet5_forward.3} parent=0 // pred_check
    _
  $region11: #{lenet5_forward.3} parent=0 // pred_check_branch
    %19 = sbr.rel (0) target = $region13
  $region12: #{lenet5_forward.3} parent=0 // pred_region
    _
  $region13: #{lenet5_forward.3} parent=0 // pred_fallthru
    _
  // Predicated region
  $region14: #{lenet5_forward.3} parent=0 // pred_check
    _
  $region15: #{lenet5_forward.3} parent=0 // pred_check_branch
    %21 = sbr.rel (0) target = $region17
  $region16: #{lenet5_forward.3} parent=0 // pred_region
    _
  $region17: #{lenet5_forward.3} parent=0 // pred_fallthru
    _
  // Predicated region
  $region18: #{lenet5_forward.3} parent=0 // pred_check
    _
  $region19: #{lenet5_forward.3} parent=0 // pred_check_branch
    %23 = sbr.rel (0) target = $region21
  $region20: #{lenet5_forward.3} parent=0 // pred_region
    _
  $region21: #{lenet5_forward.3} parent=0 // pred_fallthru
    _
  // Predicated region
  $region22: #{lenet5_forward.3} parent=0 // pred_check
    _
  $region23: #{lenet5_forward.3} parent=0 // pred_check_branch
    %25 = sbr.rel (0) target = $region25
  $region24: #{lenet5_forward.3} parent=0 // pred_region
    _
  $region25: #{lenet5_forward.3} parent=0 // pred_fallthru
    _
  // Predicated region
  $region26: #{lenet5_forward.3} parent=0 // pred_check
    _
  $region27: #{lenet5_forward.3} parent=0 // pred_check_branch
    %27 = sbr.rel (0) target = $region29
  $region28: #{lenet5_forward.3} parent=0 // pred_region
    _
  $region29: #{lenet5_forward.3} parent=0 // pred_fallthru
    _
  // Predicated region
  $region30: #{lenet5_forward.3} parent=0 // pred_check
    _
  $region31: #{lenet5_forward.3} parent=0 // pred_check_branch
    %29 = sbr.rel (0) target = $region33
  $region32: #{lenet5_forward.3} parent=0 // pred_region
    _
  $region33: #{lenet5_forward.3} parent=0 // pred_fallthru
    _
  // Predicated region
  $region34: #{lenet5_forward.3} parent=0 // pred_check
    _
  $region35: #{lenet5_forward.3} parent=0 // pred_check_branch
    %31 = sbr.rel (0) target = $region37
  $region36: #{lenet5_forward.3} parent=0 // pred_region
    _
  $region37: #{lenet5_forward.3} parent=0 // pred_fallthru
    _
  %v33 = vld [vmem:[%s0] sm:$0xff]
  %v34 = vld [vmem:[%s0 + $0x8] sm:$0xff]
  %v35 = vld [vmem:[%s0 + $0x10] sm:$0xff]
  %v36 = vld [vmem:[%s0 + $0x18] sm:$0xff]
  %v37 = vld [vmem:[%s0 + $0x20] sm:$0xff]
  %v38 = vld [vmem:[%s0 + $0x28] sm:$0xff]
  %v39 = vld [vmem:[%s0 + $0x30] sm:$0xff]
  %v40 = vld [vmem:[%s0 + $0x38] sm:$0xff]
  %v41 = vld [vmem:[%s0 + $0x40] sm:$0xff]
  %v42 = vld [vmem:[%s0 + $0x48] sm:$0xff]
  %v43 = vld [vmem:[%s0 + $0x50] sm:$0xff]
  %v44 = vld [vmem:[%s0 + $0x58] sm:$0xff]
  %v45 = vld [vmem:[%s0 + $0x60] sm:$0xff]
  %v46 = vld [vmem:[%s0 + $0x68] sm:$0xff]
  %v47 = vld [vmem:[%s0 + $0x70] sm:$0xff]
  %v48 = vld [vmem:[%s0 + $0x78] sm:$0xff]
  %v49 = vld [vmem:[%s0 + $0x80] sm:$0xff]
  %v50 = vld [vmem:[%s0 + $0x88] sm:$0xff]
  %v51 = vld [vmem:[%s0 + $0x90] sm:$0xff]
  %v52 = vld [vmem:[%s0 + $0x98] sm:$0xff]
  %v53 = vld [vmem:[%s0 + $0xa0] sm:$0xff]
  %v54 = vld [vmem:[%s0 + $0xa8] sm:$0xff]
  %v55 = vld [vmem:[%s0 + $0xb0] sm:$0xff]
  %v56 = vld [vmem:[%s0 + $0xb8] sm:$0xff]
  %v57 = vld [vmem:[%s0 + $0xc0] sm:$0xff]
  %v58 = vld [vmem:[%s0 + $0xc8] sm:$0xff]
  %v59 = vld [vmem:[%s0 + $0xd0] sm:$0xff]
  %v60 = vld [vmem:[%s0 + $0xd8] sm:$0xff]
  %v61 = vld [vmem:[%s0 + $0xe0] sm:$0xff]
  %v62 = vld [vmem:[%s0 + $0xe8] sm:$0xff]
  %v63 = vld [vmem:[%s0 + $0xf0] sm:$0xff]
  %v64 = vld [vmem:[%s0 + $0xf8] sm:$0xff]
  %v65 = vld [vmem:[%s0 + $0x100] sm:$0xff]
  %v66 = vld [vmem:[%s0 + $0x108] sm:$0xff]
  %v67 = vld [vmem:[%s0 + $0x110] sm:$0xff]
  %v68 = vld [vmem:[%s0 + $0x118] sm:$0xff]
  %v69 = vld [vmem:[%s0 + $0x120] sm:$0xff]
  %v70 = vld [vmem:[%s0 + $0x128] sm:$0xff]
  %v71 = vld [vmem:[%s0 + $0x130] sm:$0xff]
  %v72 = vld [vmem:[%s0 + $0x138] sm:$0xff]
  %v73 = vld [vmem:[%s0 + $0x140] sm:$0xff]
  %v74 = vld [vmem:[%s0 + $0x148] sm:$0xff]
  %v75 = vld [vmem:[%s0 + $0x150] sm:$0xff]
  %v76 = vld [vmem:[%s0 + $0x158] sm:$0xff]
  %v77 = vld [vmem:[%s0 + $0x160] sm:$0xff]
  %v78 = vld [vmem:[%s0 + $0x168] sm:$0xff]
  %v79 = vld [vmem:[%s0 + $0x170] sm:$0xff]
  %v80 = vld [vmem:[%s0 + $0x178] sm:$0xff]
  %v81 = vld [vmem:[%s0 + $0x180] sm:$0xff]
  %v82 = vld [vmem:[%s0 + $0x188] sm:$0xff]
  %v83 = vld [vmem:[%s0 + $0x190] sm:$0xff]
  %v84 = vld [vmem:[%s0 + $0x198] sm:$0xff]
  %v85 = vld [vmem:[%s0 + $0x1a0] sm:$0xff]
  %v86 = vld [vmem:[%s0 + $0x1a8] sm:$0xff]
  %v87 = vld [vmem:[%s0 + $0x1b0] sm:$0xff]
  %v88 = vld [vmem:[%s0 + $0x1b8] sm:$0xff]
  %v89 = vld [vmem:[%s0 + $0x1c0] sm:$0xff]
  %v90 = vld [vmem:[%s0 + $0x1c8] sm:$0xff]
  %v91 = vld [vmem:[%s0 + $0x1d0] sm:$0xff]
  %v92 = vld [vmem:[%s0 + $0x1d8] sm:$0xff]
  %v93 = vld [vmem:[%s0 + $0x1e0] sm:$0xff]
  %v94 = vld [vmem:[%s0 + $0x1e8] sm:$0xff]
  %v95 = vld [vmem:[%s0 + $0x1f0] sm:$0xff]
  %v96 = vld [vmem:[%s0 + $0x1f8] sm:$0xff]
  %v97 = vld [vmem:[%s0 + $0x200] sm:$0xff]
  %v98 = vld [vmem:[%s0 + $0x208] sm:$0xff]
  %v99 = vld [vmem:[%s0 + $0x210] sm:$0xff]
  %v100 = vld [vmem:[%s0 + $0x218] sm:$0xff]
  %v101 = vld [vmem:[%s0 + $0x220] sm:$0xff]
  %v102 = vld [vmem:[%s0 + $0x228] sm:$0xff]
  %v103 = vld [vmem:[%s0 + $0x230] sm:$0xff]
  %v104 = vld [vmem:[%s0 + $0x238] sm:$0xff]
  %v105 = vld [vmem:[%s0 + $0x240] sm:$0xff]
  %v106 = vld [vmem:[%s0 + $0x248] sm:$0xff]
  %v107 = vld [vmem:[%s0 + $0x250] sm:$0xff]
  %v108 = vld [vmem:[%s0 + $0x258] sm:$0xff]
  %v109 = vld [vmem:[%s0 + $0x260] sm:$0xff]
  %v110 = vld [vmem:[%s0 + $0x268] sm:$0xff]
  %v111 = vld [vmem:[%s0 + $0x270] sm:$0xff]
  %v112 = vld [vmem:[%s0 + $0x278] sm:$0xff]
  %v113 = vld [vmem:[%s0 + $0x280] sm:$0xff]
  %v114 = vld [vmem:[%s0 + $0x288] sm:$0xff]
  %v115 = vld [vmem:[%s0 + $0x290] sm:$0xff]
  %v116 = vld [vmem:[%s0 + $0x298] sm:$0xff]
  %v117 = vld [vmem:[%s0 + $0x2a0] sm:$0xff]
  %v118 = vld [vmem:[%s0 + $0x2a8] sm:$0xff]
  %v119 = vld [vmem:[%s0 + $0x2b0] sm:$0xff]
  %v120 = vld [vmem:[%s0 + $0x2b8] sm:$0xff]
  %v121 = vld [vmem:[%s0 + $0x2c0] sm:$0xff]
  %v122 = vld [vmem:[%s0 + $0x2c8] sm:$0xff]
  %v123 = vld [vmem:[%s0 + $0x2d0] sm:$0xff]
  %v124 = vld [vmem:[%s0 + $0x2d8] sm:$0xff]
  %v125 = vld [vmem:[%s0 + $0x2e0] sm:$0xff]
  %v126 = vld [vmem:[%s0 + $0x2e8] sm:$0xff]
  %v127 = vld [vmem:[%s0 + $0x2f0] sm:$0xff]
  %v128 = vld [vmem:[%s0 + $0x2f8] sm:$0xff]
  %v129 = vld [vmem:[%s0 + $0x300] sm:$0xff]
  %v130 = vld [vmem:[%s0 + $0x308] sm:$0xff]
  %v131 = vld [vmem:[%s0 + $0x310] sm:$0xff]
  %v132 = vld [vmem:[%s0 + $0x318] sm:$0xff]
  %v133 = vld [vmem:[%s0 + $0x320] sm:$0xff]
  %v134 = vld [vmem:[%s0 + $0x328] sm:$0xff]
  %v135 = vld [vmem:[%s0 + $0x330] sm:$0xff]
  %v136 = vld [vmem:[%s0 + $0x338] sm:$0xff]
  %v137 = vld [vmem:[%s0 + $0x340] sm:$0xff]
  %v138 = vld [vmem:[%s0 + $0x348] sm:$0xff]
  %v139 = vld [vmem:[%s0 + $0x350] sm:$0xff]
  %v140 = vld [vmem:[%s0 + $0x358] sm:$0xff]
  %v141 = vld [vmem:[%s0 + $0x360] sm:$0xff]
  %v142 = vld [vmem:[%s0 + $0x368] sm:$0xff]
  %v143 = vld [vmem:[%s0 + $0x370] sm:$0xff]
  %v144 = vld [vmem:[%s0 + $0x378] sm:$0xff]
  %v145 = vld [vmem:[%s0 + $0x380] sm:$0xff]
  %v146 = vld [vmem:[%s0 + $0x388] sm:$0xff]
  %v147 = vld [vmem:[%s0 + $0x390] sm:$0xff]
  %v148 = vld [vmem:[%s0 + $0x398] sm:$0xff]
  %v149 = vld [vmem:[%s0 + $0x3a0] sm:$0xff]
  %v150 = vld [vmem:[%s0 + $0x3a8] sm:$0xff]
  %v151 = vld [vmem:[%s0 + $0x3b0] sm:$0xff]
  %v152 = vld [vmem:[%s0 + $0x3b8] sm:$0xff]
  %v153 = vld [vmem:[%s0 + $0x3c0] sm:$0xff]
  %v154 = vld [vmem:[%s0 + $0x3c8] sm:$0xff]
  %v155 = vld [vmem:[%s0 + $0x3d0] sm:$0xff]
  %v156 = vld [vmem:[%s0 + $0x3d8] sm:$0xff]
  %v157 = vld [vmem:[%s0 + $0x3e0] sm:$0xff]
  %v158 = vld [vmem:[%s0 + $0x3e8] sm:$0xff]
  %v159 = vld [vmem:[%s0 + $0x3f0] sm:$0xff]
  %v160 = vld [vmem:[%s0 + $0x3f8] sm:$0xff]
  %v161 = vld [vmem:[%s0 + $0x400] sm:$0xff]
  %v162 = vld [vmem:[%s0 + $0x408] sm:$0xff]
  %v163 = vld [vmem:[%s0 + $0x410] sm:$0xff]
  %v164 = vld [vmem:[%s0 + $0x418] sm:$0xff]
  %v165 = vld [vmem:[%s0 + $0x420] sm:$0xff]
  %v166 = vld [vmem:[%s0 + $0x428] sm:$0xff]
  %v167 = vld [vmem:[%s0 + $0x430] sm:$0xff]
  %v168 = vld [vmem:[%s0 + $0x438] sm:$0xff]
  %v169 = vld [vmem:[%s0 + $0x440] sm:$0xff]
  %v170 = vld [vmem:[%s0 + $0x448] sm:$0xff]
  %v171 = vld [vmem:[%s0 + $0x450] sm:$0xff]
  %v172 = vld [vmem:[%s0 + $0x458] sm:$0xff]
  %v173 = vld [vmem:[%s0 + $0x460] sm:$0xff]
  %v174 = vld [vmem:[%s0 + $0x468] sm:$0xff]
  %v175 = vld [vmem:[%s0 + $0x470] sm:$0xff]
  %v176 = vld [vmem:[%s0 + $0x478] sm:$0xff]
  %v177 = vld [vmem:[%s0 + $0x480] sm:$0xff]
  %v178 = vld [vmem:[%s0 + $0x488] sm:$0xff]
  %v179 = vld [vmem:[%s0 + $0x490] sm:$0xff]
  %v180 = vld [vmem:[%s0 + $0x498] sm:$0xff]
  %v181 = vld [vmem:[%s0 + $0x4a0] sm:$0xff]
  %v182 = vld [vmem:[%s0 + $0x4a8] sm:$0xff]
  %v183 = vld [vmem:[%s0 + $0x4b0] sm:$0xff]
  %v184 = vld [vmem:[%s0 + $0x4b8] sm:$0xff]
  %v185 = vld [vmem:[%s0 + $0x4c0] sm:$0xff]
  %v186 = vld [vmem:[%s0 + $0x4c8] sm:$0xff]
  %v187 = vld [vmem:[%s0 + $0x4d0] sm:$0xff]
  %v188 = vld [vmem:[%s0 + $0x4d8] sm:$0xff]
  %v189 = vld [vmem:[%s0 + $0x4e0] sm:$0xff]
  %v190 = vld [vmem:[%s0 + $0x4e8] sm:$0xff]
  %v191 = vld [vmem:[%s0 + $0x4f0] sm:$0xff]
  %v192 = vld [vmem:[%s0 + $0x4f8] sm:$0xff]
  %v193 = vld [vmem:[%s0 + $0x500] sm:$0xff]
  %v194 = vld [vmem:[%s0 + $0x508] sm:$0xff]
  %v195 = vld [vmem:[%s0 + $0x510] sm:$0xff]
  %v196 = vld [vmem:[%s0 + $0x518] sm:$0xff]
  %v197 = vld [vmem:[%s0 + $0x520] sm:$0xff]
  %v198 = vld [vmem:[%s0 + $0x528] sm:$0xff]
  %v199 = vld [vmem:[%s0 + $0x530] sm:$0xff]
  %v200 = vld [vmem:[%s0 + $0x538] sm:$0xff]
  %v201 = vld [vmem:[%s0 + $0x540] sm:$0xff]
  %v202 = vld [vmem:[%s0 + $0x548] sm:$0xff]
  %v203 = vld [vmem:[%s0 + $0x550] sm:$0xff]
  %v204 = vld [vmem:[%s0 + $0x558] sm:$0xff]
  %v205 = vld [vmem:[%s0 + $0x560] sm:$0xff]
  %v206 = vld [vmem:[%s0 + $0x568] sm:$0xff]
  %v207 = vld [vmem:[%s0 + $0x570] sm:$0xff]
  %v208 = vld [vmem:[%s0 + $0x578] sm:$0xff]
  %v209 = vld [vmem:[%s0 + $0x580] sm:$0xff]
  %v210 = vld [vmem:[%s0 + $0x588] sm:$0xff]
  %v211 = vld [vmem:[%s0 + $0x590] sm:$0xff]
  %v212 = vld [vmem:[%s0 + $0x598] sm:$0xff]
  %v213 = vld [vmem:[%s0 + $0x5a0] sm:$0xff]
  %v214 = vld [vmem:[%s0 + $0x5a8] sm:$0xff]
  %v215 = vld [vmem:[%s0 + $0x5b0] sm:$0xff]
  %v216 = vld [vmem:[%s0 + $0x5b8] sm:$0xff]
  %v217 = vld [vmem:[%s0 + $0x5c0] sm:$0xff]
  %v218 = vld [vmem:[%s0 + $0x5c8] sm:$0xff]
  %v219 = vld [vmem:[%s0 + $0x5d0] sm:$0xff]
  %v220 = vld [vmem:[%s0 + $0x5d8] sm:$0xff]
  %v221 = vld [vmem:[%s0 + $0x5e0] sm:$0xff]
  %v222 = vld [vmem:[%s0 + $0x5e8] sm:$0xff]
  %v223 = vld [vmem:[%s0 + $0x5f0] sm:$0xff]
  %v224 = vld [vmem:[%s0 + $0x5f8] sm:$0xff]
  %v225 = vld [vmem:[%s0 + $0x600] sm:$0xff]
  %v226 = vld [vmem:[%s0 + $0x608] sm:$0xff]
  %v227 = vld [vmem:[%s0 + $0x610] sm:$0xff]
  %v228 = vld [vmem:[%s0 + $0x618] sm:$0xff]
  %v229 = vld [vmem:[%s0 + $0x620] sm:$0xff]
  %v230 = vld [vmem:[%s0 + $0x628] sm:$0xff]
  %v231 = vld [vmem:[%s0 + $0x630] sm:$0xff]
  %v232 = vld [vmem:[%s0 + $0x638] sm:$0xff]
  %v233 = vld [vmem:[%s1] sm:$0xf]
  %v234 = vld [vmem:[%s1 + $0x4] sm:$0xf]
  %v235 = vld [vmem:[%s1 + $0x8] sm:$0xf]
  %v236 = vld [vmem:[%s1 + $0xc] sm:$0xf]
  %v237 = vld [vmem:[%s1 + $0x10] sm:$0xf]
  %v238 = vld [vmem:[%s1 + $0x14] sm:$0xf]
  %v239 = vld [vmem:[%s1 + $0x18] sm:$0xf]
  %v240 = vld [vmem:[%s1 + $0x1c] sm:$0xf]
  %v241 = vld [vmem:[%s1 + $0x20] sm:$0xf]
  %v242 = vld [vmem:[%s1 + $0x24] sm:$0xf]
  %v243 = vld [vmem:[%s1 + $0x28] sm:$0xf]
  %v244 = vld [vmem:[%s1 + $0x2c] sm:$0xf]
  %v245 = vld [vmem:[%s1 + $0x30] sm:$0xf]
  %v246 = vld [vmem:[%s1 + $0x34] sm:$0xf]
  %v247 = vld [vmem:[%s1 + $0x38] sm:$0xf]
  %v248 = vld [vmem:[%s1 + $0x3c] sm:$0xf]
  %v249 = vld [vmem:[%s1 + $0x40] sm:$0xf]
  %v250 = vld [vmem:[%s1 + $0x44] sm:$0xf]
  %v251 = vld [vmem:[%s1 + $0x48] sm:$0xf]
  %v252 = vld [vmem:[%s1 + $0x4c] sm:$0xf]
  %v253 = vld [vmem:[%s1 + $0x50] sm:$0xf]
  %v254 = vld [vmem:[%s1 + $0x54] sm:$0xf]
  %v255 = vld [vmem:[%s1 + $0x58] sm:$0xf]
  %v256 = vld [vmem:[%s1 + $0x5c] sm:$0xf]
  %v257 = vld [vmem:[%s1 + $0x60] sm:$0xf]
  %v258 = vld [vmem:[%s1 + $0x64] sm:$0xf]
  %v259 = vld [vmem:[%s1 + $0x68] sm:$0xf]
  %v260 = vld [vmem:[%s1 + $0x6c] sm:$0xf]
  %v261 = vld [vmem:[%s1 + $0x70] sm:$0xf]
  %v262 = vld [vmem:[%s1 + $0x74] sm:$0xf]
  %v263 = vld [vmem:[%s1 + $0x78] sm:$0xf]
  %v264 = vld [vmem:[%s1 + $0x7c] sm:$0xf]
  %v265 = vld [vmem:[%s2] sm:$0x1]
  %v267 = vlaneseq
  %v268 = vshrl.u32 %v267, 7
  %v269 = vsub.s32 0, %v268
  %v270 = vrot.slane %v265, %v269
  %v472 = vunpack.c.l.b16 %v33
  %v473 = vunpack.c.h.b16 %v33
  %v474 = vunpack.c.l.b16 %v34
  %v475 = vunpack.c.h.b16 %v34
  %v476 = vunpack.c.l.b16 %v35
  %v477 = vunpack.c.h.b16 %v35
  %v478 = vunpack.c.l.b16 %v36
  %v479 = vunpack.c.h.b16 %v36
  %v480 = vunpack.c.l.b16 %v37
  %v481 = vunpack.c.h.b16 %v37
  %v482 = vunpack.c.l.b16 %v38
  %v483 = vunpack.c.h.b16 %v38
  %v484 = vunpack.c.l.b16 %v39
  %v485 = vunpack.c.h.b16 %v39
  %v486 = vunpack.c.l.b16 %v40
  %v487 = vunpack.c.h.b16 %v40
  %v488 = vunpack.c.l.b16 %v41
  %v489 = vunpack.c.h.b16 %v41
  %v490 = vunpack.c.l.b16 %v42
  %v491 = vunpack.c.h.b16 %v42
  %v492 = vunpack.c.l.b16 %v43
  %v493 = vunpack.c.h.b16 %v43
  %v494 = vunpack.c.l.b16 %v44
  %v495 = vunpack.c.h.b16 %v44
  %v496 = vunpack.c.l.b16 %v45
  %v497 = vunpack.c.h.b16 %v45
  %v498 = vunpack.c.l.b16 %v46
  %v499 = vunpack.c.h.b16 %v46
  %v500 = vunpack.c.l.b16 %v47
  %v501 = vunpack.c.h.b16 %v47
  %v502 = vunpack.c.l.b16 %v48
  %v503 = vunpack.c.h.b16 %v48
  %v504 = vunpack.c.l.b16 %v49
  %v505 = vunpack.c.h.b16 %v49
  %v506 = vunpack.c.l.b16 %v50
  %v507 = vunpack.c.h.b16 %v50
  %v508 = vunpack.c.l.b16 %v51
  %v509 = vunpack.c.h.b16 %v51
  %v510 = vunpack.c.l.b16 %v52
  %v511 = vunpack.c.h.b16 %v52
  %v512 = vunpack.c.l.b16 %v53
  %v513 = vunpack.c.h.b16 %v53
  %v514 = vunpack.c.l.b16 %v54
  %v515 = vunpack.c.h.b16 %v54
  %v516 = vunpack.c.l.b16 %v55
  %v517 = vunpack.c.h.b16 %v55
  %v518 = vunpack.c.l.b16 %v56
  %v519 = vunpack.c.h.b16 %v56
  %v520 = vunpack.c.l.b16 %v57
  %v521 = vunpack.c.h.b16 %v57
  %v522 = vunpack.c.l.b16 %v58
  %v523 = vunpack.c.h.b16 %v58
  %v524 = vunpack.c.l.b16 %v59
  %v525 = vunpack.c.h.b16 %v59
  %v526 = vunpack.c.l.b16 %v60
  %v527 = vunpack.c.h.b16 %v60
  %v528 = vunpack.c.l.b16 %v61
  %v529 = vunpack.c.h.b16 %v61
  %v530 = vunpack.c.l.b16 %v62
  %v531 = vunpack.c.h.b16 %v62
  %v532 = vunpack.c.l.b16 %v63
  %v533 = vunpack.c.h.b16 %v63
  %v534 = vunpack.c.l.b16 %v64
  %v535 = vunpack.c.h.b16 %v64
  %v536 = vunpack.c.l.b16 %v65
  %v537 = vunpack.c.h.b16 %v65
  %v538 = vunpack.c.l.b16 %v66
  %v539 = vunpack.c.h.b16 %v66
  %v540 = vunpack.c.l.b16 %v67
  %v541 = vunpack.c.h.b16 %v67
  %v542 = vunpack.c.l.b16 %v68
  %v543 = vunpack.c.h.b16 %v68
  %v544 = vunpack.c.l.b16 %v69
  %v545 = vunpack.c.h.b16 %v69
  %v546 = vunpack.c.l.b16 %v70
  %v547 = vunpack.c.h.b16 %v70
  %v548 = vunpack.c.l.b16 %v71
  %v549 = vunpack.c.h.b16 %v71
  %v550 = vunpack.c.l.b16 %v72
  %v551 = vunpack.c.h.b16 %v72
  %v552 = vunpack.c.l.b16 %v73
  %v553 = vunpack.c.h.b16 %v73
  %v554 = vunpack.c.l.b16 %v74
  %v555 = vunpack.c.h.b16 %v74
  %v556 = vunpack.c.l.b16 %v75
  %v557 = vunpack.c.h.b16 %v75
  %v558 = vunpack.c.l.b16 %v76
  %v559 = vunpack.c.h.b16 %v76
  %v560 = vunpack.c.l.b16 %v77
  %v561 = vunpack.c.h.b16 %v77
  %v562 = vunpack.c.l.b16 %v78
  %v563 = vunpack.c.h.b16 %v78
  %v564 = vunpack.c.l.b16 %v79
  %v565 = vunpack.c.h.b16 %v79
  %v566 = vunpack.c.l.b16 %v80
  %v567 = vunpack.c.h.b16 %v80
  %v568 = vunpack.c.l.b16 %v81
  %v569 = vunpack.c.h.b16 %v81
  %v570 = vunpack.c.l.b16 %v82
  %v571 = vunpack.c.h.b16 %v82
  %v572 = vunpack.c.l.b16 %v83
  %v573 = vunpack.c.h.b16 %v83
  %v574 = vunpack.c.l.b16 %v84
  %v575 = vunpack.c.h.b16 %v84
  %v576 = vunpack.c.l.b16 %v85
  %v577 = vunpack.c.h.b16 %v85
  %v578 = vunpack.c.l.b16 %v86
  %v579 = vunpack.c.h.b16 %v86
  %v580 = vunpack.c.l.b16 %v87
  %v581 = vunpack.c.h.b16 %v87
  %v582 = vunpack.c.l.b16 %v88
  %v583 = vunpack.c.h.b16 %v88
  %v584 = vunpack.c.l.b16 %v89
  %v585 = vunpack.c.h.b16 %v89
  %v586 = vunpack.c.l.b16 %v90
  %v587 = vunpack.c.h.b16 %v90
  %v588 = vunpack.c.l.b16 %v91
  %v589 = vunpack.c.h.b16 %v91
  %v590 = vunpack.c.l.b16 %v92
  %v591 = vunpack.c.h.b16 %v92
  %v592 = vunpack.c.l.b16 %v93
  %v593 = vunpack.c.h.b16 %v93
  %v594 = vunpack.c.l.b16 %v94
  %v595 = vunpack.c.h.b16 %v94
  %v596 = vunpack.c.l.b16 %v95
  %v597 = vunpack.c.h.b16 %v95
  %v598 = vunpack.c.l.b16 %v96
  %v599 = vunpack.c.h.b16 %v96
  %v600 = vunpack.c.l.b16 %v97
  %v601 = vunpack.c.h.b16 %v97
  %v602 = vunpack.c.l.b16 %v98
  %v603 = vunpack.c.h.b16 %v98
  %v604 = vunpack.c.l.b16 %v99
  %v605 = vunpack.c.h.b16 %v99
  %v606 = vunpack.c.l.b16 %v100
  %v607 = vunpack.c.h.b16 %v100
  %v608 = vunpack.c.l.b16 %v101
  %v609 = vunpack.c.h.b16 %v101
  %v610 = vunpack.c.l.b16 %v102
  %v611 = vunpack.c.h.b16 %v102
  %v612 = vunpack.c.l.b16 %v103
  %v613 = vunpack.c.h.b16 %v103
  %v614 = vunpack.c.l.b16 %v104
  %v615 = vunpack.c.h.b16 %v104
  %v616 = vunpack.c.l.b16 %v105
  %v617 = vunpack.c.h.b16 %v105
  %v618 = vunpack.c.l.b16 %v106
  %v619 = vunpack.c.h.b16 %v106
  %v620 = vunpack.c.l.b16 %v107
  %v621 = vunpack.c.h.b16 %v107
  %v622 = vunpack.c.l.b16 %v108
  %v623 = vunpack.c.h.b16 %v108
  %v624 = vunpack.c.l.b16 %v109
  %v625 = vunpack.c.h.b16 %v109
  %v626 = vunpack.c.l.b16 %v110
  %v627 = vunpack.c.h.b16 %v110
  %v628 = vunpack.c.l.b16 %v111
  %v629 = vunpack.c.h.b16 %v111
  %v630 = vunpack.c.l.b16 %v112
  %v631 = vunpack.c.h.b16 %v112
  %v632 = vunpack.c.l.b16 %v113
  %v633 = vunpack.c.h.b16 %v113
  %v634 = vunpack.c.l.b16 %v114
  %v635 = vunpack.c.h.b16 %v114
  %v636 = vunpack.c.l.b16 %v115
  %v637 = vunpack.c.h.b16 %v115
  %v638 = vunpack.c.l.b16 %v116
  %v639 = vunpack.c.h.b16 %v116
  %v640 = vunpack.c.l.b16 %v117
  %v641 = vunpack.c.h.b16 %v117
  %v642 = vunpack.c.l.b16 %v118
  %v643 = vunpack.c.h.b16 %v118
  %v644 = vunpack.c.l.b16 %v119
  %v645 = vunpack.c.h.b16 %v119
  %v646 = vunpack.c.l.b16 %v120
  %v647 = vunpack.c.h.b16 %v120
  %v648 = vunpack.c.l.b16 %v121
  %v649 = vunpack.c.h.b16 %v121
  %v650 = vunpack.c.l.b16 %v122
  %v651 = vunpack.c.h.b16 %v122
  %v652 = vunpack.c.l.b16 %v123
  %v653 = vunpack.c.h.b16 %v123
  %v654 = vunpack.c.l.b16 %v124
  %v655 = vunpack.c.h.b16 %v124
  %v656 = vunpack.c.l.b16 %v125
  %v657 = vunpack.c.h.b16 %v125
  %v658 = vunpack.c.l.b16 %v126
  %v659 = vunpack.c.h.b16 %v126
  %v660 = vunpack.c.l.b16 %v127
  %v661 = vunpack.c.h.b16 %v127
  %v662 = vunpack.c.l.b16 %v128
  %v663 = vunpack.c.h.b16 %v128
  %v664 = vunpack.c.l.b16 %v129
  %v665 = vunpack.c.h.b16 %v129
  %v666 = vunpack.c.l.b16 %v130
  %v667 = vunpack.c.h.b16 %v130
  %v668 = vunpack.c.l.b16 %v131
  %v669 = vunpack.c.h.b16 %v131
  %v670 = vunpack.c.l.b16 %v132
  %v671 = vunpack.c.h.b16 %v132
  %v672 = vunpack.c.l.b16 %v133
  %v673 = vunpack.c.h.b16 %v133
  %v674 = vunpack.c.l.b16 %v134
  %v675 = vunpack.c.h.b16 %v134
  %v676 = vunpack.c.l.b16 %v135
  %v677 = vunpack.c.h.b16 %v135
  %v678 = vunpack.c.l.b16 %v136
  %v679 = vunpack.c.h.b16 %v136
  %v680 = vunpack.c.l.b16 %v137
  %v681 = vunpack.c.h.b16 %v137
  %v682 = vunpack.c.l.b16 %v138
  %v683 = vunpack.c.h.b16 %v138
  %v684 = vunpack.c.l.b16 %v139
  %v685 = vunpack.c.h.b16 %v139
  %v686 = vunpack.c.l.b16 %v140
  %v687 = vunpack.c.h.b16 %v140
  %v688 = vunpack.c.l.b16 %v141
  %v689 = vunpack.c.h.b16 %v141
  %v690 = vunpack.c.l.b16 %v142
  %v691 = vunpack.c.h.b16 %v142
  %v692 = vunpack.c.l.b16 %v143
  %v693 = vunpack.c.h.b16 %v143
  %v694 = vunpack.c.l.b16 %v144
  %v695 = vunpack.c.h.b16 %v144
  %v696 = vunpack.c.l.b16 %v145
  %v697 = vunpack.c.h.b16 %v145
  %v698 = vunpack.c.l.b16 %v146
  %v699 = vunpack.c.h.b16 %v146
  %v700 = vunpack.c.l.b16 %v147
  %v701 = vunpack.c.h.b16 %v147
  %v702 = vunpack.c.l.b16 %v148
  %v703 = vunpack.c.h.b16 %v148
  %v704 = vunpack.c.l.b16 %v149
  %v705 = vunpack.c.h.b16 %v149
  %v706 = vunpack.c.l.b16 %v150
  %v707 = vunpack.c.h.b16 %v150
  %v708 = vunpack.c.l.b16 %v151
  %v709 = vunpack.c.h.b16 %v151
  %v710 = vunpack.c.l.b16 %v152
  %v711 = vunpack.c.h.b16 %v152
  %v712 = vunpack.c.l.b16 %v153
  %v713 = vunpack.c.h.b16 %v153
  %v714 = vunpack.c.l.b16 %v154
  %v715 = vunpack.c.h.b16 %v154
  %v716 = vunpack.c.l.b16 %v155
  %v717 = vunpack.c.h.b16 %v155
  %v718 = vunpack.c.l.b16 %v156
  %v719 = vunpack.c.h.b16 %v156
  %v720 = vunpack.c.l.b16 %v157
  %v721 = vunpack.c.h.b16 %v157
  %v722 = vunpack.c.l.b16 %v158
  %v723 = vunpack.c.h.b16 %v158
  %v724 = vunpack.c.l.b16 %v159
  %v725 = vunpack.c.h.b16 %v159
  %v726 = vunpack.c.l.b16 %v160
  %v727 = vunpack.c.h.b16 %v160
  %v728 = vunpack.c.l.b16 %v161
  %v729 = vunpack.c.h.b16 %v161
  %v730 = vunpack.c.l.b16 %v162
  %v731 = vunpack.c.h.b16 %v162
  %v732 = vunpack.c.l.b16 %v163
  %v733 = vunpack.c.h.b16 %v163
  %v734 = vunpack.c.l.b16 %v164
  %v735 = vunpack.c.h.b16 %v164
  %v736 = vunpack.c.l.b16 %v165
  %v737 = vunpack.c.h.b16 %v165
  %v738 = vunpack.c.l.b16 %v166
  %v739 = vunpack.c.h.b16 %v166
  %v740 = vunpack.c.l.b16 %v167
  %v741 = vunpack.c.h.b16 %v167
  %v742 = vunpack.c.l.b16 %v168
  %v743 = vunpack.c.h.b16 %v168
  %v744 = vunpack.c.l.b16 %v169
  %v745 = vunpack.c.h.b16 %v169
  %v746 = vunpack.c.l.b16 %v170
  %v747 = vunpack.c.h.b16 %v170
  %v748 = vunpack.c.l.b16 %v171
  %v749 = vunpack.c.h.b16 %v171
  %v750 = vunpack.c.l.b16 %v172
  %v751 = vunpack.c.h.b16 %v172
  %v752 = vunpack.c.l.b16 %v173
  %v753 = vunpack.c.h.b16 %v173
  %v754 = vunpack.c.l.b16 %v174
  %v755 = vunpack.c.h.b16 %v174
  %v756 = vunpack.c.l.b16 %v175
  %v757 = vunpack.c.h.b16 %v175
  %v758 = vunpack.c.l.b16 %v176
  %v759 = vunpack.c.h.b16 %v176
  %v760 = vunpack.c.l.b16 %v177
  %v761 = vunpack.c.h.b16 %v177
  %v762 = vunpack.c.l.b16 %v178
  %v763 = vunpack.c.h.b16 %v178
  %v764 = vunpack.c.l.b16 %v179
  %v765 = vunpack.c.h.b16 %v179
  %v766 = vunpack.c.l.b16 %v180
  %v767 = vunpack.c.h.b16 %v180
  %v768 = vunpack.c.l.b16 %v181
  %v769 = vunpack.c.h.b16 %v181
  %v770 = vunpack.c.l.b16 %v182
  %v771 = vunpack.c.h.b16 %v182
  %v772 = vunpack.c.l.b16 %v183
  %v773 = vunpack.c.h.b16 %v183
  %v774 = vunpack.c.l.b16 %v184
  %v775 = vunpack.c.h.b16 %v184
  %v776 = vunpack.c.l.b16 %v185
  %v777 = vunpack.c.h.b16 %v185
  %v778 = vunpack.c.l.b16 %v186
  %v779 = vunpack.c.h.b16 %v186
  %v780 = vunpack.c.l.b16 %v187
  %v781 = vunpack.c.h.b16 %v187
  %v782 = vunpack.c.l.b16 %v188
  %v783 = vunpack.c.h.b16 %v188
  %v784 = vunpack.c.l.b16 %v189
  %v785 = vunpack.c.h.b16 %v189
  %v786 = vunpack.c.l.b16 %v190
  %v787 = vunpack.c.h.b16 %v190
  %v788 = vunpack.c.l.b16 %v191
  %v789 = vunpack.c.h.b16 %v191
  %v790 = vunpack.c.l.b16 %v192
  %v791 = vunpack.c.h.b16 %v192
  %v792 = vunpack.c.l.b16 %v193
  %v793 = vunpack.c.h.b16 %v193
  %v794 = vunpack.c.l.b16 %v194
  %v795 = vunpack.c.h.b16 %v194
  %v796 = vunpack.c.l.b16 %v195
  %v797 = vunpack.c.h.b16 %v195
  %v798 = vunpack.c.l.b16 %v196
  %v799 = vunpack.c.h.b16 %v196
  %v800 = vunpack.c.l.b16 %v197
  %v801 = vunpack.c.h.b16 %v197
  %v802 = vunpack.c.l.b16 %v198
  %v803 = vunpack.c.h.b16 %v198
  %v804 = vunpack.c.l.b16 %v199
  %v805 = vunpack.c.h.b16 %v199
  %v806 = vunpack.c.l.b16 %v200
  %v807 = vunpack.c.h.b16 %v200
  %v808 = vunpack.c.l.b16 %v201
  %v809 = vunpack.c.h.b16 %v201
  %v810 = vunpack.c.l.b16 %v202
  %v811 = vunpack.c.h.b16 %v202
  %v812 = vunpack.c.l.b16 %v203
  %v813 = vunpack.c.h.b16 %v203
  %v814 = vunpack.c.l.b16 %v204
  %v815 = vunpack.c.h.b16 %v204
  %v816 = vunpack.c.l.b16 %v205
  %v817 = vunpack.c.h.b16 %v205
  %v818 = vunpack.c.l.b16 %v206
  %v819 = vunpack.c.h.b16 %v206
  %v820 = vunpack.c.l.b16 %v207
  %v821 = vunpack.c.h.b16 %v207
  %v822 = vunpack.c.l.b16 %v208
  %v823 = vunpack.c.h.b16 %v208
  %v824 = vunpack.c.l.b16 %v209
  %v825 = vunpack.c.h.b16 %v209
  %v826 = vunpack.c.l.b16 %v210
  %v827 = vunpack.c.h.b16 %v210
  %v828 = vunpack.c.l.b16 %v211
  %v829 = vunpack.c.h.b16 %v211
  %v830 = vunpack.c.l.b16 %v212
  %v831 = vunpack.c.h.b16 %v212
  %v832 = vunpack.c.l.b16 %v213
  %v833 = vunpack.c.h.b16 %v213
  %v834 = vunpack.c.l.b16 %v214
  %v835 = vunpack.c.h.b16 %v214
  %v836 = vunpack.c.l.b16 %v215
  %v837 = vunpack.c.h.b16 %v215
  %v838 = vunpack.c.l.b16 %v216
  %v839 = vunpack.c.h.b16 %v216
  %v840 = vunpack.c.l.b16 %v217
  %v841 = vunpack.c.h.b16 %v217
  %v842 = vunpack.c.l.b16 %v218
  %v843 = vunpack.c.h.b16 %v218
  %v844 = vunpack.c.l.b16 %v219
  %v845 = vunpack.c.h.b16 %v219
  %v846 = vunpack.c.l.b16 %v220
  %v847 = vunpack.c.h.b16 %v220
  %v848 = vunpack.c.l.b16 %v221
  %v849 = vunpack.c.h.b16 %v221
  %v850 = vunpack.c.l.b16 %v222
  %v851 = vunpack.c.h.b16 %v222
  %v852 = vunpack.c.l.b16 %v223
  %v853 = vunpack.c.h.b16 %v223
  %v854 = vunpack.c.l.b16 %v224
  %v855 = vunpack.c.h.b16 %v224
  %v856 = vunpack.c.l.b16 %v225
  %v857 = vunpack.c.h.b16 %v225
  %v858 = vunpack.c.l.b16 %v226
  %v859 = vunpack.c.h.b16 %v226
  %v860 = vunpack.c.l.b16 %v227
  %v861 = vunpack.c.h.b16 %v227
  %v862 = vunpack.c.l.b16 %v228
  %v863 = vunpack.c.h.b16 %v228
  %v864 = vunpack.c.l.b16 %v229
  %v865 = vunpack.c.h.b16 %v229
  %v866 = vunpack.c.l.b16 %v230
  %v867 = vunpack.c.h.b16 %v230
  %v868 = vunpack.c.l.b16 %v231
  %v869 = vunpack.c.h.b16 %v231
  %v870 = vunpack.c.l.b16 %v232
  %v871 = vunpack.c.h.b16 %v232
  %v872 = vpack.c.b16 %v474, %v472
  %v873 = vpack.c.b16 %v475, %v473
  %v874 = vpack.c.b16 %v478, %v476
  %v875 = vpack.c.b16 %v479, %v477
  %v876 = vpack.c.b16 %v482, %v480
  %v877 = vpack.c.b16 %v483, %v481
  %v878 = vpack.c.b16 %v486, %v484
  %v879 = vpack.c.b16 %v487, %v485
  %v880 = vpack.c.b16 %v490, %v488
  %v881 = vpack.c.b16 %v491, %v489
  %v882 = vpack.c.b16 %v494, %v492
  %v883 = vpack.c.b16 %v495, %v493
  %v884 = vpack.c.b16 %v498, %v496
  %v885 = vpack.c.b16 %v499, %v497
  %v886 = vpack.c.b16 %v502, %v500
  %v887 = vpack.c.b16 %v503, %v501
  %v888 = vpack.c.b16 %v506, %v504
  %v889 = vpack.c.b16 %v507, %v505
  %v890 = vpack.c.b16 %v510, %v508
  %v891 = vpack.c.b16 %v511, %v509
  %v892 = vpack.c.b16 %v514, %v512
  %v893 = vpack.c.b16 %v515, %v513
  %v894 = vpack.c.b16 %v518, %v516
  %v895 = vpack.c.b16 %v519, %v517
  %v896 = vpack.c.b16 %v522, %v520
  %v897 = vpack.c.b16 %v523, %v521
  %v898 = vpack.c.b16 %v526, %v524
  %v899 = vpack.c.b16 %v527, %v525
  %v900 = vpack.c.b16 %v530, %v528
  %v901 = vpack.c.b16 %v531, %v529
  %v902 = vpack.c.b16 %v534, %v532
  %v903 = vpack.c.b16 %v535, %v533
  %v904 = vpack.c.b16 %v538, %v536
  %v905 = vpack.c.b16 %v539, %v537
  %v906 = vpack.c.b16 %v542, %v540
  %v907 = vpack.c.b16 %v543, %v541
  %v908 = vpack.c.b16 %v546, %v544
  %v909 = vpack.c.b16 %v547, %v545
  %v910 = vpack.c.b16 %v550, %v548
  %v911 = vpack.c.b16 %v551, %v549
  %v912 = vpack.c.b16 %v554, %v552
  %v913 = vpack.c.b16 %v555, %v553
  %v914 = vpack.c.b16 %v558, %v556
  %v915 = vpack.c.b16 %v559, %v557
  %v916 = vpack.c.b16 %v562, %v560
  %v917 = vpack.c.b16 %v563, %v561
  %v918 = vpack.c.b16 %v566, %v564
  %v919 = vpack.c.b16 %v567, %v565
  %v920 = vpack.c.b16 %v570, %v568
  %v921 = vpack.c.b16 %v571, %v569
  %v922 = vpack.c.b16 %v574, %v572
  %v923 = vpack.c.b16 %v575, %v573
  %v924 = vpack.c.b16 %v578, %v576
  %v925 = vpack.c.b16 %v579, %v577
  %v926 = vpack.c.b16 %v582, %v580
  %v927 = vpack.c.b16 %v583, %v581
  %v928 = vpack.c.b16 %v586, %v584
  %v929 = vpack.c.b16 %v587, %v585
  %v930 = vpack.c.b16 %v590, %v588
  %v931 = vpack.c.b16 %v591, %v589
  %v932 = vpack.c.b16 %v594, %v592
  %v933 = vpack.c.b16 %v595, %v593
  %v934 = vpack.c.b16 %v598, %v596
  %v935 = vpack.c.b16 %v599, %v597
  %v936 = vpack.c.b16 %v602, %v600
  %v937 = vpack.c.b16 %v603, %v601
  %v938 = vpack.c.b16 %v606, %v604
  %v939 = vpack.c.b16 %v607, %v605
  %v940 = vpack.c.b16 %v610, %v608
  %v941 = vpack.c.b16 %v611, %v609
  %v942 = vpack.c.b16 %v614, %v612
  %v943 = vpack.c.b16 %v615, %v613
  %v944 = vpack.c.b16 %v618, %v616
  %v945 = vpack.c.b16 %v619, %v617
  %v946 = vpack.c.b16 %v622, %v620
  %v947 = vpack.c.b16 %v623, %v621
  %v948 = vpack.c.b16 %v626, %v624
  %v949 = vpack.c.b16 %v627, %v625
  %v950 = vpack.c.b16 %v630, %v628
  %v951 = vpack.c.b16 %v631, %v629
  %v952 = vpack.c.b16 %v634, %v632
  %v953 = vpack.c.b16 %v635, %v633
  %v954 = vpack.c.b16 %v638, %v636
  %v955 = vpack.c.b16 %v639, %v637
  %v956 = vpack.c.b16 %v642, %v640
  %v957 = vpack.c.b16 %v643, %v641
  %v958 = vpack.c.b16 %v646, %v644
  %v959 = vpack.c.b16 %v647, %v645
  %v960 = vpack.c.b16 %v650, %v648
  %v961 = vpack.c.b16 %v651, %v649
  %v962 = vpack.c.b16 %v654, %v652
  %v963 = vpack.c.b16 %v655, %v653
  %v964 = vpack.c.b16 %v658, %v656
  %v965 = vpack.c.b16 %v659, %v657
  %v966 = vpack.c.b16 %v662, %v660
  %v967 = vpack.c.b16 %v663, %v661
  %v968 = vpack.c.b16 %v666, %v664
  %v969 = vpack.c.b16 %v667, %v665
  %v970 = vpack.c.b16 %v670, %v668
  %v971 = vpack.c.b16 %v671, %v669
  %v972 = vpack.c.b16 %v674, %v672
  %v973 = vpack.c.b16 %v675, %v673
  %v974 = vpack.c.b16 %v678, %v676
  %v975 = vpack.c.b16 %v679, %v677
  %v976 = vpack.c.b16 %v682, %v680
  %v977 = vpack.c.b16 %v683, %v681
  %v978 = vpack.c.b16 %v686, %v684
  %v979 = vpack.c.b16 %v687, %v685
  %v980 = vpack.c.b16 %v690, %v688
  %v981 = vpack.c.b16 %v691, %v689
  %v982 = vpack.c.b16 %v694, %v692
  %v983 = vpack.c.b16 %v695, %v693
  %v984 = vpack.c.b16 %v698, %v696
  %v985 = vpack.c.b16 %v699, %v697
  %v986 = vpack.c.b16 %v702, %v700
  %v987 = vpack.c.b16 %v703, %v701
  %v988 = vpack.c.b16 %v706, %v704
  %v989 = vpack.c.b16 %v707, %v705
  %v990 = vpack.c.b16 %v710, %v708
  %v991 = vpack.c.b16 %v711, %v709
  %v992 = vpack.c.b16 %v714, %v712
  %v993 = vpack.c.b16 %v715, %v713
  %v994 = vpack.c.b16 %v718, %v716
  %v995 = vpack.c.b16 %v719, %v717
  %v996 = vpack.c.b16 %v722, %v720
  %v997 = vpack.c.b16 %v723, %v721
  %v998 = vpack.c.b16 %v726, %v724
  %v999 = vpack.c.b16 %v727, %v725
  %v1000 = vpack.c.b16 %v730, %v728
  %v1001 = vpack.c.b16 %v731, %v729
  %v1002 = vpack.c.b16 %v734, %v732
  %v1003 = vpack.c.b16 %v735, %v733
  %v1004 = vpack.c.b16 %v738, %v736
  %v1005 = vpack.c.b16 %v739, %v737
  %v1006 = vpack.c.b16 %v742, %v740
  %v1007 = vpack.c.b16 %v743, %v741
  %v1008 = vpack.c.b16 %v746, %v744
  %v1009 = vpack.c.b16 %v747, %v745
  %v1010 = vpack.c.b16 %v750, %v748
  %v1011 = vpack.c.b16 %v751, %v749
  %v1012 = vpack.c.b16 %v754, %v752
  %v1013 = vpack.c.b16 %v755, %v753
  %v1014 = vpack.c.b16 %v758, %v756
  %v1015 = vpack.c.b16 %v759, %v757
  %v1016 = vpack.c.b16 %v762, %v760
  %v1017 = vpack.c.b16 %v763, %v761
  %v1018 = vpack.c.b16 %v766, %v764
  %v1019 = vpack.c.b16 %v767, %v765
  %v1020 = vpack.c.b16 %v770, %v768
  %v1021 = vpack.c.b16 %v771, %v769
  %v1022 = vpack.c.b16 %v774, %v772
  %v1023 = vpack.c.b16 %v775, %v773
  %v1024 = vpack.c.b16 %v778, %v776
  %v1025 = vpack.c.b16 %v779, %v777
  %v1026 = vpack.c.b16 %v782, %v780
  %v1027 = vpack.c.b16 %v783, %v781
  %v1028 = vpack.c.b16 %v786, %v784
  %v1029 = vpack.c.b16 %v787, %v785
  %v1030 = vpack.c.b16 %v790, %v788
  %v1031 = vpack.c.b16 %v791, %v789
  %v1032 = vpack.c.b16 %v794, %v792
  %v1033 = vpack.c.b16 %v795, %v793
  %v1034 = vpack.c.b16 %v798, %v796
  %v1035 = vpack.c.b16 %v799, %v797
  %v1036 = vpack.c.b16 %v802, %v800
  %v1037 = vpack.c.b16 %v803, %v801
  %v1038 = vpack.c.b16 %v806, %v804
  %v1039 = vpack.c.b16 %v807, %v805
  %v1040 = vpack.c.b16 %v810, %v808
  %v1041 = vpack.c.b16 %v811, %v809
  %v1042 = vpack.c.b16 %v814, %v812
  %v1043 = vpack.c.b16 %v815, %v813
  %v1044 = vpack.c.b16 %v818, %v816
  %v1045 = vpack.c.b16 %v819, %v817
  %v1046 = vpack.c.b16 %v822, %v820
  %v1047 = vpack.c.b16 %v823, %v821
  %v1048 = vpack.c.b16 %v826, %v824
  %v1049 = vpack.c.b16 %v827, %v825
  %v1050 = vpack.c.b16 %v830, %v828
  %v1051 = vpack.c.b16 %v831, %v829
  %v1052 = vpack.c.b16 %v834, %v832
  %v1053 = vpack.c.b16 %v835, %v833
  %v1054 = vpack.c.b16 %v838, %v836
  %v1055 = vpack.c.b16 %v839, %v837
  %v1056 = vpack.c.b16 %v842, %v840
  %v1057 = vpack.c.b16 %v843, %v841
  %v1058 = vpack.c.b16 %v846, %v844
  %v1059 = vpack.c.b16 %v847, %v845
  %v1060 = vpack.c.b16 %v850, %v848
  %v1061 = vpack.c.b16 %v851, %v849
  %v1062 = vpack.c.b16 %v854, %v852
  %v1063 = vpack.c.b16 %v855, %v853
  %v1064 = vpack.c.b16 %v858, %v856
  %v1065 = vpack.c.b16 %v859, %v857
  %v1066 = vpack.c.b16 %v862, %v860
  %v1067 = vpack.c.b16 %v863, %v861
  %v1068 = vpack.c.b16 %v866, %v864
  %v1069 = vpack.c.b16 %v867, %v865
  %v1070 = vpack.c.b16 %v870, %v868
  %v1071 = vpack.c.b16 %v871, %v869
  %v1304 = vunpack.c.l.b16 %v233
  %v1305 = vunpack.c.l.b16 %v234
  %v1306 = vunpack.c.l.b16 %v235
  %v1307 = vunpack.c.l.b16 %v236
  %v1308 = vunpack.c.l.b16 %v237
  %v1309 = vunpack.c.l.b16 %v238
  %v1310 = vunpack.c.l.b16 %v239
  %v1311 = vunpack.c.l.b16 %v240
  %v1312 = vunpack.c.l.b16 %v241
  %v1313 = vunpack.c.l.b16 %v242
  %v1314 = vunpack.c.l.b16 %v243
  %v1315 = vunpack.c.l.b16 %v244
  %v1316 = vunpack.c.l.b16 %v245
  %v1317 = vunpack.c.l.b16 %v246
  %v1318 = vunpack.c.l.b16 %v247
  %v1319 = vunpack.c.l.b16 %v248
  %v1320 = vunpack.c.l.b16 %v249
  %v1321 = vunpack.c.l.b16 %v250
  %v1322 = vunpack.c.l.b16 %v251
  %v1323 = vunpack.c.l.b16 %v252
  %v1324 = vunpack.c.l.b16 %v253
  %v1325 = vunpack.c.l.b16 %v254
  %v1326 = vunpack.c.l.b16 %v255
  %v1327 = vunpack.c.l.b16 %v256
  %v1328 = vunpack.c.l.b16 %v257
  %v1329 = vunpack.c.l.b16 %v258
  %v1330 = vunpack.c.l.b16 %v259
  %v1331 = vunpack.c.l.b16 %v260
  %v1332 = vunpack.c.l.b16 %v261
  %v1333 = vunpack.c.l.b16 %v262
  %v1334 = vunpack.c.l.b16 %v263
  %v1335 = vunpack.c.l.b16 %v264
  %v1336 = vpack.c.b16 %v1305, %v1304
  %v1337 = vpack.c.b16 %v1307, %v1306
  %v1338 = vpack.c.b16 %v1309, %v1308
  %v1339 = vpack.c.b16 %v1311, %v1310
  %v1340 = vpack.c.b16 %v1313, %v1312
  %v1341 = vpack.c.b16 %v1315, %v1314
  %v1342 = vpack.c.b16 %v1317, %v1316
  %v1343 = vpack.c.b16 %v1319, %v1318
  %v1344 = vpack.c.b16 %v1321, %v1320
  %v1345 = vpack.c.b16 %v1323, %v1322
  %v1346 = vpack.c.b16 %v1325, %v1324
  %v1347 = vpack.c.b16 %v1327, %v1326
  %v1348 = vpack.c.b16 %v1329, %v1328
  %v1349 = vpack.c.b16 %v1331, %v1330
  %v1350 = vpack.c.b16 %v1333, %v1332
  %v1351 = vpack.c.b16 %v1335, %v1334
  %1368 = vmatprep.subr.bf16.mxu0 0
  %1369 = vmatpush1.bf16.msra.mxu0 %v1336
  %1370 = vmatprep.subr.bf16.mxu0 0
  %1371 = vmatpush1.bf16.msra.mxu0 %v1337
  %1372 = vmatprep.subr.bf16.mxu0 0
  %1373 = vmatpush1.bf16.msra.mxu0 %v1338
  %1374 = vmatprep.subr.bf16.mxu0 0
  %1375 = vmatpush1.bf16.msra.mxu0 %v1339
  %1376 = vmatprep.subr.bf16.mxu0 0
  %1377 = vmatpush1.bf16.msra.mxu0 %v1340
  %1378 = vmatprep.subr.bf16.mxu0 0
  %1379 = vmatpush1.bf16.msra.mxu0 %v1341
  %1380 = vmatprep.subr.bf16.mxu0 0
  %1381 = vmatpush1.bf16.msra.mxu0 %v1342
  %1382 = vmatprep.subr.bf16.mxu0 0
  %1383 = vmatpush1.bf16.msra.mxu0 %v1343
  %1384 = vmatprep.subr.bf16.mxu0 0
  %1385 = vmatpush1.bf16.msra.mxu0 %v1344
  %1386 = vmatprep.subr.bf16.mxu0 0
  %1387 = vmatpush1.bf16.msra.mxu0 %v1345
  %1388 = vmatprep.subr.bf16.mxu0 0
  %1389 = vmatpush1.bf16.msra.mxu0 %v1346
  %1390 = vmatprep.subr.bf16.mxu0 0
  %1391 = vmatpush1.bf16.msra.mxu0 %v1347
  %1392 = vmatprep.subr.bf16.mxu0 0
  %1393 = vmatpush1.bf16.msra.mxu0 %v1348
  %1394 = vmatprep.subr.bf16.mxu0 0
  %1395 = vmatpush1.bf16.msra.mxu0 %v1349
  %1396 = vmatprep.subr.bf16.mxu0 0
  %1397 = vmatpush1.bf16.msra.mxu0 %v1350
  %1398 = vmatprep.subr.bf16.mxu0 0
  %1399 = vmatpush1.bf16.msra.mxu0 %v1351
  %1400 = vmatprep.mubr.bf16.mxu0 %v873
  %1401 = vmatmul.mubr.bf16.gmra.mrb[0].mxu0 %v872
  %v1402 = vpop.f32.mrb[0].mxu0
  %v1403 = vadd.f32 %v270, %v1402
  %v1404 = vpop.f32.mrb[0].mxu0
  %v1405 = vpop.f32.mrb[0].mxu0
  %v1406 = vadd.f32 %v270, %v1405
  %v1407 = vpop.f32.mrb[0].mxu0
  %1408 = vmatprep.mubr.bf16.mxu0 %v875
  %1409 = vmatmul.mubr.bf16.gmra.mrb[0].mxu0 %v874
  %v1410 = vpop.f32.mrb[0].mxu0
  %v1411 = vadd.f32 %v270, %v1410
  %v1412 = vpop.f32.mrb[0].mxu0
  %v1413 = vpop.f32.mrb[0].mxu0
  %v1414 = vadd.f32 %v270, %v1413
  %v1415 = vpop.f32.mrb[0].mxu0
  %1416 = vmatprep.mubr.bf16.mxu0 %v877
  %1417 = vmatmul.mubr.bf16.gmra.mrb[0].mxu0 %v876
  %v1418 = vpop.f32.mrb[0].mxu0
  %v1419 = vadd.f32 %v270, %v1418
  %v1420 = vpop.f32.mrb[0].mxu0
  %v1421 = vpop.f32.mrb[0].mxu0
  %v1422 = vadd.f32 %v270, %v1421
  %v1423 = vpop.f32.mrb[0].mxu0
  %1424 = vmatprep.mubr.bf16.mxu0 %v879
  %1425 = vmatmul.mubr.bf16.gmra.mrb[0].mxu0 %v878
  %v1426 = vpop.f32.mrb[0].mxu0
  %v1427 = vadd.f32 %v270, %v1426
  %v1428 = vpop.f32.mrb[0].mxu0
  %v1429 = vpop.f32.mrb[0].mxu0
  %v1430 = vadd.f32 %v270, %v1429
  %v1431 = vpop.f32.mrb[0].mxu0
  %1432 = vmatprep.mubr.bf16.mxu0 %v881
  %1433 = vmatmul.mubr.bf16.gmra.mrb[0].mxu0 %v880
  %v1434 = vpop.f32.mrb[0].mxu0
  %v1435 = vadd.f32 %v270, %v1434
  %v1436 = vpop.f32.mrb[0].mxu0
  %v1437 = vpop.f32.mrb[0].mxu0
  %v1438 = vadd.f32 %v270, %v1437
  %v1439 = vpop.f32.mrb[0].mxu0
  %1440 = vmatprep.mubr.bf16.mxu0 %v883
  %1441 = vmatmul.mubr.bf16.gmra.mrb[0].mxu0 %v882
  %v1442 = vpop.f32.mrb[0].mxu0
  %v1443 = vadd.f32 %v270, %v1442
  %v1444 = vpop.f32.mrb[0].mxu0
  %v1445 = vpop.f32.mrb[0].mxu0
  %v1446 = vadd.f32 %v270, %v1445
  %v1447 = vpop.f32.mrb[0].mxu0
  %1448 = vmatprep.mubr.bf16.mxu0 %v885
  %1449 = vmatmul.mubr.bf16.gmra.mrb[0].mxu0 %v884
  %v1450 = vpop.f32.mrb[0].mxu0
  %v1451 = vadd.f32 %v270, %v1450
  %v1452 = vpop.f32.mrb[0].mxu0
  %v1453 = vpop.f32.mrb[0].mxu0
  %v1454 = vadd.f32 %v270, %v1453
  %v1455 = vpop.f32.mrb[0].mxu0
  %1456 = vmatprep.mubr.bf16.mxu0 %v887
  %1457 = vmatmul.mubr.bf16.gmra.mrb[0].mxu0 %v886
  %v1458 = vpop.f32.mrb[0].mxu0
  %v1459 = vadd.f32 %v270, %v1458
  %v1460 = vpop.f32.mrb[0].mxu0
  %v1461 = vpop.f32.mrb[0].mxu0
  %v1462 = vadd.f32 %v270, %v1461
  %v1463 = vpop.f32.mrb[0].mxu0
  %1464 = vmatprep.mubr.bf16.mxu0 %v889
  %1465 = vmatmul.mubr.bf16.gmra.mrb[0].mxu0 %v888
  %v1466 = vpop.f32.mrb[0].mxu0
  %v1467 = vadd.f32 %v270, %v1466
  %v1468 = vpop.f32.mrb[0].mxu0
  %v1469 = vpop.f32.mrb[0].mxu0
  %v1470 = vadd.f32 %v270, %v1469
  %v1471 = vpop.f32.mrb[0].mxu0
  %1472 = vmatprep.mubr.bf16.mxu0 %v891
  %1473 = vmatmul.mubr.bf16.gmra.mrb[0].mxu0 %v890
  %v1474 = vpop.f32.mrb[0].mxu0
  %v1475 = vadd.f32 %v270, %v1474
  %v1476 = vpop.f32.mrb[0].mxu0
  %v1477 = vpop.f32.mrb[0].mxu0
  %v1478 = vadd.f32 %v270, %v1477
  %v1479 = vpop.f32.mrb[0].mxu0
  %1480 = vmatprep.mubr.bf16.mxu0 %v893
  %1481 = vmatmul.mubr.bf16.gmra.mrb[0].mxu0 %v892
  %v1482 = vpop.f32.mrb[0].mxu0
  %v1483 = vadd.f32 %v270, %v1482
  %v1484 = vpop.f32.mrb[0].mxu0
  %v1485 = vpop.f32.mrb[0].mxu0
  %v1486 = vadd.f32 %v270, %v1485
  %v1487 = vpop.f32.mrb[0].mxu0
  %1488 = vmatprep.mubr.bf16.mxu0 %v895
  %1489 = vmatmul.mubr.bf16.gmra.mrb[0].mxu0 %v894
  %v1490 = vpop.f32.mrb[0].mxu0
  %v1491 = vadd.f32 %v270, %v1490
  %v1492 = vpop.f32.mrb[0].mxu0
  %v1493 = vpop.f32.mrb[0].mxu0
  %v1494 = vadd.f32 %v270, %v1493
  %v1495 = vpop.f32.mrb[0].mxu0
  %1496 = vmatprep.mubr.bf16.mxu0 %v897
  %1497 = vmatmul.mubr.bf16.gmra.mrb[0].mxu0 %v896
  %v1498 = vpop.f32.mrb[0].mxu0
  %v1499 = vadd.f32 %v270, %v1498
  %v1500 = vpop.f32.mrb[0].mxu0
  %v1501 = vpop.f32.mrb[0].mxu0
  %v1502 = vadd.f32 %v270, %v1501
  %v1503 = vpop.f32.mrb[0].mxu0
  %1504 = vmatprep.mubr.bf16.mxu0 %v899
  %1505 = vmatmul.mubr.bf16.gmra.mrb[0].mxu0 %v898
  %v1506 = vpop.f32.mrb[0].mxu0
  %v1507 = vadd.f32 %v270, %v1506
  %v1508 = vpop.f32.mrb[0].mxu0
  %v1509 = vpop.f32.mrb[0].mxu0
  %v1510 = vadd.f32 %v270, %v1509
  %v1511 = vpop.f32.mrb[0].mxu0
  %1512 = vmatprep.mubr.bf16.mxu0 %v901
  %1513 = vmatmul.mubr.bf16.gmra.mrb[0].mxu0 %v900
  %v1514 = vpop.f32.mrb[0].mxu0
  %v1515 = vadd.f32 %v270, %v1514
  %v1516 = vpop.f32.mrb[0].mxu0
  %v1517 = vpop.f32.mrb[0].mxu0
  %v1518 = vadd.f32 %v270, %v1517
  %v1519 = vpop.f32.mrb[0].mxu0
  %1520 = vmatprep.mubr.bf16.mxu0 %v903
  %1521 = vmatmul.mubr.bf16.gmra.mrb[0].mxu0 %v902
  %v1522 = vpop.f32.mrb[0].mxu0
  %v1523 = vadd.f32 %v270, %v1522
  %v1524 = vpop.f32.mrb[0].mxu0
  %v1525 = vpop.f32.mrb[0].mxu0
  %v1526 = vadd.f32 %v270, %v1525
  %v1527 = vpop.f32.mrb[0].mxu0
  %1528 = vmatprep.mubr.bf16.mxu0 %v905
  %1529 = vmatmul.mubr.bf16.gmra.mrb[0].mxu0 %v904
  %v1530 = vpop.f32.mrb[0].mxu0
  %v1531 = vadd.f32 %v270, %v1530
  %v1532 = vpop.f32.mrb[0].mxu0
  %v1533 = vpop.f32.mrb[0].mxu0
  %v1534 = vadd.f32 %v270, %v1533
  %v1535 = vpop.f32.mrb[0].mxu0
  %1536 = vmatprep.mubr.bf16.mxu0 %v907
  %1537 = vmatmul.mubr.bf16.gmra.mrb[0].mxu0 %v906
  %v1538 = vpop.f32.mrb[0].mxu0
  %v1539 = vadd.f32 %v270, %v1538
  %v1540 = vpop.f32.mrb[0].mxu0
  %v1541 = vpop.f32.mrb[0].mxu0
  %v1542 = vadd.f32 %v270, %v1541
  %v1543 = vpop.f32.mrb[0].mxu0
  %1544 = vmatprep.mubr.bf16.mxu0 %v909
  %1545 = vmatmul.mubr.bf16.gmra.mrb[0].mxu0 %v908
  %v1546 = vpop.f32.mrb[0].mxu0
  %v1547 = vadd.f32 %v270, %v1546
  %v1548 = vpop.f32.mrb[0].mxu0
  %v1549 = vpop.f32.mrb[0].mxu0
  %v1550 = vadd.f32 %v270, %v1549
  %v1551 = vpop.f32.mrb[0].mxu0
  %1552 = vmatprep.mubr.bf16.mxu0 %v911
  %1553 = vmatmul.mubr.bf16.gmra.mrb[0].mxu0 %v910
  %v1554 = vpop.f32.mrb[0].mxu0
  %v1555 = vadd.f32 %v270, %v1554
  %v1556 = vpop.f32.mrb[0].mxu0
  %v1557 = vpop.f32.mrb[0].mxu0
  %v1558 = vadd.f32 %v270, %v1557
  %v1559 = vpop.f32.mrb[0].mxu0
  %1560 = vmatprep.mubr.bf16.mxu0 %v913
  %1561 = vmatmul.mubr.bf16.gmra.mrb[0].mxu0 %v912
  %v1562 = vpop.f32.mrb[0].mxu0
  %v1563 = vadd.f32 %v270, %v1562
  %v1564 = vpop.f32.mrb[0].mxu0
  %v1565 = vpop.f32.mrb[0].mxu0
  %v1566 = vadd.f32 %v270, %v1565
  %v1567 = vpop.f32.mrb[0].mxu0
  %1568 = vmatprep.mubr.bf16.mxu0 %v915
  %1569 = vmatmul.mubr.bf16.gmra.mrb[0].mxu0 %v914
  %v1570 = vpop.f32.mrb[0].mxu0
  %v1571 = vadd.f32 %v270, %v1570
  %v1572 = vpop.f32.mrb[0].mxu0
  %v1573 = vpop.f32.mrb[0].mxu0
  %v1574 = vadd.f32 %v270, %v1573
  %v1575 = vpop.f32.mrb[0].mxu0
  %1576 = vmatprep.mubr.bf16.mxu0 %v917
  %1577 = vmatmul.mubr.bf16.gmra.mrb[0].mxu0 %v916
  %v1578 = vpop.f32.mrb[0].mxu0
  %v1579 = vadd.f32 %v270, %v1578
  %v1580 = vpop.f32.mrb[0].mxu0
  %v1581 = vpop.f32.mrb[0].mxu0
  %v1582 = vadd.f32 %v270, %v1581
  %v1583 = vpop.f32.mrb[0].mxu0
  %1584 = vmatprep.mubr.bf16.mxu0 %v919
  %1585 = vmatmul.mubr.bf16.gmra.mrb[0].mxu0 %v918
  %v1586 = vpop.f32.mrb[0].mxu0
  %v1587 = vadd.f32 %v270, %v1586
  %v1588 = vpop.f32.mrb[0].mxu0
  %v1589 = vpop.f32.mrb[0].mxu0
  %v1590 = vadd.f32 %v270, %v1589
  %v1591 = vpop.f32.mrb[0].mxu0
  %1592 = vmatprep.mubr.bf16.mxu0 %v921
  %1593 = vmatmul.mubr.bf16.gmra.mrb[0].mxu0 %v920
  %v1594 = vpop.f32.mrb[0].mxu0
  %v1595 = vadd.f32 %v270, %v1594
  %v1596 = vpop.f32.mrb[0].mxu0
  %v1597 = vpop.f32.mrb[0].mxu0
  %v1598 = vadd.f32 %v270, %v1597
  %v1599 = vpop.f32.mrb[0].mxu0
  %1600 = vmatprep.mubr.bf16.mxu0 %v923
  %1601 = vmatmul.mubr.bf16.gmra.mrb[0].mxu0 %v922
  %v1602 = vpop.f32.mrb[0].mxu0
  %v1603 = vadd.f32 %v270, %v1602
  %v1604 = vpop.f32.mrb[0].mxu0
  %v1605 = vpop.f32.mrb[0].mxu0
  %v1606 = vadd.f32 %v270, %v1605
  %v1607 = vpop.f32.mrb[0].mxu0
  %1608 = vmatprep.mubr.bf16.mxu0 %v925
  %1609 = vmatmul.mubr.bf16.gmra.mrb[0].mxu0 %v924
  %v1610 = vpop.f32.mrb[0].mxu0
  %v1611 = vadd.f32 %v270, %v1610
  %v1612 = vpop.f32.mrb[0].mxu0
  %v1613 = vpop.f32.mrb[0].mxu0
  %v1614 = vadd.f32 %v270, %v1613
  %v1615 = vpop.f32.mrb[0].mxu0
  %1616 = vmatprep.mubr.bf16.mxu0 %v927
  %1617 = vmatmul.mubr.bf16.gmra.mrb[0].mxu0 %v926
  %v1618 = vpop.f32.mrb[0].mxu0
  %v1619 = vadd.f32 %v270, %v1618
  %v1620 = vpop.f32.mrb[0].mxu0
  %v1621 = vpop.f32.mrb[0].mxu0
  %v1622 = vadd.f32 %v270, %v1621
  %v1623 = vpop.f32.mrb[0].mxu0
  %1624 = vmatprep.mubr.bf16.mxu0 %v929
  %1625 = vmatmul.mubr.bf16.gmra.mrb[0].mxu0 %v928
  %v1626 = vpop.f32.mrb[0].mxu0
  %v1627 = vadd.f32 %v270, %v1626
  %v1628 = vpop.f32.mrb[0].mxu0
  %v1629 = vpop.f32.mrb[0].mxu0
  %v1630 = vadd.f32 %v270, %v1629
  %v1631 = vpop.f32.mrb[0].mxu0
  %1632 = vmatprep.mubr.bf16.mxu0 %v931
  %1633 = vmatmul.mubr.bf16.gmra.mrb[0].mxu0 %v930
  %v1634 = vpop.f32.mrb[0].mxu0
  %v1635 = vadd.f32 %v270, %v1634
  %v1636 = vpop.f32.mrb[0].mxu0
  %v1637 = vpop.f32.mrb[0].mxu0
  %v1638 = vadd.f32 %v270, %v1637
  %v1639 = vpop.f32.mrb[0].mxu0
  %1640 = vmatprep.mubr.bf16.mxu0 %v933
  %1641 = vmatmul.mubr.bf16.gmra.mrb[0].mxu0 %v932
  %v1642 = vpop.f32.mrb[0].mxu0
  %v1643 = vadd.f32 %v270, %v1642
  %v1644 = vpop.f32.mrb[0].mxu0
  %v1645 = vpop.f32.mrb[0].mxu0
  %v1646 = vadd.f32 %v270, %v1645
  %v1647 = vpop.f32.mrb[0].mxu0
  %1648 = vmatprep.mubr.bf16.mxu0 %v935
  %1649 = vmatmul.mubr.bf16.gmra.mrb[0].mxu0 %v934
  %v1650 = vpop.f32.mrb[0].mxu0
  %v1651 = vadd.f32 %v270, %v1650
  %v1652 = vpop.f32.mrb[0].mxu0
  %v1653 = vpop.f32.mrb[0].mxu0
  %v1654 = vadd.f32 %v270, %v1653
  %v1655 = vpop.f32.mrb[0].mxu0
  %1656 = vmatprep.mubr.bf16.mxu0 %v937
  %1657 = vmatmul.mubr.bf16.gmra.mrb[0].mxu0 %v936
  %v1658 = vpop.f32.mrb[0].mxu0
  %v1659 = vadd.f32 %v270, %v1658
  %v1660 = vpop.f32.mrb[0].mxu0
  %v1661 = vpop.f32.mrb[0].mxu0
  %v1662 = vadd.f32 %v270, %v1661
  %v1663 = vpop.f32.mrb[0].mxu0
  %1664 = vmatprep.mubr.bf16.mxu0 %v939
  %1665 = vmatmul.mubr.bf16.gmra.mrb[0].mxu0 %v938
  %v1666 = vpop.f32.mrb[0].mxu0
  %v1667 = vadd.f32 %v270, %v1666
  %v1668 = vpop.f32.mrb[0].mxu0
  %v1669 = vpop.f32.mrb[0].mxu0
  %v1670 = vadd.f32 %v270, %v1669
  %v1671 = vpop.f32.mrb[0].mxu0
  %1672 = vmatprep.mubr.bf16.mxu0 %v941
  %1673 = vmatmul.mubr.bf16.gmra.mrb[0].mxu0 %v940
  %v1674 = vpop.f32.mrb[0].mxu0
  %v1675 = vadd.f32 %v270, %v1674
  %v1676 = vpop.f32.mrb[0].mxu0
  %v1677 = vpop.f32.mrb[0].mxu0
  %v1678 = vadd.f32 %v270, %v1677
  %v1679 = vpop.f32.mrb[0].mxu0
  %1680 = vmatprep.mubr.bf16.mxu0 %v943
  %1681 = vmatmul.mubr.bf16.gmra.mrb[0].mxu0 %v942
  %v1682 = vpop.f32.mrb[0].mxu0
  %v1683 = vadd.f32 %v270, %v1682
  %v1684 = vpop.f32.mrb[0].mxu0
  %v1685 = vpop.f32.mrb[0].mxu0
  %v1686 = vadd.f32 %v270, %v1685
  %v1687 = vpop.f32.mrb[0].mxu0
  %1688 = vmatprep.mubr.bf16.mxu0 %v945
  %1689 = vmatmul.mubr.bf16.gmra.mrb[0].mxu0 %v944
  %v1690 = vpop.f32.mrb[0].mxu0
  %v1691 = vadd.f32 %v270, %v1690
  %v1692 = vpop.f32.mrb[0].mxu0
  %v1693 = vpop.f32.mrb[0].mxu0
  %v1694 = vadd.f32 %v270, %v1693
  %v1695 = vpop.f32.mrb[0].mxu0
  %1696 = vmatprep.mubr.bf16.mxu0 %v947
  %1697 = vmatmul.mubr.bf16.gmra.mrb[0].mxu0 %v946
  %v1698 = vpop.f32.mrb[0].mxu0
  %v1699 = vadd.f32 %v270, %v1698
  %v1700 = vpop.f32.mrb[0].mxu0
  %v1701 = vpop.f32.mrb[0].mxu0
  %v1702 = vadd.f32 %v270, %v1701
  %v1703 = vpop.f32.mrb[0].mxu0
  %1704 = vmatprep.mubr.bf16.mxu0 %v949
  %1705 = vmatmul.mubr.bf16.gmra.mrb[0].mxu0 %v948
  %v1706 = vpop.f32.mrb[0].mxu0
  %v1707 = vadd.f32 %v270, %v1706
  %v1708 = vpop.f32.mrb[0].mxu0
  %v1709 = vpop.f32.mrb[0].mxu0
  %v1710 = vadd.f32 %v270, %v1709
  %v1711 = vpop.f32.mrb[0].mxu0
  %1712 = vmatprep.mubr.bf16.mxu0 %v951
  %1713 = vmatmul.mubr.bf16.gmra.mrb[0].mxu0 %v950
  %v1714 = vpop.f32.mrb[0].mxu0
  %v1715 = vadd.f32 %v270, %v1714
  %v1716 = vpop.f32.mrb[0].mxu0
  %v1717 = vpop.f32.mrb[0].mxu0
  %v1718 = vadd.f32 %v270, %v1717
  %v1719 = vpop.f32.mrb[0].mxu0
  %1720 = vmatprep.mubr.bf16.mxu0 %v953
  %1721 = vmatmul.mubr.bf16.gmra.mrb[0].mxu0 %v952
  %v1722 = vpop.f32.mrb[0].mxu0
  %v1723 = vadd.f32 %v270, %v1722
  %v1724 = vpop.f32.mrb[0].mxu0
  %v1725 = vpop.f32.mrb[0].mxu0
  %v1726 = vadd.f32 %v270, %v1725
  %v1727 = vpop.f32.mrb[0].mxu0
  %1728 = vmatprep.mubr.bf16.mxu0 %v955
  %1729 = vmatmul.mubr.bf16.gmra.mrb[0].mxu0 %v954
  %v1730 = vpop.f32.mrb[0].mxu0
  %v1731 = vadd.f32 %v270, %v1730
  %v1732 = vpop.f32.mrb[0].mxu0
  %v1733 = vpop.f32.mrb[0].mxu0
  %v1734 = vadd.f32 %v270, %v1733
  %v1735 = vpop.f32.mrb[0].mxu0
  %1736 = vmatprep.mubr.bf16.mxu0 %v957
  %1737 = vmatmul.mubr.bf16.gmra.mrb[0].mxu0 %v956
  %v1738 = vpop.f32.mrb[0].mxu0
  %v1739 = vadd.f32 %v270, %v1738
  %v1740 = vpop.f32.mrb[0].mxu0
  %v1741 = vpop.f32.mrb[0].mxu0
  %v1742 = vadd.f32 %v270, %v1741
  %v1743 = vpop.f32.mrb[0].mxu0
  %1744 = vmatprep.mubr.bf16.mxu0 %v959
  %1745 = vmatmul.mubr.bf16.gmra.mrb[0].mxu0 %v958
  %v1746 = vpop.f32.mrb[0].mxu0
  %v1747 = vadd.f32 %v270, %v1746
  %v1748 = vpop.f32.mrb[0].mxu0
  %v1749 = vpop.f32.mrb[0].mxu0
  %v1750 = vadd.f32 %v270, %v1749
  %v1751 = vpop.f32.mrb[0].mxu0
  %1752 = vmatprep.mubr.bf16.mxu0 %v961
  %1753 = vmatmul.mubr.bf16.gmra.mrb[0].mxu0 %v960
  %v1754 = vpop.f32.mrb[0].mxu0
  %v1755 = vadd.f32 %v270, %v1754
  %v1756 = vpop.f32.mrb[0].mxu0
  %v1757 = vpop.f32.mrb[0].mxu0
  %v1758 = vadd.f32 %v270, %v1757
  %v1759 = vpop.f32.mrb[0].mxu0
  %1760 = vmatprep.mubr.bf16.mxu0 %v963
  %1761 = vmatmul.mubr.bf16.gmra.mrb[0].mxu0 %v962
  %v1762 = vpop.f32.mrb[0].mxu0
  %v1763 = vadd.f32 %v270, %v1762
  %v1764 = vpop.f32.mrb[0].mxu0
  %v1765 = vpop.f32.mrb[0].mxu0
  %v1766 = vadd.f32 %v270, %v1765
  %v1767 = vpop.f32.mrb[0].mxu0
  %1768 = vmatprep.mubr.bf16.mxu0 %v965
  %1769 = vmatmul.mubr.bf16.gmra.mrb[0].mxu0 %v964
  %v1770 = vpop.f32.mrb[0].mxu0
  %v1771 = vadd.f32 %v270, %v1770
  %v1772 = vpop.f32.mrb[0].mxu0
  %v1773 = vpop.f32.mrb[0].mxu0
  %v1774 = vadd.f32 %v270, %v1773
  %v1775 = vpop.f32.mrb[0].mxu0
  %1776 = vmatprep.mubr.bf16.mxu0 %v967
  %1777 = vmatmul.mubr.bf16.gmra.mrb[0].mxu0 %v966
  %v1778 = vpop.f32.mrb[0].mxu0
  %v1779 = vadd.f32 %v270, %v1778
  %v1780 = vpop.f32.mrb[0].mxu0
  %v1781 = vpop.f32.mrb[0].mxu0
  %v1782 = vadd.f32 %v270, %v1781
  %v1783 = vpop.f32.mrb[0].mxu0
  %1784 = vmatprep.mubr.bf16.mxu0 %v969
  %1785 = vmatmul.mubr.bf16.gmra.mrb[0].mxu0 %v968
  %v1786 = vpop.f32.mrb[0].mxu0
  %v1787 = vadd.f32 %v270, %v1786
  %v1788 = vpop.f32.mrb[0].mxu0
  %v1789 = vpop.f32.mrb[0].mxu0
  %v1790 = vadd.f32 %v270, %v1789
  %v1791 = vpop.f32.mrb[0].mxu0
  %1792 = vmatprep.mubr.bf16.mxu0 %v971
  %1793 = vmatmul.mubr.bf16.gmra.mrb[0].mxu0 %v970
  %v1794 = vpop.f32.mrb[0].mxu0
  %v1795 = vadd.f32 %v270, %v1794
  %v1796 = vpop.f32.mrb[0].mxu0
  %v1797 = vpop.f32.mrb[0].mxu0
  %v1798 = vadd.f32 %v270, %v1797
  %v1799 = vpop.f32.mrb[0].mxu0
  %1800 = vmatprep.mubr.bf16.mxu0 %v973
  %1801 = vmatmul.mubr.bf16.gmra.mrb[0].mxu0 %v972
  %v1802 = vpop.f32.mrb[0].mxu0
  %v1803 = vadd.f32 %v270, %v1802
  %v1804 = vpop.f32.mrb[0].mxu0
  %v1805 = vpop.f32.mrb[0].mxu0
  %v1806 = vadd.f32 %v270, %v1805
  %v1807 = vpop.f32.mrb[0].mxu0
  %1808 = vmatprep.mubr.bf16.mxu0 %v975
  %1809 = vmatmul.mubr.bf16.gmra.mrb[0].mxu0 %v974
  %v1810 = vpop.f32.mrb[0].mxu0
  %v1811 = vadd.f32 %v270, %v1810
  %v1812 = vpop.f32.mrb[0].mxu0
  %v1813 = vpop.f32.mrb[0].mxu0
  %v1814 = vadd.f32 %v270, %v1813
  %v1815 = vpop.f32.mrb[0].mxu0
  %1816 = vmatprep.mubr.bf16.mxu0 %v977
  %1817 = vmatmul.mubr.bf16.gmra.mrb[0].mxu0 %v976
  %v1818 = vpop.f32.mrb[0].mxu0
  %v1819 = vadd.f32 %v270, %v1818
  %v1820 = vpop.f32.mrb[0].mxu0
  %v1821 = vpop.f32.mrb[0].mxu0
  %v1822 = vadd.f32 %v270, %v1821
  %v1823 = vpop.f32.mrb[0].mxu0
  %1824 = vmatprep.mubr.bf16.mxu0 %v979
  %1825 = vmatmul.mubr.bf16.gmra.mrb[0].mxu0 %v978
  %v1826 = vpop.f32.mrb[0].mxu0
  %v1827 = vadd.f32 %v270, %v1826
  %v1828 = vpop.f32.mrb[0].mxu0
  %v1829 = vpop.f32.mrb[0].mxu0
  %v1830 = vadd.f32 %v270, %v1829
  %v1831 = vpop.f32.mrb[0].mxu0
  %1832 = vmatprep.mubr.bf16.mxu0 %v981
  %1833 = vmatmul.mubr.bf16.gmra.mrb[0].mxu0 %v980
  %v1834 = vpop.f32.mrb[0].mxu0
  %v1835 = vadd.f32 %v270, %v1834
  %v1836 = vpop.f32.mrb[0].mxu0
  %v1837 = vpop.f32.mrb[0].mxu0
  %v1838 = vadd.f32 %v270, %v1837
  %v1839 = vpop.f32.mrb[0].mxu0
  %1840 = vmatprep.mubr.bf16.mxu0 %v983
  %1841 = vmatmul.mubr.bf16.gmra.mrb[0].mxu0 %v982
  %v1842 = vpop.f32.mrb[0].mxu0
  %v1843 = vadd.f32 %v270, %v1842
  %v1844 = vpop.f32.mrb[0].mxu0
  %v1845 = vpop.f32.mrb[0].mxu0
  %v1846 = vadd.f32 %v270, %v1845
  %v1847 = vpop.f32.mrb[0].mxu0
  %1848 = vmatprep.mubr.bf16.mxu0 %v985
  %1849 = vmatmul.mubr.bf16.gmra.mrb[0].mxu0 %v984
  %v1850 = vpop.f32.mrb[0].mxu0
  %v1851 = vadd.f32 %v270, %v1850
  %v1852 = vpop.f32.mrb[0].mxu0
  %v1853 = vpop.f32.mrb[0].mxu0
  %v1854 = vadd.f32 %v270, %v1853
  %v1855 = vpop.f32.mrb[0].mxu0
  %1856 = vmatprep.mubr.bf16.mxu0 %v987
  %1857 = vmatmul.mubr.bf16.gmra.mrb[0].mxu0 %v986
  %v1858 = vpop.f32.mrb[0].mxu0
  %v1859 = vadd.f32 %v270, %v1858
  %v1860 = vpop.f32.mrb[0].mxu0
  %v1861 = vpop.f32.mrb[0].mxu0
  %v1862 = vadd.f32 %v270, %v1861
  %v1863 = vpop.f32.mrb[0].mxu0
  %1864 = vmatprep.mubr.bf16.mxu0 %v989
  %1865 = vmatmul.mubr.bf16.gmra.mrb[0].mxu0 %v988
  %v1866 = vpop.f32.mrb[0].mxu0
  %v1867 = vadd.f32 %v270, %v1866
  %v1868 = vpop.f32.mrb[0].mxu0
  %v1869 = vpop.f32.mrb[0].mxu0
  %v1870 = vadd.f32 %v270, %v1869
  %v1871 = vpop.f32.mrb[0].mxu0
  %1872 = vmatprep.mubr.bf16.mxu0 %v991
  %1873 = vmatmul.mubr.bf16.gmra.mrb[0].mxu0 %v990
  %v1874 = vpop.f32.mrb[0].mxu0
  %v1875 = vadd.f32 %v270, %v1874
  %v1876 = vpop.f32.mrb[0].mxu0
  %v1877 = vpop.f32.mrb[0].mxu0
  %v1878 = vadd.f32 %v270, %v1877
  %v1879 = vpop.f32.mrb[0].mxu0
  %1880 = vmatprep.mubr.bf16.mxu0 %v993
  %1881 = vmatmul.mubr.bf16.gmra.mrb[0].mxu0 %v992
  %v1882 = vpop.f32.mrb[0].mxu0
  %v1883 = vadd.f32 %v270, %v1882
  %v1884 = vpop.f32.mrb[0].mxu0
  %v1885 = vpop.f32.mrb[0].mxu0
  %v1886 = vadd.f32 %v270, %v1885
  %v1887 = vpop.f32.mrb[0].mxu0
  %1888 = vmatprep.mubr.bf16.mxu0 %v995
  %1889 = vmatmul.mubr.bf16.gmra.mrb[0].mxu0 %v994
  %v1890 = vpop.f32.mrb[0].mxu0
  %v1891 = vadd.f32 %v270, %v1890
  %v1892 = vpop.f32.mrb[0].mxu0
  %v1893 = vpop.f32.mrb[0].mxu0
  %v1894 = vadd.f32 %v270, %v1893
  %v1895 = vpop.f32.mrb[0].mxu0
  %1896 = vmatprep.mubr.bf16.mxu0 %v997
  %1897 = vmatmul.mubr.bf16.gmra.mrb[0].mxu0 %v996
  %v1898 = vpop.f32.mrb[0].mxu0
  %v1899 = vadd.f32 %v270, %v1898
  %v1900 = vpop.f32.mrb[0].mxu0
  %v1901 = vpop.f32.mrb[0].mxu0
  %v1902 = vadd.f32 %v270, %v1901
  %v1903 = vpop.f32.mrb[0].mxu0
  %1904 = vmatprep.mubr.bf16.mxu0 %v999
  %1905 = vmatmul.mubr.bf16.gmra.mrb[0].mxu0 %v998
  %v1906 = vpop.f32.mrb[0].mxu0
  %v1907 = vadd.f32 %v270, %v1906
  %v1908 = vpop.f32.mrb[0].mxu0
  %v1909 = vpop.f32.mrb[0].mxu0
  %v1910 = vadd.f32 %v270, %v1909
  %v1911 = vpop.f32.mrb[0].mxu0
  %1912 = vmatprep.mubr.bf16.mxu0 %v1001
  %1913 = vmatmul.mubr.bf16.gmra.mrb[0].mxu0 %v1000
  %v1914 = vpop.f32.mrb[0].mxu0
  %v1915 = vadd.f32 %v270, %v1914
  %v1916 = vpop.f32.mrb[0].mxu0
  %v1917 = vpop.f32.mrb[0].mxu0
  %v1918 = vadd.f32 %v270, %v1917
  %v1919 = vpop.f32.mrb[0].mxu0
  %1920 = vmatprep.mubr.bf16.mxu0 %v1003
  %1921 = vmatmul.mubr.bf16.gmra.mrb[0].mxu0 %v1002
  %v1922 = vpop.f32.mrb[0].mxu0
  %v1923 = vadd.f32 %v270, %v1922
  %v1924 = vpop.f32.mrb[0].mxu0
  %v1925 = vpop.f32.mrb[0].mxu0
  %v1926 = vadd.f32 %v270, %v1925
  %v1927 = vpop.f32.mrb[0].mxu0
  %1928 = vmatprep.mubr.bf16.mxu0 %v1005
  %1929 = vmatmul.mubr.bf16.gmra.mrb[0].mxu0 %v1004
  %v1930 = vpop.f32.mrb[0].mxu0
  %v1931 = vadd.f32 %v270, %v1930
  %v1932 = vpop.f32.mrb[0].mxu0
  %v1933 = vpop.f32.mrb[0].mxu0
  %v1934 = vadd.f32 %v270, %v1933
  %v1935 = vpop.f32.mrb[0].mxu0
  %1936 = vmatprep.mubr.bf16.mxu0 %v1007
  %1937 = vmatmul.mubr.bf16.gmra.mrb[0].mxu0 %v1006
  %v1938 = vpop.f32.mrb[0].mxu0
  %v1939 = vadd.f32 %v270, %v1938
  %v1940 = vpop.f32.mrb[0].mxu0
  %v1941 = vpop.f32.mrb[0].mxu0
  %v1942 = vadd.f32 %v270, %v1941
  %v1943 = vpop.f32.mrb[0].mxu0
  %1944 = vmatprep.mubr.bf16.mxu0 %v1009
  %1945 = vmatmul.mubr.bf16.gmra.mrb[0].mxu0 %v1008
  %v1946 = vpop.f32.mrb[0].mxu0
  %v1947 = vadd.f32 %v270, %v1946
  %v1948 = vpop.f32.mrb[0].mxu0
  %v1949 = vpop.f32.mrb[0].mxu0
  %v1950 = vadd.f32 %v270, %v1949
  %v1951 = vpop.f32.mrb[0].mxu0
  %1952 = vmatprep.mubr.bf16.mxu0 %v1011
  %1953 = vmatmul.mubr.bf16.gmra.mrb[0].mxu0 %v1010
  %v1954 = vpop.f32.mrb[0].mxu0
  %v1955 = vadd.f32 %v270, %v1954
  %v1956 = vpop.f32.mrb[0].mxu0
  %v1957 = vpop.f32.mrb[0].mxu0
  %v1958 = vadd.f32 %v270, %v1957
  %v1959 = vpop.f32.mrb[0].mxu0
  %1960 = vmatprep.mubr.bf16.mxu0 %v1013
  %1961 = vmatmul.mubr.bf16.gmra.mrb[0].mxu0 %v1012
  %v1962 = vpop.f32.mrb[0].mxu0
  %v1963 = vadd.f32 %v270, %v1962
  %v1964 = vpop.f32.mrb[0].mxu0
  %v1965 = vpop.f32.mrb[0].mxu0
  %v1966 = vadd.f32 %v270, %v1965
  %v1967 = vpop.f32.mrb[0].mxu0
  %1968 = vmatprep.mubr.bf16.mxu0 %v1015
  %1969 = vmatmul.mubr.bf16.gmra.mrb[0].mxu0 %v1014
  %v1970 = vpop.f32.mrb[0].mxu0
  %v1971 = vadd.f32 %v270, %v1970
  %v1972 = vpop.f32.mrb[0].mxu0
  %v1973 = vpop.f32.mrb[0].mxu0
  %v1974 = vadd.f32 %v270, %v1973
  %v1975 = vpop.f32.mrb[0].mxu0
  %1976 = vmatprep.mubr.bf16.mxu0 %v1017
  %1977 = vmatmul.mubr.bf16.gmra.mrb[0].mxu0 %v1016
  %v1978 = vpop.f32.mrb[0].mxu0
  %v1979 = vadd.f32 %v270, %v1978
  %v1980 = vpop.f32.mrb[0].mxu0
  %v1981 = vpop.f32.mrb[0].mxu0
  %v1982 = vadd.f32 %v270, %v1981
  %v1983 = vpop.f32.mrb[0].mxu0
  %1984 = vmatprep.mubr.bf16.mxu0 %v1019
  %1985 = vmatmul.mubr.bf16.gmra.mrb[0].mxu0 %v1018
  %v1986 = vpop.f32.mrb[0].mxu0
  %v1987 = vadd.f32 %v270, %v1986
  %v1988 = vpop.f32.mrb[0].mxu0
  %v1989 = vpop.f32.mrb[0].mxu0
  %v1990 = vadd.f32 %v270, %v1989
  %v1991 = vpop.f32.mrb[0].mxu0
  %1992 = vmatprep.mubr.bf16.mxu0 %v1021
  %1993 = vmatmul.mubr.bf16.gmra.mrb[0].mxu0 %v1020
  %v1994 = vpop.f32.mrb[0].mxu0
  %v1995 = vadd.f32 %v270, %v1994
  %v1996 = vpop.f32.mrb[0].mxu0
  %v1997 = vpop.f32.mrb[0].mxu0
  %v1998 = vadd.f32 %v270, %v1997
  %v1999 = vpop.f32.mrb[0].mxu0
  %2000 = vmatprep.mubr.bf16.mxu0 %v1023
  %2001 = vmatmul.mubr.bf16.gmra.mrb[0].mxu0 %v1022
  %v2002 = vpop.f32.mrb[0].mxu0
  %v2003 = vadd.f32 %v270, %v2002
  %v2004 = vpop.f32.mrb[0].mxu0
  %v2005 = vpop.f32.mrb[0].mxu0
  %v2006 = vadd.f32 %v270, %v2005
  %v2007 = vpop.f32.mrb[0].mxu0
  %2008 = vmatprep.mubr.bf16.mxu0 %v1025
  %2009 = vmatmul.mubr.bf16.gmra.mrb[0].mxu0 %v1024
  %v2010 = vpop.f32.mrb[0].mxu0
  %v2011 = vadd.f32 %v270, %v2010
  %v2012 = vpop.f32.mrb[0].mxu0
  %v2013 = vpop.f32.mrb[0].mxu0
  %v2014 = vadd.f32 %v270, %v2013
  %v2015 = vpop.f32.mrb[0].mxu0
  %2016 = vmatprep.mubr.bf16.mxu0 %v1027
  %2017 = vmatmul.mubr.bf16.gmra.mrb[0].mxu0 %v1026
  %v2018 = vpop.f32.mrb[0].mxu0
  %v2019 = vadd.f32 %v270, %v2018
  %v2020 = vpop.f32.mrb[0].mxu0
  %v2021 = vpop.f32.mrb[0].mxu0
  %v2022 = vadd.f32 %v270, %v2021
  %v2023 = vpop.f32.mrb[0].mxu0
  %2024 = vmatprep.mubr.bf16.mxu0 %v1029
  %2025 = vmatmul.mubr.bf16.gmra.mrb[0].mxu0 %v1028
  %v2026 = vpop.f32.mrb[0].mxu0
  %v2027 = vadd.f32 %v270, %v2026
  %v2028 = vpop.f32.mrb[0].mxu0
  %v2029 = vpop.f32.mrb[0].mxu0
  %v2030 = vadd.f32 %v270, %v2029
  %v2031 = vpop.f32.mrb[0].mxu0
  %2032 = vmatprep.mubr.bf16.mxu0 %v1031
  %2033 = vmatmul.mubr.bf16.gmra.mrb[0].mxu0 %v1030
  %v2034 = vpop.f32.mrb[0].mxu0
  %v2035 = vadd.f32 %v270, %v2034
  %v2036 = vpop.f32.mrb[0].mxu0
  %v2037 = vpop.f32.mrb[0].mxu0
  %v2038 = vadd.f32 %v270, %v2037
  %v2039 = vpop.f32.mrb[0].mxu0
  %2040 = vmatprep.mubr.bf16.mxu0 %v1033
  %2041 = vmatmul.mubr.bf16.gmra.mrb[0].mxu0 %v1032
  %v2042 = vpop.f32.mrb[0].mxu0
  %v2043 = vadd.f32 %v270, %v2042
  %v2044 = vpop.f32.mrb[0].mxu0
  %v2045 = vpop.f32.mrb[0].mxu0
  %v2046 = vadd.f32 %v270, %v2045
  %v2047 = vpop.f32.mrb[0].mxu0
  %2048 = vmatprep.mubr.bf16.mxu0 %v1035
  %2049 = vmatmul.mubr.bf16.gmra.mrb[0].mxu0 %v1034
  %v2050 = vpop.f32.mrb[0].mxu0
  %v2051 = vadd.f32 %v270, %v2050
  %v2052 = vpop.f32.mrb[0].mxu0
  %v2053 = vpop.f32.mrb[0].mxu0
  %v2054 = vadd.f32 %v270, %v2053
  %v2055 = vpop.f32.mrb[0].mxu0
  %2056 = vmatprep.mubr.bf16.mxu0 %v1037
  %2057 = vmatmul.mubr.bf16.gmra.mrb[0].mxu0 %v1036
  %v2058 = vpop.f32.mrb[0].mxu0
  %v2059 = vadd.f32 %v270, %v2058
  %v2060 = vpop.f32.mrb[0].mxu0
  %v2061 = vpop.f32.mrb[0].mxu0
  %v2062 = vadd.f32 %v270, %v2061
  %v2063 = vpop.f32.mrb[0].mxu0
  %2064 = vmatprep.mubr.bf16.mxu0 %v1039
  %2065 = vmatmul.mubr.bf16.gmra.mrb[0].mxu0 %v1038
  %v2066 = vpop.f32.mrb[0].mxu0
  %v2067 = vadd.f32 %v270, %v2066
  %v2068 = vpop.f32.mrb[0].mxu0
  %v2069 = vpop.f32.mrb[0].mxu0
  %v2070 = vadd.f32 %v270, %v2069
  %v2071 = vpop.f32.mrb[0].mxu0
  %2072 = vmatprep.mubr.bf16.mxu0 %v1041
  %2073 = vmatmul.mubr.bf16.gmra.mrb[0].mxu0 %v1040
  %v2074 = vpop.f32.mrb[0].mxu0
  %v2075 = vadd.f32 %v270, %v2074
  %v2076 = vpop.f32.mrb[0].mxu0
  %v2077 = vpop.f32.mrb[0].mxu0
  %v2078 = vadd.f32 %v270, %v2077
  %v2079 = vpop.f32.mrb[0].mxu0
  %2080 = vmatprep.mubr.bf16.mxu0 %v1043
  %2081 = vmatmul.mubr.bf16.gmra.mrb[0].mxu0 %v1042
  %v2082 = vpop.f32.mrb[0].mxu0
  %v2083 = vadd.f32 %v270, %v2082
  %v2084 = vpop.f32.mrb[0].mxu0
  %v2085 = vpop.f32.mrb[0].mxu0
  %v2086 = vadd.f32 %v270, %v2085
  %v2087 = vpop.f32.mrb[0].mxu0
  %2088 = vmatprep.mubr.bf16.mxu0 %v1045
  %2089 = vmatmul.mubr.bf16.gmra.mrb[0].mxu0 %v1044
  %v2090 = vpop.f32.mrb[0].mxu0
  %v2091 = vadd.f32 %v270, %v2090
  %v2092 = vpop.f32.mrb[0].mxu0
  %v2093 = vpop.f32.mrb[0].mxu0
  %v2094 = vadd.f32 %v270, %v2093
  %v2095 = vpop.f32.mrb[0].mxu0
  %2096 = vmatprep.mubr.bf16.mxu0 %v1047
  %2097 = vmatmul.mubr.bf16.gmra.mrb[0].mxu0 %v1046
  %v2098 = vpop.f32.mrb[0].mxu0
  %v2099 = vadd.f32 %v270, %v2098
  %v2100 = vpop.f32.mrb[0].mxu0
  %v2101 = vpop.f32.mrb[0].mxu0
  %v2102 = vadd.f32 %v270, %v2101
  %v2103 = vpop.f32.mrb[0].mxu0
  %2104 = vmatprep.mubr.bf16.mxu0 %v1049
  %2105 = vmatmul.mubr.bf16.gmra.mrb[0].mxu0 %v1048
  %v2106 = vpop.f32.mrb[0].mxu0
  %v2107 = vadd.f32 %v270, %v2106
  %v2108 = vpop.f32.mrb[0].mxu0
  %v2109 = vpop.f32.mrb[0].mxu0
  %v2110 = vadd.f32 %v270, %v2109
  %v2111 = vpop.f32.mrb[0].mxu0
  %2112 = vmatprep.mubr.bf16.mxu0 %v1051
  %2113 = vmatmul.mubr.bf16.gmra.mrb[0].mxu0 %v1050
  %v2114 = vpop.f32.mrb[0].mxu0
  %v2115 = vadd.f32 %v270, %v2114
  %v2116 = vpop.f32.mrb[0].mxu0
  %v2117 = vpop.f32.mrb[0].mxu0
  %v2118 = vadd.f32 %v270, %v2117
  %v2119 = vpop.f32.mrb[0].mxu0
  %2120 = vmatprep.mubr.bf16.mxu0 %v1053
  %2121 = vmatmul.mubr.bf16.gmra.mrb[0].mxu0 %v1052
  %v2122 = vpop.f32.mrb[0].mxu0
  %v2123 = vadd.f32 %v270, %v2122
  %v2124 = vpop.f32.mrb[0].mxu0
  %v2125 = vpop.f32.mrb[0].mxu0
  %v2126 = vadd.f32 %v270, %v2125
  %v2127 = vpop.f32.mrb[0].mxu0
  %2128 = vmatprep.mubr.bf16.mxu0 %v1055
  %2129 = vmatmul.mubr.bf16.gmra.mrb[0].mxu0 %v1054
  %v2130 = vpop.f32.mrb[0].mxu0
  %v2131 = vadd.f32 %v270, %v2130
  %v2132 = vpop.f32.mrb[0].mxu0
  %v2133 = vpop.f32.mrb[0].mxu0
  %v2134 = vadd.f32 %v270, %v2133
  %v2135 = vpop.f32.mrb[0].mxu0
  %2136 = vmatprep.mubr.bf16.mxu0 %v1057
  %2137 = vmatmul.mubr.bf16.gmra.mrb[0].mxu0 %v1056
  %v2138 = vpop.f32.mrb[0].mxu0
  %v2139 = vadd.f32 %v270, %v2138
  %v2140 = vpop.f32.mrb[0].mxu0
  %v2141 = vpop.f32.mrb[0].mxu0
  %v2142 = vadd.f32 %v270, %v2141
  %v2143 = vpop.f32.mrb[0].mxu0
  %2144 = vmatprep.mubr.bf16.mxu0 %v1059
  %2145 = vmatmul.mubr.bf16.gmra.mrb[0].mxu0 %v1058
  %v2146 = vpop.f32.mrb[0].mxu0
  %v2147 = vadd.f32 %v270, %v2146
  %v2148 = vpop.f32.mrb[0].mxu0
  %v2149 = vpop.f32.mrb[0].mxu0
  %v2150 = vadd.f32 %v270, %v2149
  %v2151 = vpop.f32.mrb[0].mxu0
  %2152 = vmatprep.mubr.bf16.mxu0 %v1061
  %2153 = vmatmul.mubr.bf16.gmra.mrb[0].mxu0 %v1060
  %v2154 = vpop.f32.mrb[0].mxu0
  %v2155 = vadd.f32 %v270, %v2154
  %v2156 = vpop.f32.mrb[0].mxu0
  %v2157 = vpop.f32.mrb[0].mxu0
  %v2158 = vadd.f32 %v270, %v2157
  %v2159 = vpop.f32.mrb[0].mxu0
  %2160 = vmatprep.mubr.bf16.mxu0 %v1063
  %2161 = vmatmul.mubr.bf16.gmra.mrb[0].mxu0 %v1062
  %v2162 = vpop.f32.mrb[0].mxu0
  %v2163 = vadd.f32 %v270, %v2162
  %v2164 = vpop.f32.mrb[0].mxu0
  %v2165 = vpop.f32.mrb[0].mxu0
  %v2166 = vadd.f32 %v270, %v2165
  %v2167 = vpop.f32.mrb[0].mxu0
  %2168 = vmatprep.mubr.bf16.mxu0 %v1065
  %2169 = vmatmul.mubr.bf16.gmra.mrb[0].mxu0 %v1064
  %v2170 = vpop.f32.mrb[0].mxu0
  %v2171 = vadd.f32 %v270, %v2170
  %v2172 = vpop.f32.mrb[0].mxu0
  %v2173 = vpop.f32.mrb[0].mxu0
  %v2174 = vadd.f32 %v270, %v2173
  %v2175 = vpop.f32.mrb[0].mxu0
  %2176 = vmatprep.mubr.bf16.mxu0 %v1067
  %2177 = vmatmul.mubr.bf16.gmra.mrb[0].mxu0 %v1066
  %v2178 = vpop.f32.mrb[0].mxu0
  %v2179 = vadd.f32 %v270, %v2178
  %v2180 = vpop.f32.mrb[0].mxu0
  %v2181 = vpop.f32.mrb[0].mxu0
  %v2182 = vadd.f32 %v270, %v2181
  %v2183 = vpop.f32.mrb[0].mxu0
  %2184 = vmatprep.mubr.bf16.mxu0 %v1069
  %2185 = vmatmul.mubr.bf16.gmra.mrb[0].mxu0 %v1068
  %v2186 = vpop.f32.mrb[0].mxu0
  %v2187 = vadd.f32 %v270, %v2186
  %v2188 = vpop.f32.mrb[0].mxu0
  %v2189 = vpop.f32.mrb[0].mxu0
  %v2190 = vadd.f32 %v270, %v2189
  %v2191 = vpop.f32.mrb[0].mxu0
  %2192 = vmatprep.mubr.bf16.mxu0 %v1071
  %2193 = vmatmul.mubr.bf16.gmra.mrb[0].mxu0 %v1070
  %v2194 = vpop.f32.mrb[0].mxu0
  %v2195 = vadd.f32 %v270, %v2194
  %v2196 = vpop.f32.mrb[0].mxu0
  %v2197 = vpop.f32.mrb[0].mxu0
  %v2198 = vadd.f32 %v270, %v2197
  %v2199 = vpop.f32.mrb[0].mxu0
  %2200 = vdwg.mxu0
  %v2201 = vmul.f32 %v1403, 0.5
  %v2202 = vmul.f32 %v1406, 0.5
  %v2203 = vmul.f32 %v1411, 0.5
  %v2204 = vmul.f32 %v1414, 0.5
  %v2205 = vmul.f32 %v1419, 0.5
  %v2206 = vmul.f32 %v1422, 0.5
  %v2207 = vmul.f32 %v1427, 0.5
  %v2208 = vmul.f32 %v1430, 0.5
  %v2209 = vmul.f32 %v1435, 0.5
  %v2210 = vmul.f32 %v1438, 0.5
  %v2211 = vmul.f32 %v1443, 0.5
  %v2212 = vmul.f32 %v1446, 0.5
  %v2213 = vmul.f32 %v1451, 0.5
  %v2214 = vmul.f32 %v1454, 0.5
  %v2215 = vmul.f32 %v1459, 0.5
  %v2216 = vmul.f32 %v1462, 0.5
  %v2217 = vmul.f32 %v1467, 0.5
  %v2218 = vmul.f32 %v1470, 0.5
  %v2219 = vmul.f32 %v1475, 0.5
  %v2220 = vmul.f32 %v1478, 0.5
  %v2221 = vmul.f32 %v1483, 0.5
  %v2222 = vmul.f32 %v1486, 0.5
  %v2223 = vmul.f32 %v1491, 0.5
  %v2224 = vmul.f32 %v1494, 0.5
  %v2225 = vmul.f32 %v1499, 0.5
  %v2226 = vmul.f32 %v1502, 0.5
  %v2227 = vmul.f32 %v1507, 0.5
  %v2228 = vmul.f32 %v1510, 0.5
  %v2229 = vmul.f32 %v1515, 0.5
  %v2230 = vmul.f32 %v1518, 0.5
  %v2231 = vmul.f32 %v1523, 0.5
  %v2232 = vmul.f32 %v1526, 0.5
  %v2233 = vmul.f32 %v1531, 0.5
  %v2234 = vmul.f32 %v1534, 0.5
  %v2235 = vmul.f32 %v1539, 0.5
  %v2236 = vmul.f32 %v1542, 0.5
  %v2237 = vmul.f32 %v1547, 0.5
  %v2238 = vmul.f32 %v1550, 0.5
  %v2239 = vmul.f32 %v1555, 0.5
  %v2240 = vmul.f32 %v1558, 0.5
  %v2241 = vmul.f32 %v1563, 0.5
  %v2242 = vmul.f32 %v1566, 0.5
  %v2243 = vmul.f32 %v1571, 0.5
  %v2244 = vmul.f32 %v1574, 0.5
  %v2245 = vmul.f32 %v1579, 0.5
  %v2246 = vmul.f32 %v1582, 0.5
  %v2247 = vmul.f32 %v1587, 0.5
  %v2248 = vmul.f32 %v1590, 0.5
  %v2249 = vmul.f32 %v1595, 0.5
  %v2250 = vmul.f32 %v1598, 0.5
  %v2251 = vmul.f32 %v1603, 0.5
  %v2252 = vmul.f32 %v1606, 0.5
  %v2253 = vmul.f32 %v1611, 0.5
  %v2254 = vmul.f32 %v1614, 0.5
  %v2255 = vmul.f32 %v1619, 0.5
  %v2256 = vmul.f32 %v1622, 0.5
  %v2257 = vmul.f32 %v1627, 0.5
  %v2258 = vmul.f32 %v1630, 0.5
  %v2259 = vmul.f32 %v1635, 0.5
  %v2260 = vmul.f32 %v1638, 0.5
  %v2261 = vmul.f32 %v1643, 0.5
  %v2262 = vmul.f32 %v1646, 0.5
  %v2263 = vmul.f32 %v1651, 0.5
  %v2264 = vmul.f32 %v1654, 0.5
  %v2265 = vmul.f32 %v1659, 0.5
  %v2266 = vmul.f32 %v1662, 0.5
  %v2267 = vmul.f32 %v1667, 0.5
  %v2268 = vmul.f32 %v1670, 0.5
  %v2269 = vmul.f32 %v1675, 0.5
  %v2270 = vmul.f32 %v1678, 0.5
  %v2271 = vmul.f32 %v1683, 0.5
  %v2272 = vmul.f32 %v1686, 0.5
  %v2273 = vmul.f32 %v1691, 0.5
  %v2274 = vmul.f32 %v1694, 0.5
  %v2275 = vmul.f32 %v1699, 0.5
  %v2276 = vmul.f32 %v1702, 0.5
  %v2277 = vmul.f32 %v1707, 0.5
  %v2278 = vmul.f32 %v1710, 0.5
  %v2279 = vmul.f32 %v1715, 0.5
  %v2280 = vmul.f32 %v1718, 0.5
  %v2281 = vmul.f32 %v1723, 0.5
  %v2282 = vmul.f32 %v1726, 0.5
  %v2283 = vmul.f32 %v1731, 0.5
  %v2284 = vmul.f32 %v1734, 0.5
  %v2285 = vmul.f32 %v1739, 0.5
  %v2286 = vmul.f32 %v1742, 0.5
  %v2287 = vmul.f32 %v1747, 0.5
  %v2288 = vmul.f32 %v1750, 0.5
  %v2289 = vmul.f32 %v1755, 0.5
  %v2290 = vmul.f32 %v1758, 0.5
  %v2291 = vmul.f32 %v1763, 0.5
  %v2292 = vmul.f32 %v1766, 0.5
  %v2293 = vmul.f32 %v1771, 0.5
  %v2294 = vmul.f32 %v1774, 0.5
  %v2295 = vmul.f32 %v1779, 0.5
  %v2296 = vmul.f32 %v1782, 0.5
  %v2297 = vmul.f32 %v1787, 0.5
  %v2298 = vmul.f32 %v1790, 0.5
  %v2299 = vmul.f32 %v1795, 0.5
  %v2300 = vmul.f32 %v1798, 0.5
  %v2301 = vmul.f32 %v1803, 0.5
  %v2302 = vmul.f32 %v1806, 0.5
  %v2303 = vmul.f32 %v1811, 0.5
  %v2304 = vmul.f32 %v1814, 0.5
  %v2305 = vmul.f32 %v1819, 0.5
  %v2306 = vmul.f32 %v1822, 0.5
  %v2307 = vmul.f32 %v1827, 0.5
  %v2308 = vmul.f32 %v1830, 0.5
  %v2309 = vmul.f32 %v1835, 0.5
  %v2310 = vmul.f32 %v1838, 0.5
  %v2311 = vmul.f32 %v1843, 0.5
  %v2312 = vmul.f32 %v1846, 0.5
  %v2313 = vmul.f32 %v1851, 0.5
  %v2314 = vmul.f32 %v1854, 0.5
  %v2315 = vmul.f32 %v1859, 0.5
  %v2316 = vmul.f32 %v1862, 0.5
  %v2317 = vmul.f32 %v1867, 0.5
  %v2318 = vmul.f32 %v1870, 0.5
  %v2319 = vmul.f32 %v1875, 0.5
  %v2320 = vmul.f32 %v1878, 0.5
  %v2321 = vmul.f32 %v1883, 0.5
  %v2322 = vmul.f32 %v1886, 0.5
  %v2323 = vmul.f32 %v1891, 0.5
  %v2324 = vmul.f32 %v1894, 0.5
  %v2325 = vmul.f32 %v1899, 0.5
  %v2326 = vmul.f32 %v1902, 0.5
  %v2327 = vmul.f32 %v1907, 0.5
  %v2328 = vmul.f32 %v1910, 0.5
  %v2329 = vmul.f32 %v1915, 0.5
  %v2330 = vmul.f32 %v1918, 0.5
  %v2331 = vmul.f32 %v1923, 0.5
  %v2332 = vmul.f32 %v1926, 0.5
  %v2333 = vmul.f32 %v1931, 0.5
  %v2334 = vmul.f32 %v1934, 0.5
  %v2335 = vmul.f32 %v1939, 0.5
  %v2336 = vmul.f32 %v1942, 0.5
  %v2337 = vmul.f32 %v1947, 0.5
  %v2338 = vmul.f32 %v1950, 0.5
  %v2339 = vmul.f32 %v1955, 0.5
  %v2340 = vmul.f32 %v1958, 0.5
  %v2341 = vmul.f32 %v1963, 0.5
  %v2342 = vmul.f32 %v1966, 0.5
  %v2343 = vmul.f32 %v1971, 0.5
  %v2344 = vmul.f32 %v1974, 0.5
  %v2345 = vmul.f32 %v1979, 0.5
  %v2346 = vmul.f32 %v1982, 0.5
  %v2347 = vmul.f32 %v1987, 0.5
  %v2348 = vmul.f32 %v1990, 0.5
  %v2349 = vmul.f32 %v1995, 0.5
  %v2350 = vmul.f32 %v1998, 0.5
  %v2351 = vmul.f32 %v2003, 0.5
  %v2352 = vmul.f32 %v2006, 0.5
  %v2353 = vmul.f32 %v2011, 0.5
  %v2354 = vmul.f32 %v2014, 0.5
  %v2355 = vmul.f32 %v2019, 0.5
  %v2356 = vmul.f32 %v2022, 0.5
  %v2357 = vmul.f32 %v2027, 0.5
  %v2358 = vmul.f32 %v2030, 0.5
  %v2359 = vmul.f32 %v2035, 0.5
  %v2360 = vmul.f32 %v2038, 0.5
  %v2361 = vmul.f32 %v2043, 0.5
  %v2362 = vmul.f32 %v2046, 0.5
  %v2363 = vmul.f32 %v2051, 0.5
  %v2364 = vmul.f32 %v2054, 0.5
  %v2365 = vmul.f32 %v2059, 0.5
  %v2366 = vmul.f32 %v2062, 0.5
  %v2367 = vmul.f32 %v2067, 0.5
  %v2368 = vmul.f32 %v2070, 0.5
  %v2369 = vmul.f32 %v2075, 0.5
  %v2370 = vmul.f32 %v2078, 0.5
  %v2371 = vmul.f32 %v2083, 0.5
  %v2372 = vmul.f32 %v2086, 0.5
  %v2373 = vmul.f32 %v2091, 0.5
  %v2374 = vmul.f32 %v2094, 0.5
  %v2375 = vmul.f32 %v2099, 0.5
  %v2376 = vmul.f32 %v2102, 0.5
  %v2377 = vmul.f32 %v2107, 0.5
  %v2378 = vmul.f32 %v2110, 0.5
  %v2379 = vmul.f32 %v2115, 0.5
  %v2380 = vmul.f32 %v2118, 0.5
  %v2381 = vmul.f32 %v2123, 0.5
  %v2382 = vmul.f32 %v2126, 0.5
  %v2383 = vmul.f32 %v2131, 0.5
  %v2384 = vmul.f32 %v2134, 0.5
  %v2385 = vmul.f32 %v2139, 0.5
  %v2386 = vmul.f32 %v2142, 0.5
  %v2387 = vmul.f32 %v2147, 0.5
  %v2388 = vmul.f32 %v2150, 0.5
  %v2389 = vmul.f32 %v2155, 0.5
  %v2390 = vmul.f32 %v2158, 0.5
  %v2391 = vmul.f32 %v2163, 0.5
  %v2392 = vmul.f32 %v2166, 0.5
  %v2393 = vmul.f32 %v2171, 0.5
  %v2394 = vmul.f32 %v2174, 0.5
  %v2395 = vmul.f32 %v2179, 0.5
  %v2396 = vmul.f32 %v2182, 0.5
  %v2397 = vmul.f32 %v2187, 0.5
  %v2398 = vmul.f32 %v2190, 0.5
  %v2399 = vmul.f32 %v2195, 0.5
  %v2400 = vmul.f32 %v2198, 0.5
  %v2401 = vtanh.pop %v2201
  %v2402 = vtanh.pop %v2202
  %v2403 = vtanh.pop %v2203
  %v2404 = vtanh.pop %v2204
  %v2405 = vtanh.pop %v2205
  %v2406 = vtanh.pop %v2206
  %v2407 = vtanh.pop %v2207
  %v2408 = vtanh.pop %v2208
  %v2409 = vtanh.pop %v2209
  %v2410 = vtanh.pop %v2210
  %v2411 = vtanh.pop %v2211
  %v2412 = vtanh.pop %v2212
  %v2413 = vtanh.pop %v2213
  %v2414 = vtanh.pop %v2214
  %v2415 = vtanh.pop %v2215
  %v2416 = vtanh.pop %v2216
  %v2417 = vtanh.pop %v2217
  %v2418 = vtanh.pop %v2218
  %v2419 = vtanh.pop %v2219
  %v2420 = vtanh.pop %v2220
  %v2421 = vtanh.pop %v2221
  %v2422 = vtanh.pop %v2222
  %v2423 = vtanh.pop %v2223
  %v2424 = vtanh.pop %v2224
  %v2425 = vtanh.pop %v2225
  %v2426 = vtanh.pop %v2226
  %v2427 = vtanh.pop %v2227
  %v2428 = vtanh.pop %v2228
  %v2429 = vtanh.pop %v2229
  %v2430 = vtanh.pop %v2230
  %v2431 = vtanh.pop %v2231
  %v2432 = vtanh.pop %v2232
  %v2433 = vtanh.pop %v2233
  %v2434 = vtanh.pop %v2234
  %v2435 = vtanh.pop %v2235
  %v2436 = vtanh.pop %v2236
  %v2437 = vtanh.pop %v2237
  %v2438 = vtanh.pop %v2238
  %v2439 = vtanh.pop %v2239
  %v2440 = vtanh.pop %v2240
  %v2441 = vtanh.pop %v2241
  %v2442 = vtanh.pop %v2242
  %v2443 = vtanh.pop %v2243
  %v2444 = vtanh.pop %v2244
  %v2445 = vtanh.pop %v2245
  %v2446 = vtanh.pop %v2246
  %v2447 = vtanh.pop %v2247
  %v2448 = vtanh.pop %v2248
  %v2449 = vtanh.pop %v2249
  %v2450 = vtanh.pop %v2250
  %v2451 = vtanh.pop %v2251
  %v2452 = vtanh.pop %v2252
  %v2453 = vtanh.pop %v2253
  %v2454 = vtanh.pop %v2254
  %v2455 = vtanh.pop %v2255
  %v2456 = vtanh.pop %v2256
  %v2457 = vtanh.pop %v2257
  %v2458 = vtanh.pop %v2258
  %v2459 = vtanh.pop %v2259
  %v2460 = vtanh.pop %v2260
  %v2461 = vtanh.pop %v2261
  %v2462 = vtanh.pop %v2262
  %v2463 = vtanh.pop %v2263
  %v2464 = vtanh.pop %v2264
  %v2465 = vtanh.pop %v2265
  %v2466 = vtanh.pop %v2266
  %v2467 = vtanh.pop %v2267
  %v2468 = vtanh.pop %v2268
  %v2469 = vtanh.pop %v2269
  %v2470 = vtanh.pop %v2270
  %v2471 = vtanh.pop %v2271
  %v2472 = vtanh.pop %v2272
  %v2473 = vtanh.pop %v2273
  %v2474 = vtanh.pop %v2274
  %v2475 = vtanh.pop %v2275
  %v2476 = vtanh.pop %v2276
  %v2477 = vtanh.pop %v2277
  %v2478 = vtanh.pop %v2278
  %v2479 = vtanh.pop %v2279
  %v2480 = vtanh.pop %v2280
  %v2481 = vtanh.pop %v2281
  %v2482 = vtanh.pop %v2282
  %v2483 = vtanh.pop %v2283
  %v2484 = vtanh.pop %v2284
  %v2485 = vtanh.pop %v2285
  %v2486 = vtanh.pop %v2286
  %v2487 = vtanh.pop %v2287
  %v2488 = vtanh.pop %v2288
  %v2489 = vtanh.pop %v2289
  %v2490 = vtanh.pop %v2290
  %v2491 = vtanh.pop %v2291
  %v2492 = vtanh.pop %v2292
  %v2493 = vtanh.pop %v2293
  %v2494 = vtanh.pop %v2294
  %v2495 = vtanh.pop %v2295
  %v2496 = vtanh.pop %v2296
  %v2497 = vtanh.pop %v2297
  %v2498 = vtanh.pop %v2298
  %v2499 = vtanh.pop %v2299
  %v2500 = vtanh.pop %v2300
  %v2501 = vtanh.pop %v2301
  %v2502 = vtanh.pop %v2302
  %v2503 = vtanh.pop %v2303
  %v2504 = vtanh.pop %v2304
  %v2505 = vtanh.pop %v2305
  %v2506 = vtanh.pop %v2306
  %v2507 = vtanh.pop %v2307
  %v2508 = vtanh.pop %v2308
  %v2509 = vtanh.pop %v2309
  %v2510 = vtanh.pop %v2310
  %v2511 = vtanh.pop %v2311
  %v2512 = vtanh.pop %v2312
  %v2513 = vtanh.pop %v2313
  %v2514 = vtanh.pop %v2314
  %v2515 = vtanh.pop %v2315
  %v2516 = vtanh.pop %v2316
  %v2517 = vtanh.pop %v2317
  %v2518 = vtanh.pop %v2318
  %v2519 = vtanh.pop %v2319
  %v2520 = vtanh.pop %v2320
  %v2521 = vtanh.pop %v2321
  %v2522 = vtanh.pop %v2322
  %v2523 = vtanh.pop %v2323
  %v2524 = vtanh.pop %v2324
  %v2525 = vtanh.pop %v2325
  %v2526 = vtanh.pop %v2326
  %v2527 = vtanh.pop %v2327
  %v2528 = vtanh.pop %v2328
  %v2529 = vtanh.pop %v2329
  %v2530 = vtanh.pop %v2330
  %v2531 = vtanh.pop %v2331
  %v2532 = vtanh.pop %v2332
  %v2533 = vtanh.pop %v2333
  %v2534 = vtanh.pop %v2334
  %v2535 = vtanh.pop %v2335
  %v2536 = vtanh.pop %v2336
  %v2537 = vtanh.pop %v2337
  %v2538 = vtanh.pop %v2338
  %v2539 = vtanh.pop %v2339
  %v2540 = vtanh.pop %v2340
  %v2541 = vtanh.pop %v2341
  %v2542 = vtanh.pop %v2342
  %v2543 = vtanh.pop %v2343
  %v2544 = vtanh.pop %v2344
  %v2545 = vtanh.pop %v2345
  %v2546 = vtanh.pop %v2346
  %v2547 = vtanh.pop %v2347
  %v2548 = vtanh.pop %v2348
  %v2549 = vtanh.pop %v2349
  %v2550 = vtanh.pop %v2350
  %v2551 = vtanh.pop %v2351
  %v2552 = vtanh.pop %v2352
  %v2553 = vtanh.pop %v2353
  %v2554 = vtanh.pop %v2354
  %v2555 = vtanh.pop %v2355
  %v2556 = vtanh.pop %v2356
  %v2557 = vtanh.pop %v2357
  %v2558 = vtanh.pop %v2358
  %v2559 = vtanh.pop %v2359
  %v2560 = vtanh.pop %v2360
  %v2561 = vtanh.pop %v2361
  %v2562 = vtanh.pop %v2362
  %v2563 = vtanh.pop %v2363
  %v2564 = vtanh.pop %v2364
  %v2565 = vtanh.pop %v2365
  %v2566 = vtanh.pop %v2366
  %v2567 = vtanh.pop %v2367
  %v2568 = vtanh.pop %v2368
  %v2569 = vtanh.pop %v2369
  %v2570 = vtanh.pop %v2370
  %v2571 = vtanh.pop %v2371
  %v2572 = vtanh.pop %v2372
  %v2573 = vtanh.pop %v2373
  %v2574 = vtanh.pop %v2374
  %v2575 = vtanh.pop %v2375
  %v2576 = vtanh.pop %v2376
  %v2577 = vtanh.pop %v2377
  %v2578 = vtanh.pop %v2378
  %v2579 = vtanh.pop %v2379
  %v2580 = vtanh.pop %v2380
  %v2581 = vtanh.pop %v2381
  %v2582 = vtanh.pop %v2382
  %v2583 = vtanh.pop %v2383
  %v2584 = vtanh.pop %v2384
  %v2585 = vtanh.pop %v2385
  %v2586 = vtanh.pop %v2386
  %v2587 = vtanh.pop %v2387
  %v2588 = vtanh.pop %v2388
  %v2589 = vtanh.pop %v2389
  %v2590 = vtanh.pop %v2390
  %v2591 = vtanh.pop %v2391
  %v2592 = vtanh.pop %v2392
  %v2593 = vtanh.pop %v2393
  %v2594 = vtanh.pop %v2394
  %v2595 = vtanh.pop %v2395
  %v2596 = vtanh.pop %v2396
  %v2597 = vtanh.pop %v2397
  %v2598 = vtanh.pop %v2398
  %v2599 = vtanh.pop %v2399
  %v2600 = vtanh.pop %v2400
  %v2601 = vmul.f32 %v2401, 0.5
  %v2602 = vmul.f32 %v2402, 0.5
  %v2603 = vmul.f32 %v2403, 0.5
  %v2604 = vmul.f32 %v2404, 0.5
  %v2605 = vmul.f32 %v2405, 0.5
  %v2606 = vmul.f32 %v2406, 0.5
  %v2607 = vmul.f32 %v2407, 0.5
  %v2608 = vmul.f32 %v2408, 0.5
  %v2609 = vmul.f32 %v2409, 0.5
  %v2610 = vmul.f32 %v2410, 0.5
  %v2611 = vmul.f32 %v2411, 0.5
  %v2612 = vmul.f32 %v2412, 0.5
  %v2613 = vmul.f32 %v2413, 0.5
  %v2614 = vmul.f32 %v2414, 0.5
  %v2615 = vmul.f32 %v2415, 0.5
  %v2616 = vmul.f32 %v2416, 0.5
  %v2617 = vmul.f32 %v2417, 0.5
  %v2618 = vmul.f32 %v2418, 0.5
  %v2619 = vmul.f32 %v2419, 0.5
  %v2620 = vmul.f32 %v2420, 0.5
  %v2621 = vmul.f32 %v2421, 0.5
  %v2622 = vmul.f32 %v2422, 0.5
  %v2623 = vmul.f32 %v2423, 0.5
  %v2624 = vmul.f32 %v2424, 0.5
  %v2625 = vmul.f32 %v2425, 0.5
  %v2626 = vmul.f32 %v2426, 0.5
  %v2627 = vmul.f32 %v2427, 0.5
  %v2628 = vmul.f32 %v2428, 0.5
  %v2629 = vmul.f32 %v2429, 0.5
  %v2630 = vmul.f32 %v2430, 0.5
  %v2631 = vmul.f32 %v2431, 0.5
  %v2632 = vmul.f32 %v2432, 0.5
  %v2633 = vmul.f32 %v2433, 0.5
  %v2634 = vmul.f32 %v2434, 0.5
  %v2635 = vmul.f32 %v2435, 0.5
  %v2636 = vmul.f32 %v2436, 0.5
  %v2637 = vmul.f32 %v2437, 0.5
  %v2638 = vmul.f32 %v2438, 0.5
  %v2639 = vmul.f32 %v2439, 0.5
  %v2640 = vmul.f32 %v2440, 0.5
  %v2641 = vmul.f32 %v2441, 0.5
  %v2642 = vmul.f32 %v2442, 0.5
  %v2643 = vmul.f32 %v2443, 0.5
  %v2644 = vmul.f32 %v2444, 0.5
  %v2645 = vmul.f32 %v2445, 0.5
  %v2646 = vmul.f32 %v2446, 0.5
  %v2647 = vmul.f32 %v2447, 0.5
  %v2648 = vmul.f32 %v2448, 0.5
  %v2649 = vmul.f32 %v2449, 0.5
  %v2650 = vmul.f32 %v2450, 0.5
  %v2651 = vmul.f32 %v2451, 0.5
  %v2652 = vmul.f32 %v2452, 0.5
  %v2653 = vmul.f32 %v2453, 0.5
  %v2654 = vmul.f32 %v2454, 0.5
  %v2655 = vmul.f32 %v2455, 0.5
  %v2656 = vmul.f32 %v2456, 0.5
  %v2657 = vmul.f32 %v2457, 0.5
  %v2658 = vmul.f32 %v2458, 0.5
  %v2659 = vmul.f32 %v2459, 0.5
  %v2660 = vmul.f32 %v2460, 0.5
  %v2661 = vmul.f32 %v2461, 0.5
  %v2662 = vmul.f32 %v2462, 0.5
  %v2663 = vmul.f32 %v2463, 0.5
  %v2664 = vmul.f32 %v2464, 0.5
  %v2665 = vmul.f32 %v2465, 0.5
  %v2666 = vmul.f32 %v2466, 0.5
  %v2667 = vmul.f32 %v2467, 0.5
  %v2668 = vmul.f32 %v2468, 0.5
  %v2669 = vmul.f32 %v2469, 0.5
  %v2670 = vmul.f32 %v2470, 0.5
  %v2671 = vmul.f32 %v2471, 0.5
  %v2672 = vmul.f32 %v2472, 0.5
  %v2673 = vmul.f32 %v2473, 0.5
  %v2674 = vmul.f32 %v2474, 0.5
  %v2675 = vmul.f32 %v2475, 0.5
  %v2676 = vmul.f32 %v2476, 0.5
  %v2677 = vmul.f32 %v2477, 0.5
  %v2678 = vmul.f32 %v2478, 0.5
  %v2679 = vmul.f32 %v2479, 0.5
  %v2680 = vmul.f32 %v2480, 0.5
  %v2681 = vmul.f32 %v2481, 0.5
  %v2682 = vmul.f32 %v2482, 0.5
  %v2683 = vmul.f32 %v2483, 0.5
  %v2684 = vmul.f32 %v2484, 0.5
  %v2685 = vmul.f32 %v2485, 0.5
  %v2686 = vmul.f32 %v2486, 0.5
  %v2687 = vmul.f32 %v2487, 0.5
  %v2688 = vmul.f32 %v2488, 0.5
  %v2689 = vmul.f32 %v2489, 0.5
  %v2690 = vmul.f32 %v2490, 0.5
  %v2691 = vmul.f32 %v2491, 0.5
  %v2692 = vmul.f32 %v2492, 0.5
  %v2693 = vmul.f32 %v2493, 0.5
  %v2694 = vmul.f32 %v2494, 0.5
  %v2695 = vmul.f32 %v2495, 0.5
  %v2696 = vmul.f32 %v2496, 0.5
  %v2697 = vmul.f32 %v2497, 0.5
  %v2698 = vmul.f32 %v2498, 0.5
  %v2699 = vmul.f32 %v2499, 0.5
  %v2700 = vmul.f32 %v2500, 0.5
  %v2701 = vmul.f32 %v2501, 0.5
  %v2702 = vmul.f32 %v2502, 0.5
  %v2703 = vmul.f32 %v2503, 0.5
  %v2704 = vmul.f32 %v2504, 0.5
  %v2705 = vmul.f32 %v2505, 0.5
  %v2706 = vmul.f32 %v2506, 0.5
  %v2707 = vmul.f32 %v2507, 0.5
  %v2708 = vmul.f32 %v2508, 0.5
  %v2709 = vmul.f32 %v2509, 0.5
  %v2710 = vmul.f32 %v2510, 0.5
  %v2711 = vmul.f32 %v2511, 0.5
  %v2712 = vmul.f32 %v2512, 0.5
  %v2713 = vmul.f32 %v2513, 0.5
  %v2714 = vmul.f32 %v2514, 0.5
  %v2715 = vmul.f32 %v2515, 0.5
  %v2716 = vmul.f32 %v2516, 0.5
  %v2717 = vmul.f32 %v2517, 0.5
  %v2718 = vmul.f32 %v2518, 0.5
  %v2719 = vmul.f32 %v2519, 0.5
  %v2720 = vmul.f32 %v2520, 0.5
  %v2721 = vmul.f32 %v2521, 0.5
  %v2722 = vmul.f32 %v2522, 0.5
  %v2723 = vmul.f32 %v2523, 0.5
  %v2724 = vmul.f32 %v2524, 0.5
  %v2725 = vmul.f32 %v2525, 0.5
  %v2726 = vmul.f32 %v2526, 0.5
  %v2727 = vmul.f32 %v2527, 0.5
  %v2728 = vmul.f32 %v2528, 0.5
  %v2729 = vmul.f32 %v2529, 0.5
  %v2730 = vmul.f32 %v2530, 0.5
  %v2731 = vmul.f32 %v2531, 0.5
  %v2732 = vmul.f32 %v2532, 0.5
  %v2733 = vmul.f32 %v2533, 0.5
  %v2734 = vmul.f32 %v2534, 0.5
  %v2735 = vmul.f32 %v2535, 0.5
  %v2736 = vmul.f32 %v2536, 0.5
  %v2737 = vmul.f32 %v2537, 0.5
  %v2738 = vmul.f32 %v2538, 0.5
  %v2739 = vmul.f32 %v2539, 0.5
  %v2740 = vmul.f32 %v2540, 0.5
  %v2741 = vmul.f32 %v2541, 0.5
  %v2742 = vmul.f32 %v2542, 0.5
  %v2743 = vmul.f32 %v2543, 0.5
  %v2744 = vmul.f32 %v2544, 0.5
  %v2745 = vmul.f32 %v2545, 0.5
  %v2746 = vmul.f32 %v2546, 0.5
  %v2747 = vmul.f32 %v2547, 0.5
  %v2748 = vmul.f32 %v2548, 0.5
  %v2749 = vmul.f32 %v2549, 0.5
  %v2750 = vmul.f32 %v2550, 0.5
  %v2751 = vmul.f32 %v2551, 0.5
  %v2752 = vmul.f32 %v2552, 0.5
  %v2753 = vmul.f32 %v2553, 0.5
  %v2754 = vmul.f32 %v2554, 0.5
  %v2755 = vmul.f32 %v2555, 0.5
  %v2756 = vmul.f32 %v2556, 0.5
  %v2757 = vmul.f32 %v2557, 0.5
  %v2758 = vmul.f32 %v2558, 0.5
  %v2759 = vmul.f32 %v2559, 0.5
  %v2760 = vmul.f32 %v2560, 0.5
  %v2761 = vmul.f32 %v2561, 0.5
  %v2762 = vmul.f32 %v2562, 0.5
  %v2763 = vmul.f32 %v2563, 0.5
  %v2764 = vmul.f32 %v2564, 0.5
  %v2765 = vmul.f32 %v2565, 0.5
  %v2766 = vmul.f32 %v2566, 0.5
  %v2767 = vmul.f32 %v2567, 0.5
  %v2768 = vmul.f32 %v2568, 0.5
  %v2769 = vmul.f32 %v2569, 0.5
  %v2770 = vmul.f32 %v2570, 0.5
  %v2771 = vmul.f32 %v2571, 0.5
  %v2772 = vmul.f32 %v2572, 0.5
  %v2773 = vmul.f32 %v2573, 0.5
  %v2774 = vmul.f32 %v2574, 0.5
  %v2775 = vmul.f32 %v2575, 0.5
  %v2776 = vmul.f32 %v2576, 0.5
  %v2777 = vmul.f32 %v2577, 0.5
  %v2778 = vmul.f32 %v2578, 0.5
  %v2779 = vmul.f32 %v2579, 0.5
  %v2780 = vmul.f32 %v2580, 0.5
  %v2781 = vmul.f32 %v2581, 0.5
  %v2782 = vmul.f32 %v2582, 0.5
  %v2783 = vmul.f32 %v2583, 0.5
  %v2784 = vmul.f32 %v2584, 0.5
  %v2785 = vmul.f32 %v2585, 0.5
  %v2786 = vmul.f32 %v2586, 0.5
  %v2787 = vmul.f32 %v2587, 0.5
  %v2788 = vmul.f32 %v2588, 0.5
  %v2789 = vmul.f32 %v2589, 0.5
  %v2790 = vmul.f32 %v2590, 0.5
  %v2791 = vmul.f32 %v2591, 0.5
  %v2792 = vmul.f32 %v2592, 0.5
  %v2793 = vmul.f32 %v2593, 0.5
  %v2794 = vmul.f32 %v2594, 0.5
  %v2795 = vmul.f32 %v2595, 0.5
  %v2796 = vmul.f32 %v2596, 0.5
  %v2797 = vmul.f32 %v2597, 0.5
  %v2798 = vmul.f32 %v2598, 0.5
  %v2799 = vmul.f32 %v2599, 0.5
  %v2800 = vmul.f32 %v2600, 0.5
  %v2801 = vadd.f32 %v2601, 0.5
  %v2802 = vadd.f32 %v2602, 0.5
  %v2803 = vadd.f32 %v2603, 0.5
  %v2804 = vadd.f32 %v2604, 0.5
  %v2805 = vadd.f32 %v2605, 0.5
  %v2806 = vadd.f32 %v2606, 0.5
  %v2807 = vadd.f32 %v2607, 0.5
  %v2808 = vadd.f32 %v2608, 0.5
  %v2809 = vadd.f32 %v2609, 0.5
  %v2810 = vadd.f32 %v2610, 0.5
  %v2811 = vadd.f32 %v2611, 0.5
  %v2812 = vadd.f32 %v2612, 0.5
  %v2813 = vadd.f32 %v2613, 0.5
  %v2814 = vadd.f32 %v2614, 0.5
  %v2815 = vadd.f32 %v2615, 0.5
  %v2816 = vadd.f32 %v2616, 0.5
  %v2817 = vadd.f32 %v2617, 0.5
  %v2818 = vadd.f32 %v2618, 0.5
  %v2819 = vadd.f32 %v2619, 0.5
  %v2820 = vadd.f32 %v2620, 0.5
  %v2821 = vadd.f32 %v2621, 0.5
  %v2822 = vadd.f32 %v2622, 0.5
  %v2823 = vadd.f32 %v2623, 0.5
  %v2824 = vadd.f32 %v2624, 0.5
  %v2825 = vadd.f32 %v2625, 0.5
  %v2826 = vadd.f32 %v2626, 0.5
  %v2827 = vadd.f32 %v2627, 0.5
  %v2828 = vadd.f32 %v2628, 0.5
  %v2829 = vadd.f32 %v2629, 0.5
  %v2830 = vadd.f32 %v2630, 0.5
  %v2831 = vadd.f32 %v2631, 0.5
  %v2832 = vadd.f32 %v2632, 0.5
  %v2833 = vadd.f32 %v2633, 0.5
  %v2834 = vadd.f32 %v2634, 0.5
  %v2835 = vadd.f32 %v2635, 0.5
  %v2836 = vadd.f32 %v2636, 0.5
  %v2837 = vadd.f32 %v2637, 0.5
  %v2838 = vadd.f32 %v2638, 0.5
  %v2839 = vadd.f32 %v2639, 0.5
  %v2840 = vadd.f32 %v2640, 0.5
  %v2841 = vadd.f32 %v2641, 0.5
  %v2842 = vadd.f32 %v2642, 0.5
  %v2843 = vadd.f32 %v2643, 0.5
  %v2844 = vadd.f32 %v2644, 0.5
  %v2845 = vadd.f32 %v2645, 0.5
  %v2846 = vadd.f32 %v2646, 0.5
  %v2847 = vadd.f32 %v2647, 0.5
  %v2848 = vadd.f32 %v2648, 0.5
  %v2849 = vadd.f32 %v2649, 0.5
  %v2850 = vadd.f32 %v2650, 0.5
  %v2851 = vadd.f32 %v2651, 0.5
  %v2852 = vadd.f32 %v2652, 0.5
  %v2853 = vadd.f32 %v2653, 0.5
  %v2854 = vadd.f32 %v2654, 0.5
  %v2855 = vadd.f32 %v2655, 0.5
  %v2856 = vadd.f32 %v2656, 0.5
  %v2857 = vadd.f32 %v2657, 0.5
  %v2858 = vadd.f32 %v2658, 0.5
  %v2859 = vadd.f32 %v2659, 0.5
  %v2860 = vadd.f32 %v2660, 0.5
  %v2861 = vadd.f32 %v2661, 0.5
  %v2862 = vadd.f32 %v2662, 0.5
  %v2863 = vadd.f32 %v2663, 0.5
  %v2864 = vadd.f32 %v2664, 0.5
  %v2865 = vadd.f32 %v2665, 0.5
  %v2866 = vadd.f32 %v2666, 0.5
  %v2867 = vadd.f32 %v2667, 0.5
  %v2868 = vadd.f32 %v2668, 0.5
  %v2869 = vadd.f32 %v2669, 0.5
  %v2870 = vadd.f32 %v2670, 0.5
  %v2871 = vadd.f32 %v2671, 0.5
  %v2872 = vadd.f32 %v2672, 0.5
  %v2873 = vadd.f32 %v2673, 0.5
  %v2874 = vadd.f32 %v2674, 0.5
  %v2875 = vadd.f32 %v2675, 0.5
  %v2876 = vadd.f32 %v2676, 0.5
  %v2877 = vadd.f32 %v2677, 0.5
  %v2878 = vadd.f32 %v2678, 0.5
  %v2879 = vadd.f32 %v2679, 0.5
  %v2880 = vadd.f32 %v2680, 0.5
  %v2881 = vadd.f32 %v2681, 0.5
  %v2882 = vadd.f32 %v2682, 0.5
  %v2883 = vadd.f32 %v2683, 0.5
  %v2884 = vadd.f32 %v2684, 0.5
  %v2885 = vadd.f32 %v2685, 0.5
  %v2886 = vadd.f32 %v2686, 0.5
  %v2887 = vadd.f32 %v2687, 0.5
  %v2888 = vadd.f32 %v2688, 0.5
  %v2889 = vadd.f32 %v2689, 0.5
  %v2890 = vadd.f32 %v2690, 0.5
  %v2891 = vadd.f32 %v2691, 0.5
  %v2892 = vadd.f32 %v2692, 0.5
  %v2893 = vadd.f32 %v2693, 0.5
  %v2894 = vadd.f32 %v2694, 0.5
  %v2895 = vadd.f32 %v2695, 0.5
  %v2896 = vadd.f32 %v2696, 0.5
  %v2897 = vadd.f32 %v2697, 0.5
  %v2898 = vadd.f32 %v2698, 0.5
  %v2899 = vadd.f32 %v2699, 0.5
  %v2900 = vadd.f32 %v2700, 0.5
  %v2901 = vadd.f32 %v2701, 0.5
  %v2902 = vadd.f32 %v2702, 0.5
  %v2903 = vadd.f32 %v2703, 0.5
  %v2904 = vadd.f32 %v2704, 0.5
  %v2905 = vadd.f32 %v2705, 0.5
  %v2906 = vadd.f32 %v2706, 0.5
  %v2907 = vadd.f32 %v2707, 0.5
  %v2908 = vadd.f32 %v2708, 0.5
  %v2909 = vadd.f32 %v2709, 0.5
  %v2910 = vadd.f32 %v2710, 0.5
  %v2911 = vadd.f32 %v2711, 0.5
  %v2912 = vadd.f32 %v2712, 0.5
  %v2913 = vadd.f32 %v2713, 0.5
  %v2914 = vadd.f32 %v2714, 0.5
  %v2915 = vadd.f32 %v2715, 0.5
  %v2916 = vadd.f32 %v2716, 0.5
  %v2917 = vadd.f32 %v2717, 0.5
  %v2918 = vadd.f32 %v2718, 0.5
  %v2919 = vadd.f32 %v2719, 0.5
  %v2920 = vadd.f32 %v2720, 0.5
  %v2921 = vadd.f32 %v2721, 0.5
  %v2922 = vadd.f32 %v2722, 0.5
  %v2923 = vadd.f32 %v2723, 0.5
  %v2924 = vadd.f32 %v2724, 0.5
  %v2925 = vadd.f32 %v2725, 0.5
  %v2926 = vadd.f32 %v2726, 0.5
  %v2927 = vadd.f32 %v2727, 0.5
  %v2928 = vadd.f32 %v2728, 0.5
  %v2929 = vadd.f32 %v2729, 0.5
  %v2930 = vadd.f32 %v2730, 0.5
  %v2931 = vadd.f32 %v2731, 0.5
  %v2932 = vadd.f32 %v2732, 0.5
  %v2933 = vadd.f32 %v2733, 0.5
  %v2934 = vadd.f32 %v2734, 0.5
  %v2935 = vadd.f32 %v2735, 0.5
  %v2936 = vadd.f32 %v2736, 0.5
  %v2937 = vadd.f32 %v2737, 0.5
  %v2938 = vadd.f32 %v2738, 0.5
  %v2939 = vadd.f32 %v2739, 0.5
  %v2940 = vadd.f32 %v2740, 0.5
  %v2941 = vadd.f32 %v2741, 0.5
  %v2942 = vadd.f32 %v2742, 0.5
  %v2943 = vadd.f32 %v2743, 0.5
  %v2944 = vadd.f32 %v2744, 0.5
  %v2945 = vadd.f32 %v2745, 0.5
  %v2946 = vadd.f32 %v2746, 0.5
  %v2947 = vadd.f32 %v2747, 0.5
  %v2948 = vadd.f32 %v2748, 0.5
  %v2949 = vadd.f32 %v2749, 0.5
  %v2950 = vadd.f32 %v2750, 0.5
  %v2951 = vadd.f32 %v2751, 0.5
  %v2952 = vadd.f32 %v2752, 0.5
  %v2953 = vadd.f32 %v2753, 0.5
  %v2954 = vadd.f32 %v2754, 0.5
  %v2955 = vadd.f32 %v2755, 0.5
  %v2956 = vadd.f32 %v2756, 0.5
  %v2957 = vadd.f32 %v2757, 0.5
  %v2958 = vadd.f32 %v2758, 0.5
  %v2959 = vadd.f32 %v2759, 0.5
  %v2960 = vadd.f32 %v2760, 0.5
  %v2961 = vadd.f32 %v2761, 0.5
  %v2962 = vadd.f32 %v2762, 0.5
  %v2963 = vadd.f32 %v2763, 0.5
  %v2964 = vadd.f32 %v2764, 0.5
  %v2965 = vadd.f32 %v2765, 0.5
  %v2966 = vadd.f32 %v2766, 0.5
  %v2967 = vadd.f32 %v2767, 0.5
  %v2968 = vadd.f32 %v2768, 0.5
  %v2969 = vadd.f32 %v2769, 0.5
  %v2970 = vadd.f32 %v2770, 0.5
  %v2971 = vadd.f32 %v2771, 0.5
  %v2972 = vadd.f32 %v2772, 0.5
  %v2973 = vadd.f32 %v2773, 0.5
  %v2974 = vadd.f32 %v2774, 0.5
  %v2975 = vadd.f32 %v2775, 0.5
  %v2976 = vadd.f32 %v2776, 0.5
  %v2977 = vadd.f32 %v2777, 0.5
  %v2978 = vadd.f32 %v2778, 0.5
  %v2979 = vadd.f32 %v2779, 0.5
  %v2980 = vadd.f32 %v2780, 0.5
  %v2981 = vadd.f32 %v2781, 0.5
  %v2982 = vadd.f32 %v2782, 0.5
  %v2983 = vadd.f32 %v2783, 0.5
  %v2984 = vadd.f32 %v2784, 0.5
  %v2985 = vadd.f32 %v2785, 0.5
  %v2986 = vadd.f32 %v2786, 0.5
  %v2987 = vadd.f32 %v2787, 0.5
  %v2988 = vadd.f32 %v2788, 0.5
  %v2989 = vadd.f32 %v2789, 0.5
  %v2990 = vadd.f32 %v2790, 0.5
  %v2991 = vadd.f32 %v2791, 0.5
  %v2992 = vadd.f32 %v2792, 0.5
  %v2993 = vadd.f32 %v2793, 0.5
  %v2994 = vadd.f32 %v2794, 0.5
  %v2995 = vadd.f32 %v2795, 0.5
  %v2996 = vadd.f32 %v2796, 0.5
  %v2997 = vadd.f32 %v2797, 0.5
  %v2998 = vadd.f32 %v2798, 0.5
  %v2999 = vadd.f32 %v2799, 0.5
  %v3000 = vadd.f32 %v2800, 0.5
  %v3001 = vadd.f32 %v2801, %v2851
  %v3002 = vadd.f32 %v2802, %v2852
  %v3003 = vadd.f32 %v2803, %v2853
  %v3004 = vadd.f32 %v2804, %v2854
  %v3005 = vadd.f32 %v2805, %v2855
  %v3006 = vadd.f32 %v2806, %v2856
  %v3007 = vadd.f32 %v2807, %v2857
  %v3008 = vadd.f32 %v2808, %v2858
  %v3009 = vadd.f32 %v2809, %v2859
  %v3010 = vadd.f32 %v2810, %v2860
  %v3011 = vadd.f32 %v2811, %v2861
  %v3012 = vadd.f32 %v2812, %v2862
  %v3013 = vadd.f32 %v2813, %v2863
  %v3014 = vadd.f32 %v2814, %v2864
  %v3015 = vadd.f32 %v2815, %v2865
  %v3016 = vadd.f32 %v2816, %v2866
  %v3017 = vadd.f32 %v2817, %v2867
  %v3018 = vadd.f32 %v2818, %v2868
  %v3019 = vadd.f32 %v2819, %v2869
  %v3020 = vadd.f32 %v2820, %v2870
  %v3021 = vadd.f32 %v2821, %v2871
  %v3022 = vadd.f32 %v2822, %v2872
  %v3023 = vadd.f32 %v2823, %v2873
  %v3024 = vadd.f32 %v2824, %v2874
  %v3025 = vadd.f32 %v2825, %v2875
  %v3026 = vadd.f32 %v2826, %v2876
  %v3027 = vadd.f32 %v2827, %v2877
  %v3028 = vadd.f32 %v2828, %v2878
  %v3029 = vadd.f32 %v2829, %v2879
  %v3030 = vadd.f32 %v2830, %v2880
  %v3031 = vadd.f32 %v2831, %v2881
  %v3032 = vadd.f32 %v2832, %v2882
  %v3033 = vadd.f32 %v2833, %v2883
  %v3034 = vadd.f32 %v2834, %v2884
  %v3035 = vadd.f32 %v2835, %v2885
  %v3036 = vadd.f32 %v2836, %v2886
  %v3037 = vadd.f32 %v2837, %v2887
  %v3038 = vadd.f32 %v2838, %v2888
  %v3039 = vadd.f32 %v2839, %v2889
  %v3040 = vadd.f32 %v2840, %v2890
  %v3041 = vadd.f32 %v2841, %v2891
  %v3042 = vadd.f32 %v2842, %v2892
  %v3043 = vadd.f32 %v2843, %v2893
  %v3044 = vadd.f32 %v2844, %v2894
  %v3045 = vadd.f32 %v2845, %v2895
  %v3046 = vadd.f32 %v2846, %v2896
  %v3047 = vadd.f32 %v2847, %v2897
  %v3048 = vadd.f32 %v2848, %v2898
  %v3049 = vadd.f32 %v2849, %v2899
  %v3050 = vadd.f32 %v2850, %v2900
  %v3051 = vadd.f32 %v3001, %v2901
  %v3052 = vadd.f32 %v3002, %v2902
  %v3053 = vadd.f32 %v3003, %v2903
  %v3054 = vadd.f32 %v3004, %v2904
  %v3055 = vadd.f32 %v3005, %v2905
  %v3056 = vadd.f32 %v3006, %v2906
  %v3057 = vadd.f32 %v3007, %v2907
  %v3058 = vadd.f32 %v3008, %v2908
  %v3059 = vadd.f32 %v3009, %v2909
  %v3060 = vadd.f32 %v3010, %v2910
  %v3061 = vadd.f32 %v3011, %v2911
  %v3062 = vadd.f32 %v3012, %v2912
  %v3063 = vadd.f32 %v3013, %v2913
  %v3064 = vadd.f32 %v3014, %v2914
  %v3065 = vadd.f32 %v3015, %v2915
  %v3066 = vadd.f32 %v3016, %v2916
  %v3067 = vadd.f32 %v3017, %v2917
  %v3068 = vadd.f32 %v3018, %v2918
  %v3069 = vadd.f32 %v3019, %v2919
  %v3070 = vadd.f32 %v3020, %v2920
  %v3071 = vadd.f32 %v3021, %v2921
  %v3072 = vadd.f32 %v3022, %v2922
  %v3073 = vadd.f32 %v3023, %v2923
  %v3074 = vadd.f32 %v3024, %v2924
  %v3075 = vadd.f32 %v3025, %v2925
  %v3076 = vadd.f32 %v3026, %v2926
  %v3077 = vadd.f32 %v3027, %v2927
  %v3078 = vadd.f32 %v3028, %v2928
  %v3079 = vadd.f32 %v3029, %v2929
  %v3080 = vadd.f32 %v3030, %v2930
  %v3081 = vadd.f32 %v3031, %v2931
  %v3082 = vadd.f32 %v3032, %v2932
  %v3083 = vadd.f32 %v3033, %v2933
  %v3084 = vadd.f32 %v3034, %v2934
  %v3085 = vadd.f32 %v3035, %v2935
  %v3086 = vadd.f32 %v3036, %v2936
  %v3087 = vadd.f32 %v3037, %v2937
  %v3088 = vadd.f32 %v3038, %v2938
  %v3089 = vadd.f32 %v3039, %v2939
  %v3090 = vadd.f32 %v3040, %v2940
  %v3091 = vadd.f32 %v3041, %v2941
  %v3092 = vadd.f32 %v3042, %v2942
  %v3093 = vadd.f32 %v3043, %v2943
  %v3094 = vadd.f32 %v3044, %v2944
  %v3095 = vadd.f32 %v3045, %v2945
  %v3096 = vadd.f32 %v3046, %v2946
  %v3097 = vadd.f32 %v3047, %v2947
  %v3098 = vadd.f32 %v3048, %v2948
  %v3099 = vadd.f32 %v3049, %v2949
  %v3100 = vadd.f32 %v3050, %v2950
  %v3101 = vadd.f32 %v3051, %v2951
  %v3102 = vadd.f32 %v3052, %v2952
  %v3103 = vadd.f32 %v3053, %v2953
  %v3104 = vadd.f32 %v3054, %v2954
  %v3105 = vadd.f32 %v3055, %v2955
  %v3106 = vadd.f32 %v3056, %v2956
  %v3107 = vadd.f32 %v3057, %v2957
  %v3108 = vadd.f32 %v3058, %v2958
  %v3109 = vadd.f32 %v3059, %v2959
  %v3110 = vadd.f32 %v3060, %v2960
  %v3111 = vadd.f32 %v3061, %v2961
  %v3112 = vadd.f32 %v3062, %v2962
  %v3113 = vadd.f32 %v3063, %v2963
  %v3114 = vadd.f32 %v3064, %v2964
  %v3115 = vadd.f32 %v3065, %v2965
  %v3116 = vadd.f32 %v3066, %v2966
  %v3117 = vadd.f32 %v3067, %v2967
  %v3118 = vadd.f32 %v3068, %v2968
  %v3119 = vadd.f32 %v3069, %v2969
  %v3120 = vadd.f32 %v3070, %v2970
  %v3121 = vadd.f32 %v3071, %v2971
  %v3122 = vadd.f32 %v3072, %v2972
  %v3123 = vadd.f32 %v3073, %v2973
  %v3124 = vadd.f32 %v3074, %v2974
  %v3125 = vadd.f32 %v3075, %v2975
  %v3126 = vadd.f32 %v3076, %v2976
  %v3127 = vadd.f32 %v3077, %v2977
  %v3128 = vadd.f32 %v3078, %v2978
  %v3129 = vadd.f32 %v3079, %v2979
  %v3130 = vadd.f32 %v3080, %v2980
  %v3131 = vadd.f32 %v3081, %v2981
  %v3132 = vadd.f32 %v3082, %v2982
  %v3133 = vadd.f32 %v3083, %v2983
  %v3134 = vadd.f32 %v3084, %v2984
  %v3135 = vadd.f32 %v3085, %v2985
  %v3136 = vadd.f32 %v3086, %v2986
  %v3137 = vadd.f32 %v3087, %v2987
  %v3138 = vadd.f32 %v3088, %v2988
  %v3139 = vadd.f32 %v3089, %v2989
  %v3140 = vadd.f32 %v3090, %v2990
  %v3141 = vadd.f32 %v3091, %v2991
  %v3142 = vadd.f32 %v3092, %v2992
  %v3143 = vadd.f32 %v3093, %v2993
  %v3144 = vadd.f32 %v3094, %v2994
  %v3145 = vadd.f32 %v3095, %v2995
  %v3146 = vadd.f32 %v3096, %v2996
  %v3147 = vadd.f32 %v3097, %v2997
  %v3148 = vadd.f32 %v3098, %v2998
  %v3149 = vadd.f32 %v3099, %v2999
  %v3150 = vadd.f32 %v3100, %v3000
  %v3151 = vmul.f32 %v3101, 0.25
  %v3152 = vmul.f32 %v3102, 0.25
  %v3153 = vmul.f32 %v3103, 0.25
  %v3154 = vmul.f32 %v3104, 0.25
  %v3155 = vmul.f32 %v3105, 0.25
  %v3156 = vmul.f32 %v3106, 0.25
  %v3157 = vmul.f32 %v3107, 0.25
  %v3158 = vmul.f32 %v3108, 0.25
  %v3159 = vmul.f32 %v3109, 0.25
  %v3160 = vmul.f32 %v3110, 0.25
  %v3161 = vmul.f32 %v3111, 0.25
  %v3162 = vmul.f32 %v3112, 0.25
  %v3163 = vmul.f32 %v3113, 0.25
  %v3164 = vmul.f32 %v3114, 0.25
  %v3165 = vmul.f32 %v3115, 0.25
  %v3166 = vmul.f32 %v3116, 0.25
  %v3167 = vmul.f32 %v3117, 0.25
  %v3168 = vmul.f32 %v3118, 0.25
  %v3169 = vmul.f32 %v3119, 0.25
  %v3170 = vmul.f32 %v3120, 0.25
  %v3171 = vmul.f32 %v3121, 0.25
  %v3172 = vmul.f32 %v3122, 0.25
  %v3173 = vmul.f32 %v3123, 0.25
  %v3174 = vmul.f32 %v3124, 0.25
  %v3175 = vmul.f32 %v3125, 0.25
  %v3176 = vmul.f32 %v3126, 0.25
  %v3177 = vmul.f32 %v3127, 0.25
  %v3178 = vmul.f32 %v3128, 0.25
  %v3179 = vmul.f32 %v3129, 0.25
  %v3180 = vmul.f32 %v3130, 0.25
  %v3181 = vmul.f32 %v3131, 0.25
  %v3182 = vmul.f32 %v3132, 0.25
  %v3183 = vmul.f32 %v3133, 0.25
  %v3184 = vmul.f32 %v3134, 0.25
  %v3185 = vmul.f32 %v3135, 0.25
  %v3186 = vmul.f32 %v3136, 0.25
  %v3187 = vmul.f32 %v3137, 0.25
  %v3188 = vmul.f32 %v3138, 0.25
  %v3189 = vmul.f32 %v3139, 0.25
  %v3190 = vmul.f32 %v3140, 0.25
  %v3191 = vmul.f32 %v3141, 0.25
  %v3192 = vmul.f32 %v3142, 0.25
  %v3193 = vmul.f32 %v3143, 0.25
  %v3194 = vmul.f32 %v3144, 0.25
  %v3195 = vmul.f32 %v3145, 0.25
  %v3196 = vmul.f32 %v3146, 0.25
  %v3197 = vmul.f32 %v3147, 0.25
  %v3198 = vmul.f32 %v3148, 0.25
  %v3199 = vmul.f32 %v3149, 0.25
  %v3200 = vmul.f32 %v3150, 0.25
  %v3201 = vpack.c.bf16 %v3152, %v3151
  %v3202 = vpack.c.bf16 %v3154, %v3153
  %v3203 = vpack.c.bf16 %v3156, %v3155
  %v3204 = vpack.c.bf16 %v3158, %v3157
  %v3205 = vpack.c.bf16 %v3160, %v3159
  %v3206 = vpack.c.bf16 %v3162, %v3161
  %v3207 = vpack.c.bf16 %v3164, %v3163
  %v3208 = vpack.c.bf16 %v3166, %v3165
  %v3209 = vpack.c.bf16 %v3168, %v3167
  %v3210 = vpack.c.bf16 %v3170, %v3169
  %v3211 = vpack.c.bf16 %v3172, %v3171
  %v3212 = vpack.c.bf16 %v3174, %v3173
  %v3213 = vpack.c.bf16 %v3176, %v3175
  %v3214 = vpack.c.bf16 %v3178, %v3177
  %v3215 = vpack.c.bf16 %v3180, %v3179
  %v3216 = vpack.c.bf16 %v3182, %v3181
  %v3217 = vpack.c.bf16 %v3184, %v3183
  %v3218 = vpack.c.bf16 %v3186, %v3185
  %v3219 = vpack.c.bf16 %v3188, %v3187
  %v3220 = vpack.c.bf16 %v3190, %v3189
  %v3221 = vpack.c.bf16 %v3192, %v3191
  %v3222 = vpack.c.bf16 %v3194, %v3193
  %v3223 = vpack.c.bf16 %v3196, %v3195
  %v3224 = vpack.c.bf16 %v3198, %v3197
  %v3225 = vpack.c.bf16 %v3200, %v3199
  %v3226 = vld [vmem:[%s3] sm:$0xf]
  %v3227 = vld [vmem:[%s3 + $0x4] sm:$0xf]
  %v3228 = vld [vmem:[%s3 + $0x8] sm:$0xf]
  %v3229 = vld [vmem:[%s3 + $0xc] sm:$0xf]
  %v3230 = vld [vmem:[%s3 + $0x10] sm:$0xf]
  %v3231 = vld [vmem:[%s3 + $0x14] sm:$0xf]
  %v3232 = vld [vmem:[%s3 + $0x18] sm:$0xf]
  %v3233 = vld [vmem:[%s3 + $0x1c] sm:$0xf]
  %v3234 = vld [vmem:[%s3 + $0x20] sm:$0xf]
  %v3235 = vld [vmem:[%s3 + $0x24] sm:$0xf]
  %v3236 = vld [vmem:[%s3 + $0x28] sm:$0xf]
  %v3237 = vld [vmem:[%s3 + $0x2c] sm:$0xf]
  %v3238 = vld [vmem:[%s3 + $0x30] sm:$0xf]
  %v3239 = vld [vmem:[%s3 + $0x34] sm:$0xf]
  %v3240 = vld [vmem:[%s3 + $0x38] sm:$0xf]
  %v3241 = vld [vmem:[%s3 + $0x3c] sm:$0xf]
  %s3242 = scalar_lea.vmem %s3, 64
  %v3243 = vld [vmem:[%s3242] sm:$0xf]
  %v3244 = vld [vmem:[%s3242 + $0x4] sm:$0xf]
  %v3245 = vld [vmem:[%s3242 + $0x8] sm:$0xf]
  %v3246 = vld [vmem:[%s3242 + $0xc] sm:$0xf]
  %v3247 = vld [vmem:[%s3242 + $0x10] sm:$0xf]
  %v3248 = vld [vmem:[%s3242 + $0x14] sm:$0xf]
  %v3249 = vld [vmem:[%s3242 + $0x18] sm:$0xf]
  %v3250 = vld [vmem:[%s3242 + $0x1c] sm:$0xf]
  %v3251 = vld [vmem:[%s3242 + $0x20] sm:$0xf]
  %v3252 = vld [vmem:[%s3242 + $0x24] sm:$0xf]
  %v3253 = vld [vmem:[%s3242 + $0x28] sm:$0xf]
  %v3254 = vld [vmem:[%s3242 + $0x2c] sm:$0xf]
  %v3255 = vld [vmem:[%s3242 + $0x30] sm:$0xf]
  %v3256 = vld [vmem:[%s3242 + $0x34] sm:$0xf]
  %v3257 = vld [vmem:[%s3242 + $0x38] sm:$0xf]
  %v3258 = vld [vmem:[%s3242 + $0x3c] sm:$0xf]
  %v3275 = vunpack.c.l.b16 %v3243
  %v3276 = vunpack.c.l.b16 %v3244
  %v3277 = vunpack.c.l.b16 %v3245
  %v3278 = vunpack.c.l.b16 %v3246
  %v3279 = vunpack.c.l.b16 %v3247
  %v3280 = vunpack.c.l.b16 %v3248
  %v3281 = vunpack.c.l.b16 %v3249
  %v3282 = vunpack.c.l.b16 %v3250
  %v3283 = vunpack.c.l.b16 %v3251
  %v3284 = vunpack.c.l.b16 %v3252
  %v3285 = vunpack.c.l.b16 %v3253
  %v3286 = vunpack.c.l.b16 %v3254
  %v3287 = vunpack.c.l.b16 %v3255
  %v3288 = vunpack.c.l.b16 %v3256
  %v3289 = vunpack.c.l.b16 %v3257
  %v3290 = vunpack.c.l.b16 %v3258
  %v3291 = vpack.c.b16 %v3276, %v3275
  %v3292 = vpack.c.b16 %v3278, %v3277
  %v3293 = vpack.c.b16 %v3280, %v3279
  %v3294 = vpack.c.b16 %v3282, %v3281
  %v3295 = vpack.c.b16 %v3284, %v3283
  %v3296 = vpack.c.b16 %v3286, %v3285
  %v3297 = vpack.c.b16 %v3288, %v3287
  %v3298 = vpack.c.b16 %v3290, %v3289
  %3307 = vmatprep.subr.bf16.mxu0 0
  %3308 = vmatpush1.bf16.msra.mxu0 %v3291
  %3309 = vmatprep.subr.bf16.mxu0 0
  %3310 = vmatpush1.bf16.msra.mxu0 %v3292
  %3311 = vmatprep.subr.bf16.mxu0 0
  %3312 = vmatpush1.bf16.msra.mxu0 %v3293
  %3313 = vmatprep.subr.bf16.mxu0 0
  %3314 = vmatpush1.bf16.msra.mxu0 %v3294
  %3315 = vmatprep.subr.bf16.mxu0 0
  %3316 = vmatpush1.bf16.msra.mxu0 %v3295
  %3317 = vmatprep.subr.bf16.mxu0 0
  %3318 = vmatpush1.bf16.msra.mxu0 %v3296
  %3319 = vmatprep.subr.bf16.mxu0 0
  %3320 = vmatpush1.bf16.msra.mxu0 %v3297
  %3321 = vmatprep.subr.bf16.mxu0 0
  %3322 = vmatpush1.bf16.msra.mxu0 %v3298
  %3323 = vmatprep.subr.bf16.mxu0 0
  %3324 = vmatpush1.bf16.msra.mxu0 0
  %3325 = vmatprep.subr.bf16.mxu0 0
  %3326 = vmatpush1.bf16.msra.mxu0 0
  %3327 = vmatprep.subr.bf16.mxu0 0
  %3328 = vmatpush1.bf16.msra.mxu0 0
  %3329 = vmatprep.subr.bf16.mxu0 0
  %3330 = vmatpush1.bf16.msra.mxu0 0
  %3331 = vmatprep.subr.bf16.mxu0 0
  %3332 = vmatpush1.bf16.msra.mxu0 0
  %3333 = vmatprep.subr.bf16.mxu0 0
  %3334 = vmatpush1.bf16.msra.mxu0 0
  %3335 = vmatprep.subr.bf16.mxu0 0
  %3336 = vmatpush1.bf16.msra.mxu0 0
  %3337 = vmatprep.subr.bf16.mxu0 0
  %3338 = vmatpush1.bf16.msra.mxu0 0
  %3339 = vmatprep.mubr.bf16.mxu0 0
  %3340 = vmatmul.mubr.bf16.gmra.mrb[0].mxu0 %v3202
  %v3341 = vpop.f32.mrb[0].mxu0
  %v3342 = vadd.f32 0.0, %v3341
  %v3343 = vpop.f32.mrb[0].mxu0
  %v3344 = vpop.f32.mrb[0].mxu0
  %v3345 = vadd.f32 0.0, %v3344
  %v3346 = vpop.f32.mrb[0].mxu0
  %3347 = vdwg.mxu0
  %v3364 = vunpack.c.l.b16 %v3226
  %v3365 = vunpack.c.l.b16 %v3227
  %v3366 = vunpack.c.l.b16 %v3228
  %v3367 = vunpack.c.l.b16 %v3229
  %v3368 = vunpack.c.l.b16 %v3230
  %v3369 = vunpack.c.l.b16 %v3231
  %v3370 = vunpack.c.l.b16 %v3232
  %v3371 = vunpack.c.l.b16 %v3233
  %v3372 = vunpack.c.l.b16 %v3234
  %v3373 = vunpack.c.l.b16 %v3235
  %v3374 = vunpack.c.l.b16 %v3236
  %v3375 = vunpack.c.l.b16 %v3237
  %v3376 = vunpack.c.l.b16 %v3238
  %v3377 = vunpack.c.l.b16 %v3239
  %v3378 = vunpack.c.l.b16 %v3240
  %v3379 = vunpack.c.l.b16 %v3241
  %v3380 = vpack.c.b16 %v3365, %v3364
  %v3381 = vpack.c.b16 %v3367, %v3366
  %v3382 = vpack.c.b16 %v3369, %v3368
  %v3383 = vpack.c.b16 %v3371, %v3370
  %v3384 = vpack.c.b16 %v3373, %v3372
  %v3385 = vpack.c.b16 %v3375, %v3374
  %v3386 = vpack.c.b16 %v3377, %v3376
  %v3387 = vpack.c.b16 %v3379, %v3378
  %3396 = vmatprep.subr.bf16.mxu0 0
  %3397 = vmatpush1.bf16.msra.mxu0 %v3380
  %3398 = vmatprep.subr.bf16.mxu0 0
  %3399 = vmatpush1.bf16.msra.mxu0 %v3381
  %3400 = vmatprep.subr.bf16.mxu0 0
  %3401 = vmatpush1.bf16.msra.mxu0 %v3382
  %3402 = vmatprep.subr.bf16.mxu0 0
  %3403 = vmatpush1.bf16.msra.mxu0 %v3383
  %3404 = vmatprep.subr.bf16.mxu0 0
  %3405 = vmatpush1.bf16.msra.mxu0 %v3384
  %3406 = vmatprep.subr.bf16.mxu0 0
  %3407 = vmatpush1.bf16.msra.mxu0 %v3385
  %3408 = vmatprep.subr.bf16.mxu0 0
  %3409 = vmatpush1.bf16.msra.mxu0 %v3386
  %3410 = vmatprep.subr.bf16.mxu0 0
  %3411 = vmatpush1.bf16.msra.mxu0 %v3387
  %3412 = vmatprep.subr.bf16.mxu0 0
  %3413 = vmatpush1.bf16.msra.mxu0 0
  %3414 = vmatprep.subr.bf16.mxu0 0
  %3415 = vmatpush1.bf16.msra.mxu0 0
  %3416 = vmatprep.subr.bf16.mxu0 0
  %3417 = vmatpush1.bf16.msra.mxu0 0
  %3418 = vmatprep.subr.bf16.mxu0 0
  %3419 = vmatpush1.bf16.msra.mxu0 0
  %3420 = vmatprep.subr.bf16.mxu0 0
  %3421 = vmatpush1.bf16.msra.mxu0 0
  %3422 = vmatprep.subr.bf16.mxu0 0
  %3423 = vmatpush1.bf16.msra.mxu0 0
  %3424 = vmatprep.subr.bf16.mxu0 0
  %3425 = vmatpush1.bf16.msra.mxu0 0
  %3426 = vmatprep.subr.bf16.mxu0 0
  %3427 = vmatpush1.bf16.msra.mxu0 0
  %3428 = vmatprep.mubr.bf16.mxu0 0
  %3429 = vmatmul.mubr.bf16.gmra.mrb[0].mxu0 %v3201
  %v3430 = vpop.f32.mrb[0].mxu0
  %v3431 = vadd.f32 %v3342, %v3430
  %v3432 = vpop.f32.mrb[0].mxu0
  %v3433 = vpop.f32.mrb[0].mxu0
  %v3434 = vadd.f32 %v3345, %v3433
  %v3435 = vpop.f32.mrb[0].mxu0
  %3436 = vdwg.mxu0
  %s3437 = scalar_lea.vmem %s3, 128
  %v3438 = vld [vmem:[%s3437] sm:$0xf]
  %v3439 = vld [vmem:[%s3437 + $0x4] sm:$0xf]
  %v3440 = vld [vmem:[%s3437 + $0x8] sm:$0xf]
  %v3441 = vld [vmem:[%s3437 + $0xc] sm:$0xf]
  %v3442 = vld [vmem:[%s3437 + $0x10] sm:$0xf]
  %v3443 = vld [vmem:[%s3437 + $0x14] sm:$0xf]
  %v3444 = vld [vmem:[%s3437 + $0x18] sm:$0xf]
  %v3445 = vld [vmem:[%s3437 + $0x1c] sm:$0xf]
  %v3446 = vld [vmem:[%s3437 + $0x20] sm:$0xf]
  %v3447 = vld [vmem:[%s3437 + $0x24] sm:$0xf]
  %v3448 = vld [vmem:[%s3437 + $0x28] sm:$0xf]
  %v3449 = vld [vmem:[%s3437 + $0x2c] sm:$0xf]
  %v3450 = vld [vmem:[%s3437 + $0x30] sm:$0xf]
  %v3451 = vld [vmem:[%s3437 + $0x34] sm:$0xf]
  %v3452 = vld [vmem:[%s3437 + $0x38] sm:$0xf]
  %v3453 = vld [vmem:[%s3437 + $0x3c] sm:$0xf]
  %v3470 = vunpack.c.l.b16 %v3438
  %v3471 = vunpack.c.l.b16 %v3439
  %v3472 = vunpack.c.l.b16 %v3440
  %v3473 = vunpack.c.l.b16 %v3441
  %v3474 = vunpack.c.l.b16 %v3442
  %v3475 = vunpack.c.l.b16 %v3443
  %v3476 = vunpack.c.l.b16 %v3444
  %v3477 = vunpack.c.l.b16 %v3445
  %v3478 = vunpack.c.l.b16 %v3446
  %v3479 = vunpack.c.l.b16 %v3447
  %v3480 = vunpack.c.l.b16 %v3448
  %v3481 = vunpack.c.l.b16 %v3449
  %v3482 = vunpack.c.l.b16 %v3450
  %v3483 = vunpack.c.l.b16 %v3451
  %v3484 = vunpack.c.l.b16 %v3452
  %v3485 = vunpack.c.l.b16 %v3453
  %v3486 = vpack.c.b16 %v3471, %v3470
  %v3487 = vpack.c.b16 %v3473, %v3472
  %v3488 = vpack.c.b16 %v3475, %v3474
  %v3489 = vpack.c.b16 %v3477, %v3476
  %v3490 = vpack.c.b16 %v3479, %v3478
  %v3491 = vpack.c.b16 %v3481, %v3480
  %v3492 = vpack.c.b16 %v3483, %v3482
  %v3493 = vpack.c.b16 %v3485, %v3484
  %3502 = vmatprep.subr.bf16.mxu0 0
  %3503 = vmatpush1.bf16.msra.mxu0 %v3486
  %3504 = vmatprep.subr.bf16.mxu0 0
  %3505 = vmatpush1.bf16.msra.mxu0 %v3487
  %3506 = vmatprep.subr.bf16.mxu0 0
  %3507 = vmatpush1.bf16.msra.mxu0 %v3488
  %3508 = vmatprep.subr.bf16.mxu0 0
  %3509 = vmatpush1.bf16.msra.mxu0 %v3489
  %3510 = vmatprep.subr.bf16.mxu0 0
  %3511 = vmatpush1.bf16.msra.mxu0 %v3490
  %3512 = vmatprep.subr.bf16.mxu0 0
  %3513 = vmatpush1.bf16.msra.mxu0 %v3491
  %3514 = vmatprep.subr.bf16.mxu0 0
  %3515 = vmatpush1.bf16.msra.mxu0 %v3492
  %3516 = vmatprep.subr.bf16.mxu0 0
  %3517 = vmatpush1.bf16.msra.mxu0 %v3493
  %3518 = vmatprep.subr.bf16.mxu0 0
  %3519 = vmatpush1.bf16.msra.mxu0 0
  %3520 = vmatprep.subr.bf16.mxu0 0
  %3521 = vmatpush1.bf16.msra.mxu0 0
  %3522 = vmatprep.subr.bf16.mxu0 0
  %3523 = vmatpush1.bf16.msra.mxu0 0
  %3524 = vmatprep.subr.bf16.mxu0 0
  %3525 = vmatpush1.bf16.msra.mxu0 0
  %3526 = vmatprep.subr.bf16.mxu0 0
  %3527 = vmatpush1.bf16.msra.mxu0 0
  %3528 = vmatprep.subr.bf16.mxu0 0
  %3529 = vmatpush1.bf16.msra.mxu0 0
  %3530 = vmatprep.subr.bf16.mxu0 0
  %3531 = vmatpush1.bf16.msra.mxu0 0
  %3532 = vmatprep.subr.bf16.mxu0 0
  %3533 = vmatpush1.bf16.msra.mxu0 0
  %3534 = vmatprep.mubr.bf16.mxu0 0
  %3535 = vmatmul.mubr.bf16.gmra.mrb[0].mxu0 %v3203
  %v3536 = vpop.f32.mrb[0].mxu0
  %v3537 = vadd.f32 0.0, %v3536
  %v3538 = vpop.f32.mrb[0].mxu0
  %v3539 = vpop.f32.mrb[0].mxu0
  %v3540 = vadd.f32 0.0, %v3539
  %v3541 = vpop.f32.mrb[0].mxu0
  %3542 = vdwg.mxu0
  %v3543 = vadd.f32 %v3431, %v3537
  %v3544 = vadd.f32 %v3434, %v3540
  %s3545 = scalar_lea.vmem %s3, 192
  %v3546 = vld [vmem:[%s3545] sm:$0xf]
  %v3547 = vld [vmem:[%s3545 + $0x4] sm:$0xf]
  %v3548 = vld [vmem:[%s3545 + $0x8] sm:$0xf]
  %v3549 = vld [vmem:[%s3545 + $0xc] sm:$0xf]
  %v3550 = vld [vmem:[%s3545 + $0x10] sm:$0xf]
  %v3551 = vld [vmem:[%s3545 + $0x14] sm:$0xf]
  %v3552 = vld [vmem:[%s3545 + $0x18] sm:$0xf]
  %v3553 = vld [vmem:[%s3545 + $0x1c] sm:$0xf]
  %v3554 = vld [vmem:[%s3545 + $0x20] sm:$0xf]
  %v3555 = vld [vmem:[%s3545 + $0x24] sm:$0xf]
  %v3556 = vld [vmem:[%s3545 + $0x28] sm:$0xf]
  %v3557 = vld [vmem:[%s3545 + $0x2c] sm:$0xf]
  %v3558 = vld [vmem:[%s3545 + $0x30] sm:$0xf]
  %v3559 = vld [vmem:[%s3545 + $0x34] sm:$0xf]
  %v3560 = vld [vmem:[%s3545 + $0x38] sm:$0xf]
  %v3561 = vld [vmem:[%s3545 + $0x3c] sm:$0xf]
  %v3578 = vunpack.c.l.b16 %v3546
  %v3579 = vunpack.c.l.b16 %v3547
  %v3580 = vunpack.c.l.b16 %v3548
  %v3581 = vunpack.c.l.b16 %v3549
  %v3582 = vunpack.c.l.b16 %v3550
  %v3583 = vunpack.c.l.b16 %v3551
  %v3584 = vunpack.c.l.b16 %v3552
  %v3585 = vunpack.c.l.b16 %v3553
  %v3586 = vunpack.c.l.b16 %v3554
  %v3587 = vunpack.c.l.b16 %v3555
  %v3588 = vunpack.c.l.b16 %v3556
  %v3589 = vunpack.c.l.b16 %v3557
  %v3590 = vunpack.c.l.b16 %v3558
  %v3591 = vunpack.c.l.b16 %v3559
  %v3592 = vunpack.c.l.b16 %v3560
  %v3593 = vunpack.c.l.b16 %v3561
  %v3594 = vpack.c.b16 %v3579, %v3578
  %v3595 = vpack.c.b16 %v3581, %v3580
  %v3596 = vpack.c.b16 %v3583, %v3582
  %v3597 = vpack.c.b16 %v3585, %v3584
  %v3598 = vpack.c.b16 %v3587, %v3586
  %v3599 = vpack.c.b16 %v3589, %v3588
  %v3600 = vpack.c.b16 %v3591, %v3590
  %v3601 = vpack.c.b16 %v3593, %v3592
  %3610 = vmatprep.subr.bf16.mxu0 0
  %3611 = vmatpush1.bf16.msra.mxu0 %v3594
  %3612 = vmatprep.subr.bf16.mxu0 0
  %3613 = vmatpush1.bf16.msra.mxu0 %v3595
  %3614 = vmatprep.subr.bf16.mxu0 0
  %3615 = vmatpush1.bf16.msra.mxu0 %v3596
  %3616 = vmatprep.subr.bf16.mxu0 0
  %3617 = vmatpush1.bf16.msra.mxu0 %v3597
  %3618 = vmatprep.subr.bf16.mxu0 0
  %3619 = vmatpush1.bf16.msra.mxu0 %v3598
  %3620 = vmatprep.subr.bf16.mxu0 0
  %3621 = vmatpush1.bf16.msra.mxu0 %v3599
  %3622 = vmatprep.subr.bf16.mxu0 0
  %3623 = vmatpush1.bf16.msra.mxu0 %v3600
  %3624 = vmatprep.subr.bf16.mxu0 0
  %3625 = vmatpush1.bf16.msra.mxu0 %v3601
  %3626 = vmatprep.subr.bf16.mxu0 0
  %3627 = vmatpush1.bf16.msra.mxu0 0
  %3628 = vmatprep.subr.bf16.mxu0 0
  %3629 = vmatpush1.bf16.msra.mxu0 0
  %3630 = vmatprep.subr.bf16.mxu0 0
  %3631 = vmatpush1.bf16.msra.mxu0 0
  %3632 = vmatprep.subr.bf16.mxu0 0
  %3633 = vmatpush1.bf16.msra.mxu0 0
  %3634 = vmatprep.subr.bf16.mxu0 0
  %3635 = vmatpush1.bf16.msra.mxu0 0
  %3636 = vmatprep.subr.bf16.mxu0 0
  %3637 = vmatpush1.bf16.msra.mxu0 0
  %3638 = vmatprep.subr.bf16.mxu0 0
  %3639 = vmatpush1.bf16.msra.mxu0 0
  %3640 = vmatprep.subr.bf16.mxu0 0
  %3641 = vmatpush1.bf16.msra.mxu0 0
  %3642 = vmatprep.mubr.bf16.mxu0 0
  %3643 = vmatmul.mubr.bf16.gmra.mrb[0].mxu0 %v3204
  %v3644 = vpop.f32.mrb[0].mxu0
  %v3645 = vadd.f32 0.0, %v3644
  %v3646 = vpop.f32.mrb[0].mxu0
  %v3647 = vpop.f32.mrb[0].mxu0
  %v3648 = vadd.f32 0.0, %v3647
  %v3649 = vpop.f32.mrb[0].mxu0
  %3650 = vdwg.mxu0
  %v3651 = vadd.f32 %v3543, %v3645
  %v3652 = vadd.f32 %v3544, %v3648
  %s3653 = scalar_lea.vmem %s3, 256
  %v3654 = vld [vmem:[%s3653] sm:$0xf]
  %v3655 = vld [vmem:[%s3653 + $0x4] sm:$0xf]
  %v3656 = vld [vmem:[%s3653 + $0x8] sm:$0xf]
  %v3657 = vld [vmem:[%s3653 + $0xc] sm:$0xf]
  %v3658 = vld [vmem:[%s3653 + $0x10] sm:$0xf]
  %v3659 = vld [vmem:[%s3653 + $0x14] sm:$0xf]
  %v3660 = vld [vmem:[%s3653 + $0x18] sm:$0xf]
  %v3661 = vld [vmem:[%s3653 + $0x1c] sm:$0xf]
  %v3662 = vld [vmem:[%s3653 + $0x20] sm:$0xf]
  %v3663 = vld [vmem:[%s3653 + $0x24] sm:$0xf]
  %v3664 = vld [vmem:[%s3653 + $0x28] sm:$0xf]
  %v3665 = vld [vmem:[%s3653 + $0x2c] sm:$0xf]
  %v3666 = vld [vmem:[%s3653 + $0x30] sm:$0xf]
  %v3667 = vld [vmem:[%s3653 + $0x34] sm:$0xf]
  %v3668 = vld [vmem:[%s3653 + $0x38] sm:$0xf]
  %v3669 = vld [vmem:[%s3653 + $0x3c] sm:$0xf]
  %v3686 = vunpack.c.l.b16 %v3654
  %v3687 = vunpack.c.l.b16 %v3655
  %v3688 = vunpack.c.l.b16 %v3656
  %v3689 = vunpack.c.l.b16 %v3657
  %v3690 = vunpack.c.l.b16 %v3658
  %v3691 = vunpack.c.l.b16 %v3659
  %v3692 = vunpack.c.l.b16 %v3660
  %v3693 = vunpack.c.l.b16 %v3661
  %v3694 = vunpack.c.l.b16 %v3662
  %v3695 = vunpack.c.l.b16 %v3663
  %v3696 = vunpack.c.l.b16 %v3664
  %v3697 = vunpack.c.l.b16 %v3665
  %v3698 = vunpack.c.l.b16 %v3666
  %v3699 = vunpack.c.l.b16 %v3667
  %v3700 = vunpack.c.l.b16 %v3668
  %v3701 = vunpack.c.l.b16 %v3669
  %v3702 = vpack.c.b16 %v3687, %v3686
  %v3703 = vpack.c.b16 %v3689, %v3688
  %v3704 = vpack.c.b16 %v3691, %v3690
  %v3705 = vpack.c.b16 %v3693, %v3692
  %v3706 = vpack.c.b16 %v3695, %v3694
  %v3707 = vpack.c.b16 %v3697, %v3696
  %v3708 = vpack.c.b16 %v3699, %v3698
  %v3709 = vpack.c.b16 %v3701, %v3700
  %3718 = vmatprep.subr.bf16.mxu0 0
  %3719 = vmatpush1.bf16.msra.mxu0 %v3702
  %3720 = vmatprep.subr.bf16.mxu0 0
  %3721 = vmatpush1.bf16.msra.mxu0 %v3703
  %3722 = vmatprep.subr.bf16.mxu0 0
  %3723 = vmatpush1.bf16.msra.mxu0 %v3704
  %3724 = vmatprep.subr.bf16.mxu0 0
  %3725 = vmatpush1.bf16.msra.mxu0 %v3705
  %3726 = vmatprep.subr.bf16.mxu0 0
  %3727 = vmatpush1.bf16.msra.mxu0 %v3706
  %3728 = vmatprep.subr.bf16.mxu0 0
  %3729 = vmatpush1.bf16.msra.mxu0 %v3707
  %3730 = vmatprep.subr.bf16.mxu0 0
  %3731 = vmatpush1.bf16.msra.mxu0 %v3708
  %3732 = vmatprep.subr.bf16.mxu0 0
  %3733 = vmatpush1.bf16.msra.mxu0 %v3709
  %3734 = vmatprep.subr.bf16.mxu0 0
  %3735 = vmatpush1.bf16.msra.mxu0 0
  %3736 = vmatprep.subr.bf16.mxu0 0
  %3737 = vmatpush1.bf16.msra.mxu0 0
  %3738 = vmatprep.subr.bf16.mxu0 0
  %3739 = vmatpush1.bf16.msra.mxu0 0
  %3740 = vmatprep.subr.bf16.mxu0 0
  %3741 = vmatpush1.bf16.msra.mxu0 0
  %3742 = vmatprep.subr.bf16.mxu0 0
  %3743 = vmatpush1.bf16.msra.mxu0 0
  %3744 = vmatprep.subr.bf16.mxu0 0
  %3745 = vmatpush1.bf16.msra.mxu0 0
  %3746 = vmatprep.subr.bf16.mxu0 0
  %3747 = vmatpush1.bf16.msra.mxu0 0
  %3748 = vmatprep.subr.bf16.mxu0 0
  %3749 = vmatpush1.bf16.msra.mxu0 0
  %3750 = vmatprep.mubr.bf16.mxu0 0
  %3751 = vmatmul.mubr.bf16.gmra.mrb[0].mxu0 %v3205
  %v3752 = vpop.f32.mrb[0].mxu0
  %v3753 = vadd.f32 0.0, %v3752
  %v3754 = vpop.f32.mrb[0].mxu0
  %v3755 = vpop.f32.mrb[0].mxu0
  %v3756 = vadd.f32 0.0, %v3755
  %v3757 = vpop.f32.mrb[0].mxu0
  %3758 = vdwg.mxu0
  %v3759 = vadd.f32 %v3651, %v3753
  %v3760 = vadd.f32 %v3652, %v3756
  %s3761 = scalar_lea.vmem %s3, 320
  %v3762 = vld [vmem:[%s3761] sm:$0xf]
  %v3763 = vld [vmem:[%s3761 + $0x4] sm:$0xf]
  %v3764 = vld [vmem:[%s3761 + $0x8] sm:$0xf]
  %v3765 = vld [vmem:[%s3761 + $0xc] sm:$0xf]
  %v3766 = vld [vmem:[%s3761 + $0x10] sm:$0xf]
  %v3767 = vld [vmem:[%s3761 + $0x14] sm:$0xf]
  %v3768 = vld [vmem:[%s3761 + $0x18] sm:$0xf]
  %v3769 = vld [vmem:[%s3761 + $0x1c] sm:$0xf]
  %v3770 = vld [vmem:[%s3761 + $0x20] sm:$0xf]
  %v3771 = vld [vmem:[%s3761 + $0x24] sm:$0xf]
  %v3772 = vld [vmem:[%s3761 + $0x28] sm:$0xf]
  %v3773 = vld [vmem:[%s3761 + $0x2c] sm:$0xf]
  %v3774 = vld [vmem:[%s3761 + $0x30] sm:$0xf]
  %v3775 = vld [vmem:[%s3761 + $0x34] sm:$0xf]
  %v3776 = vld [vmem:[%s3761 + $0x38] sm:$0xf]
  %v3777 = vld [vmem:[%s3761 + $0x3c] sm:$0xf]
  %v3794 = vunpack.c.l.b16 %v3762
  %v3795 = vunpack.c.l.b16 %v3763
  %v3796 = vunpack.c.l.b16 %v3764
  %v3797 = vunpack.c.l.b16 %v3765
  %v3798 = vunpack.c.l.b16 %v3766
  %v3799 = vunpack.c.l.b16 %v3767
  %v3800 = vunpack.c.l.b16 %v3768
  %v3801 = vunpack.c.l.b16 %v3769
  %v3802 = vunpack.c.l.b16 %v3770
  %v3803 = vunpack.c.l.b16 %v3771
  %v3804 = vunpack.c.l.b16 %v3772
  %v3805 = vunpack.c.l.b16 %v3773
  %v3806 = vunpack.c.l.b16 %v3774
  %v3807 = vunpack.c.l.b16 %v3775
  %v3808 = vunpack.c.l.b16 %v3776
  %v3809 = vunpack.c.l.b16 %v3777
  %v3810 = vpack.c.b16 %v3795, %v3794
  %v3811 = vpack.c.b16 %v3797, %v3796
  %v3812 = vpack.c.b16 %v3799, %v3798
  %v3813 = vpack.c.b16 %v3801, %v3800
  %v3814 = vpack.c.b16 %v3803, %v3802
  %v3815 = vpack.c.b16 %v3805, %v3804
  %v3816 = vpack.c.b16 %v3807, %v3806
  %v3817 = vpack.c.b16 %v3809, %v3808
  %3826 = vmatprep.subr.bf16.mxu0 0
  %3827 = vmatpush1.bf16.msra.mxu0 %v3810
  %3828 = vmatprep.subr.bf16.mxu0 0
  %3829 = vmatpush1.bf16.msra.mxu0 %v3811
  %3830 = vmatprep.subr.bf16.mxu0 0
  %3831 = vmatpush1.bf16.msra.mxu0 %v3812
  %3832 = vmatprep.subr.bf16.mxu0 0
  %3833 = vmatpush1.bf16.msra.mxu0 %v3813
  %3834 = vmatprep.subr.bf16.mxu0 0
  %3835 = vmatpush1.bf16.msra.mxu0 %v3814
  %3836 = vmatprep.subr.bf16.mxu0 0
  %3837 = vmatpush1.bf16.msra.mxu0 %v3815
  %3838 = vmatprep.subr.bf16.mxu0 0
  %3839 = vmatpush1.bf16.msra.mxu0 %v3816
  %3840 = vmatprep.subr.bf16.mxu0 0
  %3841 = vmatpush1.bf16.msra.mxu0 %v3817
  %3842 = vmatprep.subr.bf16.mxu0 0
  %3843 = vmatpush1.bf16.msra.mxu0 0
  %3844 = vmatprep.subr.bf16.mxu0 0
  %3845 = vmatpush1.bf16.msra.mxu0 0
  %3846 = vmatprep.subr.bf16.mxu0 0
  %3847 = vmatpush1.bf16.msra.mxu0 0
  %3848 = vmatprep.subr.bf16.mxu0 0
  %3849 = vmatpush1.bf16.msra.mxu0 0
  %3850 = vmatprep.subr.bf16.mxu0 0
  %3851 = vmatpush1.bf16.msra.mxu0 0
  %3852 = vmatprep.subr.bf16.mxu0 0
  %3853 = vmatpush1.bf16.msra.mxu0 0
  %3854 = vmatprep.subr.bf16.mxu0 0
  %3855 = vmatpush1.bf16.msra.mxu0 0
  %3856 = vmatprep.subr.bf16.mxu0 0
  %3857 = vmatpush1.bf16.msra.mxu0 0
  %3858 = vmatprep.mubr.bf16.mxu0 0
  %3859 = vmatmul.mubr.bf16.gmra.mrb[0].mxu0 %v3206
  %v3860 = vpop.f32.mrb[0].mxu0
  %v3861 = vadd.f32 0.0, %v3860
  %v3862 = vpop.f32.mrb[0].mxu0
  %v3863 = vpop.f32.mrb[0].mxu0
  %v3864 = vadd.f32 0.0, %v3863
  %v3865 = vpop.f32.mrb[0].mxu0
  %3866 = vdwg.mxu0
  %v3867 = vadd.f32 %v3759, %v3861
  %v3868 = vadd.f32 %v3760, %v3864
  %s3869 = scalar_lea.vmem %s3, 384
  %v3870 = vld [vmem:[%s3869] sm:$0xf]
  %v3871 = vld [vmem:[%s3869 + $0x4] sm:$0xf]
  %v3872 = vld [vmem:[%s3869 + $0x8] sm:$0xf]
  %v3873 = vld [vmem:[%s3869 + $0xc] sm:$0xf]
  %v3874 = vld [vmem:[%s3869 + $0x10] sm:$0xf]
  %v3875 = vld [vmem:[%s3869 + $0x14] sm:$0xf]
  %v3876 = vld [vmem:[%s3869 + $0x18] sm:$0xf]
  %v3877 = vld [vmem:[%s3869 + $0x1c] sm:$0xf]
  %v3878 = vld [vmem:[%s3869 + $0x20] sm:$0xf]
  %v3879 = vld [vmem:[%s3869 + $0x24] sm:$0xf]
  %v3880 = vld [vmem:[%s3869 + $0x28] sm:$0xf]
  %v3881 = vld [vmem:[%s3869 + $0x2c] sm:$0xf]
  %v3882 = vld [vmem:[%s3869 + $0x30] sm:$0xf]
  %v3883 = vld [vmem:[%s3869 + $0x34] sm:$0xf]
  %v3884 = vld [vmem:[%s3869 + $0x38] sm:$0xf]
  %v3885 = vld [vmem:[%s3869 + $0x3c] sm:$0xf]
  %v3902 = vunpack.c.l.b16 %v3870
  %v3903 = vunpack.c.l.b16 %v3871
  %v3904 = vunpack.c.l.b16 %v3872
  %v3905 = vunpack.c.l.b16 %v3873
  %v3906 = vunpack.c.l.b16 %v3874
  %v3907 = vunpack.c.l.b16 %v3875
  %v3908 = vunpack.c.l.b16 %v3876
  %v3909 = vunpack.c.l.b16 %v3877
  %v3910 = vunpack.c.l.b16 %v3878
  %v3911 = vunpack.c.l.b16 %v3879
  %v3912 = vunpack.c.l.b16 %v3880
  %v3913 = vunpack.c.l.b16 %v3881
  %v3914 = vunpack.c.l.b16 %v3882
  %v3915 = vunpack.c.l.b16 %v3883
  %v3916 = vunpack.c.l.b16 %v3884
  %v3917 = vunpack.c.l.b16 %v3885
  %v3918 = vpack.c.b16 %v3903, %v3902
  %v3919 = vpack.c.b16 %v3905, %v3904
  %v3920 = vpack.c.b16 %v3907, %v3906
  %v3921 = vpack.c.b16 %v3909, %v3908
  %v3922 = vpack.c.b16 %v3911, %v3910
  %v3923 = vpack.c.b16 %v3913, %v3912
  %v3924 = vpack.c.b16 %v3915, %v3914
  %v3925 = vpack.c.b16 %v3917, %v3916
  %3934 = vmatprep.subr.bf16.mxu0 0
  %3935 = vmatpush1.bf16.msra.mxu0 %v3918
  %3936 = vmatprep.subr.bf16.mxu0 0
  %3937 = vmatpush1.bf16.msra.mxu0 %v3919
  %3938 = vmatprep.subr.bf16.mxu0 0
  %3939 = vmatpush1.bf16.msra.mxu0 %v3920
  %3940 = vmatprep.subr.bf16.mxu0 0
  %3941 = vmatpush1.bf16.msra.mxu0 %v3921
  %3942 = vmatprep.subr.bf16.mxu0 0
  %3943 = vmatpush1.bf16.msra.mxu0 %v3922
  %3944 = vmatprep.subr.bf16.mxu0 0
  %3945 = vmatpush1.bf16.msra.mxu0 %v3923
  %3946 = vmatprep.subr.bf16.mxu0 0
  %3947 = vmatpush1.bf16.msra.mxu0 %v3924
  %3948 = vmatprep.subr.bf16.mxu0 0
  %3949 = vmatpush1.bf16.msra.mxu0 %v3925
  %3950 = vmatprep.subr.bf16.mxu0 0
  %3951 = vmatpush1.bf16.msra.mxu0 0
  %3952 = vmatprep.subr.bf16.mxu0 0
  %3953 = vmatpush1.bf16.msra.mxu0 0
  %3954 = vmatprep.subr.bf16.mxu0 0
  %3955 = vmatpush1.bf16.msra.mxu0 0
  %3956 = vmatprep.subr.bf16.mxu0 0
  %3957 = vmatpush1.bf16.msra.mxu0 0
  %3958 = vmatprep.subr.bf16.mxu0 0
  %3959 = vmatpush1.bf16.msra.mxu0 0
  %3960 = vmatprep.subr.bf16.mxu0 0
  %3961 = vmatpush1.bf16.msra.mxu0 0
  %3962 = vmatprep.subr.bf16.mxu0 0
  %3963 = vmatpush1.bf16.msra.mxu0 0
  %3964 = vmatprep.subr.bf16.mxu0 0
  %3965 = vmatpush1.bf16.msra.mxu0 0
  %3966 = vmatprep.mubr.bf16.mxu0 0
  %3967 = vmatmul.mubr.bf16.gmra.mrb[0].mxu0 %v3207
  %v3968 = vpop.f32.mrb[0].mxu0
  %v3969 = vadd.f32 0.0, %v3968
  %v3970 = vpop.f32.mrb[0].mxu0
  %v3971 = vpop.f32.mrb[0].mxu0
  %v3972 = vadd.f32 0.0, %v3971
  %v3973 = vpop.f32.mrb[0].mxu0
  %3974 = vdwg.mxu0
  %v3975 = vadd.f32 %v3867, %v3969
  %v3976 = vadd.f32 %v3868, %v3972
  %s3977 = scalar_lea.vmem %s3, 448
  %v3978 = vld [vmem:[%s3977] sm:$0xf]
  %v3979 = vld [vmem:[%s3977 + $0x4] sm:$0xf]
  %v3980 = vld [vmem:[%s3977 + $0x8] sm:$0xf]
  %v3981 = vld [vmem:[%s3977 + $0xc] sm:$0xf]
  %v3982 = vld [vmem:[%s3977 + $0x10] sm:$0xf]
  %v3983 = vld [vmem:[%s3977 + $0x14] sm:$0xf]
  %v3984 = vld [vmem:[%s3977 + $0x18] sm:$0xf]
  %v3985 = vld [vmem:[%s3977 + $0x1c] sm:$0xf]
  %v3986 = vld [vmem:[%s3977 + $0x20] sm:$0xf]
  %v3987 = vld [vmem:[%s3977 + $0x24] sm:$0xf]
  %v3988 = vld [vmem:[%s3977 + $0x28] sm:$0xf]
  %v3989 = vld [vmem:[%s3977 + $0x2c] sm:$0xf]
  %v3990 = vld [vmem:[%s3977 + $0x30] sm:$0xf]
  %v3991 = vld [vmem:[%s3977 + $0x34] sm:$0xf]
  %v3992 = vld [vmem:[%s3977 + $0x38] sm:$0xf]
  %v3993 = vld [vmem:[%s3977 + $0x3c] sm:$0xf]
  %v4010 = vunpack.c.l.b16 %v3978
  %v4011 = vunpack.c.l.b16 %v3979
  %v4012 = vunpack.c.l.b16 %v3980
  %v4013 = vunpack.c.l.b16 %v3981
  %v4014 = vunpack.c.l.b16 %v3982
  %v4015 = vunpack.c.l.b16 %v3983
  %v4016 = vunpack.c.l.b16 %v3984
  %v4017 = vunpack.c.l.b16 %v3985
  %v4018 = vunpack.c.l.b16 %v3986
  %v4019 = vunpack.c.l.b16 %v3987
  %v4020 = vunpack.c.l.b16 %v3988
  %v4021 = vunpack.c.l.b16 %v3989
  %v4022 = vunpack.c.l.b16 %v3990
  %v4023 = vunpack.c.l.b16 %v3991
  %v4024 = vunpack.c.l.b16 %v3992
  %v4025 = vunpack.c.l.b16 %v3993
  %v4026 = vpack.c.b16 %v4011, %v4010
  %v4027 = vpack.c.b16 %v4013, %v4012
  %v4028 = vpack.c.b16 %v4015, %v4014
  %v4029 = vpack.c.b16 %v4017, %v4016
  %v4030 = vpack.c.b16 %v4019, %v4018
  %v4031 = vpack.c.b16 %v4021, %v4020
  %v4032 = vpack.c.b16 %v4023, %v4022
  %v4033 = vpack.c.b16 %v4025, %v4024
  %4042 = vmatprep.subr.bf16.mxu0 0
  %4043 = vmatpush1.bf16.msra.mxu0 %v4026
  %4044 = vmatprep.subr.bf16.mxu0 0
  %4045 = vmatpush1.bf16.msra.mxu0 %v4027
  %4046 = vmatprep.subr.bf16.mxu0 0
  %4047 = vmatpush1.bf16.msra.mxu0 %v4028
  %4048 = vmatprep.subr.bf16.mxu0 0
  %4049 = vmatpush1.bf16.msra.mxu0 %v4029
  %4050 = vmatprep.subr.bf16.mxu0 0
  %4051 = vmatpush1.bf16.msra.mxu0 %v4030
  %4052 = vmatprep.subr.bf16.mxu0 0
  %4053 = vmatpush1.bf16.msra.mxu0 %v4031
  %4054 = vmatprep.subr.bf16.mxu0 0
  %4055 = vmatpush1.bf16.msra.mxu0 %v4032
  %4056 = vmatprep.subr.bf16.mxu0 0
  %4057 = vmatpush1.bf16.msra.mxu0 %v4033
  %4058 = vmatprep.subr.bf16.mxu0 0
  %4059 = vmatpush1.bf16.msra.mxu0 0
  %4060 = vmatprep.subr.bf16.mxu0 0
  %4061 = vmatpush1.bf16.msra.mxu0 0
  %4062 = vmatprep.subr.bf16.mxu0 0
  %4063 = vmatpush1.bf16.msra.mxu0 0
  %4064 = vmatprep.subr.bf16.mxu0 0
  %4065 = vmatpush1.bf16.msra.mxu0 0
  %4066 = vmatprep.subr.bf16.mxu0 0
  %4067 = vmatpush1.bf16.msra.mxu0 0
  %4068 = vmatprep.subr.bf16.mxu0 0
  %4069 = vmatpush1.bf16.msra.mxu0 0
  %4070 = vmatprep.subr.bf16.mxu0 0
  %4071 = vmatpush1.bf16.msra.mxu0 0
  %4072 = vmatprep.subr.bf16.mxu0 0
  %4073 = vmatpush1.bf16.msra.mxu0 0
  %4074 = vmatprep.mubr.bf16.mxu0 0
  %4075 = vmatmul.mubr.bf16.gmra.mrb[0].mxu0 %v3208
  %v4076 = vpop.f32.mrb[0].mxu0
  %v4077 = vadd.f32 0.0, %v4076
  %v4078 = vpop.f32.mrb[0].mxu0
  %v4079 = vpop.f32.mrb[0].mxu0
  %v4080 = vadd.f32 0.0, %v4079
  %v4081 = vpop.f32.mrb[0].mxu0
  %4082 = vdwg.mxu0
  %v4083 = vadd.f32 %v3975, %v4077
  %v4084 = vadd.f32 %v3976, %v4080
  %s4085 = scalar_lea.vmem %s3, 512
  %v4086 = vld [vmem:[%s4085] sm:$0xf]
  %v4087 = vld [vmem:[%s4085 + $0x4] sm:$0xf]
  %v4088 = vld [vmem:[%s4085 + $0x8] sm:$0xf]
  %v4089 = vld [vmem:[%s4085 + $0xc] sm:$0xf]
  %v4090 = vld [vmem:[%s4085 + $0x10] sm:$0xf]
  %v4091 = vld [vmem:[%s4085 + $0x14] sm:$0xf]
  %v4092 = vld [vmem:[%s4085 + $0x18] sm:$0xf]
  %v4093 = vld [vmem:[%s4085 + $0x1c] sm:$0xf]
  %v4094 = vld [vmem:[%s4085 + $0x20] sm:$0xf]
  %v4095 = vld [vmem:[%s4085 + $0x24] sm:$0xf]
  %v4096 = vld [vmem:[%s4085 + $0x28] sm:$0xf]
  %v4097 = vld [vmem:[%s4085 + $0x2c] sm:$0xf]
  %v4098 = vld [vmem:[%s4085 + $0x30] sm:$0xf]
  %v4099 = vld [vmem:[%s4085 + $0x34] sm:$0xf]
  %v4100 = vld [vmem:[%s4085 + $0x38] sm:$0xf]
  %v4101 = vld [vmem:[%s4085 + $0x3c] sm:$0xf]
  %v4118 = vunpack.c.l.b16 %v4086
  %v4119 = vunpack.c.l.b16 %v4087
  %v4120 = vunpack.c.l.b16 %v4088
  %v4121 = vunpack.c.l.b16 %v4089
  %v4122 = vunpack.c.l.b16 %v4090
  %v4123 = vunpack.c.l.b16 %v4091
  %v4124 = vunpack.c.l.b16 %v4092
  %v4125 = vunpack.c.l.b16 %v4093
  %v4126 = vunpack.c.l.b16 %v4094
  %v4127 = vunpack.c.l.b16 %v4095
  %v4128 = vunpack.c.l.b16 %v4096
  %v4129 = vunpack.c.l.b16 %v4097
  %v4130 = vunpack.c.l.b16 %v4098
  %v4131 = vunpack.c.l.b16 %v4099
  %v4132 = vunpack.c.l.b16 %v4100
  %v4133 = vunpack.c.l.b16 %v4101
  %v4134 = vpack.c.b16 %v4119, %v4118
  %v4135 = vpack.c.b16 %v4121, %v4120
  %v4136 = vpack.c.b16 %v4123, %v4122
  %v4137 = vpack.c.b16 %v4125, %v4124
  %v4138 = vpack.c.b16 %v4127, %v4126
  %v4139 = vpack.c.b16 %v4129, %v4128
  %v4140 = vpack.c.b16 %v4131, %v4130
  %v4141 = vpack.c.b16 %v4133, %v4132
  %4150 = vmatprep.subr.bf16.mxu0 0
  %4151 = vmatpush1.bf16.msra.mxu0 %v4134
  %4152 = vmatprep.subr.bf16.mxu0 0
  %4153 = vmatpush1.bf16.msra.mxu0 %v4135
  %4154 = vmatprep.subr.bf16.mxu0 0
  %4155 = vmatpush1.bf16.msra.mxu0 %v4136
  %4156 = vmatprep.subr.bf16.mxu0 0
  %4157 = vmatpush1.bf16.msra.mxu0 %v4137
  %4158 = vmatprep.subr.bf16.mxu0 0
  %4159 = vmatpush1.bf16.msra.mxu0 %v4138
  %4160 = vmatprep.subr.bf16.mxu0 0
  %4161 = vmatpush1.bf16.msra.mxu0 %v4139
  %4162 = vmatprep.subr.bf16.mxu0 0
  %4163 = vmatpush1.bf16.msra.mxu0 %v4140
  %4164 = vmatprep.subr.bf16.mxu0 0
  %4165 = vmatpush1.bf16.msra.mxu0 %v4141
  %4166 = vmatprep.subr.bf16.mxu0 0
  %4167 = vmatpush1.bf16.msra.mxu0 0
  %4168 = vmatprep.subr.bf16.mxu0 0
  %4169 = vmatpush1.bf16.msra.mxu0 0
  %4170 = vmatprep.subr.bf16.mxu0 0
  %4171 = vmatpush1.bf16.msra.mxu0 0
  %4172 = vmatprep.subr.bf16.mxu0 0
  %4173 = vmatpush1.bf16.msra.mxu0 0
  %4174 = vmatprep.subr.bf16.mxu0 0
  %4175 = vmatpush1.bf16.msra.mxu0 0
  %4176 = vmatprep.subr.bf16.mxu0 0
  %4177 = vmatpush1.bf16.msra.mxu0 0
  %4178 = vmatprep.subr.bf16.mxu0 0
  %4179 = vmatpush1.bf16.msra.mxu0 0
  %4180 = vmatprep.subr.bf16.mxu0 0
  %4181 = vmatpush1.bf16.msra.mxu0 0
  %4182 = vmatprep.mubr.bf16.mxu0 0
  %4183 = vmatmul.mubr.bf16.gmra.mrb[0].mxu0 %v3209
  %v4184 = vpop.f32.mrb[0].mxu0
  %v4185 = vadd.f32 0.0, %v4184
  %v4186 = vpop.f32.mrb[0].mxu0
  %v4187 = vpop.f32.mrb[0].mxu0
  %v4188 = vadd.f32 0.0, %v4187
  %v4189 = vpop.f32.mrb[0].mxu0
  %4190 = vdwg.mxu0
  %v4191 = vadd.f32 %v4083, %v4185
  %v4192 = vadd.f32 %v4084, %v4188
  %s4193 = scalar_lea.vmem %s3, 576
  %v4194 = vld [vmem:[%s4193] sm:$0xf]
  %v4195 = vld [vmem:[%s4193 + $0x4] sm:$0xf]
  %v4196 = vld [vmem:[%s4193 + $0x8] sm:$0xf]
  %v4197 = vld [vmem:[%s4193 + $0xc] sm:$0xf]
  %v4198 = vld [vmem:[%s4193 + $0x10] sm:$0xf]
  %v4199 = vld [vmem:[%s4193 + $0x14] sm:$0xf]
  %v4200 = vld [vmem:[%s4193 + $0x18] sm:$0xf]
  %v4201 = vld [vmem:[%s4193 + $0x1c] sm:$0xf]
  %v4202 = vld [vmem:[%s4193 + $0x20] sm:$0xf]
  %v4203 = vld [vmem:[%s4193 + $0x24] sm:$0xf]
  %v4204 = vld [vmem:[%s4193 + $0x28] sm:$0xf]
  %v4205 = vld [vmem:[%s4193 + $0x2c] sm:$0xf]
  %v4206 = vld [vmem:[%s4193 + $0x30] sm:$0xf]
  %v4207 = vld [vmem:[%s4193 + $0x34] sm:$0xf]
  %v4208 = vld [vmem:[%s4193 + $0x38] sm:$0xf]
  %v4209 = vld [vmem:[%s4193 + $0x3c] sm:$0xf]
  %v4226 = vunpack.c.l.b16 %v4194
  %v4227 = vunpack.c.l.b16 %v4195
  %v4228 = vunpack.c.l.b16 %v4196
  %v4229 = vunpack.c.l.b16 %v4197
  %v4230 = vunpack.c.l.b16 %v4198
  %v4231 = vunpack.c.l.b16 %v4199
  %v4232 = vunpack.c.l.b16 %v4200
  %v4233 = vunpack.c.l.b16 %v4201
  %v4234 = vunpack.c.l.b16 %v4202
  %v4235 = vunpack.c.l.b16 %v4203
  %v4236 = vunpack.c.l.b16 %v4204
  %v4237 = vunpack.c.l.b16 %v4205
  %v4238 = vunpack.c.l.b16 %v4206
  %v4239 = vunpack.c.l.b16 %v4207
  %v4240 = vunpack.c.l.b16 %v4208
  %v4241 = vunpack.c.l.b16 %v4209
  %v4242 = vpack.c.b16 %v4227, %v4226
  %v4243 = vpack.c.b16 %v4229, %v4228
  %v4244 = vpack.c.b16 %v4231, %v4230
  %v4245 = vpack.c.b16 %v4233, %v4232
  %v4246 = vpack.c.b16 %v4235, %v4234
  %v4247 = vpack.c.b16 %v4237, %v4236
  %v4248 = vpack.c.b16 %v4239, %v4238
  %v4249 = vpack.c.b16 %v4241, %v4240
  %4258 = vmatprep.subr.bf16.mxu0 0
  %4259 = vmatpush1.bf16.msra.mxu0 %v4242
  %4260 = vmatprep.subr.bf16.mxu0 0
  %4261 = vmatpush1.bf16.msra.mxu0 %v4243
  %4262 = vmatprep.subr.bf16.mxu0 0
  %4263 = vmatpush1.bf16.msra.mxu0 %v4244
  %4264 = vmatprep.subr.bf16.mxu0 0
  %4265 = vmatpush1.bf16.msra.mxu0 %v4245
  %4266 = vmatprep.subr.bf16.mxu0 0
  %4267 = vmatpush1.bf16.msra.mxu0 %v4246
  %4268 = vmatprep.subr.bf16.mxu0 0
  %4269 = vmatpush1.bf16.msra.mxu0 %v4247
  %4270 = vmatprep.subr.bf16.mxu0 0
  %4271 = vmatpush1.bf16.msra.mxu0 %v4248
  %4272 = vmatprep.subr.bf16.mxu0 0
  %4273 = vmatpush1.bf16.msra.mxu0 %v4249
  %4274 = vmatprep.subr.bf16.mxu0 0
  %4275 = vmatpush1.bf16.msra.mxu0 0
  %4276 = vmatprep.subr.bf16.mxu0 0
  %4277 = vmatpush1.bf16.msra.mxu0 0
  %4278 = vmatprep.subr.bf16.mxu0 0
  %4279 = vmatpush1.bf16.msra.mxu0 0
  %4280 = vmatprep.subr.bf16.mxu0 0
  %4281 = vmatpush1.bf16.msra.mxu0 0
  %4282 = vmatprep.subr.bf16.mxu0 0
  %4283 = vmatpush1.bf16.msra.mxu0 0
  %4284 = vmatprep.subr.bf16.mxu0 0
  %4285 = vmatpush1.bf16.msra.mxu0 0
  %4286 = vmatprep.subr.bf16.mxu0 0
  %4287 = vmatpush1.bf16.msra.mxu0 0
  %4288 = vmatprep.subr.bf16.mxu0 0
  %4289 = vmatpush1.bf16.msra.mxu0 0
  %4290 = vmatprep.mubr.bf16.mxu0 0
  %4291 = vmatmul.mubr.bf16.gmra.mrb[0].mxu0 %v3210
  %v4292 = vpop.f32.mrb[0].mxu0
  %v4293 = vadd.f32 0.0, %v4292
  %v4294 = vpop.f32.mrb[0].mxu0
  %v4295 = vpop.f32.mrb[0].mxu0
  %v4296 = vadd.f32 0.0, %v4295
  %v4297 = vpop.f32.mrb[0].mxu0
  %4298 = vdwg.mxu0
  %v4299 = vadd.f32 %v4191, %v4293
  %v4300 = vadd.f32 %v4192, %v4296
  %s4301 = scalar_lea.vmem %s3, 640
  %v4302 = vld [vmem:[%s4301] sm:$0xf]
  %v4303 = vld [vmem:[%s4301 + $0x4] sm:$0xf]
  %v4304 = vld [vmem:[%s4301 + $0x8] sm:$0xf]
  %v4305 = vld [vmem:[%s4301 + $0xc] sm:$0xf]
  %v4306 = vld [vmem:[%s4301 + $0x10] sm:$0xf]
  %v4307 = vld [vmem:[%s4301 + $0x14] sm:$0xf]
  %v4308 = vld [vmem:[%s4301 + $0x18] sm:$0xf]
  %v4309 = vld [vmem:[%s4301 + $0x1c] sm:$0xf]
  %v4310 = vld [vmem:[%s4301 + $0x20] sm:$0xf]
  %v4311 = vld [vmem:[%s4301 + $0x24] sm:$0xf]
  %v4312 = vld [vmem:[%s4301 + $0x28] sm:$0xf]
  %v4313 = vld [vmem:[%s4301 + $0x2c] sm:$0xf]
  %v4314 = vld [vmem:[%s4301 + $0x30] sm:$0xf]
  %v4315 = vld [vmem:[%s4301 + $0x34] sm:$0xf]
  %v4316 = vld [vmem:[%s4301 + $0x38] sm:$0xf]
  %v4317 = vld [vmem:[%s4301 + $0x3c] sm:$0xf]
  %v4334 = vunpack.c.l.b16 %v4302
  %v4335 = vunpack.c.l.b16 %v4303
  %v4336 = vunpack.c.l.b16 %v4304
  %v4337 = vunpack.c.l.b16 %v4305
  %v4338 = vunpack.c.l.b16 %v4306
  %v4339 = vunpack.c.l.b16 %v4307
  %v4340 = vunpack.c.l.b16 %v4308
  %v4341 = vunpack.c.l.b16 %v4309
  %v4342 = vunpack.c.l.b16 %v4310
  %v4343 = vunpack.c.l.b16 %v4311
  %v4344 = vunpack.c.l.b16 %v4312
  %v4345 = vunpack.c.l.b16 %v4313
  %v4346 = vunpack.c.l.b16 %v4314
  %v4347 = vunpack.c.l.b16 %v4315
  %v4348 = vunpack.c.l.b16 %v4316
  %v4349 = vunpack.c.l.b16 %v4317
  %v4350 = vpack.c.b16 %v4335, %v4334
  %v4351 = vpack.c.b16 %v4337, %v4336
  %v4352 = vpack.c.b16 %v4339, %v4338
  %v4353 = vpack.c.b16 %v4341, %v4340
  %v4354 = vpack.c.b16 %v4343, %v4342
  %v4355 = vpack.c.b16 %v4345, %v4344
  %v4356 = vpack.c.b16 %v4347, %v4346
  %v4357 = vpack.c.b16 %v4349, %v4348
  %4366 = vmatprep.subr.bf16.mxu0 0
  %4367 = vmatpush1.bf16.msra.mxu0 %v4350
  %4368 = vmatprep.subr.bf16.mxu0 0
  %4369 = vmatpush1.bf16.msra.mxu0 %v4351
  %4370 = vmatprep.subr.bf16.mxu0 0
  %4371 = vmatpush1.bf16.msra.mxu0 %v4352
  %4372 = vmatprep.subr.bf16.mxu0 0
  %4373 = vmatpush1.bf16.msra.mxu0 %v4353
  %4374 = vmatprep.subr.bf16.mxu0 0
  %4375 = vmatpush1.bf16.msra.mxu0 %v4354
  %4376 = vmatprep.subr.bf16.mxu0 0
  %4377 = vmatpush1.bf16.msra.mxu0 %v4355
  %4378 = vmatprep.subr.bf16.mxu0 0
  %4379 = vmatpush1.bf16.msra.mxu0 %v4356
  %4380 = vmatprep.subr.bf16.mxu0 0
  %4381 = vmatpush1.bf16.msra.mxu0 %v4357
  %4382 = vmatprep.subr.bf16.mxu0 0
  %4383 = vmatpush1.bf16.msra.mxu0 0
  %4384 = vmatprep.subr.bf16.mxu0 0
  %4385 = vmatpush1.bf16.msra.mxu0 0
  %4386 = vmatprep.subr.bf16.mxu0 0
  %4387 = vmatpush1.bf16.msra.mxu0 0
  %4388 = vmatprep.subr.bf16.mxu0 0
  %4389 = vmatpush1.bf16.msra.mxu0 0
  %4390 = vmatprep.subr.bf16.mxu0 0
  %4391 = vmatpush1.bf16.msra.mxu0 0
  %4392 = vmatprep.subr.bf16.mxu0 0
  %4393 = vmatpush1.bf16.msra.mxu0 0
  %4394 = vmatprep.subr.bf16.mxu0 0
  %4395 = vmatpush1.bf16.msra.mxu0 0
  %4396 = vmatprep.subr.bf16.mxu0 0
  %4397 = vmatpush1.bf16.msra.mxu0 0
  %4398 = vmatprep.mubr.bf16.mxu0 0
  %4399 = vmatmul.mubr.bf16.gmra.mrb[0].mxu0 %v3211
  %v4400 = vpop.f32.mrb[0].mxu0
  %v4401 = vadd.f32 0.0, %v4400
  %v4402 = vpop.f32.mrb[0].mxu0
  %v4403 = vpop.f32.mrb[0].mxu0
  %v4404 = vadd.f32 0.0, %v4403
  %v4405 = vpop.f32.mrb[0].mxu0
  %4406 = vdwg.mxu0
  %v4407 = vadd.f32 %v4299, %v4401
  %v4408 = vadd.f32 %v4300, %v4404
  %s4409 = scalar_lea.vmem %s3, 704
  %v4410 = vld [vmem:[%s4409] sm:$0xf]
  %v4411 = vld [vmem:[%s4409 + $0x4] sm:$0xf]
  %v4412 = vld [vmem:[%s4409 + $0x8] sm:$0xf]
  %v4413 = vld [vmem:[%s4409 + $0xc] sm:$0xf]
  %v4414 = vld [vmem:[%s4409 + $0x10] sm:$0xf]
  %v4415 = vld [vmem:[%s4409 + $0x14] sm:$0xf]
  %v4416 = vld [vmem:[%s4409 + $0x18] sm:$0xf]
  %v4417 = vld [vmem:[%s4409 + $0x1c] sm:$0xf]
  %v4418 = vld [vmem:[%s4409 + $0x20] sm:$0xf]
  %v4419 = vld [vmem:[%s4409 + $0x24] sm:$0xf]
  %v4420 = vld [vmem:[%s4409 + $0x28] sm:$0xf]
  %v4421 = vld [vmem:[%s4409 + $0x2c] sm:$0xf]
  %v4422 = vld [vmem:[%s4409 + $0x30] sm:$0xf]
  %v4423 = vld [vmem:[%s4409 + $0x34] sm:$0xf]
  %v4424 = vld [vmem:[%s4409 + $0x38] sm:$0xf]
  %v4425 = vld [vmem:[%s4409 + $0x3c] sm:$0xf]
  %v4442 = vunpack.c.l.b16 %v4410
  %v4443 = vunpack.c.l.b16 %v4411
  %v4444 = vunpack.c.l.b16 %v4412
  %v4445 = vunpack.c.l.b16 %v4413
  %v4446 = vunpack.c.l.b16 %v4414
  %v4447 = vunpack.c.l.b16 %v4415
  %v4448 = vunpack.c.l.b16 %v4416
  %v4449 = vunpack.c.l.b16 %v4417
  %v4450 = vunpack.c.l.b16 %v4418
  %v4451 = vunpack.c.l.b16 %v4419
  %v4452 = vunpack.c.l.b16 %v4420
  %v4453 = vunpack.c.l.b16 %v4421
  %v4454 = vunpack.c.l.b16 %v4422
  %v4455 = vunpack.c.l.b16 %v4423
  %v4456 = vunpack.c.l.b16 %v4424
  %v4457 = vunpack.c.l.b16 %v4425
  %v4458 = vpack.c.b16 %v4443, %v4442
  %v4459 = vpack.c.b16 %v4445, %v4444
  %v4460 = vpack.c.b16 %v4447, %v4446
  %v4461 = vpack.c.b16 %v4449, %v4448
  %v4462 = vpack.c.b16 %v4451, %v4450
  %v4463 = vpack.c.b16 %v4453, %v4452
  %v4464 = vpack.c.b16 %v4455, %v4454
  %v4465 = vpack.c.b16 %v4457, %v4456
  %4474 = vmatprep.subr.bf16.mxu0 0
  %4475 = vmatpush1.bf16.msra.mxu0 %v4458
  %4476 = vmatprep.subr.bf16.mxu0 0
  %4477 = vmatpush1.bf16.msra.mxu0 %v4459
  %4478 = vmatprep.subr.bf16.mxu0 0
  %4479 = vmatpush1.bf16.msra.mxu0 %v4460
  %4480 = vmatprep.subr.bf16.mxu0 0
  %4481 = vmatpush1.bf16.msra.mxu0 %v4461
  %4482 = vmatprep.subr.bf16.mxu0 0
  %4483 = vmatpush1.bf16.msra.mxu0 %v4462
  %4484 = vmatprep.subr.bf16.mxu0 0
  %4485 = vmatpush1.bf16.msra.mxu0 %v4463
  %4486 = vmatprep.subr.bf16.mxu0 0
  %4487 = vmatpush1.bf16.msra.mxu0 %v4464
  %4488 = vmatprep.subr.bf16.mxu0 0
  %4489 = vmatpush1.bf16.msra.mxu0 %v4465
  %4490 = vmatprep.subr.bf16.mxu0 0
  %4491 = vmatpush1.bf16.msra.mxu0 0
  %4492 = vmatprep.subr.bf16.mxu0 0
  %4493 = vmatpush1.bf16.msra.mxu0 0
  %4494 = vmatprep.subr.bf16.mxu0 0
  %4495 = vmatpush1.bf16.msra.mxu0 0
  %4496 = vmatprep.subr.bf16.mxu0 0
  %4497 = vmatpush1.bf16.msra.mxu0 0
  %4498 = vmatprep.subr.bf16.mxu0 0
  %4499 = vmatpush1.bf16.msra.mxu0 0
  %4500 = vmatprep.subr.bf16.mxu0 0
  %4501 = vmatpush1.bf16.msra.mxu0 0
  %4502 = vmatprep.subr.bf16.mxu0 0
  %4503 = vmatpush1.bf16.msra.mxu0 0
  %4504 = vmatprep.subr.bf16.mxu0 0
  %4505 = vmatpush1.bf16.msra.mxu0 0
  %4506 = vmatprep.mubr.bf16.mxu0 0
  %4507 = vmatmul.mubr.bf16.gmra.mrb[0].mxu0 %v3212
  %v4508 = vpop.f32.mrb[0].mxu0
  %v4509 = vadd.f32 0.0, %v4508
  %v4510 = vpop.f32.mrb[0].mxu0
  %v4511 = vpop.f32.mrb[0].mxu0
  %v4512 = vadd.f32 0.0, %v4511
  %v4513 = vpop.f32.mrb[0].mxu0
  %4514 = vdwg.mxu0
  %v4515 = vadd.f32 %v4407, %v4509
  %v4516 = vadd.f32 %v4408, %v4512
  %s4517 = scalar_lea.vmem %s3, 768
  %v4518 = vld [vmem:[%s4517] sm:$0xf]
  %v4519 = vld [vmem:[%s4517 + $0x4] sm:$0xf]
  %v4520 = vld [vmem:[%s4517 + $0x8] sm:$0xf]
  %v4521 = vld [vmem:[%s4517 + $0xc] sm:$0xf]
  %v4522 = vld [vmem:[%s4517 + $0x10] sm:$0xf]
  %v4523 = vld [vmem:[%s4517 + $0x14] sm:$0xf]
  %v4524 = vld [vmem:[%s4517 + $0x18] sm:$0xf]
  %v4525 = vld [vmem:[%s4517 + $0x1c] sm:$0xf]
  %v4526 = vld [vmem:[%s4517 + $0x20] sm:$0xf]
  %v4527 = vld [vmem:[%s4517 + $0x24] sm:$0xf]
  %v4528 = vld [vmem:[%s4517 + $0x28] sm:$0xf]
  %v4529 = vld [vmem:[%s4517 + $0x2c] sm:$0xf]
  %v4530 = vld [vmem:[%s4517 + $0x30] sm:$0xf]
  %v4531 = vld [vmem:[%s4517 + $0x34] sm:$0xf]
  %v4532 = vld [vmem:[%s4517 + $0x38] sm:$0xf]
  %v4533 = vld [vmem:[%s4517 + $0x3c] sm:$0xf]
  %v4550 = vunpack.c.l.b16 %v4518
  %v4551 = vunpack.c.l.b16 %v4519
  %v4552 = vunpack.c.l.b16 %v4520
  %v4553 = vunpack.c.l.b16 %v4521
  %v4554 = vunpack.c.l.b16 %v4522
  %v4555 = vunpack.c.l.b16 %v4523
  %v4556 = vunpack.c.l.b16 %v4524
  %v4557 = vunpack.c.l.b16 %v4525
  %v4558 = vunpack.c.l.b16 %v4526
  %v4559 = vunpack.c.l.b16 %v4527
  %v4560 = vunpack.c.l.b16 %v4528
  %v4561 = vunpack.c.l.b16 %v4529
  %v4562 = vunpack.c.l.b16 %v4530
  %v4563 = vunpack.c.l.b16 %v4531
  %v4564 = vunpack.c.l.b16 %v4532
  %v4565 = vunpack.c.l.b16 %v4533
  %v4566 = vpack.c.b16 %v4551, %v4550
  %v4567 = vpack.c.b16 %v4553, %v4552
  %v4568 = vpack.c.b16 %v4555, %v4554
  %v4569 = vpack.c.b16 %v4557, %v4556
  %v4570 = vpack.c.b16 %v4559, %v4558
  %v4571 = vpack.c.b16 %v4561, %v4560
  %v4572 = vpack.c.b16 %v4563, %v4562
  %v4573 = vpack.c.b16 %v4565, %v4564
  %4582 = vmatprep.subr.bf16.mxu0 0
  %4583 = vmatpush1.bf16.msra.mxu0 %v4566
  %4584 = vmatprep.subr.bf16.mxu0 0
  %4585 = vmatpush1.bf16.msra.mxu0 %v4567
  %4586 = vmatprep.subr.bf16.mxu0 0
  %4587 = vmatpush1.bf16.msra.mxu0 %v4568
  %4588 = vmatprep.subr.bf16.mxu0 0
  %4589 = vmatpush1.bf16.msra.mxu0 %v4569
  %4590 = vmatprep.subr.bf16.mxu0 0
  %4591 = vmatpush1.bf16.msra.mxu0 %v4570
  %4592 = vmatprep.subr.bf16.mxu0 0
  %4593 = vmatpush1.bf16.msra.mxu0 %v4571
  %4594 = vmatprep.subr.bf16.mxu0 0
  %4595 = vmatpush1.bf16.msra.mxu0 %v4572
  %4596 = vmatprep.subr.bf16.mxu0 0
  %4597 = vmatpush1.bf16.msra.mxu0 %v4573
  %4598 = vmatprep.subr.bf16.mxu0 0
  %4599 = vmatpush1.bf16.msra.mxu0 0
  %4600 = vmatprep.subr.bf16.mxu0 0
  %4601 = vmatpush1.bf16.msra.mxu0 0
  %4602 = vmatprep.subr.bf16.mxu0 0
  %4603 = vmatpush1.bf16.msra.mxu0 0
  %4604 = vmatprep.subr.bf16.mxu0 0
  %4605 = vmatpush1.bf16.msra.mxu0 0
  %4606 = vmatprep.subr.bf16.mxu0 0
  %4607 = vmatpush1.bf16.msra.mxu0 0
  %4608 = vmatprep.subr.bf16.mxu0 0
  %4609 = vmatpush1.bf16.msra.mxu0 0
  %4610 = vmatprep.subr.bf16.mxu0 0
  %4611 = vmatpush1.bf16.msra.mxu0 0
  %4612 = vmatprep.subr.bf16.mxu0 0
  %4613 = vmatpush1.bf16.msra.mxu0 0
  %4614 = vmatprep.mubr.bf16.mxu0 0
  %4615 = vmatmul.mubr.bf16.gmra.mrb[0].mxu0 %v3213
  %v4616 = vpop.f32.mrb[0].mxu0
  %v4617 = vadd.f32 0.0, %v4616
  %v4618 = vpop.f32.mrb[0].mxu0
  %v4619 = vpop.f32.mrb[0].mxu0
  %v4620 = vadd.f32 0.0, %v4619
  %v4621 = vpop.f32.mrb[0].mxu0
  %4622 = vdwg.mxu0
  %v4623 = vadd.f32 %v4515, %v4617
  %v4624 = vadd.f32 %v4516, %v4620
  %s4625 = scalar_lea.vmem %s3, 832
  %v4626 = vld [vmem:[%s4625] sm:$0xf]
  %v4627 = vld [vmem:[%s4625 + $0x4] sm:$0xf]
  %v4628 = vld [vmem:[%s4625 + $0x8] sm:$0xf]
  %v4629 = vld [vmem:[%s4625 + $0xc] sm:$0xf]
  %v4630 = vld [vmem:[%s4625 + $0x10] sm:$0xf]
  %v4631 = vld [vmem:[%s4625 + $0x14] sm:$0xf]
  %v4632 = vld [vmem:[%s4625 + $0x18] sm:$0xf]
  %v4633 = vld [vmem:[%s4625 + $0x1c] sm:$0xf]
  %v4634 = vld [vmem:[%s4625 + $0x20] sm:$0xf]
  %v4635 = vld [vmem:[%s4625 + $0x24] sm:$0xf]
  %v4636 = vld [vmem:[%s4625 + $0x28] sm:$0xf]
  %v4637 = vld [vmem:[%s4625 + $0x2c] sm:$0xf]
  %v4638 = vld [vmem:[%s4625 + $0x30] sm:$0xf]
  %v4639 = vld [vmem:[%s4625 + $0x34] sm:$0xf]
  %v4640 = vld [vmem:[%s4625 + $0x38] sm:$0xf]
  %v4641 = vld [vmem:[%s4625 + $0x3c] sm:$0xf]
  %v4658 = vunpack.c.l.b16 %v4626
  %v4659 = vunpack.c.l.b16 %v4627
  %v4660 = vunpack.c.l.b16 %v4628
  %v4661 = vunpack.c.l.b16 %v4629
  %v4662 = vunpack.c.l.b16 %v4630
  %v4663 = vunpack.c.l.b16 %v4631
  %v4664 = vunpack.c.l.b16 %v4632
  %v4665 = vunpack.c.l.b16 %v4633
  %v4666 = vunpack.c.l.b16 %v4634
  %v4667 = vunpack.c.l.b16 %v4635
  %v4668 = vunpack.c.l.b16 %v4636
  %v4669 = vunpack.c.l.b16 %v4637
  %v4670 = vunpack.c.l.b16 %v4638
  %v4671 = vunpack.c.l.b16 %v4639
  %v4672 = vunpack.c.l.b16 %v4640
  %v4673 = vunpack.c.l.b16 %v4641
  %v4674 = vpack.c.b16 %v4659, %v4658
  %v4675 = vpack.c.b16 %v4661, %v4660
  %v4676 = vpack.c.b16 %v4663, %v4662
  %v4677 = vpack.c.b16 %v4665, %v4664
  %v4678 = vpack.c.b16 %v4667, %v4666
  %v4679 = vpack.c.b16 %v4669, %v4668
  %v4680 = vpack.c.b16 %v4671, %v4670
  %v4681 = vpack.c.b16 %v4673, %v4672
  %4690 = vmatprep.subr.bf16.mxu0 0
  %4691 = vmatpush1.bf16.msra.mxu0 %v4674
  %4692 = vmatprep.subr.bf16.mxu0 0
  %4693 = vmatpush1.bf16.msra.mxu0 %v4675
  %4694 = vmatprep.subr.bf16.mxu0 0
  %4695 = vmatpush1.bf16.msra.mxu0 %v4676
  %4696 = vmatprep.subr.bf16.mxu0 0
  %4697 = vmatpush1.bf16.msra.mxu0 %v4677
  %4698 = vmatprep.subr.bf16.mxu0 0
  %4699 = vmatpush1.bf16.msra.mxu0 %v4678
  %4700 = vmatprep.subr.bf16.mxu0 0
  %4701 = vmatpush1.bf16.msra.mxu0 %v4679
  %4702 = vmatprep.subr.bf16.mxu0 0
  %4703 = vmatpush1.bf16.msra.mxu0 %v4680
  %4704 = vmatprep.subr.bf16.mxu0 0
  %4705 = vmatpush1.bf16.msra.mxu0 %v4681
  %4706 = vmatprep.subr.bf16.mxu0 0
  %4707 = vmatpush1.bf16.msra.mxu0 0
  %4708 = vmatprep.subr.bf16.mxu0 0
  %4709 = vmatpush1.bf16.msra.mxu0 0
  %4710 = vmatprep.subr.bf16.mxu0 0
  %4711 = vmatpush1.bf16.msra.mxu0 0
  %4712 = vmatprep.subr.bf16.mxu0 0
  %4713 = vmatpush1.bf16.msra.mxu0 0
  %4714 = vmatprep.subr.bf16.mxu0 0
  %4715 = vmatpush1.bf16.msra.mxu0 0
  %4716 = vmatprep.subr.bf16.mxu0 0
  %4717 = vmatpush1.bf16.msra.mxu0 0
  %4718 = vmatprep.subr.bf16.mxu0 0
  %4719 = vmatpush1.bf16.msra.mxu0 0
  %4720 = vmatprep.subr.bf16.mxu0 0
  %4721 = vmatpush1.bf16.msra.mxu0 0
  %4722 = vmatprep.mubr.bf16.mxu0 0
  %4723 = vmatmul.mubr.bf16.gmra.mrb[0].mxu0 %v3214
  %v4724 = vpop.f32.mrb[0].mxu0
  %v4725 = vadd.f32 0.0, %v4724
  %v4726 = vpop.f32.mrb[0].mxu0
  %v4727 = vpop.f32.mrb[0].mxu0
  %v4728 = vadd.f32 0.0, %v4727
  %v4729 = vpop.f32.mrb[0].mxu0
  %4730 = vdwg.mxu0
  %v4731 = vadd.f32 %v4623, %v4725
  %v4732 = vadd.f32 %v4624, %v4728
  %s4733 = scalar_lea.vmem %s3, 896
  %v4734 = vld [vmem:[%s4733] sm:$0xf]
  %v4735 = vld [vmem:[%s4733 + $0x4] sm:$0xf]
  %v4736 = vld [vmem:[%s4733 + $0x8] sm:$0xf]
  %v4737 = vld [vmem:[%s4733 + $0xc] sm:$0xf]
  %v4738 = vld [vmem:[%s4733 + $0x10] sm:$0xf]
  %v4739 = vld [vmem:[%s4733 + $0x14] sm:$0xf]
  %v4740 = vld [vmem:[%s4733 + $0x18] sm:$0xf]
  %v4741 = vld [vmem:[%s4733 + $0x1c] sm:$0xf]
  %v4742 = vld [vmem:[%s4733 + $0x20] sm:$0xf]
  %v4743 = vld [vmem:[%s4733 + $0x24] sm:$0xf]
  %v4744 = vld [vmem:[%s4733 + $0x28] sm:$0xf]
  %v4745 = vld [vmem:[%s4733 + $0x2c] sm:$0xf]
  %v4746 = vld [vmem:[%s4733 + $0x30] sm:$0xf]
  %v4747 = vld [vmem:[%s4733 + $0x34] sm:$0xf]
  %v4748 = vld [vmem:[%s4733 + $0x38] sm:$0xf]
  %v4749 = vld [vmem:[%s4733 + $0x3c] sm:$0xf]
  %v4766 = vunpack.c.l.b16 %v4734
  %v4767 = vunpack.c.l.b16 %v4735
  %v4768 = vunpack.c.l.b16 %v4736
  %v4769 = vunpack.c.l.b16 %v4737
  %v4770 = vunpack.c.l.b16 %v4738
  %v4771 = vunpack.c.l.b16 %v4739
  %v4772 = vunpack.c.l.b16 %v4740
  %v4773 = vunpack.c.l.b16 %v4741
  %v4774 = vunpack.c.l.b16 %v4742
  %v4775 = vunpack.c.l.b16 %v4743
  %v4776 = vunpack.c.l.b16 %v4744
  %v4777 = vunpack.c.l.b16 %v4745
  %v4778 = vunpack.c.l.b16 %v4746
  %v4779 = vunpack.c.l.b16 %v4747
  %v4780 = vunpack.c.l.b16 %v4748
  %v4781 = vunpack.c.l.b16 %v4749
  %v4782 = vpack.c.b16 %v4767, %v4766
  %v4783 = vpack.c.b16 %v4769, %v4768
  %v4784 = vpack.c.b16 %v4771, %v4770
  %v4785 = vpack.c.b16 %v4773, %v4772
  %v4786 = vpack.c.b16 %v4775, %v4774
  %v4787 = vpack.c.b16 %v4777, %v4776
  %v4788 = vpack.c.b16 %v4779, %v4778
  %v4789 = vpack.c.b16 %v4781, %v4780
  %4798 = vmatprep.subr.bf16.mxu0 0
  %4799 = vmatpush1.bf16.msra.mxu0 %v4782
  %4800 = vmatprep.subr.bf16.mxu0 0
  %4801 = vmatpush1.bf16.msra.mxu0 %v4783
  %4802 = vmatprep.subr.bf16.mxu0 0
  %4803 = vmatpush1.bf16.msra.mxu0 %v4784
  %4804 = vmatprep.subr.bf16.mxu0 0
  %4805 = vmatpush1.bf16.msra.mxu0 %v4785
  %4806 = vmatprep.subr.bf16.mxu0 0
  %4807 = vmatpush1.bf16.msra.mxu0 %v4786
  %4808 = vmatprep.subr.bf16.mxu0 0
  %4809 = vmatpush1.bf16.msra.mxu0 %v4787
  %4810 = vmatprep.subr.bf16.mxu0 0
  %4811 = vmatpush1.bf16.msra.mxu0 %v4788
  %4812 = vmatprep.subr.bf16.mxu0 0
  %4813 = vmatpush1.bf16.msra.mxu0 %v4789
  %4814 = vmatprep.subr.bf16.mxu0 0
  %4815 = vmatpush1.bf16.msra.mxu0 0
  %4816 = vmatprep.subr.bf16.mxu0 0
  %4817 = vmatpush1.bf16.msra.mxu0 0
  %4818 = vmatprep.subr.bf16.mxu0 0
  %4819 = vmatpush1.bf16.msra.mxu0 0
  %4820 = vmatprep.subr.bf16.mxu0 0
  %4821 = vmatpush1.bf16.msra.mxu0 0
  %4822 = vmatprep.subr.bf16.mxu0 0
  %4823 = vmatpush1.bf16.msra.mxu0 0
  %4824 = vmatprep.subr.bf16.mxu0 0
  %4825 = vmatpush1.bf16.msra.mxu0 0
  %4826 = vmatprep.subr.bf16.mxu0 0
  %4827 = vmatpush1.bf16.msra.mxu0 0
  %4828 = vmatprep.subr.bf16.mxu0 0
  %4829 = vmatpush1.bf16.msra.mxu0 0
  %4830 = vmatprep.mubr.bf16.mxu0 0
  %4831 = vmatmul.mubr.bf16.gmra.mrb[0].mxu0 %v3215
  %v4832 = vpop.f32.mrb[0].mxu0
  %v4833 = vadd.f32 0.0, %v4832
  %v4834 = vpop.f32.mrb[0].mxu0
  %v4835 = vpop.f32.mrb[0].mxu0
  %v4836 = vadd.f32 0.0, %v4835
  %v4837 = vpop.f32.mrb[0].mxu0
  %4838 = vdwg.mxu0
  %v4839 = vadd.f32 %v4731, %v4833
  %v4840 = vadd.f32 %v4732, %v4836
  %s4841 = scalar_lea.vmem %s3, 960
  %v4842 = vld [vmem:[%s4841] sm:$0xf]
  %v4843 = vld [vmem:[%s4841 + $0x4] sm:$0xf]
  %v4844 = vld [vmem:[%s4841 + $0x8] sm:$0xf]
  %v4845 = vld [vmem:[%s4841 + $0xc] sm:$0xf]
  %v4846 = vld [vmem:[%s4841 + $0x10] sm:$0xf]
  %v4847 = vld [vmem:[%s4841 + $0x14] sm:$0xf]
  %v4848 = vld [vmem:[%s4841 + $0x18] sm:$0xf]
  %v4849 = vld [vmem:[%s4841 + $0x1c] sm:$0xf]
  %v4850 = vld [vmem:[%s4841 + $0x20] sm:$0xf]
  %v4851 = vld [vmem:[%s4841 + $0x24] sm:$0xf]
  %v4852 = vld [vmem:[%s4841 + $0x28] sm:$0xf]
  %v4853 = vld [vmem:[%s4841 + $0x2c] sm:$0xf]
  %v4854 = vld [vmem:[%s4841 + $0x30] sm:$0xf]
  %v4855 = vld [vmem:[%s4841 + $0x34] sm:$0xf]
  %v4856 = vld [vmem:[%s4841 + $0x38] sm:$0xf]
  %v4857 = vld [vmem:[%s4841 + $0x3c] sm:$0xf]
  %v4874 = vunpack.c.l.b16 %v4842
  %v4875 = vunpack.c.l.b16 %v4843
  %v4876 = vunpack.c.l.b16 %v4844
  %v4877 = vunpack.c.l.b16 %v4845
  %v4878 = vunpack.c.l.b16 %v4846
  %v4879 = vunpack.c.l.b16 %v4847
  %v4880 = vunpack.c.l.b16 %v4848
  %v4881 = vunpack.c.l.b16 %v4849
  %v4882 = vunpack.c.l.b16 %v4850
  %v4883 = vunpack.c.l.b16 %v4851
  %v4884 = vunpack.c.l.b16 %v4852
  %v4885 = vunpack.c.l.b16 %v4853
  %v4886 = vunpack.c.l.b16 %v4854
  %v4887 = vunpack.c.l.b16 %v4855
  %v4888 = vunpack.c.l.b16 %v4856
  %v4889 = vunpack.c.l.b16 %v4857
  %v4890 = vpack.c.b16 %v4875, %v4874
  %v4891 = vpack.c.b16 %v4877, %v4876
  %v4892 = vpack.c.b16 %v4879, %v4878
  %v4893 = vpack.c.b16 %v4881, %v4880
  %v4894 = vpack.c.b16 %v4883, %v4882
  %v4895 = vpack.c.b16 %v4885, %v4884
  %v4896 = vpack.c.b16 %v4887, %v4886
  %v4897 = vpack.c.b16 %v4889, %v4888
  %4906 = vmatprep.subr.bf16.mxu0 0
  %4907 = vmatpush1.bf16.msra.mxu0 %v4890
  %4908 = vmatprep.subr.bf16.mxu0 0
  %4909 = vmatpush1.bf16.msra.mxu0 %v4891
  %4910 = vmatprep.subr.bf16.mxu0 0
  %4911 = vmatpush1.bf16.msra.mxu0 %v4892
  %4912 = vmatprep.subr.bf16.mxu0 0
  %4913 = vmatpush1.bf16.msra.mxu0 %v4893
  %4914 = vmatprep.subr.bf16.mxu0 0
  %4915 = vmatpush1.bf16.msra.mxu0 %v4894
  %4916 = vmatprep.subr.bf16.mxu0 0
  %4917 = vmatpush1.bf16.msra.mxu0 %v4895
  %4918 = vmatprep.subr.bf16.mxu0 0
  %4919 = vmatpush1.bf16.msra.mxu0 %v4896
  %4920 = vmatprep.subr.bf16.mxu0 0
  %4921 = vmatpush1.bf16.msra.mxu0 %v4897
  %4922 = vmatprep.subr.bf16.mxu0 0
  %4923 = vmatpush1.bf16.msra.mxu0 0
  %4924 = vmatprep.subr.bf16.mxu0 0
  %4925 = vmatpush1.bf16.msra.mxu0 0
  %4926 = vmatprep.subr.bf16.mxu0 0
  %4927 = vmatpush1.bf16.msra.mxu0 0
  %4928 = vmatprep.subr.bf16.mxu0 0
  %4929 = vmatpush1.bf16.msra.mxu0 0
  %4930 = vmatprep.subr.bf16.mxu0 0
  %4931 = vmatpush1.bf16.msra.mxu0 0
  %4932 = vmatprep.subr.bf16.mxu0 0
  %4933 = vmatpush1.bf16.msra.mxu0 0
  %4934 = vmatprep.subr.bf16.mxu0 0
  %4935 = vmatpush1.bf16.msra.mxu0 0
  %4936 = vmatprep.subr.bf16.mxu0 0
  %4937 = vmatpush1.bf16.msra.mxu0 0
  %4938 = vmatprep.mubr.bf16.mxu0 0
  %4939 = vmatmul.mubr.bf16.gmra.mrb[0].mxu0 %v3216
  %v4940 = vpop.f32.mrb[0].mxu0
  %v4941 = vadd.f32 0.0, %v4940
  %v4942 = vpop.f32.mrb[0].mxu0
  %v4943 = vpop.f32.mrb[0].mxu0
  %v4944 = vadd.f32 0.0, %v4943
  %v4945 = vpop.f32.mrb[0].mxu0
  %4946 = vdwg.mxu0
  %v4947 = vadd.f32 %v4839, %v4941
  %v4948 = vadd.f32 %v4840, %v4944
  %s4949 = scalar_lea.vmem %s3, 1024
  %v4950 = vld [vmem:[%s4949] sm:$0xf]
  %v4951 = vld [vmem:[%s4949 + $0x4] sm:$0xf]
  %v4952 = vld [vmem:[%s4949 + $0x8] sm:$0xf]
  %v4953 = vld [vmem:[%s4949 + $0xc] sm:$0xf]
  %v4954 = vld [vmem:[%s4949 + $0x10] sm:$0xf]
  %v4955 = vld [vmem:[%s4949 + $0x14] sm:$0xf]
  %v4956 = vld [vmem:[%s4949 + $0x18] sm:$0xf]
  %v4957 = vld [vmem:[%s4949 + $0x1c] sm:$0xf]
  %v4958 = vld [vmem:[%s4949 + $0x20] sm:$0xf]
  %v4959 = vld [vmem:[%s4949 + $0x24] sm:$0xf]
  %v4960 = vld [vmem:[%s4949 + $0x28] sm:$0xf]
  %v4961 = vld [vmem:[%s4949 + $0x2c] sm:$0xf]
  %v4962 = vld [vmem:[%s4949 + $0x30] sm:$0xf]
  %v4963 = vld [vmem:[%s4949 + $0x34] sm:$0xf]
  %v4964 = vld [vmem:[%s4949 + $0x38] sm:$0xf]
  %v4965 = vld [vmem:[%s4949 + $0x3c] sm:$0xf]
  %v4982 = vunpack.c.l.b16 %v4950
  %v4983 = vunpack.c.l.b16 %v4951
  %v4984 = vunpack.c.l.b16 %v4952
  %v4985 = vunpack.c.l.b16 %v4953
  %v4986 = vunpack.c.l.b16 %v4954
  %v4987 = vunpack.c.l.b16 %v4955
  %v4988 = vunpack.c.l.b16 %v4956
  %v4989 = vunpack.c.l.b16 %v4957
  %v4990 = vunpack.c.l.b16 %v4958
  %v4991 = vunpack.c.l.b16 %v4959
  %v4992 = vunpack.c.l.b16 %v4960
  %v4993 = vunpack.c.l.b16 %v4961
  %v4994 = vunpack.c.l.b16 %v4962
  %v4995 = vunpack.c.l.b16 %v4963
  %v4996 = vunpack.c.l.b16 %v4964
  %v4997 = vunpack.c.l.b16 %v4965
  %v4998 = vpack.c.b16 %v4983, %v4982
  %v4999 = vpack.c.b16 %v4985, %v4984
  %v5000 = vpack.c.b16 %v4987, %v4986
  %v5001 = vpack.c.b16 %v4989, %v4988
  %v5002 = vpack.c.b16 %v4991, %v4990
  %v5003 = vpack.c.b16 %v4993, %v4992
  %v5004 = vpack.c.b16 %v4995, %v4994
  %v5005 = vpack.c.b16 %v4997, %v4996
  %5014 = vmatprep.subr.bf16.mxu0 0
  %5015 = vmatpush1.bf16.msra.mxu0 %v4998
  %5016 = vmatprep.subr.bf16.mxu0 0
  %5017 = vmatpush1.bf16.msra.mxu0 %v4999
  %5018 = vmatprep.subr.bf16.mxu0 0
  %5019 = vmatpush1.bf16.msra.mxu0 %v5000
  %5020 = vmatprep.subr.bf16.mxu0 0
  %5021 = vmatpush1.bf16.msra.mxu0 %v5001
  %5022 = vmatprep.subr.bf16.mxu0 0
  %5023 = vmatpush1.bf16.msra.mxu0 %v5002
  %5024 = vmatprep.subr.bf16.mxu0 0
  %5025 = vmatpush1.bf16.msra.mxu0 %v5003
  %5026 = vmatprep.subr.bf16.mxu0 0
  %5027 = vmatpush1.bf16.msra.mxu0 %v5004
  %5028 = vmatprep.subr.bf16.mxu0 0
  %5029 = vmatpush1.bf16.msra.mxu0 %v5005
  %5030 = vmatprep.subr.bf16.mxu0 0
  %5031 = vmatpush1.bf16.msra.mxu0 0
  %5032 = vmatprep.subr.bf16.mxu0 0
  %5033 = vmatpush1.bf16.msra.mxu0 0
  %5034 = vmatprep.subr.bf16.mxu0 0
  %5035 = vmatpush1.bf16.msra.mxu0 0
  %5036 = vmatprep.subr.bf16.mxu0 0
  %5037 = vmatpush1.bf16.msra.mxu0 0
  %5038 = vmatprep.subr.bf16.mxu0 0
  %5039 = vmatpush1.bf16.msra.mxu0 0
  %5040 = vmatprep.subr.bf16.mxu0 0
  %5041 = vmatpush1.bf16.msra.mxu0 0
  %5042 = vmatprep.subr.bf16.mxu0 0
  %5043 = vmatpush1.bf16.msra.mxu0 0
  %5044 = vmatprep.subr.bf16.mxu0 0
  %5045 = vmatpush1.bf16.msra.mxu0 0
  %5046 = vmatprep.mubr.bf16.mxu0 0
  %5047 = vmatmul.mubr.bf16.gmra.mrb[0].mxu0 %v3217
  %v5048 = vpop.f32.mrb[0].mxu0
  %v5049 = vadd.f32 0.0, %v5048
  %v5050 = vpop.f32.mrb[0].mxu0
  %v5051 = vpop.f32.mrb[0].mxu0
  %v5052 = vadd.f32 0.0, %v5051
  %v5053 = vpop.f32.mrb[0].mxu0
  %5054 = vdwg.mxu0
  %v5055 = vadd.f32 %v4947, %v5049
  %v5056 = vadd.f32 %v4948, %v5052
  %s5057 = scalar_lea.vmem %s3, 1088
  %v5058 = vld [vmem:[%s5057] sm:$0xf]
  %v5059 = vld [vmem:[%s5057 + $0x4] sm:$0xf]
  %v5060 = vld [vmem:[%s5057 + $0x8] sm:$0xf]
  %v5061 = vld [vmem:[%s5057 + $0xc] sm:$0xf]
  %v5062 = vld [vmem:[%s5057 + $0x10] sm:$0xf]
  %v5063 = vld [vmem:[%s5057 + $0x14] sm:$0xf]
  %v5064 = vld [vmem:[%s5057 + $0x18] sm:$0xf]
  %v5065 = vld [vmem:[%s5057 + $0x1c] sm:$0xf]
  %v5066 = vld [vmem:[%s5057 + $0x20] sm:$0xf]
  %v5067 = vld [vmem:[%s5057 + $0x24] sm:$0xf]
  %v5068 = vld [vmem:[%s5057 + $0x28] sm:$0xf]
  %v5069 = vld [vmem:[%s5057 + $0x2c] sm:$0xf]
  %v5070 = vld [vmem:[%s5057 + $0x30] sm:$0xf]
  %v5071 = vld [vmem:[%s5057 + $0x34] sm:$0xf]
  %v5072 = vld [vmem:[%s5057 + $0x38] sm:$0xf]
  %v5073 = vld [vmem:[%s5057 + $0x3c] sm:$0xf]
  %v5090 = vunpack.c.l.b16 %v5058
  %v5091 = vunpack.c.l.b16 %v5059
  %v5092 = vunpack.c.l.b16 %v5060
  %v5093 = vunpack.c.l.b16 %v5061
  %v5094 = vunpack.c.l.b16 %v5062
  %v5095 = vunpack.c.l.b16 %v5063
  %v5096 = vunpack.c.l.b16 %v5064
  %v5097 = vunpack.c.l.b16 %v5065
  %v5098 = vunpack.c.l.b16 %v5066
  %v5099 = vunpack.c.l.b16 %v5067
  %v5100 = vunpack.c.l.b16 %v5068
  %v5101 = vunpack.c.l.b16 %v5069
  %v5102 = vunpack.c.l.b16 %v5070
  %v5103 = vunpack.c.l.b16 %v5071
  %v5104 = vunpack.c.l.b16 %v5072
  %v5105 = vunpack.c.l.b16 %v5073
  %v5106 = vpack.c.b16 %v5091, %v5090
  %v5107 = vpack.c.b16 %v5093, %v5092
  %v5108 = vpack.c.b16 %v5095, %v5094
  %v5109 = vpack.c.b16 %v5097, %v5096
  %v5110 = vpack.c.b16 %v5099, %v5098
  %v5111 = vpack.c.b16 %v5101, %v5100
  %v5112 = vpack.c.b16 %v5103, %v5102
  %v5113 = vpack.c.b16 %v5105, %v5104
  %5122 = vmatprep.subr.bf16.mxu0 0
  %5123 = vmatpush1.bf16.msra.mxu0 %v5106
  %5124 = vmatprep.subr.bf16.mxu0 0
  %5125 = vmatpush1.bf16.msra.mxu0 %v5107
  %5126 = vmatprep.subr.bf16.mxu0 0
  %5127 = vmatpush1.bf16.msra.mxu0 %v5108
  %5128 = vmatprep.subr.bf16.mxu0 0
  %5129 = vmatpush1.bf16.msra.mxu0 %v5109
  %5130 = vmatprep.subr.bf16.mxu0 0
  %5131 = vmatpush1.bf16.msra.mxu0 %v5110
  %5132 = vmatprep.subr.bf16.mxu0 0
  %5133 = vmatpush1.bf16.msra.mxu0 %v5111
  %5134 = vmatprep.subr.bf16.mxu0 0
  %5135 = vmatpush1.bf16.msra.mxu0 %v5112
  %5136 = vmatprep.subr.bf16.mxu0 0
  %5137 = vmatpush1.bf16.msra.mxu0 %v5113
  %5138 = vmatprep.subr.bf16.mxu0 0
  %5139 = vmatpush1.bf16.msra.mxu0 0
  %5140 = vmatprep.subr.bf16.mxu0 0
  %5141 = vmatpush1.bf16.msra.mxu0 0
  %5142 = vmatprep.subr.bf16.mxu0 0
  %5143 = vmatpush1.bf16.msra.mxu0 0
  %5144 = vmatprep.subr.bf16.mxu0 0
  %5145 = vmatpush1.bf16.msra.mxu0 0
  %5146 = vmatprep.subr.bf16.mxu0 0
  %5147 = vmatpush1.bf16.msra.mxu0 0
  %5148 = vmatprep.subr.bf16.mxu0 0
  %5149 = vmatpush1.bf16.msra.mxu0 0
  %5150 = vmatprep.subr.bf16.mxu0 0
  %5151 = vmatpush1.bf16.msra.mxu0 0
  %5152 = vmatprep.subr.bf16.mxu0 0
  %5153 = vmatpush1.bf16.msra.mxu0 0
  %5154 = vmatprep.mubr.bf16.mxu0 0
  %5155 = vmatmul.mubr.bf16.gmra.mrb[0].mxu0 %v3218
  %v5156 = vpop.f32.mrb[0].mxu0
  %v5157 = vadd.f32 0.0, %v5156
  %v5158 = vpop.f32.mrb[0].mxu0
  %v5159 = vpop.f32.mrb[0].mxu0
  %v5160 = vadd.f32 0.0, %v5159
  %v5161 = vpop.f32.mrb[0].mxu0
  %5162 = vdwg.mxu0
  %v5163 = vadd.f32 %v5055, %v5157
  %v5164 = vadd.f32 %v5056, %v5160
  %s5165 = scalar_lea.vmem %s3, 1152
  %v5166 = vld [vmem:[%s5165] sm:$0xf]
  %v5167 = vld [vmem:[%s5165 + $0x4] sm:$0xf]
  %v5168 = vld [vmem:[%s5165 + $0x8] sm:$0xf]
  %v5169 = vld [vmem:[%s5165 + $0xc] sm:$0xf]
  %v5170 = vld [vmem:[%s5165 + $0x10] sm:$0xf]
  %v5171 = vld [vmem:[%s5165 + $0x14] sm:$0xf]
  %v5172 = vld [vmem:[%s5165 + $0x18] sm:$0xf]
  %v5173 = vld [vmem:[%s5165 + $0x1c] sm:$0xf]
  %v5174 = vld [vmem:[%s5165 + $0x20] sm:$0xf]
  %v5175 = vld [vmem:[%s5165 + $0x24] sm:$0xf]
  %v5176 = vld [vmem:[%s5165 + $0x28] sm:$0xf]
  %v5177 = vld [vmem:[%s5165 + $0x2c] sm:$0xf]
  %v5178 = vld [vmem:[%s5165 + $0x30] sm:$0xf]
  %v5179 = vld [vmem:[%s5165 + $0x34] sm:$0xf]
  %v5180 = vld [vmem:[%s5165 + $0x38] sm:$0xf]
  %v5181 = vld [vmem:[%s5165 + $0x3c] sm:$0xf]
  %v5198 = vunpack.c.l.b16 %v5166
  %v5199 = vunpack.c.l.b16 %v5167
  %v5200 = vunpack.c.l.b16 %v5168
  %v5201 = vunpack.c.l.b16 %v5169
  %v5202 = vunpack.c.l.b16 %v5170
  %v5203 = vunpack.c.l.b16 %v5171
  %v5204 = vunpack.c.l.b16 %v5172
  %v5205 = vunpack.c.l.b16 %v5173
  %v5206 = vunpack.c.l.b16 %v5174
  %v5207 = vunpack.c.l.b16 %v5175
  %v5208 = vunpack.c.l.b16 %v5176
  %v5209 = vunpack.c.l.b16 %v5177
  %v5210 = vunpack.c.l.b16 %v5178
  %v5211 = vunpack.c.l.b16 %v5179
  %v5212 = vunpack.c.l.b16 %v5180
  %v5213 = vunpack.c.l.b16 %v5181
  %v5214 = vpack.c.b16 %v5199, %v5198
  %v5215 = vpack.c.b16 %v5201, %v5200
  %v5216 = vpack.c.b16 %v5203, %v5202
  %v5217 = vpack.c.b16 %v5205, %v5204
  %v5218 = vpack.c.b16 %v5207, %v5206
  %v5219 = vpack.c.b16 %v5209, %v5208
  %v5220 = vpack.c.b16 %v5211, %v5210
  %v5221 = vpack.c.b16 %v5213, %v5212
  %5230 = vmatprep.subr.bf16.mxu0 0
  %5231 = vmatpush1.bf16.msra.mxu0 %v5214
  %5232 = vmatprep.subr.bf16.mxu0 0
  %5233 = vmatpush1.bf16.msra.mxu0 %v5215
  %5234 = vmatprep.subr.bf16.mxu0 0
  %5235 = vmatpush1.bf16.msra.mxu0 %v5216
  %5236 = vmatprep.subr.bf16.mxu0 0
  %5237 = vmatpush1.bf16.msra.mxu0 %v5217
  %5238 = vmatprep.subr.bf16.mxu0 0
  %5239 = vmatpush1.bf16.msra.mxu0 %v5218
  %5240 = vmatprep.subr.bf16.mxu0 0
  %5241 = vmatpush1.bf16.msra.mxu0 %v5219
  %5242 = vmatprep.subr.bf16.mxu0 0
  %5243 = vmatpush1.bf16.msra.mxu0 %v5220
  %5244 = vmatprep.subr.bf16.mxu0 0
  %5245 = vmatpush1.bf16.msra.mxu0 %v5221
  %5246 = vmatprep.subr.bf16.mxu0 0
  %5247 = vmatpush1.bf16.msra.mxu0 0
  %5248 = vmatprep.subr.bf16.mxu0 0
  %5249 = vmatpush1.bf16.msra.mxu0 0
  %5250 = vmatprep.subr.bf16.mxu0 0
  %5251 = vmatpush1.bf16.msra.mxu0 0
  %5252 = vmatprep.subr.bf16.mxu0 0
  %5253 = vmatpush1.bf16.msra.mxu0 0
  %5254 = vmatprep.subr.bf16.mxu0 0
  %5255 = vmatpush1.bf16.msra.mxu0 0
  %5256 = vmatprep.subr.bf16.mxu0 0
  %5257 = vmatpush1.bf16.msra.mxu0 0
  %5258 = vmatprep.subr.bf16.mxu0 0
  %5259 = vmatpush1.bf16.msra.mxu0 0
  %5260 = vmatprep.subr.bf16.mxu0 0
  %5261 = vmatpush1.bf16.msra.mxu0 0
  %5262 = vmatprep.mubr.bf16.mxu0 0
  %5263 = vmatmul.mubr.bf16.gmra.mrb[0].mxu0 %v3219
  %v5264 = vpop.f32.mrb[0].mxu0
  %v5265 = vadd.f32 0.0, %v5264
  %v5266 = vpop.f32.mrb[0].mxu0
  %v5267 = vpop.f32.mrb[0].mxu0
  %v5268 = vadd.f32 0.0, %v5267
  %v5269 = vpop.f32.mrb[0].mxu0
  %5270 = vdwg.mxu0
  %v5271 = vadd.f32 %v5163, %v5265
  %v5272 = vadd.f32 %v5164, %v5268
  %s5273 = scalar_lea.vmem %s3, 1216
  %v5274 = vld [vmem:[%s5273] sm:$0xf]
  %v5275 = vld [vmem:[%s5273 + $0x4] sm:$0xf]
  %v5276 = vld [vmem:[%s5273 + $0x8] sm:$0xf]
  %v5277 = vld [vmem:[%s5273 + $0xc] sm:$0xf]
  %v5278 = vld [vmem:[%s5273 + $0x10] sm:$0xf]
  %v5279 = vld [vmem:[%s5273 + $0x14] sm:$0xf]
  %v5280 = vld [vmem:[%s5273 + $0x18] sm:$0xf]
  %v5281 = vld [vmem:[%s5273 + $0x1c] sm:$0xf]
  %v5282 = vld [vmem:[%s5273 + $0x20] sm:$0xf]
  %v5283 = vld [vmem:[%s5273 + $0x24] sm:$0xf]
  %v5284 = vld [vmem:[%s5273 + $0x28] sm:$0xf]
  %v5285 = vld [vmem:[%s5273 + $0x2c] sm:$0xf]
  %v5286 = vld [vmem:[%s5273 + $0x30] sm:$0xf]
  %v5287 = vld [vmem:[%s5273 + $0x34] sm:$0xf]
  %v5288 = vld [vmem:[%s5273 + $0x38] sm:$0xf]
  %v5289 = vld [vmem:[%s5273 + $0x3c] sm:$0xf]
  %v5306 = vunpack.c.l.b16 %v5274
  %v5307 = vunpack.c.l.b16 %v5275
  %v5308 = vunpack.c.l.b16 %v5276
  %v5309 = vunpack.c.l.b16 %v5277
  %v5310 = vunpack.c.l.b16 %v5278
  %v5311 = vunpack.c.l.b16 %v5279
  %v5312 = vunpack.c.l.b16 %v5280
  %v5313 = vunpack.c.l.b16 %v5281
  %v5314 = vunpack.c.l.b16 %v5282
  %v5315 = vunpack.c.l.b16 %v5283
  %v5316 = vunpack.c.l.b16 %v5284
  %v5317 = vunpack.c.l.b16 %v5285
  %v5318 = vunpack.c.l.b16 %v5286
  %v5319 = vunpack.c.l.b16 %v5287
  %v5320 = vunpack.c.l.b16 %v5288
  %v5321 = vunpack.c.l.b16 %v5289
  %v5322 = vpack.c.b16 %v5307, %v5306
  %v5323 = vpack.c.b16 %v5309, %v5308
  %v5324 = vpack.c.b16 %v5311, %v5310
  %v5325 = vpack.c.b16 %v5313, %v5312
  %v5326 = vpack.c.b16 %v5315, %v5314
  %v5327 = vpack.c.b16 %v5317, %v5316
  %v5328 = vpack.c.b16 %v5319, %v5318
  %v5329 = vpack.c.b16 %v5321, %v5320
  %5338 = vmatprep.subr.bf16.mxu0 0
  %5339 = vmatpush1.bf16.msra.mxu0 %v5322
  %5340 = vmatprep.subr.bf16.mxu0 0
  %5341 = vmatpush1.bf16.msra.mxu0 %v5323
  %5342 = vmatprep.subr.bf16.mxu0 0
  %5343 = vmatpush1.bf16.msra.mxu0 %v5324
  %5344 = vmatprep.subr.bf16.mxu0 0
  %5345 = vmatpush1.bf16.msra.mxu0 %v5325
  %5346 = vmatprep.subr.bf16.mxu0 0
  %5347 = vmatpush1.bf16.msra.mxu0 %v5326
  %5348 = vmatprep.subr.bf16.mxu0 0
  %5349 = vmatpush1.bf16.msra.mxu0 %v5327
  %5350 = vmatprep.subr.bf16.mxu0 0
  %5351 = vmatpush1.bf16.msra.mxu0 %v5328
  %5352 = vmatprep.subr.bf16.mxu0 0
  %5353 = vmatpush1.bf16.msra.mxu0 %v5329
  %5354 = vmatprep.subr.bf16.mxu0 0
  %5355 = vmatpush1.bf16.msra.mxu0 0
  %5356 = vmatprep.subr.bf16.mxu0 0
  %5357 = vmatpush1.bf16.msra.mxu0 0
  %5358 = vmatprep.subr.bf16.mxu0 0
  %5359 = vmatpush1.bf16.msra.mxu0 0
  %5360 = vmatprep.subr.bf16.mxu0 0
  %5361 = vmatpush1.bf16.msra.mxu0 0
  %5362 = vmatprep.subr.bf16.mxu0 0
  %5363 = vmatpush1.bf16.msra.mxu0 0
  %5364 = vmatprep.subr.bf16.mxu0 0
  %5365 = vmatpush1.bf16.msra.mxu0 0
  %5366 = vmatprep.subr.bf16.mxu0 0
  %5367 = vmatpush1.bf16.msra.mxu0 0
  %5368 = vmatprep.subr.bf16.mxu0 0
  %5369 = vmatpush1.bf16.msra.mxu0 0
  %5370 = vmatprep.mubr.bf16.mxu0 0
  %5371 = vmatmul.mubr.bf16.gmra.mrb[0].mxu0 %v3220
  %v5372 = vpop.f32.mrb[0].mxu0
  %v5373 = vadd.f32 0.0, %v5372
  %v5374 = vpop.f32.mrb[0].mxu0
  %v5375 = vpop.f32.mrb[0].mxu0
  %v5376 = vadd.f32 0.0, %v5375
  %v5377 = vpop.f32.mrb[0].mxu0
  %5378 = vdwg.mxu0
  %v5379 = vadd.f32 %v5271, %v5373
  %v5380 = vadd.f32 %v5272, %v5376
  %s5381 = scalar_lea.vmem %s3, 1280
  %v5382 = vld [vmem:[%s5381] sm:$0xf]
  %v5383 = vld [vmem:[%s5381 + $0x4] sm:$0xf]
  %v5384 = vld [vmem:[%s5381 + $0x8] sm:$0xf]
  %v5385 = vld [vmem:[%s5381 + $0xc] sm:$0xf]
  %v5386 = vld [vmem:[%s5381 + $0x10] sm:$0xf]
  %v5387 = vld [vmem:[%s5381 + $0x14] sm:$0xf]
  %v5388 = vld [vmem:[%s5381 + $0x18] sm:$0xf]
  %v5389 = vld [vmem:[%s5381 + $0x1c] sm:$0xf]
  %v5390 = vld [vmem:[%s5381 + $0x20] sm:$0xf]
  %v5391 = vld [vmem:[%s5381 + $0x24] sm:$0xf]
  %v5392 = vld [vmem:[%s5381 + $0x28] sm:$0xf]
  %v5393 = vld [vmem:[%s5381 + $0x2c] sm:$0xf]
  %v5394 = vld [vmem:[%s5381 + $0x30] sm:$0xf]
  %v5395 = vld [vmem:[%s5381 + $0x34] sm:$0xf]
  %v5396 = vld [vmem:[%s5381 + $0x38] sm:$0xf]
  %v5397 = vld [vmem:[%s5381 + $0x3c] sm:$0xf]
  %v5414 = vunpack.c.l.b16 %v5382
  %v5415 = vunpack.c.l.b16 %v5383
  %v5416 = vunpack.c.l.b16 %v5384
  %v5417 = vunpack.c.l.b16 %v5385
  %v5418 = vunpack.c.l.b16 %v5386
  %v5419 = vunpack.c.l.b16 %v5387
  %v5420 = vunpack.c.l.b16 %v5388
  %v5421 = vunpack.c.l.b16 %v5389
  %v5422 = vunpack.c.l.b16 %v5390
  %v5423 = vunpack.c.l.b16 %v5391
  %v5424 = vunpack.c.l.b16 %v5392
  %v5425 = vunpack.c.l.b16 %v5393
  %v5426 = vunpack.c.l.b16 %v5394
  %v5427 = vunpack.c.l.b16 %v5395
  %v5428 = vunpack.c.l.b16 %v5396
  %v5429 = vunpack.c.l.b16 %v5397
  %v5430 = vpack.c.b16 %v5415, %v5414
  %v5431 = vpack.c.b16 %v5417, %v5416
  %v5432 = vpack.c.b16 %v5419, %v5418
  %v5433 = vpack.c.b16 %v5421, %v5420
  %v5434 = vpack.c.b16 %v5423, %v5422
  %v5435 = vpack.c.b16 %v5425, %v5424
  %v5436 = vpack.c.b16 %v5427, %v5426
  %v5437 = vpack.c.b16 %v5429, %v5428
  %5446 = vmatprep.subr.bf16.mxu0 0
  %5447 = vmatpush1.bf16.msra.mxu0 %v5430
  %5448 = vmatprep.subr.bf16.mxu0 0
  %5449 = vmatpush1.bf16.msra.mxu0 %v5431
  %5450 = vmatprep.subr.bf16.mxu0 0
  %5451 = vmatpush1.bf16.msra.mxu0 %v5432
  %5452 = vmatprep.subr.bf16.mxu0 0
  %5453 = vmatpush1.bf16.msra.mxu0 %v5433
  %5454 = vmatprep.subr.bf16.mxu0 0
  %5455 = vmatpush1.bf16.msra.mxu0 %v5434
  %5456 = vmatprep.subr.bf16.mxu0 0
  %5457 = vmatpush1.bf16.msra.mxu0 %v5435
  %5458 = vmatprep.subr.bf16.mxu0 0
  %5459 = vmatpush1.bf16.msra.mxu0 %v5436
  %5460 = vmatprep.subr.bf16.mxu0 0
  %5461 = vmatpush1.bf16.msra.mxu0 %v5437
  %5462 = vmatprep.subr.bf16.mxu0 0
  %5463 = vmatpush1.bf16.msra.mxu0 0
  %5464 = vmatprep.subr.bf16.mxu0 0
  %5465 = vmatpush1.bf16.msra.mxu0 0
  %5466 = vmatprep.subr.bf16.mxu0 0
  %5467 = vmatpush1.bf16.msra.mxu0 0
  %5468 = vmatprep.subr.bf16.mxu0 0
  %5469 = vmatpush1.bf16.msra.mxu0 0
  %5470 = vmatprep.subr.bf16.mxu0 0
  %5471 = vmatpush1.bf16.msra.mxu0 0
  %5472 = vmatprep.subr.bf16.mxu0 0
  %5473 = vmatpush1.bf16.msra.mxu0 0
  %5474 = vmatprep.subr.bf16.mxu0 0
  %5475 = vmatpush1.bf16.msra.mxu0 0
  %5476 = vmatprep.subr.bf16.mxu0 0
  %5477 = vmatpush1.bf16.msra.mxu0 0
  %5478 = vmatprep.mubr.bf16.mxu0 0
  %5479 = vmatmul.mubr.bf16.gmra.mrb[0].mxu0 %v3221
  %v5480 = vpop.f32.mrb[0].mxu0
  %v5481 = vadd.f32 0.0, %v5480
  %v5482 = vpop.f32.mrb[0].mxu0
  %v5483 = vpop.f32.mrb[0].mxu0
  %v5484 = vadd.f32 0.0, %v5483
  %v5485 = vpop.f32.mrb[0].mxu0
  %5486 = vdwg.mxu0
  %v5487 = vadd.f32 %v5379, %v5481
  %v5488 = vadd.f32 %v5380, %v5484
  %s5489 = scalar_lea.vmem %s3, 1344
  %v5490 = vld [vmem:[%s5489] sm:$0xf]
  %v5491 = vld [vmem:[%s5489 + $0x4] sm:$0xf]
  %v5492 = vld [vmem:[%s5489 + $0x8] sm:$0xf]
  %v5493 = vld [vmem:[%s5489 + $0xc] sm:$0xf]
  %v5494 = vld [vmem:[%s5489 + $0x10] sm:$0xf]
  %v5495 = vld [vmem:[%s5489 + $0x14] sm:$0xf]
  %v5496 = vld [vmem:[%s5489 + $0x18] sm:$0xf]
  %v5497 = vld [vmem:[%s5489 + $0x1c] sm:$0xf]
  %v5498 = vld [vmem:[%s5489 + $0x20] sm:$0xf]
  %v5499 = vld [vmem:[%s5489 + $0x24] sm:$0xf]
  %v5500 = vld [vmem:[%s5489 + $0x28] sm:$0xf]
  %v5501 = vld [vmem:[%s5489 + $0x2c] sm:$0xf]
  %v5502 = vld [vmem:[%s5489 + $0x30] sm:$0xf]
  %v5503 = vld [vmem:[%s5489 + $0x34] sm:$0xf]
  %v5504 = vld [vmem:[%s5489 + $0x38] sm:$0xf]
  %v5505 = vld [vmem:[%s5489 + $0x3c] sm:$0xf]
  %v5522 = vunpack.c.l.b16 %v5490
  %v5523 = vunpack.c.l.b16 %v5491
  %v5524 = vunpack.c.l.b16 %v5492
  %v5525 = vunpack.c.l.b16 %v5493
  %v5526 = vunpack.c.l.b16 %v5494
  %v5527 = vunpack.c.l.b16 %v5495
  %v5528 = vunpack.c.l.b16 %v5496
  %v5529 = vunpack.c.l.b16 %v5497
  %v5530 = vunpack.c.l.b16 %v5498
  %v5531 = vunpack.c.l.b16 %v5499
  %v5532 = vunpack.c.l.b16 %v5500
  %v5533 = vunpack.c.l.b16 %v5501
  %v5534 = vunpack.c.l.b16 %v5502
  %v5535 = vunpack.c.l.b16 %v5503
  %v5536 = vunpack.c.l.b16 %v5504
  %v5537 = vunpack.c.l.b16 %v5505
  %v5538 = vpack.c.b16 %v5523, %v5522
  %v5539 = vpack.c.b16 %v5525, %v5524
  %v5540 = vpack.c.b16 %v5527, %v5526
  %v5541 = vpack.c.b16 %v5529, %v5528
  %v5542 = vpack.c.b16 %v5531, %v5530
  %v5543 = vpack.c.b16 %v5533, %v5532
  %v5544 = vpack.c.b16 %v5535, %v5534
  %v5545 = vpack.c.b16 %v5537, %v5536
  %5554 = vmatprep.subr.bf16.mxu0 0
  %5555 = vmatpush1.bf16.msra.mxu0 %v5538
  %5556 = vmatprep.subr.bf16.mxu0 0
  %5557 = vmatpush1.bf16.msra.mxu0 %v5539
  %5558 = vmatprep.subr.bf16.mxu0 0
  %5559 = vmatpush1.bf16.msra.mxu0 %v5540
  %5560 = vmatprep.subr.bf16.mxu0 0
  %5561 = vmatpush1.bf16.msra.mxu0 %v5541
  %5562 = vmatprep.subr.bf16.mxu0 0
  %5563 = vmatpush1.bf16.msra.mxu0 %v5542
  %5564 = vmatprep.subr.bf16.mxu0 0
  %5565 = vmatpush1.bf16.msra.mxu0 %v5543
  %5566 = vmatprep.subr.bf16.mxu0 0
  %5567 = vmatpush1.bf16.msra.mxu0 %v5544
  %5568 = vmatprep.subr.bf16.mxu0 0
  %5569 = vmatpush1.bf16.msra.mxu0 %v5545
  %5570 = vmatprep.subr.bf16.mxu0 0
  %5571 = vmatpush1.bf16.msra.mxu0 0
  %5572 = vmatprep.subr.bf16.mxu0 0
  %5573 = vmatpush1.bf16.msra.mxu0 0
  %5574 = vmatprep.subr.bf16.mxu0 0
  %5575 = vmatpush1.bf16.msra.mxu0 0
  %5576 = vmatprep.subr.bf16.mxu0 0
  %5577 = vmatpush1.bf16.msra.mxu0 0
  %5578 = vmatprep.subr.bf16.mxu0 0
  %5579 = vmatpush1.bf16.msra.mxu0 0
  %5580 = vmatprep.subr.bf16.mxu0 0
  %5581 = vmatpush1.bf16.msra.mxu0 0
  %5582 = vmatprep.subr.bf16.mxu0 0
  %5583 = vmatpush1.bf16.msra.mxu0 0
  %5584 = vmatprep.subr.bf16.mxu0 0
  %5585 = vmatpush1.bf16.msra.mxu0 0
  %5586 = vmatprep.mubr.bf16.mxu0 0
  %5587 = vmatmul.mubr.bf16.gmra.mrb[0].mxu0 %v3222
  %v5588 = vpop.f32.mrb[0].mxu0
  %v5589 = vadd.f32 0.0, %v5588
  %v5590 = vpop.f32.mrb[0].mxu0
  %v5591 = vpop.f32.mrb[0].mxu0
  %v5592 = vadd.f32 0.0, %v5591
  %v5593 = vpop.f32.mrb[0].mxu0
  %5594 = vdwg.mxu0
  %v5595 = vadd.f32 %v5487, %v5589
  %v5596 = vadd.f32 %v5488, %v5592
  %s5597 = scalar_lea.vmem %s3, 1408
  %v5598 = vld [vmem:[%s5597] sm:$0xf]
  %v5599 = vld [vmem:[%s5597 + $0x4] sm:$0xf]
  %v5600 = vld [vmem:[%s5597 + $0x8] sm:$0xf]
  %v5601 = vld [vmem:[%s5597 + $0xc] sm:$0xf]
  %v5602 = vld [vmem:[%s5597 + $0x10] sm:$0xf]
  %v5603 = vld [vmem:[%s5597 + $0x14] sm:$0xf]
  %v5604 = vld [vmem:[%s5597 + $0x18] sm:$0xf]
  %v5605 = vld [vmem:[%s5597 + $0x1c] sm:$0xf]
  %v5606 = vld [vmem:[%s5597 + $0x20] sm:$0xf]
  %v5607 = vld [vmem:[%s5597 + $0x24] sm:$0xf]
  %v5608 = vld [vmem:[%s5597 + $0x28] sm:$0xf]
  %v5609 = vld [vmem:[%s5597 + $0x2c] sm:$0xf]
  %v5610 = vld [vmem:[%s5597 + $0x30] sm:$0xf]
  %v5611 = vld [vmem:[%s5597 + $0x34] sm:$0xf]
  %v5612 = vld [vmem:[%s5597 + $0x38] sm:$0xf]
  %v5613 = vld [vmem:[%s5597 + $0x3c] sm:$0xf]
  %v5630 = vunpack.c.l.b16 %v5598
  %v5631 = vunpack.c.l.b16 %v5599
  %v5632 = vunpack.c.l.b16 %v5600
  %v5633 = vunpack.c.l.b16 %v5601
  %v5634 = vunpack.c.l.b16 %v5602
  %v5635 = vunpack.c.l.b16 %v5603
  %v5636 = vunpack.c.l.b16 %v5604
  %v5637 = vunpack.c.l.b16 %v5605
  %v5638 = vunpack.c.l.b16 %v5606
  %v5639 = vunpack.c.l.b16 %v5607
  %v5640 = vunpack.c.l.b16 %v5608
  %v5641 = vunpack.c.l.b16 %v5609
  %v5642 = vunpack.c.l.b16 %v5610
  %v5643 = vunpack.c.l.b16 %v5611
  %v5644 = vunpack.c.l.b16 %v5612
  %v5645 = vunpack.c.l.b16 %v5613
  %v5646 = vpack.c.b16 %v5631, %v5630
  %v5647 = vpack.c.b16 %v5633, %v5632
  %v5648 = vpack.c.b16 %v5635, %v5634
  %v5649 = vpack.c.b16 %v5637, %v5636
  %v5650 = vpack.c.b16 %v5639, %v5638
  %v5651 = vpack.c.b16 %v5641, %v5640
  %v5652 = vpack.c.b16 %v5643, %v5642
  %v5653 = vpack.c.b16 %v5645, %v5644
  %5662 = vmatprep.subr.bf16.mxu0 0
  %5663 = vmatpush1.bf16.msra.mxu0 %v5646
  %5664 = vmatprep.subr.bf16.mxu0 0
  %5665 = vmatpush1.bf16.msra.mxu0 %v5647
  %5666 = vmatprep.subr.bf16.mxu0 0
  %5667 = vmatpush1.bf16.msra.mxu0 %v5648
  %5668 = vmatprep.subr.bf16.mxu0 0
  %5669 = vmatpush1.bf16.msra.mxu0 %v5649
  %5670 = vmatprep.subr.bf16.mxu0 0
  %5671 = vmatpush1.bf16.msra.mxu0 %v5650
  %5672 = vmatprep.subr.bf16.mxu0 0
  %5673 = vmatpush1.bf16.msra.mxu0 %v5651
  %5674 = vmatprep.subr.bf16.mxu0 0
  %5675 = vmatpush1.bf16.msra.mxu0 %v5652
  %5676 = vmatprep.subr.bf16.mxu0 0
  %5677 = vmatpush1.bf16.msra.mxu0 %v5653
  %5678 = vmatprep.subr.bf16.mxu0 0
  %5679 = vmatpush1.bf16.msra.mxu0 0
  %5680 = vmatprep.subr.bf16.mxu0 0
  %5681 = vmatpush1.bf16.msra.mxu0 0
  %5682 = vmatprep.subr.bf16.mxu0 0
  %5683 = vmatpush1.bf16.msra.mxu0 0
  %5684 = vmatprep.subr.bf16.mxu0 0
  %5685 = vmatpush1.bf16.msra.mxu0 0
  %5686 = vmatprep.subr.bf16.mxu0 0
  %5687 = vmatpush1.bf16.msra.mxu0 0
  %5688 = vmatprep.subr.bf16.mxu0 0
  %5689 = vmatpush1.bf16.msra.mxu0 0
  %5690 = vmatprep.subr.bf16.mxu0 0
  %5691 = vmatpush1.bf16.msra.mxu0 0
  %5692 = vmatprep.subr.bf16.mxu0 0
  %5693 = vmatpush1.bf16.msra.mxu0 0
  %5694 = vmatprep.mubr.bf16.mxu0 0
  %5695 = vmatmul.mubr.bf16.gmra.mrb[0].mxu0 %v3223
  %v5696 = vpop.f32.mrb[0].mxu0
  %v5697 = vadd.f32 0.0, %v5696
  %v5698 = vpop.f32.mrb[0].mxu0
  %v5699 = vpop.f32.mrb[0].mxu0
  %v5700 = vadd.f32 0.0, %v5699
  %v5701 = vpop.f32.mrb[0].mxu0
  %5702 = vdwg.mxu0
  %v5703 = vadd.f32 %v5595, %v5697
  %v5704 = vadd.f32 %v5596, %v5700
  %s5705 = scalar_lea.vmem %s3, 1472
  %v5706 = vld [vmem:[%s5705] sm:$0xf]
  %v5707 = vld [vmem:[%s5705 + $0x4] sm:$0xf]
  %v5708 = vld [vmem:[%s5705 + $0x8] sm:$0xf]
  %v5709 = vld [vmem:[%s5705 + $0xc] sm:$0xf]
  %v5710 = vld [vmem:[%s5705 + $0x10] sm:$0xf]
  %v5711 = vld [vmem:[%s5705 + $0x14] sm:$0xf]
  %v5712 = vld [vmem:[%s5705 + $0x18] sm:$0xf]
  %v5713 = vld [vmem:[%s5705 + $0x1c] sm:$0xf]
  %v5714 = vld [vmem:[%s5705 + $0x20] sm:$0xf]
  %v5715 = vld [vmem:[%s5705 + $0x24] sm:$0xf]
  %v5716 = vld [vmem:[%s5705 + $0x28] sm:$0xf]
  %v5717 = vld [vmem:[%s5705 + $0x2c] sm:$0xf]
  %v5718 = vld [vmem:[%s5705 + $0x30] sm:$0xf]
  %v5719 = vld [vmem:[%s5705 + $0x34] sm:$0xf]
  %v5720 = vld [vmem:[%s5705 + $0x38] sm:$0xf]
  %v5721 = vld [vmem:[%s5705 + $0x3c] sm:$0xf]
  %v5738 = vunpack.c.l.b16 %v5706
  %v5739 = vunpack.c.l.b16 %v5707
  %v5740 = vunpack.c.l.b16 %v5708
  %v5741 = vunpack.c.l.b16 %v5709
  %v5742 = vunpack.c.l.b16 %v5710
  %v5743 = vunpack.c.l.b16 %v5711
  %v5744 = vunpack.c.l.b16 %v5712
  %v5745 = vunpack.c.l.b16 %v5713
  %v5746 = vunpack.c.l.b16 %v5714
  %v5747 = vunpack.c.l.b16 %v5715
  %v5748 = vunpack.c.l.b16 %v5716
  %v5749 = vunpack.c.l.b16 %v5717
  %v5750 = vunpack.c.l.b16 %v5718
  %v5751 = vunpack.c.l.b16 %v5719
  %v5752 = vunpack.c.l.b16 %v5720
  %v5753 = vunpack.c.l.b16 %v5721
  %v5754 = vpack.c.b16 %v5739, %v5738
  %v5755 = vpack.c.b16 %v5741, %v5740
  %v5756 = vpack.c.b16 %v5743, %v5742
  %v5757 = vpack.c.b16 %v5745, %v5744
  %v5758 = vpack.c.b16 %v5747, %v5746
  %v5759 = vpack.c.b16 %v5749, %v5748
  %v5760 = vpack.c.b16 %v5751, %v5750
  %v5761 = vpack.c.b16 %v5753, %v5752
  %5770 = vmatprep.subr.bf16.mxu0 0
  %5771 = vmatpush1.bf16.msra.mxu0 %v5754
  %5772 = vmatprep.subr.bf16.mxu0 0
  %5773 = vmatpush1.bf16.msra.mxu0 %v5755
  %5774 = vmatprep.subr.bf16.mxu0 0
  %5775 = vmatpush1.bf16.msra.mxu0 %v5756
  %5776 = vmatprep.subr.bf16.mxu0 0
  %5777 = vmatpush1.bf16.msra.mxu0 %v5757
  %5778 = vmatprep.subr.bf16.mxu0 0
  %5779 = vmatpush1.bf16.msra.mxu0 %v5758
  %5780 = vmatprep.subr.bf16.mxu0 0
  %5781 = vmatpush1.bf16.msra.mxu0 %v5759
  %5782 = vmatprep.subr.bf16.mxu0 0
  %5783 = vmatpush1.bf16.msra.mxu0 %v5760
  %5784 = vmatprep.subr.bf16.mxu0 0
  %5785 = vmatpush1.bf16.msra.mxu0 %v5761
  %5786 = vmatprep.subr.bf16.mxu0 0
  %5787 = vmatpush1.bf16.msra.mxu0 0
  %5788 = vmatprep.subr.bf16.mxu0 0
  %5789 = vmatpush1.bf16.msra.mxu0 0
  %5790 = vmatprep.subr.bf16.mxu0 0
  %5791 = vmatpush1.bf16.msra.mxu0 0
  %5792 = vmatprep.subr.bf16.mxu0 0
  %5793 = vmatpush1.bf16.msra.mxu0 0
  %5794 = vmatprep.subr.bf16.mxu0 0
  %5795 = vmatpush1.bf16.msra.mxu0 0
  %5796 = vmatprep.subr.bf16.mxu0 0
  %5797 = vmatpush1.bf16.msra.mxu0 0
  %5798 = vmatprep.subr.bf16.mxu0 0
  %5799 = vmatpush1.bf16.msra.mxu0 0
  %5800 = vmatprep.subr.bf16.mxu0 0
  %5801 = vmatpush1.bf16.msra.mxu0 0
  %5802 = vmatprep.mubr.bf16.mxu0 0
  %5803 = vmatmul.mubr.bf16.gmra.mrb[0].mxu0 %v3224
  %v5804 = vpop.f32.mrb[0].mxu0
  %v5805 = vadd.f32 0.0, %v5804
  %v5806 = vpop.f32.mrb[0].mxu0
  %v5807 = vpop.f32.mrb[0].mxu0
  %v5808 = vadd.f32 0.0, %v5807
  %v5809 = vpop.f32.mrb[0].mxu0
  %5810 = vdwg.mxu0
  %v5811 = vadd.f32 %v5703, %v5805
  %v5812 = vadd.f32 %v5704, %v5808
  %s5813 = scalar_lea.vmem %s3, 1536
  %v5814 = vld [vmem:[%s5813] sm:$0xf]
  %v5815 = vld [vmem:[%s5813 + $0x4] sm:$0xf]
  %v5816 = vld [vmem:[%s5813 + $0x8] sm:$0xf]
  %v5817 = vld [vmem:[%s5813 + $0xc] sm:$0xf]
  %v5818 = vld [vmem:[%s5813 + $0x10] sm:$0xf]
  %v5819 = vld [vmem:[%s5813 + $0x14] sm:$0xf]
  %v5820 = vld [vmem:[%s5813 + $0x18] sm:$0xf]
  %v5821 = vld [vmem:[%s5813 + $0x1c] sm:$0xf]
  %v5822 = vld [vmem:[%s5813 + $0x20] sm:$0xf]
  %v5823 = vld [vmem:[%s5813 + $0x24] sm:$0xf]
  %v5824 = vld [vmem:[%s5813 + $0x28] sm:$0xf]
  %v5825 = vld [vmem:[%s5813 + $0x2c] sm:$0xf]
  %v5826 = vld [vmem:[%s5813 + $0x30] sm:$0xf]
  %v5827 = vld [vmem:[%s5813 + $0x34] sm:$0xf]
  %v5828 = vld [vmem:[%s5813 + $0x38] sm:$0xf]
  %v5829 = vld [vmem:[%s5813 + $0x3c] sm:$0xf]
  %v5846 = vunpack.c.l.b16 %v5814
  %v5847 = vunpack.c.l.b16 %v5815
  %v5848 = vunpack.c.l.b16 %v5816
  %v5849 = vunpack.c.l.b16 %v5817
  %v5850 = vunpack.c.l.b16 %v5818
  %v5851 = vunpack.c.l.b16 %v5819
  %v5852 = vunpack.c.l.b16 %v5820
  %v5853 = vunpack.c.l.b16 %v5821
  %v5854 = vunpack.c.l.b16 %v5822
  %v5855 = vunpack.c.l.b16 %v5823
  %v5856 = vunpack.c.l.b16 %v5824
  %v5857 = vunpack.c.l.b16 %v5825
  %v5858 = vunpack.c.l.b16 %v5826
  %v5859 = vunpack.c.l.b16 %v5827
  %v5860 = vunpack.c.l.b16 %v5828
  %v5861 = vunpack.c.l.b16 %v5829
  %v5862 = vpack.c.b16 %v5847, %v5846
  %v5863 = vpack.c.b16 %v5849, %v5848
  %v5864 = vpack.c.b16 %v5851, %v5850
  %v5865 = vpack.c.b16 %v5853, %v5852
  %v5866 = vpack.c.b16 %v5855, %v5854
  %v5867 = vpack.c.b16 %v5857, %v5856
  %v5868 = vpack.c.b16 %v5859, %v5858
  %v5869 = vpack.c.b16 %v5861, %v5860
  %5878 = vmatprep.subr.bf16.mxu0 0
  %5879 = vmatpush1.bf16.msra.mxu0 %v5862
  %5880 = vmatprep.subr.bf16.mxu0 0
  %5881 = vmatpush1.bf16.msra.mxu0 %v5863
  %5882 = vmatprep.subr.bf16.mxu0 0
  %5883 = vmatpush1.bf16.msra.mxu0 %v5864
  %5884 = vmatprep.subr.bf16.mxu0 0
  %5885 = vmatpush1.bf16.msra.mxu0 %v5865
  %5886 = vmatprep.subr.bf16.mxu0 0
  %5887 = vmatpush1.bf16.msra.mxu0 %v5866
  %5888 = vmatprep.subr.bf16.mxu0 0
  %5889 = vmatpush1.bf16.msra.mxu0 %v5867
  %5890 = vmatprep.subr.bf16.mxu0 0
  %5891 = vmatpush1.bf16.msra.mxu0 %v5868
  %5892 = vmatprep.subr.bf16.mxu0 0
  %5893 = vmatpush1.bf16.msra.mxu0 %v5869
  %5894 = vmatprep.subr.bf16.mxu0 0
  %5895 = vmatpush1.bf16.msra.mxu0 0
  %5896 = vmatprep.subr.bf16.mxu0 0
  %5897 = vmatpush1.bf16.msra.mxu0 0
  %5898 = vmatprep.subr.bf16.mxu0 0
  %5899 = vmatpush1.bf16.msra.mxu0 0
  %5900 = vmatprep.subr.bf16.mxu0 0
  %5901 = vmatpush1.bf16.msra.mxu0 0
  %5902 = vmatprep.subr.bf16.mxu0 0
  %5903 = vmatpush1.bf16.msra.mxu0 0
  %5904 = vmatprep.subr.bf16.mxu0 0
  %5905 = vmatpush1.bf16.msra.mxu0 0
  %5906 = vmatprep.subr.bf16.mxu0 0
  %5907 = vmatpush1.bf16.msra.mxu0 0
  %5908 = vmatprep.subr.bf16.mxu0 0
  %5909 = vmatpush1.bf16.msra.mxu0 0
  %5910 = vmatprep.mubr.bf16.mxu0 0
  %5911 = vmatmul.mubr.bf16.gmra.mrb[0].mxu0 %v3225
  %v5912 = vpop.f32.mrb[0].mxu0
  %v5913 = vadd.f32 0.0, %v5912
  %v5914 = vpop.f32.mrb[0].mxu0
  %v5915 = vpop.f32.mrb[0].mxu0
  %v5916 = vadd.f32 0.0, %v5915
  %v5917 = vpop.f32.mrb[0].mxu0
  %5918 = vdwg.mxu0
  %v5919 = vadd.f32 %v5811, %v5913
  %v5920 = vadd.f32 %v5812, %v5916
  %v5921 = vld [vmem:[%s4] sm:$0x1]
  %v5923 = vlaneseq
  %v5924 = vshrl.u32 %v5923, 7
  %v5925 = vsub.s32 0, %v5924
  %v5926 = vrot.slane %v5921, %v5925
  %v5928 = vadd.f32 %v5919, %v5926
  %v5929 = vadd.f32 %v5920, %v5926
  %v5930 = vmul.f32 %v5928, 0.5
  %v5931 = vmul.f32 %v5929, 0.5
  %v5932 = vtanh.pop %v5930
  %v5933 = vtanh.pop %v5931
  %v5934 = vmul.f32 %v5932, 0.5
  %v5935 = vmul.f32 %v5933, 0.5
  %v5936 = vadd.f32 %v5934, 0.5
  %v5937 = vadd.f32 %v5935, 0.5
  %v5938 = vpack.c.bf16 %v5937, %v5936
  %v5939 = vld [vmem:[%s5] sm:$0xf]
  %v5940 = vld [vmem:[%s5 + $0x4] sm:$0xf]
  %v5941 = vld [vmem:[%s5 + $0x8] sm:$0xf]
  %v5942 = vld [vmem:[%s5 + $0xc] sm:$0xf]
  %v5943 = vld [vmem:[%s5 + $0x10] sm:$0xf]
  %v5944 = vld [vmem:[%s5 + $0x14] sm:$0xf]
  %v5945 = vld [vmem:[%s5 + $0x18] sm:$0xf]
  %v5946 = vld [vmem:[%s5 + $0x1c] sm:$0xf]
  %v5947 = vld [vmem:[%s5 + $0x20] sm:$0xf]
  %v5948 = vld [vmem:[%s5 + $0x24] sm:$0xf]
  %v5949 = vld [vmem:[%s5 + $0x28] sm:$0xf]
  %v5950 = vld [vmem:[%s5 + $0x2c] sm:$0xf]
  %v5951 = vld [vmem:[%s5 + $0x30] sm:$0xf]
  %v5952 = vld [vmem:[%s5 + $0x34] sm:$0xf]
  %v5953 = vld [vmem:[%s5 + $0x38] sm:$0xf]
  %v5954 = vld [vmem:[%s5 + $0x3c] sm:$0xf]
  %v5955 = vld [vmem:[%s6] sm:$0x1]
  %v5957 = vlaneseq
  %v5958 = vshrl.u32 %v5957, 7
  %v5959 = vsub.s32 0, %v5958
  %v5960 = vrot.slane %v5955, %v5959
  %v5978 = vunpack.c.l.b16 %v5939
  %v5979 = vunpack.c.l.b16 %v5940
  %v5980 = vunpack.c.l.b16 %v5941
  %v5981 = vunpack.c.l.b16 %v5942
  %v5982 = vunpack.c.l.b16 %v5943
  %v5983 = vunpack.c.l.b16 %v5944
  %v5984 = vunpack.c.l.b16 %v5945
  %v5985 = vunpack.c.l.b16 %v5946
  %v5986 = vunpack.c.l.b16 %v5947
  %v5987 = vunpack.c.l.b16 %v5948
  %v5988 = vunpack.c.l.b16 %v5949
  %v5989 = vunpack.c.l.b16 %v5950
  %v5990 = vunpack.c.l.b16 %v5951
  %v5991 = vunpack.c.l.b16 %v5952
  %v5992 = vunpack.c.l.b16 %v5953
  %v5993 = vunpack.c.l.b16 %v5954
  %v5994 = vpack.c.b16 %v5979, %v5978
  %v5995 = vpack.c.b16 %v5981, %v5980
  %v5996 = vpack.c.b16 %v5983, %v5982
  %v5997 = vpack.c.b16 %v5985, %v5984
  %v5998 = vpack.c.b16 %v5987, %v5986
  %v5999 = vpack.c.b16 %v5989, %v5988
  %v6000 = vpack.c.b16 %v5991, %v5990
  %v6001 = vpack.c.b16 %v5993, %v5992
  %6010 = vmatprep.subr.bf16.mxu0 0
  %6011 = vmatpush1.bf16.msra.mxu0 %v5994
  %6012 = vmatprep.subr.bf16.mxu0 0
  %6013 = vmatpush1.bf16.msra.mxu0 %v5995
  %6014 = vmatprep.subr.bf16.mxu0 0
  %6015 = vmatpush1.bf16.msra.mxu0 %v5996
  %6016 = vmatprep.subr.bf16.mxu0 0
  %6017 = vmatpush1.bf16.msra.mxu0 %v5997
  %6018 = vmatprep.subr.bf16.mxu0 0
  %6019 = vmatpush1.bf16.msra.mxu0 %v5998
  %6020 = vmatprep.subr.bf16.mxu0 0
  %6021 = vmatpush1.bf16.msra.mxu0 %v5999
  %6022 = vmatprep.subr.bf16.mxu0 0
  %6023 = vmatpush1.bf16.msra.mxu0 %v6000
  %6024 = vmatprep.subr.bf16.mxu0 0
  %6025 = vmatpush1.bf16.msra.mxu0 %v6001
  %6026 = vmatprep.subr.bf16.mxu0 0
  %6027 = vmatpush1.bf16.msra.mxu0 0
  %6028 = vmatprep.subr.bf16.mxu0 0
  %6029 = vmatpush1.bf16.msra.mxu0 0
  %6030 = vmatprep.subr.bf16.mxu0 0
  %6031 = vmatpush1.bf16.msra.mxu0 0
  %6032 = vmatprep.subr.bf16.mxu0 0
  %6033 = vmatpush1.bf16.msra.mxu0 0
  %6034 = vmatprep.subr.bf16.mxu0 0
  %6035 = vmatpush1.bf16.msra.mxu0 0
  %6036 = vmatprep.subr.bf16.mxu0 0
  %6037 = vmatpush1.bf16.msra.mxu0 0
  %6038 = vmatprep.subr.bf16.mxu0 0
  %6039 = vmatpush1.bf16.msra.mxu0 0
  %6040 = vmatprep.subr.bf16.mxu0 0
  %6041 = vmatpush1.bf16.msra.mxu0 0
  %6042 = vmatprep.mubr.bf16.mxu0 0
  %6043 = vmatmul.mubr.bf16.gmra.mrb[0].mxu0 %v5938
  %v6044 = vpop.f32.mrb[0].mxu0
  %v6045 = vadd.f32 %v5960, %v6044
  %v6046 = vpop.f32.mrb[0].mxu0
  %v6047 = vpop.f32.mrb[0].mxu0
  %v6048 = vadd.f32 %v5960, %v6047
  %v6049 = vpop.f32.mrb[0].mxu0
  %6050 = vdwg.mxu0
  %v6051 = vmul.f32 %v6045, 0.5
  %v6052 = vmul.f32 %v6048, 0.5
  %v6053 = vtanh.pop %v6051
  %v6054 = vtanh.pop %v6052
  %v6055 = vmul.f32 %v6053, 0.5
  %v6056 = vmul.f32 %v6054, 0.5
  %v6057 = vadd.f32 %v6055, 0.5
  %v6058 = vadd.f32 %v6056, 0.5
  %v6059 = vpack.c.bf16 %v6058, %v6057
  %v6060 = vld [vmem:[%s7] sm:$0xf]
  %v6061 = vld [vmem:[%s7 + $0x4] sm:$0xf]
  %v6062 = vld [vmem:[%s7 + $0x8] sm:$0xf]
  %v6063 = vld [vmem:[%s7 + $0xc] sm:$0xf]
  %v6064 = vld [vmem:[%s7 + $0x10] sm:$0xf]
  %v6065 = vld [vmem:[%s7 + $0x14] sm:$0xf]
  %v6066 = vld [vmem:[%s7 + $0x18] sm:$0xf]
  %v6067 = vld [vmem:[%s7 + $0x1c] sm:$0xf]
  %v6068 = vld [vmem:[%s7 + $0x20] sm:$0xf]
  %v6069 = vld [vmem:[%s7 + $0x24] sm:$0xf]
  %v6070 = vld [vmem:[%s7 + $0x28] sm:$0xf]
  %v6071 = vld [vmem:[%s7 + $0x2c] sm:$0xf]
  %v6072 = vld [vmem:[%s7 + $0x30] sm:$0xf]
  %v6073 = vld [vmem:[%s7 + $0x34] sm:$0xf]
  %v6074 = vld [vmem:[%s7 + $0x38] sm:$0xf]
  %v6075 = vld [vmem:[%s7 + $0x3c] sm:$0xf]
  %v6076 = vld [vmem:[%s8] sm:$0x1]
  %v6078 = vlaneseq
  %v6079 = vshrl.u32 %v6078, 7
  %v6080 = vsub.s32 0, %v6079
  %v6081 = vrot.slane %v6076, %v6080
  %v6099 = vunpack.c.l.b16 %v6060
  %v6100 = vunpack.c.l.b16 %v6061
  %v6101 = vunpack.c.l.b16 %v6062
  %v6102 = vunpack.c.l.b16 %v6063
  %v6103 = vunpack.c.l.b16 %v6064
  %v6104 = vunpack.c.l.b16 %v6065
  %v6105 = vunpack.c.l.b16 %v6066
  %v6106 = vunpack.c.l.b16 %v6067
  %v6107 = vunpack.c.l.b16 %v6068
  %v6108 = vunpack.c.l.b16 %v6069
  %v6109 = vunpack.c.l.b16 %v6070
  %v6110 = vunpack.c.l.b16 %v6071
  %v6111 = vunpack.c.l.b16 %v6072
  %v6112 = vunpack.c.l.b16 %v6073
  %v6113 = vunpack.c.l.b16 %v6074
  %v6114 = vunpack.c.l.b16 %v6075
  %v6115 = vpack.c.b16 %v6100, %v6099
  %v6116 = vpack.c.b16 %v6102, %v6101
  %v6117 = vpack.c.b16 %v6104, %v6103
  %v6118 = vpack.c.b16 %v6106, %v6105
  %v6119 = vpack.c.b16 %v6108, %v6107
  %v6120 = vpack.c.b16 %v6110, %v6109
  %v6121 = vpack.c.b16 %v6112, %v6111
  %v6122 = vpack.c.b16 %v6114, %v6113
  %6131 = vmatprep.subr.bf16.mxu0 0
  %6132 = vmatpush1.bf16.msra.mxu0 %v6115
  %6133 = vmatprep.subr.bf16.mxu0 0
  %6134 = vmatpush1.bf16.msra.mxu0 %v6116
  %6135 = vmatprep.subr.bf16.mxu0 0
  %6136 = vmatpush1.bf16.msra.mxu0 %v6117
  %6137 = vmatprep.subr.bf16.mxu0 0
  %6138 = vmatpush1.bf16.msra.mxu0 %v6118
  %6139 = vmatprep.subr.bf16.mxu0 0
  %6140 = vmatpush1.bf16.msra.mxu0 %v6119
  %6141 = vmatprep.subr.bf16.mxu0 0
  %6142 = vmatpush1.bf16.msra.mxu0 %v6120
  %6143 = vmatprep.subr.bf16.mxu0 0
  %6144 = vmatpush1.bf16.msra.mxu0 %v6121
  %6145 = vmatprep.subr.bf16.mxu0 0
  %6146 = vmatpush1.bf16.msra.mxu0 %v6122
  %6147 = vmatprep.subr.bf16.mxu0 0
  %6148 = vmatpush1.bf16.msra.mxu0 0
  %6149 = vmatprep.subr.bf16.mxu0 0
  %6150 = vmatpush1.bf16.msra.mxu0 0
  %6151 = vmatprep.subr.bf16.mxu0 0
  %6152 = vmatpush1.bf16.msra.mxu0 0
  %6153 = vmatprep.subr.bf16.mxu0 0
  %6154 = vmatpush1.bf16.msra.mxu0 0
  %6155 = vmatprep.subr.bf16.mxu0 0
  %6156 = vmatpush1.bf16.msra.mxu0 0
  %6157 = vmatprep.subr.bf16.mxu0 0
  %6158 = vmatpush1.bf16.msra.mxu0 0
  %6159 = vmatprep.subr.bf16.mxu0 0
  %6160 = vmatpush1.bf16.msra.mxu0 0
  %6161 = vmatprep.subr.bf16.mxu0 0
  %6162 = vmatpush1.bf16.msra.mxu0 0
  %6163 = vmatprep.mubr.bf16.mxu0 0
  %6164 = vmatmul.mubr.bf16.gmra.mrb[0].mxu0 %v6059
  %v6165 = vpop.f32.mrb[0].mxu0
  %v6166 = vadd.f32 %v6081, %v6165
  %v6167 = vpop.f32.mrb[0].mxu0
  %v6168 = vpop.f32.mrb[0].mxu0
  %v6169 = vadd.f32 %v6081, %v6168
  %v6170 = vpop.f32.mrb[0].mxu0
  %6171 = vdwg.mxu0
  %6172 = vst [vmem:[%s9] sm:$0xff] %v6166
  %6173 = vst [vmem:[%s9 + $0x8] sm:$0xff] %v6169
  // Predicated region
  $region38: #{lenet5_forward.3} parent=0 // pred_check
    _
  $region39: #{lenet5_forward.3} parent=0 // pred_check_branch
    %6175 = sbr.rel (0) target = $region41
  $region40: #{lenet5_forward.3} parent=0 // pred_region
    _
  $region41: #{lenet5_forward.3} parent=0 // pred_fallthru
    _
  // Predicated region
  $region42: #{lenet5_forward.3} parent=0 // pred_check
    _
  $region43: #{lenet5_forward.3} parent=0 // pred_check_branch
    %6177 = sbr.rel (0) target = $region45
  $region44: #{lenet5_forward.3} parent=0 // pred_region
    _
  $region45: #{lenet5_forward.3} parent=0 // pred_fallthru
    _

</llo_original>
